<compile_context>
chip_gen: v7x
topology: tpu7x:2x2x1
jax: 0.10.0
libtpu: 0.0.40
codegen_flags: <defaults>
</compile_context>

<pallas_src>
import math

import jax
import jax.numpy as jnp
from jax.experimental import pallas as pl
from jax.experimental.pallas import tpu as pltpu


def get_atom_fdim():
    # chemprop's real value is 133; kept small & lane-friendly for this synthetic
    # kernel.  For the real 133, pad the feature dim to a multiple of 128 up front.
    return 32


NUM_HEADS = 4
K_SEEDS = 4
NEG_INF = -1e30          # finite -> fully-masked softmax rows stay NaN-free
# Flip to jnp.bfloat16 on v6e/v7x to halve MXU cycles / operand traffic (accumulation
# stays f32, LayerNorm/softmax math stays f32).  Keep f32 on v5e (no bf16 VPU/EUP).
COMPUTE_DTYPE = jnp.float32


def _mm(a, b):
    """Plain 2-D matmul: operands in COMPUTE_DTYPE, accumulation in f32."""
    return jnp.dot(a.astype(COMPUTE_DTYPE), b.astype(COMPUTE_DTYPE),
                   preferred_element_type=jnp.float32)


def _qkt(a, b):
    """(Sq, dh) x (Skv, dh) -> (Sq, Skv): contract the last dims (no transpose copy)."""
    return jax.lax.dot_general(
        a.astype(COMPUTE_DTYPE), b.astype(COMPUTE_DTYPE),
        (((1,), (1,)), ((), ())), preferred_element_type=jnp.float32)


def _layer_norm(x, gamma, beta, eps=1e-5):
    # torch.nn.LayerNorm over the last dim, biased variance, eps=1e-5
    mu = jnp.mean(x, axis=-1, keepdims=True)
    var = jnp.mean((x - mu) ** 2, axis=-1, keepdims=True)
    return (x - mu) * jax.lax.rsqrt(var + eps) * gamma + beta


def _mab(xq, xkv, mask, prefs):
    """DGL MultiHeadAttention block: LN_inter(h + FFN(h)), h = LN_in(xq + attn).

    xq: (Sq, D), xkv: (Skv, D), mask: (Sq, Skv) bool (True = may attend).
    Q/K/V are single lane-dense (S,D)@(D,H*dh) matmuls; heads are 32-lane slices; the
    head combine is a lane concat + one 128-deep matmul with W_o (MXU-accumulated).
    """
    (wq, wk, wv, wo, w1, b1, w2, b2, g_in, b_in, g_it, b_it) = prefs
    hd = wq.shape[1]
    dh = hd // NUM_HEADS
    scale = 1.0 / math.sqrt(dh)

    q = _mm(xq, wq[...])       # (Sq,  H*dh)  full-width MXU pushes
    k = _mm(xkv, wk[...])      # (Skv, H*dh)
    v = _mm(xkv, wv[...])      # (Skv, H*dh)

    outs = []
    for h in range(NUM_HEADS):
        sl = slice(h * dh, (h + 1) * dh)
        e = _qkt(q[:, sl], k[:, sl]) * scale             # (Sq, Skv)
        e = jnp.where(mask, e, NEG_INF)
        m = jnp.max(e, axis=-1, keepdims=True)
        p = jnp.exp(e - m)                               # masked cols underflow to 0
        l = jnp.sum(p, axis=-1, keepdims=True)           # >= 1 on valid rows -> no NaN
        # EUP approx reciprocal (~1e-3 rel err); use p / l instead for exact parity.
        alpha = p * pl.reciprocal(l, approx=True)
        outs.append(_mm(alpha, v[:, sl]))                # (Sq, dh)
    o = jnp.concatenate(outs, axis=-1)                   # (Sq, H*dh) == torch cat(heads)
    attn = _mm(o, wo[...])                               # (Sq, D): one 128-deep contraction

    h1 = _layer_norm(xq + attn, g_in[...], b_in[...])
    f = jnp.maximum(_mm(h1, w1[...]) + b1[...], 0.0)
    f = _mm(f, w2[...]) + b2[...]
    return _layer_norm(h1 + f, g_it[...], b_it[...])


def fused_kernel(lens_ref, x_ref, seeds_ref, *rest):
    """Whole SetTransformer forward for one chunk of G graphs, fully VMEM-resident."""
    o_ref = rest[-1]
    w = rest[:-1]
    enc_p, pffn_p, pma_p, dec_p = w[0:12], w[12:16], w[16:28], w[28:40]
    wl_r, bl_r, wp1_r, bp1_r, wp2_r, bp2_r = w[40:46]

    c = pl.program_id(0)
    x = x_ref[0]                        # (GN, D) packed nodes, graph-major rows
    seeds = seeds_ref[...]              # (GK, D), row k*G+g = seed k of graph g
    GN = x.shape[0]
    GK = seeds.shape[0]
    G = o_ref.shape[1]
    N = GN // G

    # ---- attention masks, built in-kernel from the SMEM lengths (no O(GN^2) DMA) ----
    col = jax.lax.broadcasted_iota(jnp.int32, (1, GN), 1)
    row = jax.lax.broadcasted_iota(jnp.int32, (GN, 1), 0)
    col_g = jnp.zeros((1, GN), jnp.int32)      # graph id of each packed node (key axis)
    row_g = jnp.zeros((GN, 1), jnp.int32)      # graph id of each packed node (query axis)
    key_ok = col < 0                           # all-False bool, filled below
    for g in range(G):                         # unrolled: ~10 tiny VPU ops per graph
        lo = g * N
        in_c = (col >= lo) & (col < lo + N)
        col_g = jnp.where(in_c, g, col_g)
        row_g = jnp.where((row >= lo) & (row < lo + N), g, row_g)
        key_ok = key_ok | (in_c & (col < lo + lens_ref[c, g]))
    srow = jax.lax.broadcasted_iota(jnp.int32, (GK, 1), 0)
    scol = jax.lax.broadcasted_iota(jnp.int32, (1, GK), 1)
    srow_g, scol_g = srow, scol                # seed row k*G+g -> graph g (== row mod G)
    for kk in range(1, K_SEEDS):
        srow_g = srow_g - jnp.where(srow >= kk * G, G, 0)
        scol_g = scol_g - jnp.where(scol >= kk * G, G, 0)
    mask_enc = (row_g == col_g) & key_ok       # (GN, GN) nodes<->nodes: same graph & valid
    mask_pma = (srow_g == col_g) & key_ok      # (GK, GN) seeds -> nodes
    mask_dec = srow_g == scol_g                # (GK, GK) seeds<->seeds: same graph

    # ---- Encoder: one SAB over the whole packed chunk ----
    enc = _mab(x, x, mask_enc, enc_p)

    # ---- Decoder PMA: learned seeds attend over ffn(encoder output) ----
    pw1, pb1, pw2, pb2 = pffn_p
    mem = jnp.maximum(_mm(enc, pw1[...]) + pb1[...], 0.0)
    mem = _mm(mem, pw2[...]) + pb2[...]
    pma = _mab(seeds, mem, mask_pma, pma_p)

    # ---- Decoder SAB over each graph's K seeds (block-diagonal across graphs) ----
    dec = _mab(pma, pma, mask_dec, dec_p)

    # ---- Head: per-graph flatten of the K seeds (seed-major along features) == lane
    #      concat of K contiguous row blocks, then ONE 128-deep matmul with the original
    #      (K*D, hidden) weight; then the 2-layer MLP.  Final store is lane-dense
    #      (out_pad >= 128); the wrapper slices [:, :hidden].
    flat = jnp.concatenate([dec[kk * G:(kk + 1) * G] for kk in range(K_SEEDS)], axis=-1)
    h = _mm(flat, wl_r[...]) + bl_r[...]
    h = jnp.maximum(_mm(h, wp1_r[...]) + bp1_r[...], 0.0)
    o_ref[0] = _mm(h, wp2_r[...]) + bp2_r[...]


# ---------------------------------------------------------------------------
# Parameter flattening (weights are used in their natural torch/DGL layouts)
# ---------------------------------------------------------------------------
def _mab_flat(p):
    return [p["wq"], p["wk"], p["wv"], p["wo"], p["w1"], p["b1"], p["w2"], p["b2"],
            p["g_in"], p["be_in"], p["g_it"], p["be_it"]]


def _flatten_params(params, out_pad):
    head = params["head"]
    hidden = head["wp1"].shape[0]
    wp2p = jnp.pad(head["wp2"], ((0, 0), (0, out_pad - hidden)))   # lane-dense final store
    bp2p = jnp.pad(head["bp2"], ((0, 0), (0, out_pad - hidden)))
    pffn = params["pma_ffn"]
    return (_mab_flat(params["enc_sab"])
            + [pffn["w1"], pffn["b1"], pffn["w2"], pffn["b2"]]
            + _mab_flat(params["pma_mab"])
            + _mab_flat(params["dec_sab"])
            + [head["wl"], head["bl"], head["wp1"], head["bp1"], wp2p, bp2p])


# ---------------------------------------------------------------------------
# Full SetTransformer forward (padded per-graph layout + lengths)
# ---------------------------------------------------------------------------
def set_transformer_forward(nodes_feature, lengths, params, graphs_per_chunk=None):
    """nodes_feature: (B, N_max, D) f32, lengths: (B,) int32 = graph.batch_num_nodes().
    Returns (B, hidden_dim)."""
    B, N, D = nodes_feature.shape
    hidden = params["head"]["wp1"].shape[0]
    out_pad = -(-hidden // 128) * 128                    # lane-dense store width

    # Graphs per grid step: target ~256 packed rows per chunk (fills MXU sublanes and
    # amortizes the ~0.35us/grid-step overhead); no artificial >=2-chunk split.  On v7x
    # pass graphs_per_chunk=ceil(B/2) explicitly to keep both TensorCores busy on small
    # batches (the single grid axis is marked "parallel").
    if graphs_per_chunk is None:
        rows_target = 256
        G = min(B, max(1, -(-rows_target // max(N, 1))))
    else:
        G = max(1, min(B, graphs_per_chunk))
    C = -(-B // G)                                       # number of chunks (grid size)
    Bp = C * G
    GN, GK = G * N, G * K_SEEDS

    xp = jnp.pad(nodes_feature.astype(jnp.float32), ((0, Bp - B), (0, 0), (0, 0)))
    x_packed = xp.reshape(C, GN, D)
    lens2d = jnp.pad(lengths.astype(jnp.int32), (0, Bp - B)).reshape(C, G)
    # Learned PMA seeds tiled per graph of a chunk: (K*G, D), row k*G+g = seed k.
    seeds_q = jnp.repeat(params["pma_seeds"].astype(jnp.float32), G, axis=0)

    flat_w = _flatten_params(params, out_pad)

    def const_spec(a):     # full-array block, constant index -> stays VMEM-resident
        nd = a.ndim
        return pl.BlockSpec(a.shape, lambda c, lens, _nd=nd: (0,) * _nd)

    in_specs = ([pl.BlockSpec((1, GN, D), lambda c, lens: (c, 0, 0)),   # packed nodes
                 const_spec(seeds_q)]
                + [const_spec(a) for a in flat_w])

    # Advisory cost estimate so XLA schedules the surrounding pad/reshape ops sensibly.
    hd = NUM_HEADS * hidden

    def _mab_cost(sq, skv):
        fl = 2 * (sq + 2 * skv) * D * hd + 4 * NUM_HEADS * sq * skv * hidden
        fl += 2 * sq * hd * D + 4 * sq * D * hidden
        return fl, NUM_HEADS * sq * (skv + 1) + 4 * sq

    f1, t1 = _mab_cost(GN, GN)
    f2, t2 = _mab_cost(GK, GN)
    f3, t3 = _mab_cost(GK, GK)
    flops = C * (f1 + f2 + f3 + 4 * GN * D * hidden
                 + 2 * G * (K_SEEDS * D + 2 * hidden) * hidden)
    transc = C * (t1 + t2 + t3)
    bytes_acc = (x_packed.size + C * G * out_pad + lens2d.size + seeds_q.size
                 + sum(int(a.size) for a in flat_w)) * 4

    out = pl.pallas_call(
        fused_kernel,
        out_shape=jax.ShapeDtypeStruct((C, G, out_pad), jnp.float32),
        grid_spec=pltpu.PrefetchScalarGridSpec(
            num_scalar_prefetch=1,                       # lengths -> SMEM
            grid=(C,),
            in_specs=in_specs,
            out_specs=pl.BlockSpec((1, G, out_pad), lambda c, lens: (c, 0, 0)),
        ),
        compiler_params=pltpu.CompilerParams(
            dimension_semantics=("parallel",),
            vmem_limit_bytes=48 * 1024 * 1024,           # legal on v5e/v6e and v7x (64 MiB)
        ),
        cost_estimate=pl.CostEstimate(flops=int(flops), transcendentals=int(transc),
                                      bytes_accessed=int(bytes_acc)),
    )(lens2d, x_packed, seeds_q, *flat_w)

    return out.reshape(Bp, out_pad)[:B, :hidden]


# ---------------------------------------------------------------------------
# Deterministic parameter init (synthetic; matches module shapes, not a checkpoint)
# ---------------------------------------------------------------------------
def _linear_w(key, din, dout):
    return jax.random.normal(key, (din, dout), jnp.float32) / math.sqrt(din)


def _linear_b(key, dout):
    return jax.random.normal(key, (1, dout), jnp.float32) * 0.01


def init_mab_params(key, d_model, nheads, d_head, d_ff):
    ks = jax.random.split(key, 8)
    hd = nheads * d_head
    return dict(
        wq=_linear_w(ks[0], d_model, hd), wk=_linear_w(ks[1], d_model, hd),
        wv=_linear_w(ks[2], d_model, hd), wo=_linear_w(ks[3], hd, d_model),
        w1=_linear_w(ks[4], d_model, d_ff), b1=_linear_b(ks[5], d_ff),
        w2=_linear_w(ks[6], d_ff, d_model), b2=_linear_b(ks[7], d_model),
        g_in=jnp.ones((1, d_model), jnp.float32), be_in=jnp.zeros((1, d_model), jnp.float32),
        g_it=jnp.ones((1, d_model), jnp.float32), be_it=jnp.zeros((1, d_model), jnp.float32),
    )


def init_params(key, hidden_dim):
    d_model = get_atom_fdim()
    ks = jax.random.split(key, 12)
    return dict(
        enc_sab=init_mab_params(ks[0], d_model, NUM_HEADS, hidden_dim, hidden_dim),
        pma_seeds=jax.random.normal(ks[1], (K_SEEDS, d_model), jnp.float32) * 0.1,
        pma_ffn=dict(w1=_linear_w(ks[2], d_model, hidden_dim), b1=_linear_b(ks[3], hidden_dim),
                     w2=_linear_w(ks[4], hidden_dim, d_model), b2=_linear_b(ks[5], d_model)),
        pma_mab=init_mab_params(ks[6], d_model, NUM_HEADS, hidden_dim, hidden_dim),
        dec_sab=init_mab_params(ks[7], d_model, NUM_HEADS, hidden_dim, hidden_dim),
        head=dict(wl=_linear_w(ks[8], d_model * K_SEEDS, hidden_dim),
                  bl=_linear_b(ks[9], hidden_dim),
                  wp1=_linear_w(ks[10], hidden_dim, hidden_dim),
                  bp1=jnp.zeros((1, hidden_dim), jnp.float32),
                  wp2=_linear_w(ks[11], hidden_dim, hidden_dim),
                  bp2=jnp.zeros((1, hidden_dim), jnp.float32)),
    )


if __name__ == "__main__":
    hidden_dim = 32
    B, N_max = 4, 8
    d_model = get_atom_fdim()

    key = jax.random.PRNGKey(0)
    k_params, k_nodes, k_edges = jax.random.split(key, 3)

    params = init_params(k_params, hidden_dim)
    nodes_feature = jax.random.normal(k_nodes, (B, N_max, d_model), jnp.float32)
    lengths = jnp.array([8, 6, 5, 7], dtype=jnp.int32)         # graph.batch_num_nodes()
    # edges_feature is accepted by the reference forward but never used.
    edges_feature = jax.random.normal(k_edges, (B, 12, 8), jnp.float32)  # unused

    fwd = jax.jit(set_transformer_forward)
    out = jax.block_until_ready(fwd(nodes_feature, lengths, params))
    assert out.shape == (B, hidden_dim)
    assert bool(jnp.isfinite(out).all())
    print("KERNEL_OK")
</pallas_src>

<mosaic_0001>
module attributes {stable_mosaic.version = 11 : i64} {
  func.func @fused_kernel(%arg0: i32, %arg1: memref<1x4xi32, #tpu.memory_space<smem>>, %arg2: memref<1x32x32xf32, #tpu.memory_space<vmem>>, %arg3: memref<16x32xf32, #tpu.memory_space<vmem>>, %arg4: memref<32x128xf32, #tpu.memory_space<vmem>>, %arg5: memref<32x128xf32, #tpu.memory_space<vmem>>, %arg6: memref<32x128xf32, #tpu.memory_space<vmem>>, %arg7: memref<128x32xf32, #tpu.memory_space<vmem>>, %arg8: memref<32x32xf32, #tpu.memory_space<vmem>>, %arg9: memref<1x32xf32, #tpu.memory_space<vmem>>, %arg10: memref<32x32xf32, #tpu.memory_space<vmem>>, %arg11: memref<1x32xf32, #tpu.memory_space<vmem>>, %arg12: memref<1x32xf32, #tpu.memory_space<vmem>>, %arg13: memref<1x32xf32, #tpu.memory_space<vmem>>, %arg14: memref<1x32xf32, #tpu.memory_space<vmem>>, %arg15: memref<1x32xf32, #tpu.memory_space<vmem>>, %arg16: memref<32x32xf32, #tpu.memory_space<vmem>>, %arg17: memref<1x32xf32, #tpu.memory_space<vmem>>, %arg18: memref<32x32xf32, #tpu.memory_space<vmem>>, %arg19: memref<1x32xf32, #tpu.memory_space<vmem>>, %arg20: memref<32x128xf32, #tpu.memory_space<vmem>>, %arg21: memref<32x128xf32, #tpu.memory_space<vmem>>, %arg22: memref<32x128xf32, #tpu.memory_space<vmem>>, %arg23: memref<128x32xf32, #tpu.memory_space<vmem>>, %arg24: memref<32x32xf32, #tpu.memory_space<vmem>>, %arg25: memref<1x32xf32, #tpu.memory_space<vmem>>, %arg26: memref<32x32xf32, #tpu.memory_space<vmem>>, %arg27: memref<1x32xf32, #tpu.memory_space<vmem>>, %arg28: memref<1x32xf32, #tpu.memory_space<vmem>>, %arg29: memref<1x32xf32, #tpu.memory_space<vmem>>, %arg30: memref<1x32xf32, #tpu.memory_space<vmem>>, %arg31: memref<1x32xf32, #tpu.memory_space<vmem>>, %arg32: memref<32x128xf32, #tpu.memory_space<vmem>>, %arg33: memref<32x128xf32, #tpu.memory_space<vmem>>, %arg34: memref<32x128xf32, #tpu.memory_space<vmem>>, %arg35: memref<128x32xf32, #tpu.memory_space<vmem>>, %arg36: memref<32x32xf32, #tpu.memory_space<vmem>>, %arg37: memref<1x32xf32, #tpu.memory_space<vmem>>, %arg38: memref<32x32xf32, #tpu.memory_space<vmem>>, %arg39: memref<1x32xf32, #tpu.memory_space<vmem>>, %arg40: memref<1x32xf32, #tpu.memory_space<vmem>>, %arg41: memref<1x32xf32, #tpu.memory_space<vmem>>, %arg42: memref<1x32xf32, #tpu.memory_space<vmem>>, %arg43: memref<1x32xf32, #tpu.memory_space<vmem>>, %arg44: memref<128x32xf32, #tpu.memory_space<vmem>>, %arg45: memref<1x32xf32, #tpu.memory_space<vmem>>, %arg46: memref<32x32xf32, #tpu.memory_space<vmem>>, %arg47: memref<1x32xf32, #tpu.memory_space<vmem>>, %arg48: memref<32x128xf32, #tpu.memory_space<vmem>>, %arg49: memref<1x128xf32, #tpu.memory_space<vmem>>, %arg50: memref<1x4x128xf32, #tpu.memory_space<vmem>>) attributes {dimension_semantics = [#tpu.dimension_semantics<parallel>], iteration_bounds = array<i64: 1>, scalar_prefetch = 1 : i64, scratch_operands = 0 : i64, tpu.core_type = #tpu.core_type<tc>, window_params = [{transform_indices = @transform_0, window_bounds = array<i64: 1, 32, 32>}, {pipeline_mode = #tpu.pipeline_mode<synchronous>, transform_indices = @transform_1, window_bounds = array<i64: 16, 32>}, {pipeline_mode = #tpu.pipeline_mode<synchronous>, transform_indices = @transform_2, window_bounds = array<i64: 32, 128>}, {pipeline_mode = #tpu.pipeline_mode<synchronous>, transform_indices = @transform_3, window_bounds = array<i64: 32, 128>}, {pipeline_mode = #tpu.pipeline_mode<synchronous>, transform_indices = @transform_4, window_bounds = array<i64: 32, 128>}, {pipeline_mode = #tpu.pipeline_mode<synchronous>, transform_indices = @transform_5, window_bounds = array<i64: 128, 32>}, {pipeline_mode = #tpu.pipeline_mode<synchronous>, transform_indices = @transform_6, window_bounds = array<i64: 32, 32>}, {pipeline_mode = #tpu.pipeline_mode<synchronous>, transform_indices = @transform_7, window_bounds = array<i64: 1, 32>}, {pipeline_mode = #tpu.pipeline_mode<synchronous>, transform_indices = @transform_8, window_bounds = array<i64: 32, 32>}, {pipeline_mode = #tpu.pipeline_mode<synchronous>, transform_indices = @transform_9, window_bounds = array<i64: 1, 32>}, {pipeline_mode = #tpu.pipeline_mode<synchronous>, transform_indices = @transform_10, window_bounds = array<i64: 1, 32>}, {pipeline_mode = #tpu.pipeline_mode<synchronous>, transform_indices = @transform_11, window_bounds = array<i64: 1, 32>}, {pipeline_mode = #tpu.pipeline_mode<synchronous>, transform_indices = @transform_12, window_bounds = array<i64: 1, 32>}, {pipeline_mode = #tpu.pipeline_mode<synchronous>, transform_indices = @transform_13, window_bounds = array<i64: 1, 32>}, {pipeline_mode = #tpu.pipeline_mode<synchronous>, transform_indices = @transform_14, window_bounds = array<i64: 32, 32>}, {pipeline_mode = #tpu.pipeline_mode<synchronous>, transform_indices = @transform_15, window_bounds = array<i64: 1, 32>}, {pipeline_mode = #tpu.pipeline_mode<synchronous>, transform_indices = @transform_16, window_bounds = array<i64: 32, 32>}, {pipeline_mode = #tpu.pipeline_mode<synchronous>, transform_indices = @transform_17, window_bounds = array<i64: 1, 32>}, {pipeline_mode = #tpu.pipeline_mode<synchronous>, transform_indices = @transform_18, window_bounds = array<i64: 32, 128>}, {pipeline_mode = #tpu.pipeline_mode<synchronous>, transform_indices = @transform_19, window_bounds = array<i64: 32, 128>}, {pipeline_mode = #tpu.pipeline_mode<synchronous>, transform_indices = @transform_20, window_bounds = array<i64: 32, 128>}, {pipeline_mode = #tpu.pipeline_mode<synchronous>, transform_indices = @transform_21, window_bounds = array<i64: 128, 32>}, {pipeline_mode = #tpu.pipeline_mode<synchronous>, transform_indices = @transform_22, window_bounds = array<i64: 32, 32>}, {pipeline_mode = #tpu.pipeline_mode<synchronous>, transform_indices = @transform_23, window_bounds = array<i64: 1, 32>}, {pipeline_mode = #tpu.pipeline_mode<synchronous>, transform_indices = @transform_24, window_bounds = array<i64: 32, 32>}, {pipeline_mode = #tpu.pipeline_mode<synchronous>, transform_indices = @transform_25, window_bounds = array<i64: 1, 32>}, {pipeline_mode = #tpu.pipeline_mode<synchronous>, transform_indices = @transform_26, window_bounds = array<i64: 1, 32>}, {pipeline_mode = #tpu.pipeline_mode<synchronous>, transform_indices = @transform_27, window_bounds = array<i64: 1, 32>}, {pipeline_mode = #tpu.pipeline_mode<synchronous>, transform_indices = @transform_28, window_bounds = array<i64: 1, 32>}, {pipeline_mode = #tpu.pipeline_mode<synchronous>, transform_indices = @transform_29, window_bounds = array<i64: 1, 32>}, {pipeline_mode = #tpu.pipeline_mode<synchronous>, transform_indices = @transform_30, window_bounds = array<i64: 32, 128>}, {pipeline_mode = #tpu.pipeline_mode<synchronous>, transform_indices = @transform_31, window_bounds = array<i64: 32, 128>}, {pipeline_mode = #tpu.pipeline_mode<synchronous>, transform_indices = @transform_32, window_bounds = array<i64: 32, 128>}, {pipeline_mode = #tpu.pipeline_mode<synchronous>, transform_indices = @transform_33, window_bounds = array<i64: 128, 32>}, {pipeline_mode = #tpu.pipeline_mode<synchronous>, transform_indices = @transform_34, window_bounds = array<i64: 32, 32>}, {pipeline_mode = #tpu.pipeline_mode<synchronous>, transform_indices = @transform_35, window_bounds = array<i64: 1, 32>}, {pipeline_mode = #tpu.pipeline_mode<synchronous>, transform_indices = @transform_36, window_bounds = array<i64: 32, 32>}, {pipeline_mode = #tpu.pipeline_mode<synchronous>, transform_indices = @transform_37, window_bounds = array<i64: 1, 32>}, {pipeline_mode = #tpu.pipeline_mode<synchronous>, transform_indices = @transform_38, window_bounds = array<i64: 1, 32>}, {pipeline_mode = #tpu.pipeline_mode<synchronous>, transform_indices = @transform_39, window_bounds = array<i64: 1, 32>}, {pipeline_mode = #tpu.pipeline_mode<synchronous>, transform_indices = @transform_40, window_bounds = array<i64: 1, 32>}, {pipeline_mode = #tpu.pipeline_mode<synchronous>, transform_indices = @transform_41, window_bounds = array<i64: 1, 32>}, {pipeline_mode = #tpu.pipeline_mode<synchronous>, transform_indices = @transform_42, window_bounds = array<i64: 128, 32>}, {pipeline_mode = #tpu.pipeline_mode<synchronous>, transform_indices = @transform_43, window_bounds = array<i64: 1, 32>}, {pipeline_mode = #tpu.pipeline_mode<synchronous>, transform_indices = @transform_44, window_bounds = array<i64: 32, 32>}, {pipeline_mode = #tpu.pipeline_mode<synchronous>, transform_indices = @transform_45, window_bounds = array<i64: 1, 32>}, {pipeline_mode = #tpu.pipeline_mode<synchronous>, transform_indices = @transform_46, window_bounds = array<i64: 32, 128>}, {pipeline_mode = #tpu.pipeline_mode<synchronous>, transform_indices = @transform_47, window_bounds = array<i64: 1, 128>}, {transform_indices = @transform_48, window_bounds = array<i64: 1, 4, 128>}]} {
    %c0 = arith.constant 0 : index
    %c0_0 = arith.constant 0 : index
    %c0_1 = arith.constant 0 : index
    %0 = vector.load %arg2[%c0, %c0_0, %c0_1] : memref<1x32x32xf32, #tpu.memory_space<vmem>>, vector<1x32x32xf32>
    %1 = vector.shape_cast %0 : vector<1x32x32xf32> to vector<32x32xf32>
    %c0_2 = arith.constant 0 : index
    %c0_3 = arith.constant 0 : index
    %2 = vector.load %arg3[%c0_2, %c0_3] : memref<16x32xf32, #tpu.memory_space<vmem>>, vector<16x32xf32>
    %3 = tpu.iota {dimensions = array<i32: 1>} : vector<1x32xi32>
    %4 = tpu.iota {dimensions = array<i32: 0>} : vector<32x1xi32>
    %c0_i32 = arith.constant 0 : i32
    %5 = vector.broadcast %c0_i32 : i32 to vector<1x32xi32>
    %c0_i32_4 = arith.constant 0 : i32
    %6 = vector.broadcast %c0_i32_4 : i32 to vector<32x1xi32>
    %c0_i32_5 = arith.constant 0 : i32
    %7 = vector.broadcast %c0_i32_5 : i32 to vector<1x32xi32>
    %8 = arith.cmpi slt, %3, %7 : vector<1x32xi32>
    %c0_i32_6 = arith.constant 0 : i32
    %9 = vector.broadcast %c0_i32_6 : i32 to vector<1x32xi32>
    %10 = arith.cmpi sge, %3, %9 : vector<1x32xi32>
    %c8_i32 = arith.constant 8 : i32
    %11 = vector.broadcast %c8_i32 : i32 to vector<1x32xi32>
    %12 = arith.cmpi slt, %3, %11 : vector<1x32xi32>
    %13 = arith.andi %10, %12 : vector<1x32xi1>
    %c0_i32_7 = arith.constant 0 : i32
    %14 = vector.broadcast %c0_i32_7 : i32 to vector<1x32xi32>
    %15 = arith.select %13, %14, %5 : vector<1x32xi1>, vector<1x32xi32>
    %c0_i32_8 = arith.constant 0 : i32
    %16 = vector.broadcast %c0_i32_8 : i32 to vector<32x1xi32>
    %17 = arith.cmpi sge, %4, %16 : vector<32x1xi32>
    %c8_i32_9 = arith.constant 8 : i32
    %18 = vector.broadcast %c8_i32_9 : i32 to vector<32x1xi32>
    %19 = arith.cmpi slt, %4, %18 : vector<32x1xi32>
    %20 = arith.andi %17, %19 : vector<32x1xi1>
    %c0_i32_10 = arith.constant 0 : i32
    %21 = vector.broadcast %c0_i32_10 : i32 to vector<32x1xi32>
    %22 = arith.select %20, %21, %6 : vector<32x1xi1>, vector<32x1xi32>
    %23 = arith.index_cast %arg0 : i32 to index
    %c0_11 = arith.constant 0 : index
    %24 = memref.load %arg1[%23, %c0_11] : memref<1x4xi32, #tpu.memory_space<smem>>
    %c0_i32_12 = arith.constant 0 : i32
    %25 = arith.addi %c0_i32_12, %24 : i32
    %26 = vector.broadcast %25 : i32 to vector<1x32xi32>
    %27 = arith.cmpi slt, %3, %26 : vector<1x32xi32>
    %28 = arith.andi %13, %27 : vector<1x32xi1>
    %29 = arith.ori %8, %28 : vector<1x32xi1>
    %c8_i32_13 = arith.constant 8 : i32
    %30 = vector.broadcast %c8_i32_13 : i32 to vector<1x32xi32>
    %31 = arith.cmpi sge, %3, %30 : vector<1x32xi32>
    %c16_i32 = arith.constant 16 : i32
    %32 = vector.broadcast %c16_i32 : i32 to vector<1x32xi32>
    %33 = arith.cmpi slt, %3, %32 : vector<1x32xi32>
    %34 = arith.andi %31, %33 : vector<1x32xi1>
    %c1_i32 = arith.constant 1 : i32
    %35 = vector.broadcast %c1_i32 : i32 to vector<1x32xi32>
    %36 = arith.select %34, %35, %15 : vector<1x32xi1>, vector<1x32xi32>
    %c8_i32_14 = arith.constant 8 : i32
    %37 = vector.broadcast %c8_i32_14 : i32 to vector<32x1xi32>
    %38 = arith.cmpi sge, %4, %37 : vector<32x1xi32>
    %c16_i32_15 = arith.constant 16 : i32
    %39 = vector.broadcast %c16_i32_15 : i32 to vector<32x1xi32>
    %40 = arith.cmpi slt, %4, %39 : vector<32x1xi32>
    %41 = arith.andi %38, %40 : vector<32x1xi1>
    %c1_i32_16 = arith.constant 1 : i32
    %42 = vector.broadcast %c1_i32_16 : i32 to vector<32x1xi32>
    %43 = arith.select %41, %42, %22 : vector<32x1xi1>, vector<32x1xi32>
    %44 = arith.index_cast %arg0 : i32 to index
    %c1 = arith.constant 1 : index
    %45 = memref.load %arg1[%44, %c1] : memref<1x4xi32, #tpu.memory_space<smem>>
    %c8_i32_17 = arith.constant 8 : i32
    %46 = arith.addi %c8_i32_17, %45 : i32
    %47 = vector.broadcast %46 : i32 to vector<1x32xi32>
    %48 = arith.cmpi slt, %3, %47 : vector<1x32xi32>
    %49 = arith.andi %34, %48 : vector<1x32xi1>
    %50 = arith.ori %29, %49 : vector<1x32xi1>
    %c16_i32_18 = arith.constant 16 : i32
    %51 = vector.broadcast %c16_i32_18 : i32 to vector<1x32xi32>
    %52 = arith.cmpi sge, %3, %51 : vector<1x32xi32>
    %c24_i32 = arith.constant 24 : i32
    %53 = vector.broadcast %c24_i32 : i32 to vector<1x32xi32>
    %54 = arith.cmpi slt, %3, %53 : vector<1x32xi32>
    %55 = arith.andi %52, %54 : vector<1x32xi1>
    %c2_i32 = arith.constant 2 : i32
    %56 = vector.broadcast %c2_i32 : i32 to vector<1x32xi32>
    %57 = arith.select %55, %56, %36 : vector<1x32xi1>, vector<1x32xi32>
    %c16_i32_19 = arith.constant 16 : i32
    %58 = vector.broadcast %c16_i32_19 : i32 to vector<32x1xi32>
    %59 = arith.cmpi sge, %4, %58 : vector<32x1xi32>
    %c24_i32_20 = arith.constant 24 : i32
    %60 = vector.broadcast %c24_i32_20 : i32 to vector<32x1xi32>
    %61 = arith.cmpi slt, %4, %60 : vector<32x1xi32>
    %62 = arith.andi %59, %61 : vector<32x1xi1>
    %c2_i32_21 = arith.constant 2 : i32
    %63 = vector.broadcast %c2_i32_21 : i32 to vector<32x1xi32>
    %64 = arith.select %62, %63, %43 : vector<32x1xi1>, vector<32x1xi32>
    %65 = arith.index_cast %arg0 : i32 to index
    %c2 = arith.constant 2 : index
    %66 = memref.load %arg1[%65, %c2] : memref<1x4xi32, #tpu.memory_space<smem>>
    %c16_i32_22 = arith.constant 16 : i32
    %67 = arith.addi %c16_i32_22, %66 : i32
    %68 = vector.broadcast %67 : i32 to vector<1x32xi32>
    %69 = arith.cmpi slt, %3, %68 : vector<1x32xi32>
    %70 = arith.andi %55, %69 : vector<1x32xi1>
    %71 = arith.ori %50, %70 : vector<1x32xi1>
    %c24_i32_23 = arith.constant 24 : i32
    %72 = vector.broadcast %c24_i32_23 : i32 to vector<1x32xi32>
    %73 = arith.cmpi sge, %3, %72 : vector<1x32xi32>
    %c32_i32 = arith.constant 32 : i32
    %74 = vector.broadcast %c32_i32 : i32 to vector<1x32xi32>
    %75 = arith.cmpi slt, %3, %74 : vector<1x32xi32>
    %76 = arith.andi %73, %75 : vector<1x32xi1>
    %c3_i32 = arith.constant 3 : i32
    %77 = vector.broadcast %c3_i32 : i32 to vector<1x32xi32>
    %78 = arith.select %76, %77, %57 : vector<1x32xi1>, vector<1x32xi32>
    %c24_i32_24 = arith.constant 24 : i32
    %79 = vector.broadcast %c24_i32_24 : i32 to vector<32x1xi32>
    %80 = arith.cmpi sge, %4, %79 : vector<32x1xi32>
    %c32_i32_25 = arith.constant 32 : i32
    %81 = vector.broadcast %c32_i32_25 : i32 to vector<32x1xi32>
    %82 = arith.cmpi slt, %4, %81 : vector<32x1xi32>
    %83 = arith.andi %80, %82 : vector<32x1xi1>
    %c3_i32_26 = arith.constant 3 : i32
    %84 = vector.broadcast %c3_i32_26 : i32 to vector<32x1xi32>
    %85 = arith.select %83, %84, %64 : vector<32x1xi1>, vector<32x1xi32>
    %86 = arith.index_cast %arg0 : i32 to index
    %c3 = arith.constant 3 : index
    %87 = memref.load %arg1[%86, %c3] : memref<1x4xi32, #tpu.memory_space<smem>>
    %c24_i32_27 = arith.constant 24 : i32
    %88 = arith.addi %c24_i32_27, %87 : i32
    %89 = vector.broadcast %88 : i32 to vector<1x32xi32>
    %90 = arith.cmpi slt, %3, %89 : vector<1x32xi32>
    %91 = arith.andi %76, %90 : vector<1x32xi1>
    %92 = arith.ori %71, %91 : vector<1x32xi1>
    %93 = tpu.iota {dimensions = array<i32: 0>} : vector<16x1xi32>
    %94 = tpu.iota {dimensions = array<i32: 1>} : vector<1x16xi32>
    %c4_i32 = arith.constant 4 : i32
    %95 = vector.broadcast %c4_i32 : i32 to vector<16x1xi32>
    %96 = arith.cmpi sge, %93, %95 : vector<16x1xi32>
    %c4_i32_28 = arith.constant 4 : i32
    %c0_i32_29 = arith.constant 0 : i32
    %97 = vector.broadcast %c4_i32_28 : i32 to vector<16x1xi32>
    %98 = vector.broadcast %c0_i32_29 : i32 to vector<16x1xi32>
    %99 = arith.select %96, %97, %98 : vector<16x1xi1>, vector<16x1xi32>
    %100 = arith.subi %93, %99 : vector<16x1xi32>
    %c4_i32_30 = arith.constant 4 : i32
    %101 = vector.broadcast %c4_i32_30 : i32 to vector<1x16xi32>
    %102 = arith.cmpi sge, %94, %101 : vector<1x16xi32>
    %c4_i32_31 = arith.constant 4 : i32
    %c0_i32_32 = arith.constant 0 : i32
    %103 = vector.broadcast %c4_i32_31 : i32 to vector<1x16xi32>
    %104 = vector.broadcast %c0_i32_32 : i32 to vector<1x16xi32>
    %105 = arith.select %102, %103, %104 : vector<1x16xi1>, vector<1x16xi32>
    %106 = arith.subi %94, %105 : vector<1x16xi32>
    %c8_i32_33 = arith.constant 8 : i32
    %107 = vector.broadcast %c8_i32_33 : i32 to vector<16x1xi32>
    %108 = arith.cmpi sge, %93, %107 : vector<16x1xi32>
    %c4_i32_34 = arith.constant 4 : i32
    %c0_i32_35 = arith.constant 0 : i32
    %109 = vector.broadcast %c4_i32_34 : i32 to vector<16x1xi32>
    %110 = vector.broadcast %c0_i32_35 : i32 to vector<16x1xi32>
    %111 = arith.select %108, %109, %110 : vector<16x1xi1>, vector<16x1xi32>
    %112 = arith.subi %100, %111 : vector<16x1xi32>
    %c8_i32_36 = arith.constant 8 : i32
    %113 = vector.broadcast %c8_i32_36 : i32 to vector<1x16xi32>
    %114 = arith.cmpi sge, %94, %113 : vector<1x16xi32>
    %c4_i32_37 = arith.constant 4 : i32
    %c0_i32_38 = arith.constant 0 : i32
    %115 = vector.broadcast %c4_i32_37 : i32 to vector<1x16xi32>
    %116 = vector.broadcast %c0_i32_38 : i32 to vector<1x16xi32>
    %117 = arith.select %114, %115, %116 : vector<1x16xi1>, vector<1x16xi32>
    %118 = arith.subi %106, %117 : vector<1x16xi32>
    %c12_i32 = arith.constant 12 : i32
    %119 = vector.broadcast %c12_i32 : i32 to vector<16x1xi32>
    %120 = arith.cmpi sge, %93, %119 : vector<16x1xi32>
    %c4_i32_39 = arith.constant 4 : i32
    %c0_i32_40 = arith.constant 0 : i32
    %121 = vector.broadcast %c4_i32_39 : i32 to vector<16x1xi32>
    %122 = vector.broadcast %c0_i32_40 : i32 to vector<16x1xi32>
    %123 = arith.select %120, %121, %122 : vector<16x1xi1>, vector<16x1xi32>
    %124 = arith.subi %112, %123 : vector<16x1xi32>
    %c12_i32_41 = arith.constant 12 : i32
    %125 = vector.broadcast %c12_i32_41 : i32 to vector<1x16xi32>
    %126 = arith.cmpi sge, %94, %125 : vector<1x16xi32>
    %c4_i32_42 = arith.constant 4 : i32
    %c0_i32_43 = arith.constant 0 : i32
    %127 = vector.broadcast %c4_i32_42 : i32 to vector<1x16xi32>
    %128 = vector.broadcast %c0_i32_43 : i32 to vector<1x16xi32>
    %129 = arith.select %126, %127, %128 : vector<1x16xi1>, vector<1x16xi32>
    %130 = arith.subi %118, %129 : vector<1x16xi32>
    %131 = vector.broadcast %85 : vector<32x1xi32> to vector<32x32xi32>
    %132 = vector.broadcast %78 : vector<1x32xi32> to vector<32x32xi32>
    %133 = arith.cmpi eq, %131, %132 : vector<32x32xi32>
    %134 = vector.broadcast %92 : vector<1x32xi1> to vector<32x32xi1>
    %135 = arith.andi %133, %134 : vector<32x32xi1>
    %136 = vector.broadcast %124 : vector<16x1xi32> to vector<16x32xi32>
    %137 = vector.broadcast %78 : vector<1x32xi32> to vector<16x32xi32>
    %138 = arith.cmpi eq, %136, %137 : vector<16x32xi32>
    %139 = vector.broadcast %92 : vector<1x32xi1> to vector<16x32xi1>
    %140 = arith.andi %138, %139 : vector<16x32xi1>
    %141 = vector.broadcast %124 : vector<16x1xi32> to vector<16x16xi32>
    %142 = vector.broadcast %130 : vector<1x16xi32> to vector<16x16xi32>
    %143 = arith.cmpi eq, %141, %142 : vector<16x16xi32>
    %c0_44 = arith.constant 0 : index
    %c0_45 = arith.constant 0 : index
    %144 = vector.load %arg4[%c0_44, %c0_45] : memref<32x128xf32, #tpu.memory_space<vmem>>, vector<32x128xf32>
    %cst = arith.constant dense<0.000000e+00> : vector<32x128xf32>
    %145 = tpu.matmul %1, %144, %cst {dimension_numbers = #tpu.dot_dimension_numbers<[1], [0], [0], [1], [0, 0, 1, 1], [], []>} : vector<32x32xf32>, vector<32x128xf32>, vector<32x128xf32> -> vector<32x128xf32>
    %c0_46 = arith.constant 0 : index
    %c0_47 = arith.constant 0 : index
    %146 = vector.load %arg5[%c0_46, %c0_47] : memref<32x128xf32, #tpu.memory_space<vmem>>, vector<32x128xf32>
    %cst_48 = arith.constant dense<0.000000e+00> : vector<32x128xf32>
    %147 = tpu.matmul %1, %146, %cst_48 {dimension_numbers = #tpu.dot_dimension_numbers<[1], [0], [0], [1], [0, 0, 1, 1], [], []>} : vector<32x32xf32>, vector<32x128xf32>, vector<32x128xf32> -> vector<32x128xf32>
    %c0_49 = arith.constant 0 : index
    %c0_50 = arith.constant 0 : index
    %148 = vector.load %arg6[%c0_49, %c0_50] : memref<32x128xf32, #tpu.memory_space<vmem>>, vector<32x128xf32>
    %cst_51 = arith.constant dense<0.000000e+00> : vector<32x128xf32>
    %149 = tpu.matmul %1, %148, %cst_51 {dimension_numbers = #tpu.dot_dimension_numbers<[1], [0], [0], [1], [0, 0, 1, 1], [], []>} : vector<32x32xf32>, vector<32x128xf32>, vector<32x128xf32> -> vector<32x128xf32>
    %150 = vector.extract_strided_slice %145 {offsets = [0, 0], sizes = [32, 32], strides = [1, 1]} : vector<32x128xf32> to vector<32x32xf32>
    %151 = vector.extract_strided_slice %147 {offsets = [0, 0], sizes = [32, 32], strides = [1, 1]} : vector<32x128xf32> to vector<32x32xf32>
    %cst_52 = arith.constant dense<0.000000e+00> : vector<32x32xf32>
    %152 = tpu.matmul %150, %151, %cst_52 {dimension_numbers = #tpu.dot_dimension_numbers<[1], [1], [0], [0], [0, 0, 1, 0], [], []>} : vector<32x32xf32>, vector<32x32xf32>, vector<32x32xf32> -> vector<32x32xf32>
    %cst_53 = arith.constant 0.176776692 : f32
    %153 = vector.broadcast %cst_53 : f32 to vector<32x32xf32>
    %154 = arith.mulf %152, %153 : vector<32x32xf32>
    %cst_54 = arith.constant -1.000000e+30 : f32
    %155 = vector.broadcast %cst_54 : f32 to vector<32x32xf32>
    %156 = arith.select %135, %154, %155 : vector<32x32xi1>, vector<32x32xf32>
    %cst_55 = arith.constant dense<0xFF800000> : vector<32xf32>
    %157 = vector.multi_reduction <maximumf>, %156, %cst_55 [1] : vector<32x32xf32> to vector<32xf32>
    %158 = vector.shape_cast %157 : vector<32xf32> to vector<32x1xf32>
    %159 = vector.broadcast %158 : vector<32x1xf32> to vector<32x32xf32>
    %160 = arith.subf %156, %159 : vector<32x32xf32>
    %161 = math.exp %160 : vector<32x32xf32>
    %cst_56 = arith.constant dense<0.000000e+00> : vector<32xf32>
    %162 = vector.multi_reduction <add>, %161, %cst_56 [1] : vector<32x32xf32> to vector<32xf32>
    %163 = vector.shape_cast %162 : vector<32xf32> to vector<32x1xf32>
    %164 = tpu.reciprocal %163 {approx = true} : vector<32x1xf32> -> vector<32x1xf32>
    %165 = vector.broadcast %164 : vector<32x1xf32> to vector<32x32xf32>
    %166 = arith.mulf %161, %165 : vector<32x32xf32>
    %167 = vector.extract_strided_slice %149 {offsets = [0, 0], sizes = [32, 32], strides = [1, 1]} : vector<32x128xf32> to vector<32x32xf32>
    %cst_57 = arith.constant dense<0.000000e+00> : vector<32x32xf32>
    %168 = tpu.matmul %166, %167, %cst_57 {dimension_numbers = #tpu.dot_dimension_numbers<[1], [0], [0], [1], [0, 0, 1, 1], [], []>} : vector<32x32xf32>, vector<32x32xf32>, vector<32x32xf32> -> vector<32x32xf32>
    %169 = vector.extract_strided_slice %145 {offsets = [0, 32], sizes = [32, 32], strides = [1, 1]} : vector<32x128xf32> to vector<32x32xf32>
    %170 = vector.extract_strided_slice %147 {offsets = [0, 32], sizes = [32, 32], strides = [1, 1]} : vector<32x128xf32> to vector<32x32xf32>
    %cst_58 = arith.constant dense<0.000000e+00> : vector<32x32xf32>
    %171 = tpu.matmul %169, %170, %cst_58 {dimension_numbers = #tpu.dot_dimension_numbers<[1], [1], [0], [0], [0, 0, 1, 0], [], []>} : vector<32x32xf32>, vector<32x32xf32>, vector<32x32xf32> -> vector<32x32xf32>
    %cst_59 = arith.constant 0.176776692 : f32
    %172 = vector.broadcast %cst_59 : f32 to vector<32x32xf32>
    %173 = arith.mulf %171, %172 : vector<32x32xf32>
    %cst_60 = arith.constant -1.000000e+30 : f32
    %174 = vector.broadcast %cst_60 : f32 to vector<32x32xf32>
    %175 = arith.select %135, %173, %174 : vector<32x32xi1>, vector<32x32xf32>
    %cst_61 = arith.constant dense<0xFF800000> : vector<32xf32>
    %176 = vector.multi_reduction <maximumf>, %175, %cst_61 [1] : vector<32x32xf32> to vector<32xf32>
    %177 = vector.shape_cast %176 : vector<32xf32> to vector<32x1xf32>
    %178 = vector.broadcast %177 : vector<32x1xf32> to vector<32x32xf32>
    %179 = arith.subf %175, %178 : vector<32x32xf32>
    %180 = math.exp %179 : vector<32x32xf32>
    %cst_62 = arith.constant dense<0.000000e+00> : vector<32xf32>
    %181 = vector.multi_reduction <add>, %180, %cst_62 [1] : vector<32x32xf32> to vector<32xf32>
    %182 = vector.shape_cast %181 : vector<32xf32> to vector<32x1xf32>
    %183 = tpu.reciprocal %182 {approx = true} : vector<32x1xf32> -> vector<32x1xf32>
    %184 = vector.broadcast %183 : vector<32x1xf32> to vector<32x32xf32>
    %185 = arith.mulf %180, %184 : vector<32x32xf32>
    %186 = vector.extract_strided_slice %149 {offsets = [0, 32], sizes = [32, 32], strides = [1, 1]} : vector<32x128xf32> to vector<32x32xf32>
    %cst_63 = arith.constant dense<0.000000e+00> : vector<32x32xf32>
    %187 = tpu.matmul %185, %186, %cst_63 {dimension_numbers = #tpu.dot_dimension_numbers<[1], [0], [0], [1], [0, 0, 1, 1], [], []>} : vector<32x32xf32>, vector<32x32xf32>, vector<32x32xf32> -> vector<32x32xf32>
    %188 = vector.extract_strided_slice %145 {offsets = [0, 64], sizes = [32, 32], strides = [1, 1]} : vector<32x128xf32> to vector<32x32xf32>
    %189 = vector.extract_strided_slice %147 {offsets = [0, 64], sizes = [32, 32], strides = [1, 1]} : vector<32x128xf32> to vector<32x32xf32>
    %cst_64 = arith.constant dense<0.000000e+00> : vector<32x32xf32>
    %190 = tpu.matmul %188, %189, %cst_64 {dimension_numbers = #tpu.dot_dimension_numbers<[1], [1], [0], [0], [0, 0, 1, 0], [], []>} : vector<32x32xf32>, vector<32x32xf32>, vector<32x32xf32> -> vector<32x32xf32>
    %cst_65 = arith.constant 0.176776692 : f32
    %191 = vector.broadcast %cst_65 : f32 to vector<32x32xf32>
    %192 = arith.mulf %190, %191 : vector<32x32xf32>
    %cst_66 = arith.constant -1.000000e+30 : f32
    %193 = vector.broadcast %cst_66 : f32 to vector<32x32xf32>
    %194 = arith.select %135, %192, %193 : vector<32x32xi1>, vector<32x32xf32>
    %cst_67 = arith.constant dense<0xFF800000> : vector<32xf32>
    %195 = vector.multi_reduction <maximumf>, %194, %cst_67 [1] : vector<32x32xf32> to vector<32xf32>
    %196 = vector.shape_cast %195 : vector<32xf32> to vector<32x1xf32>
    %197 = vector.broadcast %196 : vector<32x1xf32> to vector<32x32xf32>
    %198 = arith.subf %194, %197 : vector<32x32xf32>
    %199 = math.exp %198 : vector<32x32xf32>
    %cst_68 = arith.constant dense<0.000000e+00> : vector<32xf32>
    %200 = vector.multi_reduction <add>, %199, %cst_68 [1] : vector<32x32xf32> to vector<32xf32>
    %201 = vector.shape_cast %200 : vector<32xf32> to vector<32x1xf32>
    %202 = tpu.reciprocal %201 {approx = true} : vector<32x1xf32> -> vector<32x1xf32>
    %203 = vector.broadcast %202 : vector<32x1xf32> to vector<32x32xf32>
    %204 = arith.mulf %199, %203 : vector<32x32xf32>
    %205 = vector.extract_strided_slice %149 {offsets = [0, 64], sizes = [32, 32], strides = [1, 1]} : vector<32x128xf32> to vector<32x32xf32>
    %cst_69 = arith.constant dense<0.000000e+00> : vector<32x32xf32>
    %206 = tpu.matmul %204, %205, %cst_69 {dimension_numbers = #tpu.dot_dimension_numbers<[1], [0], [0], [1], [0, 0, 1, 1], [], []>} : vector<32x32xf32>, vector<32x32xf32>, vector<32x32xf32> -> vector<32x32xf32>
    %207 = vector.extract_strided_slice %145 {offsets = [0, 96], sizes = [32, 32], strides = [1, 1]} : vector<32x128xf32> to vector<32x32xf32>
    %208 = vector.extract_strided_slice %147 {offsets = [0, 96], sizes = [32, 32], strides = [1, 1]} : vector<32x128xf32> to vector<32x32xf32>
    %cst_70 = arith.constant dense<0.000000e+00> : vector<32x32xf32>
    %209 = tpu.matmul %207, %208, %cst_70 {dimension_numbers = #tpu.dot_dimension_numbers<[1], [1], [0], [0], [0, 0, 1, 0], [], []>} : vector<32x32xf32>, vector<32x32xf32>, vector<32x32xf32> -> vector<32x32xf32>
    %cst_71 = arith.constant 0.176776692 : f32
    %210 = vector.broadcast %cst_71 : f32 to vector<32x32xf32>
    %211 = arith.mulf %209, %210 : vector<32x32xf32>
    %cst_72 = arith.constant -1.000000e+30 : f32
    %212 = vector.broadcast %cst_72 : f32 to vector<32x32xf32>
    %213 = arith.select %135, %211, %212 : vector<32x32xi1>, vector<32x32xf32>
    %cst_73 = arith.constant dense<0xFF800000> : vector<32xf32>
    %214 = vector.multi_reduction <maximumf>, %213, %cst_73 [1] : vector<32x32xf32> to vector<32xf32>
    %215 = vector.shape_cast %214 : vector<32xf32> to vector<32x1xf32>
    %216 = vector.broadcast %215 : vector<32x1xf32> to vector<32x32xf32>
    %217 = arith.subf %213, %216 : vector<32x32xf32>
    %218 = math.exp %217 : vector<32x32xf32>
    %cst_74 = arith.constant dense<0.000000e+00> : vector<32xf32>
    %219 = vector.multi_reduction <add>, %218, %cst_74 [1] : vector<32x32xf32> to vector<32xf32>
    %220 = vector.shape_cast %219 : vector<32xf32> to vector<32x1xf32>
    %221 = tpu.reciprocal %220 {approx = true} : vector<32x1xf32> -> vector<32x1xf32>
    %222 = vector.broadcast %221 : vector<32x1xf32> to vector<32x32xf32>
    %223 = arith.mulf %218, %222 : vector<32x32xf32>
    %224 = vector.extract_strided_slice %149 {offsets = [0, 96], sizes = [32, 32], strides = [1, 1]} : vector<32x128xf32> to vector<32x32xf32>
    %cst_75 = arith.constant dense<0.000000e+00> : vector<32x32xf32>
    %225 = tpu.matmul %223, %224, %cst_75 {dimension_numbers = #tpu.dot_dimension_numbers<[1], [0], [0], [1], [0, 0, 1, 1], [], []>} : vector<32x32xf32>, vector<32x32xf32>, vector<32x32xf32> -> vector<32x32xf32>
    %226 = tpu.concatenate %168, %187, %206, %225 in 1 : vector<32x32xf32>, vector<32x32xf32>, vector<32x32xf32>, vector<32x32xf32> -> vector<32x128xf32>
    %c0_76 = arith.constant 0 : index
    %c0_77 = arith.constant 0 : index
    %227 = vector.load %arg7[%c0_76, %c0_77] : memref<128x32xf32, #tpu.memory_space<vmem>>, vector<128x32xf32>
    %cst_78 = arith.constant dense<0.000000e+00> : vector<32x32xf32>
    %228 = tpu.matmul %226, %227, %cst_78 {dimension_numbers = #tpu.dot_dimension_numbers<[1], [0], [0], [1], [0, 0, 1, 1], [], []>} : vector<32x128xf32>, vector<128x32xf32>, vector<32x32xf32> -> vector<32x32xf32>
    %229 = arith.addf %1, %228 : vector<32x32xf32>
    %c0_79 = arith.constant 0 : index
    %c0_80 = arith.constant 0 : index
    %230 = vector.load %arg12[%c0_79, %c0_80] : memref<1x32xf32, #tpu.memory_space<vmem>>, vector<1x32xf32>
    %c0_81 = arith.constant 0 : index
    %c0_82 = arith.constant 0 : index
    %231 = vector.load %arg13[%c0_81, %c0_82] : memref<1x32xf32, #tpu.memory_space<vmem>>, vector<1x32xf32>
    %cst_83 = arith.constant dense<0.000000e+00> : vector<32xf32>
    %232 = vector.multi_reduction <add>, %229, %cst_83 [1] : vector<32x32xf32> to vector<32xf32>
    %233 = vector.shape_cast %232 : vector<32xf32> to vector<32x1xf32>
    %cst_84 = arith.constant 3.200000e+01 : f32
    %234 = vector.broadcast %cst_84 : f32 to vector<32x1xf32>
    %235 = arith.divf %233, %234 : vector<32x1xf32>
    %236 = vector.broadcast %235 : vector<32x1xf32> to vector<32x32xf32>
    %237 = arith.subf %229, %236 : vector<32x32xf32>
    %238 = arith.mulf %237, %237 : vector<32x32xf32>
    %cst_85 = arith.constant dense<0.000000e+00> : vector<32xf32>
    %239 = vector.multi_reduction <add>, %238, %cst_85 [1] : vector<32x32xf32> to vector<32xf32>
    %240 = vector.shape_cast %239 : vector<32xf32> to vector<32x1xf32>
    %cst_86 = arith.constant 3.200000e+01 : f32
    %241 = vector.broadcast %cst_86 : f32 to vector<32x1xf32>
    %242 = arith.divf %240, %241 : vector<32x1xf32>
    %243 = vector.broadcast %235 : vector<32x1xf32> to vector<32x32xf32>
    %244 = arith.subf %229, %243 : vector<32x32xf32>
    %cst_87 = arith.constant 9.99999974E-6 : f32
    %245 = vector.broadcast %cst_87 : f32 to vector<32x1xf32>
    %246 = arith.addf %242, %245 : vector<32x1xf32>
    %247 = math.rsqrt %246 : vector<32x1xf32>
    %248 = vector.broadcast %247 : vector<32x1xf32> to vector<32x32xf32>
    %249 = arith.mulf %244, %248 : vector<32x32xf32>
    %250 = vector.broadcast %230 : vector<1x32xf32> to vector<32x32xf32>
    %251 = arith.mulf %249, %250 : vector<32x32xf32>
    %252 = vector.broadcast %231 : vector<1x32xf32> to vector<32x32xf32>
    %253 = arith.addf %251, %252 : vector<32x32xf32>
    %c0_88 = arith.constant 0 : index
    %c0_89 = arith.constant 0 : index
    %254 = vector.load %arg8[%c0_88, %c0_89] : memref<32x32xf32, #tpu.memory_space<vmem>>, vector<32x32xf32>
    %cst_90 = arith.constant dense<0.000000e+00> : vector<32x32xf32>
    %255 = tpu.matmul %253, %254, %cst_90 {dimension_numbers = #tpu.dot_dimension_numbers<[1], [0], [0], [1], [0, 0, 1, 1], [], []>} : vector<32x32xf32>, vector<32x32xf32>, vector<32x32xf32> -> vector<32x32xf32>
    %c0_91 = arith.constant 0 : index
    %c0_92 = arith.constant 0 : index
    %256 = vector.load %arg9[%c0_91, %c0_92] : memref<1x32xf32, #tpu.memory_space<vmem>>, vector<1x32xf32>
    %257 = vector.broadcast %256 : vector<1x32xf32> to vector<32x32xf32>
    %258 = arith.addf %255, %257 : vector<32x32xf32>
    %cst_93 = arith.constant 0.000000e+00 : f32
    %259 = vector.broadcast %cst_93 : f32 to vector<32x32xf32>
    %260 = arith.maximumf %258, %259 : vector<32x32xf32>
    %c0_94 = arith.constant 0 : index
    %c0_95 = arith.constant 0 : index
    %261 = vector.load %arg10[%c0_94, %c0_95] : memref<32x32xf32, #tpu.memory_space<vmem>>, vector<32x32xf32>
    %cst_96 = arith.constant dense<0.000000e+00> : vector<32x32xf32>
    %262 = tpu.matmul %260, %261, %cst_96 {dimension_numbers = #tpu.dot_dimension_numbers<[1], [0], [0], [1], [0, 0, 1, 1], [], []>} : vector<32x32xf32>, vector<32x32xf32>, vector<32x32xf32> -> vector<32x32xf32>
    %c0_97 = arith.constant 0 : index
    %c0_98 = arith.constant 0 : index
    %263 = vector.load %arg11[%c0_97, %c0_98] : memref<1x32xf32, #tpu.memory_space<vmem>>, vector<1x32xf32>
    %264 = vector.broadcast %263 : vector<1x32xf32> to vector<32x32xf32>
    %265 = arith.addf %262, %264 : vector<32x32xf32>
    %266 = arith.addf %253, %265 : vector<32x32xf32>
    %c0_99 = arith.constant 0 : index
    %c0_100 = arith.constant 0 : index
    %267 = vector.load %arg14[%c0_99, %c0_100] : memref<1x32xf32, #tpu.memory_space<vmem>>, vector<1x32xf32>
    %c0_101 = arith.constant 0 : index
    %c0_102 = arith.constant 0 : index
    %268 = vector.load %arg15[%c0_101, %c0_102] : memref<1x32xf32, #tpu.memory_space<vmem>>, vector<1x32xf32>
    %cst_103 = arith.constant dense<0.000000e+00> : vector<32xf32>
    %269 = vector.multi_reduction <add>, %266, %cst_103 [1] : vector<32x32xf32> to vector<32xf32>
    %270 = vector.shape_cast %269 : vector<32xf32> to vector<32x1xf32>
    %cst_104 = arith.constant 3.200000e+01 : f32
    %271 = vector.broadcast %cst_104 : f32 to vector<32x1xf32>
    %272 = arith.divf %270, %271 : vector<32x1xf32>
    %273 = vector.broadcast %272 : vector<32x1xf32> to vector<32x32xf32>
    %274 = arith.subf %266, %273 : vector<32x32xf32>
    %275 = arith.mulf %274, %274 : vector<32x32xf32>
    %cst_105 = arith.constant dense<0.000000e+00> : vector<32xf32>
    %276 = vector.multi_reduction <add>, %275, %cst_105 [1] : vector<32x32xf32> to vector<32xf32>
    %277 = vector.shape_cast %276 : vector<32xf32> to vector<32x1xf32>
    %cst_106 = arith.constant 3.200000e+01 : f32
    %278 = vector.broadcast %cst_106 : f32 to vector<32x1xf32>
    %279 = arith.divf %277, %278 : vector<32x1xf32>
    %280 = vector.broadcast %272 : vector<32x1xf32> to vector<32x32xf32>
    %281 = arith.subf %266, %280 : vector<32x32xf32>
    %cst_107 = arith.constant 9.99999974E-6 : f32
    %282 = vector.broadcast %cst_107 : f32 to vector<32x1xf32>
    %283 = arith.addf %279, %282 : vector<32x1xf32>
    %284 = math.rsqrt %283 : vector<32x1xf32>
    %285 = vector.broadcast %284 : vector<32x1xf32> to vector<32x32xf32>
    %286 = arith.mulf %281, %285 : vector<32x32xf32>
    %287 = vector.broadcast %267 : vector<1x32xf32> to vector<32x32xf32>
    %288 = arith.mulf %286, %287 : vector<32x32xf32>
    %289 = vector.broadcast %268 : vector<1x32xf32> to vector<32x32xf32>
    %290 = arith.addf %288, %289 : vector<32x32xf32>
    %c0_108 = arith.constant 0 : index
    %c0_109 = arith.constant 0 : index
    %291 = vector.load %arg16[%c0_108, %c0_109] : memref<32x32xf32, #tpu.memory_space<vmem>>, vector<32x32xf32>
    %cst_110 = arith.constant dense<0.000000e+00> : vector<32x32xf32>
    %292 = tpu.matmul %290, %291, %cst_110 {dimension_numbers = #tpu.dot_dimension_numbers<[1], [0], [0], [1], [0, 0, 1, 1], [], []>} : vector<32x32xf32>, vector<32x32xf32>, vector<32x32xf32> -> vector<32x32xf32>
    %c0_111 = arith.constant 0 : index
    %c0_112 = arith.constant 0 : index
    %293 = vector.load %arg17[%c0_111, %c0_112] : memref<1x32xf32, #tpu.memory_space<vmem>>, vector<1x32xf32>
    %294 = vector.broadcast %293 : vector<1x32xf32> to vector<32x32xf32>
    %295 = arith.addf %292, %294 : vector<32x32xf32>
    %cst_113 = arith.constant 0.000000e+00 : f32
    %296 = vector.broadcast %cst_113 : f32 to vector<32x32xf32>
    %297 = arith.maximumf %295, %296 : vector<32x32xf32>
    %c0_114 = arith.constant 0 : index
    %c0_115 = arith.constant 0 : index
    %298 = vector.load %arg18[%c0_114, %c0_115] : memref<32x32xf32, #tpu.memory_space<vmem>>, vector<32x32xf32>
    %cst_116 = arith.constant dense<0.000000e+00> : vector<32x32xf32>
    %299 = tpu.matmul %297, %298, %cst_116 {dimension_numbers = #tpu.dot_dimension_numbers<[1], [0], [0], [1], [0, 0, 1, 1], [], []>} : vector<32x32xf32>, vector<32x32xf32>, vector<32x32xf32> -> vector<32x32xf32>
    %c0_117 = arith.constant 0 : index
    %c0_118 = arith.constant 0 : index
    %300 = vector.load %arg19[%c0_117, %c0_118] : memref<1x32xf32, #tpu.memory_space<vmem>>, vector<1x32xf32>
    %301 = vector.broadcast %300 : vector<1x32xf32> to vector<32x32xf32>
    %302 = arith.addf %299, %301 : vector<32x32xf32>
    %c0_119 = arith.constant 0 : index
    %c0_120 = arith.constant 0 : index
    %303 = vector.load %arg20[%c0_119, %c0_120] : memref<32x128xf32, #tpu.memory_space<vmem>>, vector<32x128xf32>
    %cst_121 = arith.constant dense<0.000000e+00> : vector<16x128xf32>
    %304 = tpu.matmul %2, %303, %cst_121 {dimension_numbers = #tpu.dot_dimension_numbers<[1], [0], [0], [1], [0, 0, 1, 1], [], []>} : vector<16x32xf32>, vector<32x128xf32>, vector<16x128xf32> -> vector<16x128xf32>
    %c0_122 = arith.constant 0 : index
    %c0_123 = arith.constant 0 : index
    %305 = vector.load %arg21[%c0_122, %c0_123] : memref<32x128xf32, #tpu.memory_space<vmem>>, vector<32x128xf32>
    %cst_124 = arith.constant dense<0.000000e+00> : vector<32x128xf32>
    %306 = tpu.matmul %302, %305, %cst_124 {dimension_numbers = #tpu.dot_dimension_numbers<[1], [0], [0], [1], [0, 0, 1, 1], [], []>} : vector<32x32xf32>, vector<32x128xf32>, vector<32x128xf32> -> vector<32x128xf32>
    %c0_125 = arith.constant 0 : index
    %c0_126 = arith.constant 0 : index
    %307 = vector.load %arg22[%c0_125, %c0_126] : memref<32x128xf32, #tpu.memory_space<vmem>>, vector<32x128xf32>
    %cst_127 = arith.constant dense<0.000000e+00> : vector<32x128xf32>
    %308 = tpu.matmul %302, %307, %cst_127 {dimension_numbers = #tpu.dot_dimension_numbers<[1], [0], [0], [1], [0, 0, 1, 1], [], []>} : vector<32x32xf32>, vector<32x128xf32>, vector<32x128xf32> -> vector<32x128xf32>
    %309 = vector.extract_strided_slice %304 {offsets = [0, 0], sizes = [16, 32], strides = [1, 1]} : vector<16x128xf32> to vector<16x32xf32>
    %310 = vector.extract_strided_slice %306 {offsets = [0, 0], sizes = [32, 32], strides = [1, 1]} : vector<32x128xf32> to vector<32x32xf32>
    %cst_128 = arith.constant dense<0.000000e+00> : vector<16x32xf32>
    %311 = tpu.matmul %309, %310, %cst_128 {dimension_numbers = #tpu.dot_dimension_numbers<[1], [1], [0], [0], [0, 0, 1, 0], [], []>} : vector<16x32xf32>, vector<32x32xf32>, vector<16x32xf32> -> vector<16x32xf32>
    %cst_129 = arith.constant 0.176776692 : f32
    %312 = vector.broadcast %cst_129 : f32 to vector<16x32xf32>
    %313 = arith.mulf %311, %312 : vector<16x32xf32>
    %cst_130 = arith.constant -1.000000e+30 : f32
    %314 = vector.broadcast %cst_130 : f32 to vector<16x32xf32>
    %315 = arith.select %140, %313, %314 : vector<16x32xi1>, vector<16x32xf32>
    %cst_131 = arith.constant dense<0xFF800000> : vector<16xf32>
    %316 = vector.multi_reduction <maximumf>, %315, %cst_131 [1] : vector<16x32xf32> to vector<16xf32>
    %317 = vector.shape_cast %316 : vector<16xf32> to vector<16x1xf32>
    %318 = vector.broadcast %317 : vector<16x1xf32> to vector<16x32xf32>
    %319 = arith.subf %315, %318 : vector<16x32xf32>
    %320 = math.exp %319 : vector<16x32xf32>
    %cst_132 = arith.constant dense<0.000000e+00> : vector<16xf32>
    %321 = vector.multi_reduction <add>, %320, %cst_132 [1] : vector<16x32xf32> to vector<16xf32>
    %322 = vector.shape_cast %321 : vector<16xf32> to vector<16x1xf32>
    %323 = tpu.reciprocal %322 {approx = true} : vector<16x1xf32> -> vector<16x1xf32>
    %324 = vector.broadcast %323 : vector<16x1xf32> to vector<16x32xf32>
    %325 = arith.mulf %320, %324 : vector<16x32xf32>
    %326 = vector.extract_strided_slice %308 {offsets = [0, 0], sizes = [32, 32], strides = [1, 1]} : vector<32x128xf32> to vector<32x32xf32>
    %cst_133 = arith.constant dense<0.000000e+00> : vector<16x32xf32>
    %327 = tpu.matmul %325, %326, %cst_133 {dimension_numbers = #tpu.dot_dimension_numbers<[1], [0], [0], [1], [0, 0, 1, 1], [], []>} : vector<16x32xf32>, vector<32x32xf32>, vector<16x32xf32> -> vector<16x32xf32>
    %328 = vector.extract_strided_slice %304 {offsets = [0, 32], sizes = [16, 32], strides = [1, 1]} : vector<16x128xf32> to vector<16x32xf32>
    %329 = vector.extract_strided_slice %306 {offsets = [0, 32], sizes = [32, 32], strides = [1, 1]} : vector<32x128xf32> to vector<32x32xf32>
    %cst_134 = arith.constant dense<0.000000e+00> : vector<16x32xf32>
    %330 = tpu.matmul %328, %329, %cst_134 {dimension_numbers = #tpu.dot_dimension_numbers<[1], [1], [0], [0], [0, 0, 1, 0], [], []>} : vector<16x32xf32>, vector<32x32xf32>, vector<16x32xf32> -> vector<16x32xf32>
    %cst_135 = arith.constant 0.176776692 : f32
    %331 = vector.broadcast %cst_135 : f32 to vector<16x32xf32>
    %332 = arith.mulf %330, %331 : vector<16x32xf32>
    %cst_136 = arith.constant -1.000000e+30 : f32
    %333 = vector.broadcast %cst_136 : f32 to vector<16x32xf32>
    %334 = arith.select %140, %332, %333 : vector<16x32xi1>, vector<16x32xf32>
    %cst_137 = arith.constant dense<0xFF800000> : vector<16xf32>
    %335 = vector.multi_reduction <maximumf>, %334, %cst_137 [1] : vector<16x32xf32> to vector<16xf32>
    %336 = vector.shape_cast %335 : vector<16xf32> to vector<16x1xf32>
    %337 = vector.broadcast %336 : vector<16x1xf32> to vector<16x32xf32>
    %338 = arith.subf %334, %337 : vector<16x32xf32>
    %339 = math.exp %338 : vector<16x32xf32>
    %cst_138 = arith.constant dense<0.000000e+00> : vector<16xf32>
    %340 = vector.multi_reduction <add>, %339, %cst_138 [1] : vector<16x32xf32> to vector<16xf32>
    %341 = vector.shape_cast %340 : vector<16xf32> to vector<16x1xf32>
    %342 = tpu.reciprocal %341 {approx = true} : vector<16x1xf32> -> vector<16x1xf32>
    %343 = vector.broadcast %342 : vector<16x1xf32> to vector<16x32xf32>
    %344 = arith.mulf %339, %343 : vector<16x32xf32>
    %345 = vector.extract_strided_slice %308 {offsets = [0, 32], sizes = [32, 32], strides = [1, 1]} : vector<32x128xf32> to vector<32x32xf32>
    %cst_139 = arith.constant dense<0.000000e+00> : vector<16x32xf32>
    %346 = tpu.matmul %344, %345, %cst_139 {dimension_numbers = #tpu.dot_dimension_numbers<[1], [0], [0], [1], [0, 0, 1, 1], [], []>} : vector<16x32xf32>, vector<32x32xf32>, vector<16x32xf32> -> vector<16x32xf32>
    %347 = vector.extract_strided_slice %304 {offsets = [0, 64], sizes = [16, 32], strides = [1, 1]} : vector<16x128xf32> to vector<16x32xf32>
    %348 = vector.extract_strided_slice %306 {offsets = [0, 64], sizes = [32, 32], strides = [1, 1]} : vector<32x128xf32> to vector<32x32xf32>
    %cst_140 = arith.constant dense<0.000000e+00> : vector<16x32xf32>
    %349 = tpu.matmul %347, %348, %cst_140 {dimension_numbers = #tpu.dot_dimension_numbers<[1], [1], [0], [0], [0, 0, 1, 0], [], []>} : vector<16x32xf32>, vector<32x32xf32>, vector<16x32xf32> -> vector<16x32xf32>
    %cst_141 = arith.constant 0.176776692 : f32
    %350 = vector.broadcast %cst_141 : f32 to vector<16x32xf32>
    %351 = arith.mulf %349, %350 : vector<16x32xf32>
    %cst_142 = arith.constant -1.000000e+30 : f32
    %352 = vector.broadcast %cst_142 : f32 to vector<16x32xf32>
    %353 = arith.select %140, %351, %352 : vector<16x32xi1>, vector<16x32xf32>
    %cst_143 = arith.constant dense<0xFF800000> : vector<16xf32>
    %354 = vector.multi_reduction <maximumf>, %353, %cst_143 [1] : vector<16x32xf32> to vector<16xf32>
    %355 = vector.shape_cast %354 : vector<16xf32> to vector<16x1xf32>
    %356 = vector.broadcast %355 : vector<16x1xf32> to vector<16x32xf32>
    %357 = arith.subf %353, %356 : vector<16x32xf32>
    %358 = math.exp %357 : vector<16x32xf32>
    %cst_144 = arith.constant dense<0.000000e+00> : vector<16xf32>
    %359 = vector.multi_reduction <add>, %358, %cst_144 [1] : vector<16x32xf32> to vector<16xf32>
    %360 = vector.shape_cast %359 : vector<16xf32> to vector<16x1xf32>
    %361 = tpu.reciprocal %360 {approx = true} : vector<16x1xf32> -> vector<16x1xf32>
    %362 = vector.broadcast %361 : vector<16x1xf32> to vector<16x32xf32>
    %363 = arith.mulf %358, %362 : vector<16x32xf32>
    %364 = vector.extract_strided_slice %308 {offsets = [0, 64], sizes = [32, 32], strides = [1, 1]} : vector<32x128xf32> to vector<32x32xf32>
    %cst_145 = arith.constant dense<0.000000e+00> : vector<16x32xf32>
    %365 = tpu.matmul %363, %364, %cst_145 {dimension_numbers = #tpu.dot_dimension_numbers<[1], [0], [0], [1], [0, 0, 1, 1], [], []>} : vector<16x32xf32>, vector<32x32xf32>, vector<16x32xf32> -> vector<16x32xf32>
    %366 = vector.extract_strided_slice %304 {offsets = [0, 96], sizes = [16, 32], strides = [1, 1]} : vector<16x128xf32> to vector<16x32xf32>
    %367 = vector.extract_strided_slice %306 {offsets = [0, 96], sizes = [32, 32], strides = [1, 1]} : vector<32x128xf32> to vector<32x32xf32>
    %cst_146 = arith.constant dense<0.000000e+00> : vector<16x32xf32>
    %368 = tpu.matmul %366, %367, %cst_146 {dimension_numbers = #tpu.dot_dimension_numbers<[1], [1], [0], [0], [0, 0, 1, 0], [], []>} : vector<16x32xf32>, vector<32x32xf32>, vector<16x32xf32> -> vector<16x32xf32>
    %cst_147 = arith.constant 0.176776692 : f32
    %369 = vector.broadcast %cst_147 : f32 to vector<16x32xf32>
    %370 = arith.mulf %368, %369 : vector<16x32xf32>
    %cst_148 = arith.constant -1.000000e+30 : f32
    %371 = vector.broadcast %cst_148 : f32 to vector<16x32xf32>
    %372 = arith.select %140, %370, %371 : vector<16x32xi1>, vector<16x32xf32>
    %cst_149 = arith.constant dense<0xFF800000> : vector<16xf32>
    %373 = vector.multi_reduction <maximumf>, %372, %cst_149 [1] : vector<16x32xf32> to vector<16xf32>
    %374 = vector.shape_cast %373 : vector<16xf32> to vector<16x1xf32>
    %375 = vector.broadcast %374 : vector<16x1xf32> to vector<16x32xf32>
    %376 = arith.subf %372, %375 : vector<16x32xf32>
    %377 = math.exp %376 : vector<16x32xf32>
    %cst_150 = arith.constant dense<0.000000e+00> : vector<16xf32>
    %378 = vector.multi_reduction <add>, %377, %cst_150 [1] : vector<16x32xf32> to vector<16xf32>
    %379 = vector.shape_cast %378 : vector<16xf32> to vector<16x1xf32>
    %380 = tpu.reciprocal %379 {approx = true} : vector<16x1xf32> -> vector<16x1xf32>
    %381 = vector.broadcast %380 : vector<16x1xf32> to vector<16x32xf32>
    %382 = arith.mulf %377, %381 : vector<16x32xf32>
    %383 = vector.extract_strided_slice %308 {offsets = [0, 96], sizes = [32, 32], strides = [1, 1]} : vector<32x128xf32> to vector<32x32xf32>
    %cst_151 = arith.constant dense<0.000000e+00> : vector<16x32xf32>
    %384 = tpu.matmul %382, %383, %cst_151 {dimension_numbers = #tpu.dot_dimension_numbers<[1], [0], [0], [1], [0, 0, 1, 1], [], []>} : vector<16x32xf32>, vector<32x32xf32>, vector<16x32xf32> -> vector<16x32xf32>
    %385 = tpu.concatenate %327, %346, %365, %384 in 1 : vector<16x32xf32>, vector<16x32xf32>, vector<16x32xf32>, vector<16x32xf32> -> vector<16x128xf32>
    %c0_152 = arith.constant 0 : index
    %c0_153 = arith.constant 0 : index
    %386 = vector.load %arg23[%c0_152, %c0_153] : memref<128x32xf32, #tpu.memory_space<vmem>>, vector<128x32xf32>
    %cst_154 = arith.constant dense<0.000000e+00> : vector<16x32xf32>
    %387 = tpu.matmul %385, %386, %cst_154 {dimension_numbers = #tpu.dot_dimension_numbers<[1], [0], [0], [1], [0, 0, 1, 1], [], []>} : vector<16x128xf32>, vector<128x32xf32>, vector<16x32xf32> -> vector<16x32xf32>
    %388 = arith.addf %2, %387 : vector<16x32xf32>
    %c0_155 = arith.constant 0 : index
    %c0_156 = arith.constant 0 : index
    %389 = vector.load %arg28[%c0_155, %c0_156] : memref<1x32xf32, #tpu.memory_space<vmem>>, vector<1x32xf32>
    %c0_157 = arith.constant 0 : index
    %c0_158 = arith.constant 0 : index
    %390 = vector.load %arg29[%c0_157, %c0_158] : memref<1x32xf32, #tpu.memory_space<vmem>>, vector<1x32xf32>
    %cst_159 = arith.constant dense<0.000000e+00> : vector<16xf32>
    %391 = vector.multi_reduction <add>, %388, %cst_159 [1] : vector<16x32xf32> to vector<16xf32>
    %392 = vector.shape_cast %391 : vector<16xf32> to vector<16x1xf32>
    %cst_160 = arith.constant 3.200000e+01 : f32
    %393 = vector.broadcast %cst_160 : f32 to vector<16x1xf32>
    %394 = arith.divf %392, %393 : vector<16x1xf32>
    %395 = vector.broadcast %394 : vector<16x1xf32> to vector<16x32xf32>
    %396 = arith.subf %388, %395 : vector<16x32xf32>
    %397 = arith.mulf %396, %396 : vector<16x32xf32>
    %cst_161 = arith.constant dense<0.000000e+00> : vector<16xf32>
    %398 = vector.multi_reduction <add>, %397, %cst_161 [1] : vector<16x32xf32> to vector<16xf32>
    %399 = vector.shape_cast %398 : vector<16xf32> to vector<16x1xf32>
    %cst_162 = arith.constant 3.200000e+01 : f32
    %400 = vector.broadcast %cst_162 : f32 to vector<16x1xf32>
    %401 = arith.divf %399, %400 : vector<16x1xf32>
    %402 = vector.broadcast %394 : vector<16x1xf32> to vector<16x32xf32>
    %403 = arith.subf %388, %402 : vector<16x32xf32>
    %cst_163 = arith.constant 9.99999974E-6 : f32
    %404 = vector.broadcast %cst_163 : f32 to vector<16x1xf32>
    %405 = arith.addf %401, %404 : vector<16x1xf32>
    %406 = math.rsqrt %405 : vector<16x1xf32>
    %407 = vector.broadcast %406 : vector<16x1xf32> to vector<16x32xf32>
    %408 = arith.mulf %403, %407 : vector<16x32xf32>
    %409 = vector.broadcast %389 : vector<1x32xf32> to vector<16x32xf32>
    %410 = arith.mulf %408, %409 : vector<16x32xf32>
    %411 = vector.broadcast %390 : vector<1x32xf32> to vector<16x32xf32>
    %412 = arith.addf %410, %411 : vector<16x32xf32>
    %c0_164 = arith.constant 0 : index
    %c0_165 = arith.constant 0 : index
    %413 = vector.load %arg24[%c0_164, %c0_165] : memref<32x32xf32, #tpu.memory_space<vmem>>, vector<32x32xf32>
    %cst_166 = arith.constant dense<0.000000e+00> : vector<16x32xf32>
    %414 = tpu.matmul %412, %413, %cst_166 {dimension_numbers = #tpu.dot_dimension_numbers<[1], [0], [0], [1], [0, 0, 1, 1], [], []>} : vector<16x32xf32>, vector<32x32xf32>, vector<16x32xf32> -> vector<16x32xf32>
    %c0_167 = arith.constant 0 : index
    %c0_168 = arith.constant 0 : index
    %415 = vector.load %arg25[%c0_167, %c0_168] : memref<1x32xf32, #tpu.memory_space<vmem>>, vector<1x32xf32>
    %416 = vector.broadcast %415 : vector<1x32xf32> to vector<16x32xf32>
    %417 = arith.addf %414, %416 : vector<16x32xf32>
    %cst_169 = arith.constant 0.000000e+00 : f32
    %418 = vector.broadcast %cst_169 : f32 to vector<16x32xf32>
    %419 = arith.maximumf %417, %418 : vector<16x32xf32>
    %c0_170 = arith.constant 0 : index
    %c0_171 = arith.constant 0 : index
    %420 = vector.load %arg26[%c0_170, %c0_171] : memref<32x32xf32, #tpu.memory_space<vmem>>, vector<32x32xf32>
    %cst_172 = arith.constant dense<0.000000e+00> : vector<16x32xf32>
    %421 = tpu.matmul %419, %420, %cst_172 {dimension_numbers = #tpu.dot_dimension_numbers<[1], [0], [0], [1], [0, 0, 1, 1], [], []>} : vector<16x32xf32>, vector<32x32xf32>, vector<16x32xf32> -> vector<16x32xf32>
    %c0_173 = arith.constant 0 : index
    %c0_174 = arith.constant 0 : index
    %422 = vector.load %arg27[%c0_173, %c0_174] : memref<1x32xf32, #tpu.memory_space<vmem>>, vector<1x32xf32>
    %423 = vector.broadcast %422 : vector<1x32xf32> to vector<16x32xf32>
    %424 = arith.addf %421, %423 : vector<16x32xf32>
    %425 = arith.addf %412, %424 : vector<16x32xf32>
    %c0_175 = arith.constant 0 : index
    %c0_176 = arith.constant 0 : index
    %426 = vector.load %arg30[%c0_175, %c0_176] : memref<1x32xf32, #tpu.memory_space<vmem>>, vector<1x32xf32>
    %c0_177 = arith.constant 0 : index
    %c0_178 = arith.constant 0 : index
    %427 = vector.load %arg31[%c0_177, %c0_178] : memref<1x32xf32, #tpu.memory_space<vmem>>, vector<1x32xf32>
    %cst_179 = arith.constant dense<0.000000e+00> : vector<16xf32>
    %428 = vector.multi_reduction <add>, %425, %cst_179 [1] : vector<16x32xf32> to vector<16xf32>
    %429 = vector.shape_cast %428 : vector<16xf32> to vector<16x1xf32>
    %cst_180 = arith.constant 3.200000e+01 : f32
    %430 = vector.broadcast %cst_180 : f32 to vector<16x1xf32>
    %431 = arith.divf %429, %430 : vector<16x1xf32>
    %432 = vector.broadcast %431 : vector<16x1xf32> to vector<16x32xf32>
    %433 = arith.subf %425, %432 : vector<16x32xf32>
    %434 = arith.mulf %433, %433 : vector<16x32xf32>
    %cst_181 = arith.constant dense<0.000000e+00> : vector<16xf32>
    %435 = vector.multi_reduction <add>, %434, %cst_181 [1] : vector<16x32xf32> to vector<16xf32>
    %436 = vector.shape_cast %435 : vector<16xf32> to vector<16x1xf32>
    %cst_182 = arith.constant 3.200000e+01 : f32
    %437 = vector.broadcast %cst_182 : f32 to vector<16x1xf32>
    %438 = arith.divf %436, %437 : vector<16x1xf32>
    %439 = vector.broadcast %431 : vector<16x1xf32> to vector<16x32xf32>
    %440 = arith.subf %425, %439 : vector<16x32xf32>
    %cst_183 = arith.constant 9.99999974E-6 : f32
    %441 = vector.broadcast %cst_183 : f32 to vector<16x1xf32>
    %442 = arith.addf %438, %441 : vector<16x1xf32>
    %443 = math.rsqrt %442 : vector<16x1xf32>
    %444 = vector.broadcast %443 : vector<16x1xf32> to vector<16x32xf32>
    %445 = arith.mulf %440, %444 : vector<16x32xf32>
    %446 = vector.broadcast %426 : vector<1x32xf32> to vector<16x32xf32>
    %447 = arith.mulf %445, %446 : vector<16x32xf32>
    %448 = vector.broadcast %427 : vector<1x32xf32> to vector<16x32xf32>
    %449 = arith.addf %447, %448 : vector<16x32xf32>
    %c0_184 = arith.constant 0 : index
    %c0_185 = arith.constant 0 : index
    %450 = vector.load %arg32[%c0_184, %c0_185] : memref<32x128xf32, #tpu.memory_space<vmem>>, vector<32x128xf32>
    %cst_186 = arith.constant dense<0.000000e+00> : vector<16x128xf32>
    %451 = tpu.matmul %449, %450, %cst_186 {dimension_numbers = #tpu.dot_dimension_numbers<[1], [0], [0], [1], [0, 0, 1, 1], [], []>} : vector<16x32xf32>, vector<32x128xf32>, vector<16x128xf32> -> vector<16x128xf32>
    %c0_187 = arith.constant 0 : index
    %c0_188 = arith.constant 0 : index
    %452 = vector.load %arg33[%c0_187, %c0_188] : memref<32x128xf32, #tpu.memory_space<vmem>>, vector<32x128xf32>
    %cst_189 = arith.constant dense<0.000000e+00> : vector<16x128xf32>
    %453 = tpu.matmul %449, %452, %cst_189 {dimension_numbers = #tpu.dot_dimension_numbers<[1], [0], [0], [1], [0, 0, 1, 1], [], []>} : vector<16x32xf32>, vector<32x128xf32>, vector<16x128xf32> -> vector<16x128xf32>
    %c0_190 = arith.constant 0 : index
    %c0_191 = arith.constant 0 : index
    %454 = vector.load %arg34[%c0_190, %c0_191] : memref<32x128xf32, #tpu.memory_space<vmem>>, vector<32x128xf32>
    %cst_192 = arith.constant dense<0.000000e+00> : vector<16x128xf32>
    %455 = tpu.matmul %449, %454, %cst_192 {dimension_numbers = #tpu.dot_dimension_numbers<[1], [0], [0], [1], [0, 0, 1, 1], [], []>} : vector<16x32xf32>, vector<32x128xf32>, vector<16x128xf32> -> vector<16x128xf32>
    %456 = vector.extract_strided_slice %451 {offsets = [0, 0], sizes = [16, 32], strides = [1, 1]} : vector<16x128xf32> to vector<16x32xf32>
    %457 = vector.extract_strided_slice %453 {offsets = [0, 0], sizes = [16, 32], strides = [1, 1]} : vector<16x128xf32> to vector<16x32xf32>
    %cst_193 = arith.constant dense<0.000000e+00> : vector<16x16xf32>
    %458 = tpu.matmul %456, %457, %cst_193 {dimension_numbers = #tpu.dot_dimension_numbers<[1], [1], [0], [0], [0, 0, 1, 0], [], []>} : vector<16x32xf32>, vector<16x32xf32>, vector<16x16xf32> -> vector<16x16xf32>
    %cst_194 = arith.constant 0.176776692 : f32
    %459 = vector.broadcast %cst_194 : f32 to vector<16x16xf32>
    %460 = arith.mulf %458, %459 : vector<16x16xf32>
    %cst_195 = arith.constant -1.000000e+30 : f32
    %461 = vector.broadcast %cst_195 : f32 to vector<16x16xf32>
    %462 = arith.select %143, %460, %461 : vector<16x16xi1>, vector<16x16xf32>
    %cst_196 = arith.constant dense<0xFF800000> : vector<16xf32>
    %463 = vector.multi_reduction <maximumf>, %462, %cst_196 [1] : vector<16x16xf32> to vector<16xf32>
    %464 = vector.shape_cast %463 : vector<16xf32> to vector<16x1xf32>
    %465 = vector.broadcast %464 : vector<16x1xf32> to vector<16x16xf32>
    %466 = arith.subf %462, %465 : vector<16x16xf32>
    %467 = math.exp %466 : vector<16x16xf32>
    %cst_197 = arith.constant dense<0.000000e+00> : vector<16xf32>
    %468 = vector.multi_reduction <add>, %467, %cst_197 [1] : vector<16x16xf32> to vector<16xf32>
    %469 = vector.shape_cast %468 : vector<16xf32> to vector<16x1xf32>
    %470 = tpu.reciprocal %469 {approx = true} : vector<16x1xf32> -> vector<16x1xf32>
    %471 = vector.broadcast %470 : vector<16x1xf32> to vector<16x16xf32>
    %472 = arith.mulf %467, %471 : vector<16x16xf32>
    %473 = vector.extract_strided_slice %455 {offsets = [0, 0], sizes = [16, 32], strides = [1, 1]} : vector<16x128xf32> to vector<16x32xf32>
    %cst_198 = arith.constant dense<0.000000e+00> : vector<16x32xf32>
    %474 = tpu.matmul %472, %473, %cst_198 {dimension_numbers = #tpu.dot_dimension_numbers<[1], [0], [0], [1], [0, 0, 1, 1], [], []>} : vector<16x16xf32>, vector<16x32xf32>, vector<16x32xf32> -> vector<16x32xf32>
    %475 = vector.extract_strided_slice %451 {offsets = [0, 32], sizes = [16, 32], strides = [1, 1]} : vector<16x128xf32> to vector<16x32xf32>
    %476 = vector.extract_strided_slice %453 {offsets = [0, 32], sizes = [16, 32], strides = [1, 1]} : vector<16x128xf32> to vector<16x32xf32>
    %cst_199 = arith.constant dense<0.000000e+00> : vector<16x16xf32>
    %477 = tpu.matmul %475, %476, %cst_199 {dimension_numbers = #tpu.dot_dimension_numbers<[1], [1], [0], [0], [0, 0, 1, 0], [], []>} : vector<16x32xf32>, vector<16x32xf32>, vector<16x16xf32> -> vector<16x16xf32>
    %cst_200 = arith.constant 0.176776692 : f32
    %478 = vector.broadcast %cst_200 : f32 to vector<16x16xf32>
    %479 = arith.mulf %477, %478 : vector<16x16xf32>
    %cst_201 = arith.constant -1.000000e+30 : f32
    %480 = vector.broadcast %cst_201 : f32 to vector<16x16xf32>
    %481 = arith.select %143, %479, %480 : vector<16x16xi1>, vector<16x16xf32>
    %cst_202 = arith.constant dense<0xFF800000> : vector<16xf32>
    %482 = vector.multi_reduction <maximumf>, %481, %cst_202 [1] : vector<16x16xf32> to vector<16xf32>
    %483 = vector.shape_cast %482 : vector<16xf32> to vector<16x1xf32>
    %484 = vector.broadcast %483 : vector<16x1xf32> to vector<16x16xf32>
    %485 = arith.subf %481, %484 : vector<16x16xf32>
    %486 = math.exp %485 : vector<16x16xf32>
    %cst_203 = arith.constant dense<0.000000e+00> : vector<16xf32>
    %487 = vector.multi_reduction <add>, %486, %cst_203 [1] : vector<16x16xf32> to vector<16xf32>
    %488 = vector.shape_cast %487 : vector<16xf32> to vector<16x1xf32>
    %489 = tpu.reciprocal %488 {approx = true} : vector<16x1xf32> -> vector<16x1xf32>
    %490 = vector.broadcast %489 : vector<16x1xf32> to vector<16x16xf32>
    %491 = arith.mulf %486, %490 : vector<16x16xf32>
    %492 = vector.extract_strided_slice %455 {offsets = [0, 32], sizes = [16, 32], strides = [1, 1]} : vector<16x128xf32> to vector<16x32xf32>
    %cst_204 = arith.constant dense<0.000000e+00> : vector<16x32xf32>
    %493 = tpu.matmul %491, %492, %cst_204 {dimension_numbers = #tpu.dot_dimension_numbers<[1], [0], [0], [1], [0, 0, 1, 1], [], []>} : vector<16x16xf32>, vector<16x32xf32>, vector<16x32xf32> -> vector<16x32xf32>
    %494 = vector.extract_strided_slice %451 {offsets = [0, 64], sizes = [16, 32], strides = [1, 1]} : vector<16x128xf32> to vector<16x32xf32>
    %495 = vector.extract_strided_slice %453 {offsets = [0, 64], sizes = [16, 32], strides = [1, 1]} : vector<16x128xf32> to vector<16x32xf32>
    %cst_205 = arith.constant dense<0.000000e+00> : vector<16x16xf32>
    %496 = tpu.matmul %494, %495, %cst_205 {dimension_numbers = #tpu.dot_dimension_numbers<[1], [1], [0], [0], [0, 0, 1, 0], [], []>} : vector<16x32xf32>, vector<16x32xf32>, vector<16x16xf32> -> vector<16x16xf32>
    %cst_206 = arith.constant 0.176776692 : f32
    %497 = vector.broadcast %cst_206 : f32 to vector<16x16xf32>
    %498 = arith.mulf %496, %497 : vector<16x16xf32>
    %cst_207 = arith.constant -1.000000e+30 : f32
    %499 = vector.broadcast %cst_207 : f32 to vector<16x16xf32>
    %500 = arith.select %143, %498, %499 : vector<16x16xi1>, vector<16x16xf32>
    %cst_208 = arith.constant dense<0xFF800000> : vector<16xf32>
    %501 = vector.multi_reduction <maximumf>, %500, %cst_208 [1] : vector<16x16xf32> to vector<16xf32>
    %502 = vector.shape_cast %501 : vector<16xf32> to vector<16x1xf32>
    %503 = vector.broadcast %502 : vector<16x1xf32> to vector<16x16xf32>
    %504 = arith.subf %500, %503 : vector<16x16xf32>
    %505 = math.exp %504 : vector<16x16xf32>
    %cst_209 = arith.constant dense<0.000000e+00> : vector<16xf32>
    %506 = vector.multi_reduction <add>, %505, %cst_209 [1] : vector<16x16xf32> to vector<16xf32>
    %507 = vector.shape_cast %506 : vector<16xf32> to vector<16x1xf32>
    %508 = tpu.reciprocal %507 {approx = true} : vector<16x1xf32> -> vector<16x1xf32>
    %509 = vector.broadcast %508 : vector<16x1xf32> to vector<16x16xf32>
    %510 = arith.mulf %505, %509 : vector<16x16xf32>
    %511 = vector.extract_strided_slice %455 {offsets = [0, 64], sizes = [16, 32], strides = [1, 1]} : vector<16x128xf32> to vector<16x32xf32>
    %cst_210 = arith.constant dense<0.000000e+00> : vector<16x32xf32>
    %512 = tpu.matmul %510, %511, %cst_210 {dimension_numbers = #tpu.dot_dimension_numbers<[1], [0], [0], [1], [0, 0, 1, 1], [], []>} : vector<16x16xf32>, vector<16x32xf32>, vector<16x32xf32> -> vector<16x32xf32>
    %513 = vector.extract_strided_slice %451 {offsets = [0, 96], sizes = [16, 32], strides = [1, 1]} : vector<16x128xf32> to vector<16x32xf32>
    %514 = vector.extract_strided_slice %453 {offsets = [0, 96], sizes = [16, 32], strides = [1, 1]} : vector<16x128xf32> to vector<16x32xf32>
    %cst_211 = arith.constant dense<0.000000e+00> : vector<16x16xf32>
    %515 = tpu.matmul %513, %514, %cst_211 {dimension_numbers = #tpu.dot_dimension_numbers<[1], [1], [0], [0], [0, 0, 1, 0], [], []>} : vector<16x32xf32>, vector<16x32xf32>, vector<16x16xf32> -> vector<16x16xf32>
    %cst_212 = arith.constant 0.176776692 : f32
    %516 = vector.broadcast %cst_212 : f32 to vector<16x16xf32>
    %517 = arith.mulf %515, %516 : vector<16x16xf32>
    %cst_213 = arith.constant -1.000000e+30 : f32
    %518 = vector.broadcast %cst_213 : f32 to vector<16x16xf32>
    %519 = arith.select %143, %517, %518 : vector<16x16xi1>, vector<16x16xf32>
    %cst_214 = arith.constant dense<0xFF800000> : vector<16xf32>
    %520 = vector.multi_reduction <maximumf>, %519, %cst_214 [1] : vector<16x16xf32> to vector<16xf32>
    %521 = vector.shape_cast %520 : vector<16xf32> to vector<16x1xf32>
    %522 = vector.broadcast %521 : vector<16x1xf32> to vector<16x16xf32>
    %523 = arith.subf %519, %522 : vector<16x16xf32>
    %524 = math.exp %523 : vector<16x16xf32>
    %cst_215 = arith.constant dense<0.000000e+00> : vector<16xf32>
    %525 = vector.multi_reduction <add>, %524, %cst_215 [1] : vector<16x16xf32> to vector<16xf32>
    %526 = vector.shape_cast %525 : vector<16xf32> to vector<16x1xf32>
    %527 = tpu.reciprocal %526 {approx = true} : vector<16x1xf32> -> vector<16x1xf32>
    %528 = vector.broadcast %527 : vector<16x1xf32> to vector<16x16xf32>
    %529 = arith.mulf %524, %528 : vector<16x16xf32>
    %530 = vector.extract_strided_slice %455 {offsets = [0, 96], sizes = [16, 32], strides = [1, 1]} : vector<16x128xf32> to vector<16x32xf32>
    %cst_216 = arith.constant dense<0.000000e+00> : vector<16x32xf32>
    %531 = tpu.matmul %529, %530, %cst_216 {dimension_numbers = #tpu.dot_dimension_numbers<[1], [0], [0], [1], [0, 0, 1, 1], [], []>} : vector<16x16xf32>, vector<16x32xf32>, vector<16x32xf32> -> vector<16x32xf32>
    %532 = tpu.concatenate %474, %493, %512, %531 in 1 : vector<16x32xf32>, vector<16x32xf32>, vector<16x32xf32>, vector<16x32xf32> -> vector<16x128xf32>
    %c0_217 = arith.constant 0 : index
    %c0_218 = arith.constant 0 : index
    %533 = vector.load %arg35[%c0_217, %c0_218] : memref<128x32xf32, #tpu.memory_space<vmem>>, vector<128x32xf32>
    %cst_219 = arith.constant dense<0.000000e+00> : vector<16x32xf32>
    %534 = tpu.matmul %532, %533, %cst_219 {dimension_numbers = #tpu.dot_dimension_numbers<[1], [0], [0], [1], [0, 0, 1, 1], [], []>} : vector<16x128xf32>, vector<128x32xf32>, vector<16x32xf32> -> vector<16x32xf32>
    %535 = arith.addf %449, %534 : vector<16x32xf32>
    %c0_220 = arith.constant 0 : index
    %c0_221 = arith.constant 0 : index
    %536 = vector.load %arg40[%c0_220, %c0_221] : memref<1x32xf32, #tpu.memory_space<vmem>>, vector<1x32xf32>
    %c0_222 = arith.constant 0 : index
    %c0_223 = arith.constant 0 : index
    %537 = vector.load %arg41[%c0_222, %c0_223] : memref<1x32xf32, #tpu.memory_space<vmem>>, vector<1x32xf32>
    %cst_224 = arith.constant dense<0.000000e+00> : vector<16xf32>
    %538 = vector.multi_reduction <add>, %535, %cst_224 [1] : vector<16x32xf32> to vector<16xf32>
    %539 = vector.shape_cast %538 : vector<16xf32> to vector<16x1xf32>
    %cst_225 = arith.constant 3.200000e+01 : f32
    %540 = vector.broadcast %cst_225 : f32 to vector<16x1xf32>
    %541 = arith.divf %539, %540 : vector<16x1xf32>
    %542 = vector.broadcast %541 : vector<16x1xf32> to vector<16x32xf32>
    %543 = arith.subf %535, %542 : vector<16x32xf32>
    %544 = arith.mulf %543, %543 : vector<16x32xf32>
    %cst_226 = arith.constant dense<0.000000e+00> : vector<16xf32>
    %545 = vector.multi_reduction <add>, %544, %cst_226 [1] : vector<16x32xf32> to vector<16xf32>
    %546 = vector.shape_cast %545 : vector<16xf32> to vector<16x1xf32>
    %cst_227 = arith.constant 3.200000e+01 : f32
    %547 = vector.broadcast %cst_227 : f32 to vector<16x1xf32>
    %548 = arith.divf %546, %547 : vector<16x1xf32>
    %549 = vector.broadcast %541 : vector<16x1xf32> to vector<16x32xf32>
    %550 = arith.subf %535, %549 : vector<16x32xf32>
    %cst_228 = arith.constant 9.99999974E-6 : f32
    %551 = vector.broadcast %cst_228 : f32 to vector<16x1xf32>
    %552 = arith.addf %548, %551 : vector<16x1xf32>
    %553 = math.rsqrt %552 : vector<16x1xf32>
    %554 = vector.broadcast %553 : vector<16x1xf32> to vector<16x32xf32>
    %555 = arith.mulf %550, %554 : vector<16x32xf32>
    %556 = vector.broadcast %536 : vector<1x32xf32> to vector<16x32xf32>
    %557 = arith.mulf %555, %556 : vector<16x32xf32>
    %558 = vector.broadcast %537 : vector<1x32xf32> to vector<16x32xf32>
    %559 = arith.addf %557, %558 : vector<16x32xf32>
    %c0_229 = arith.constant 0 : index
    %c0_230 = arith.constant 0 : index
    %560 = vector.load %arg36[%c0_229, %c0_230] : memref<32x32xf32, #tpu.memory_space<vmem>>, vector<32x32xf32>
    %cst_231 = arith.constant dense<0.000000e+00> : vector<16x32xf32>
    %561 = tpu.matmul %559, %560, %cst_231 {dimension_numbers = #tpu.dot_dimension_numbers<[1], [0], [0], [1], [0, 0, 1, 1], [], []>} : vector<16x32xf32>, vector<32x32xf32>, vector<16x32xf32> -> vector<16x32xf32>
    %c0_232 = arith.constant 0 : index
    %c0_233 = arith.constant 0 : index
    %562 = vector.load %arg37[%c0_232, %c0_233] : memref<1x32xf32, #tpu.memory_space<vmem>>, vector<1x32xf32>
    %563 = vector.broadcast %562 : vector<1x32xf32> to vector<16x32xf32>
    %564 = arith.addf %561, %563 : vector<16x32xf32>
    %cst_234 = arith.constant 0.000000e+00 : f32
    %565 = vector.broadcast %cst_234 : f32 to vector<16x32xf32>
    %566 = arith.maximumf %564, %565 : vector<16x32xf32>
    %c0_235 = arith.constant 0 : index
    %c0_236 = arith.constant 0 : index
    %567 = vector.load %arg38[%c0_235, %c0_236] : memref<32x32xf32, #tpu.memory_space<vmem>>, vector<32x32xf32>
    %cst_237 = arith.constant dense<0.000000e+00> : vector<16x32xf32>
    %568 = tpu.matmul %566, %567, %cst_237 {dimension_numbers = #tpu.dot_dimension_numbers<[1], [0], [0], [1], [0, 0, 1, 1], [], []>} : vector<16x32xf32>, vector<32x32xf32>, vector<16x32xf32> -> vector<16x32xf32>
    %c0_238 = arith.constant 0 : index
    %c0_239 = arith.constant 0 : index
    %569 = vector.load %arg39[%c0_238, %c0_239] : memref<1x32xf32, #tpu.memory_space<vmem>>, vector<1x32xf32>
    %570 = vector.broadcast %569 : vector<1x32xf32> to vector<16x32xf32>
    %571 = arith.addf %568, %570 : vector<16x32xf32>
    %572 = arith.addf %559, %571 : vector<16x32xf32>
    %c0_240 = arith.constant 0 : index
    %c0_241 = arith.constant 0 : index
    %573 = vector.load %arg42[%c0_240, %c0_241] : memref<1x32xf32, #tpu.memory_space<vmem>>, vector<1x32xf32>
    %c0_242 = arith.constant 0 : index
    %c0_243 = arith.constant 0 : index
    %574 = vector.load %arg43[%c0_242, %c0_243] : memref<1x32xf32, #tpu.memory_space<vmem>>, vector<1x32xf32>
    %cst_244 = arith.constant dense<0.000000e+00> : vector<16xf32>
    %575 = vector.multi_reduction <add>, %572, %cst_244 [1] : vector<16x32xf32> to vector<16xf32>
    %576 = vector.shape_cast %575 : vector<16xf32> to vector<16x1xf32>
    %cst_245 = arith.constant 3.200000e+01 : f32
    %577 = vector.broadcast %cst_245 : f32 to vector<16x1xf32>
    %578 = arith.divf %576, %577 : vector<16x1xf32>
    %579 = vector.broadcast %578 : vector<16x1xf32> to vector<16x32xf32>
    %580 = arith.subf %572, %579 : vector<16x32xf32>
    %581 = arith.mulf %580, %580 : vector<16x32xf32>
    %cst_246 = arith.constant dense<0.000000e+00> : vector<16xf32>
    %582 = vector.multi_reduction <add>, %581, %cst_246 [1] : vector<16x32xf32> to vector<16xf32>
    %583 = vector.shape_cast %582 : vector<16xf32> to vector<16x1xf32>
    %cst_247 = arith.constant 3.200000e+01 : f32
    %584 = vector.broadcast %cst_247 : f32 to vector<16x1xf32>
    %585 = arith.divf %583, %584 : vector<16x1xf32>
    %586 = vector.broadcast %578 : vector<16x1xf32> to vector<16x32xf32>
    %587 = arith.subf %572, %586 : vector<16x32xf32>
    %cst_248 = arith.constant 9.99999974E-6 : f32
    %588 = vector.broadcast %cst_248 : f32 to vector<16x1xf32>
    %589 = arith.addf %585, %588 : vector<16x1xf32>
    %590 = math.rsqrt %589 : vector<16x1xf32>
    %591 = vector.broadcast %590 : vector<16x1xf32> to vector<16x32xf32>
    %592 = arith.mulf %587, %591 : vector<16x32xf32>
    %593 = vector.broadcast %573 : vector<1x32xf32> to vector<16x32xf32>
    %594 = arith.mulf %592, %593 : vector<16x32xf32>
    %595 = vector.broadcast %574 : vector<1x32xf32> to vector<16x32xf32>
    %596 = arith.addf %594, %595 : vector<16x32xf32>
    %597 = vector.extract_strided_slice %596 {offsets = [0, 0], sizes = [4, 32], strides = [1, 1]} : vector<16x32xf32> to vector<4x32xf32>
    %598 = vector.extract_strided_slice %596 {offsets = [4, 0], sizes = [4, 32], strides = [1, 1]} : vector<16x32xf32> to vector<4x32xf32>
    %599 = vector.extract_strided_slice %596 {offsets = [8, 0], sizes = [4, 32], strides = [1, 1]} : vector<16x32xf32> to vector<4x32xf32>
    %600 = vector.extract_strided_slice %596 {offsets = [12, 0], sizes = [4, 32], strides = [1, 1]} : vector<16x32xf32> to vector<4x32xf32>
    %601 = tpu.concatenate %597, %598, %599, %600 in 1 : vector<4x32xf32>, vector<4x32xf32>, vector<4x32xf32>, vector<4x32xf32> -> vector<4x128xf32>
    %c0_249 = arith.constant 0 : index
    %c0_250 = arith.constant 0 : index
    %602 = vector.load %arg44[%c0_249, %c0_250] : memref<128x32xf32, #tpu.memory_space<vmem>>, vector<128x32xf32>
    %cst_251 = arith.constant dense<0.000000e+00> : vector<4x32xf32>
    %603 = tpu.matmul %601, %602, %cst_251 {dimension_numbers = #tpu.dot_dimension_numbers<[1], [0], [0], [1], [0, 0, 1, 1], [], []>} : vector<4x128xf32>, vector<128x32xf32>, vector<4x32xf32> -> vector<4x32xf32>
    %c0_252 = arith.constant 0 : index
    %c0_253 = arith.constant 0 : index
    %604 = vector.load %arg45[%c0_252, %c0_253] : memref<1x32xf32, #tpu.memory_space<vmem>>, vector<1x32xf32>
    %605 = vector.broadcast %604 : vector<1x32xf32> to vector<4x32xf32>
    %606 = arith.addf %603, %605 : vector<4x32xf32>
    %c0_254 = arith.constant 0 : index
    %c0_255 = arith.constant 0 : index
    %607 = vector.load %arg46[%c0_254, %c0_255] : memref<32x32xf32, #tpu.memory_space<vmem>>, vector<32x32xf32>
    %cst_256 = arith.constant dense<0.000000e+00> : vector<4x32xf32>
    %608 = tpu.matmul %606, %607, %cst_256 {dimension_numbers = #tpu.dot_dimension_numbers<[1], [0], [0], [1], [0, 0, 1, 1], [], []>} : vector<4x32xf32>, vector<32x32xf32>, vector<4x32xf32> -> vector<4x32xf32>
    %c0_257 = arith.constant 0 : index
    %c0_258 = arith.constant 0 : index
    %609 = vector.load %arg47[%c0_257, %c0_258] : memref<1x32xf32, #tpu.memory_space<vmem>>, vector<1x32xf32>
    %610 = vector.broadcast %609 : vector<1x32xf32> to vector<4x32xf32>
    %611 = arith.addf %608, %610 : vector<4x32xf32>
    %cst_259 = arith.constant 0.000000e+00 : f32
    %612 = vector.broadcast %cst_259 : f32 to vector<4x32xf32>
    %613 = arith.maximumf %611, %612 : vector<4x32xf32>
    %c0_260 = arith.constant 0 : index
    %c0_261 = arith.constant 0 : index
    %614 = vector.load %arg48[%c0_260, %c0_261] : memref<32x128xf32, #tpu.memory_space<vmem>>, vector<32x128xf32>
    %cst_262 = arith.constant dense<0.000000e+00> : vector<4x128xf32>
    %615 = tpu.matmul %613, %614, %cst_262 {dimension_numbers = #tpu.dot_dimension_numbers<[1], [0], [0], [1], [0, 0, 1, 1], [], []>} : vector<4x32xf32>, vector<32x128xf32>, vector<4x128xf32> -> vector<4x128xf32>
    %c0_263 = arith.constant 0 : index
    %c0_264 = arith.constant 0 : index
    %616 = vector.load %arg49[%c0_263, %c0_264] : memref<1x128xf32, #tpu.memory_space<vmem>>, vector<1x128xf32>
    %617 = vector.broadcast %616 : vector<1x128xf32> to vector<4x128xf32>
    %618 = arith.addf %615, %617 : vector<4x128xf32>
    %c0_265 = arith.constant 0 : index
    %c0_266 = arith.constant 0 : index
    %c0_267 = arith.constant 0 : index
    %619 = vector.load %arg50[%c0_265, %c0_266, %c0_267] : memref<1x4x128xf32, #tpu.memory_space<vmem>>, vector<1x4x128xf32>
    %620 = vector.shape_cast %619 : vector<1x4x128xf32> to vector<4x128xf32>
    %621 = vector.shape_cast %618 : vector<4x128xf32> to vector<1x4x128xf32>
    tpu.vector_store %arg50[%c0_265, %c0_266, %c0_267], %621 {strides = array<i32>} : memref<1x4x128xf32, #tpu.memory_space<vmem>>, vector<1x4x128xf32>,
    return
  }
  func.func @transform_0(%arg0: i32, %arg1: memref<1x4xi32, #tpu.memory_space<smem>>) -> (i32, i32, i32) {
    %c0_i32 = arith.constant 0 : i32
    %c0_i32_0 = arith.constant 0 : i32
    %c0_i32_1 = arith.constant 0 : i32
    return %arg0, %c0_i32, %c0_i32_0 : i32, i32, i32
  }
  func.func @transform_1(%arg0: i32, %arg1: memref<1x4xi32, #tpu.memory_space<smem>>) -> (i32, i32) {
    %c0_i32 = arith.constant 0 : i32
    %c0_i32_0 = arith.constant 0 : i32
    %c0_i32_1 = arith.constant 0 : i32
    return %c0_i32, %c0_i32_0 : i32, i32
  }
  func.func @transform_2(%arg0: i32, %arg1: memref<1x4xi32, #tpu.memory_space<smem>>) -> (i32, i32) {
    %c0_i32 = arith.constant 0 : i32
    %c0_i32_0 = arith.constant 0 : i32
    %c0_i32_1 = arith.constant 0 : i32
    return %c0_i32, %c0_i32_0 : i32, i32
  }
  func.func @transform_3(%arg0: i32, %arg1: memref<1x4xi32, #tpu.memory_space<smem>>) -> (i32, i32) {
    %c0_i32 = arith.constant 0 : i32
    %c0_i32_0 = arith.constant 0 : i32
    %c0_i32_1 = arith.constant 0 : i32
    return %c0_i32, %c0_i32_0 : i32, i32
  }
  func.func @transform_4(%arg0: i32, %arg1: memref<1x4xi32, #tpu.memory_space<smem>>) -> (i32, i32) {
    %c0_i32 = arith.constant 0 : i32
    %c0_i32_0 = arith.constant 0 : i32
    %c0_i32_1 = arith.constant 0 : i32
    return %c0_i32, %c0_i32_0 : i32, i32
  }
  func.func @transform_5(%arg0: i32, %arg1: memref<1x4xi32, #tpu.memory_space<smem>>) -> (i32, i32) {
    %c0_i32 = arith.constant 0 : i32
    %c0_i32_0 = arith.constant 0 : i32
    %c0_i32_1 = arith.constant 0 : i32
    return %c0_i32, %c0_i32_0 : i32, i32
  }
  func.func @transform_6(%arg0: i32, %arg1: memref<1x4xi32, #tpu.memory_space<smem>>) -> (i32, i32) {
    %c0_i32 = arith.constant 0 : i32
    %c0_i32_0 = arith.constant 0 : i32
    %c0_i32_1 = arith.constant 0 : i32
    return %c0_i32, %c0_i32_0 : i32, i32
  }
  func.func @transform_7(%arg0: i32, %arg1: memref<1x4xi32, #tpu.memory_space<smem>>) -> (i32, i32) {
    %c0_i32 = arith.constant 0 : i32
    %c0_i32_0 = arith.constant 0 : i32
    %c0_i32_1 = arith.constant 0 : i32
    return %c0_i32, %c0_i32_0 : i32, i32
  }
  func.func @transform_8(%arg0: i32, %arg1: memref<1x4xi32, #tpu.memory_space<smem>>) -> (i32, i32) {
    %c0_i32 = arith.constant 0 : i32
    %c0_i32_0 = arith.constant 0 : i32
    %c0_i32_1 = arith.constant 0 : i32
    return %c0_i32, %c0_i32_0 : i32, i32
  }
  func.func @transform_9(%arg0: i32, %arg1: memref<1x4xi32, #tpu.memory_space<smem>>) -> (i32, i32) {
    %c0_i32 = arith.constant 0 : i32
    %c0_i32_0 = arith.constant 0 : i32
    %c0_i32_1 = arith.constant 0 : i32
    return %c0_i32, %c0_i32_0 : i32, i32
  }
  func.func @transform_10(%arg0: i32, %arg1: memref<1x4xi32, #tpu.memory_space<smem>>) -> (i32, i32) {
    %c0_i32 = arith.constant 0 : i32
    %c0_i32_0 = arith.constant 0 : i32
    %c0_i32_1 = arith.constant 0 : i32
    return %c0_i32, %c0_i32_0 : i32, i32
  }
  func.func @transform_11(%arg0: i32, %arg1: memref<1x4xi32, #tpu.memory_space<smem>>) -> (i32, i32) {
    %c0_i32 = arith.constant 0 : i32
    %c0_i32_0 = arith.constant 0 : i32
    %c0_i32_1 = arith.constant 0 : i32
    return %c0_i32, %c0_i32_0 : i32, i32
  }
  func.func @transform_12(%arg0: i32, %arg1: memref<1x4xi32, #tpu.memory_space<smem>>) -> (i32, i32) {
    %c0_i32 = arith.constant 0 : i32
    %c0_i32_0 = arith.constant 0 : i32
    %c0_i32_1 = arith.constant 0 : i32
    return %c0_i32, %c0_i32_0 : i32, i32
  }
  func.func @transform_13(%arg0: i32, %arg1: memref<1x4xi32, #tpu.memory_space<smem>>) -> (i32, i32) {
    %c0_i32 = arith.constant 0 : i32
    %c0_i32_0 = arith.constant 0 : i32
    %c0_i32_1 = arith.constant 0 : i32
    return %c0_i32, %c0_i32_0 : i32, i32
  }
  func.func @transform_14(%arg0: i32, %arg1: memref<1x4xi32, #tpu.memory_space<smem>>) -> (i32, i32) {
    %c0_i32 = arith.constant 0 : i32
    %c0_i32_0 = arith.constant 0 : i32
    %c0_i32_1 = arith.constant 0 : i32
    return %c0_i32, %c0_i32_0 : i32, i32
  }
  func.func @transform_15(%arg0: i32, %arg1: memref<1x4xi32, #tpu.memory_space<smem>>) -> (i32, i32) {
    %c0_i32 = arith.constant 0 : i32
    %c0_i32_0 = arith.constant 0 : i32
    %c0_i32_1 = arith.constant 0 : i32
    return %c0_i32, %c0_i32_0 : i32, i32
  }
  func.func @transform_16(%arg0: i32, %arg1: memref<1x4xi32, #tpu.memory_space<smem>>) -> (i32, i32) {
    %c0_i32 = arith.constant 0 : i32
    %c0_i32_0 = arith.constant 0 : i32
    %c0_i32_1 = arith.constant 0 : i32
    return %c0_i32, %c0_i32_0 : i32, i32
  }
  func.func @transform_17(%arg0: i32, %arg1: memref<1x4xi32, #tpu.memory_space<smem>>) -> (i32, i32) {
    %c0_i32 = arith.constant 0 : i32
    %c0_i32_0 = arith.constant 0 : i32
    %c0_i32_1 = arith.constant 0 : i32
    return %c0_i32, %c0_i32_0 : i32, i32
  }
  func.func @transform_18(%arg0: i32, %arg1: memref<1x4xi32, #tpu.memory_space<smem>>) -> (i32, i32) {
    %c0_i32 = arith.constant 0 : i32
    %c0_i32_0 = arith.constant 0 : i32
    %c0_i32_1 = arith.constant 0 : i32
    return %c0_i32, %c0_i32_0 : i32, i32
  }
  func.func @transform_19(%arg0: i32, %arg1: memref<1x4xi32, #tpu.memory_space<smem>>) -> (i32, i32) {
    %c0_i32 = arith.constant 0 : i32
    %c0_i32_0 = arith.constant 0 : i32
    %c0_i32_1 = arith.constant 0 : i32
    return %c0_i32, %c0_i32_0 : i32, i32
  }
  func.func @transform_20(%arg0: i32, %arg1: memref<1x4xi32, #tpu.memory_space<smem>>) -> (i32, i32) {
    %c0_i32 = arith.constant 0 : i32
    %c0_i32_0 = arith.constant 0 : i32
    %c0_i32_1 = arith.constant 0 : i32
    return %c0_i32, %c0_i32_0 : i32, i32
  }
  func.func @transform_21(%arg0: i32, %arg1: memref<1x4xi32, #tpu.memory_space<smem>>) -> (i32, i32) {
    %c0_i32 = arith.constant 0 : i32
    %c0_i32_0 = arith.constant 0 : i32
    %c0_i32_1 = arith.constant 0 : i32
    return %c0_i32, %c0_i32_0 : i32, i32
  }
  func.func @transform_22(%arg0: i32, %arg1: memref<1x4xi32, #tpu.memory_space<smem>>) -> (i32, i32) {
    %c0_i32 = arith.constant 0 : i32
    %c0_i32_0 = arith.constant 0 : i32
    %c0_i32_1 = arith.constant 0 : i32
    return %c0_i32, %c0_i32_0 : i32, i32
  }
  func.func @transform_23(%arg0: i32, %arg1: memref<1x4xi32, #tpu.memory_space<smem>>) -> (i32, i32) {
    %c0_i32 = arith.constant 0 : i32
    %c0_i32_0 = arith.constant 0 : i32
    %c0_i32_1 = arith.constant 0 : i32
    return %c0_i32, %c0_i32_0 : i32, i32
  }
  func.func @transform_24(%arg0: i32, %arg1: memref<1x4xi32, #tpu.memory_space<smem>>) -> (i32, i32) {
    %c0_i32 = arith.constant 0 : i32
    %c0_i32_0 = arith.constant 0 : i32
    %c0_i32_1 = arith.constant 0 : i32
    return %c0_i32, %c0_i32_0 : i32, i32
  }
  func.func @transform_25(%arg0: i32, %arg1: memref<1x4xi32, #tpu.memory_space<smem>>) -> (i32, i32) {
    %c0_i32 = arith.constant 0 : i32
    %c0_i32_0 = arith.constant 0 : i32
    %c0_i32_1 = arith.constant 0 : i32
    return %c0_i32, %c0_i32_0 : i32, i32
  }
  func.func @transform_26(%arg0: i32, %arg1: memref<1x4xi32, #tpu.memory_space<smem>>) -> (i32, i32) {
    %c0_i32 = arith.constant 0 : i32
    %c0_i32_0 = arith.constant 0 : i32
    %c0_i32_1 = arith.constant 0 : i32
    return %c0_i32, %c0_i32_0 : i32, i32
  }
  func.func @transform_27(%arg0: i32, %arg1: memref<1x4xi32, #tpu.memory_space<smem>>) -> (i32, i32) {
    %c0_i32 = arith.constant 0 : i32
    %c0_i32_0 = arith.constant 0 : i32
    %c0_i32_1 = arith.constant 0 : i32
    return %c0_i32, %c0_i32_0 : i32, i32
  }
  func.func @transform_28(%arg0: i32, %arg1: memref<1x4xi32, #tpu.memory_space<smem>>) -> (i32, i32) {
    %c0_i32 = arith.constant 0 : i32
    %c0_i32_0 = arith.constant 0 : i32
    %c0_i32_1 = arith.constant 0 : i32
    return %c0_i32, %c0_i32_0 : i32, i32
  }
  func.func @transform_29(%arg0: i32, %arg1: memref<1x4xi32, #tpu.memory_space<smem>>) -> (i32, i32) {
    %c0_i32 = arith.constant 0 : i32
    %c0_i32_0 = arith.constant 0 : i32
    %c0_i32_1 = arith.constant 0 : i32
    return %c0_i32, %c0_i32_0 : i32, i32
  }
  func.func @transform_30(%arg0: i32, %arg1: memref<1x4xi32, #tpu.memory_space<smem>>) -> (i32, i32) {
    %c0_i32 = arith.constant 0 : i32
    %c0_i32_0 = arith.constant 0 : i32
    %c0_i32_1 = arith.constant 0 : i32
    return %c0_i32, %c0_i32_0 : i32, i32
  }
  func.func @transform_31(%arg0: i32, %arg1: memref<1x4xi32, #tpu.memory_space<smem>>) -> (i32, i32) {
    %c0_i32 = arith.constant 0 : i32
    %c0_i32_0 = arith.constant 0 : i32
    %c0_i32_1 = arith.constant 0 : i32
    return %c0_i32, %c0_i32_0 : i32, i32
  }
  func.func @transform_32(%arg0: i32, %arg1: memref<1x4xi32, #tpu.memory_space<smem>>) -> (i32, i32) {
    %c0_i32 = arith.constant 0 : i32
    %c0_i32_0 = arith.constant 0 : i32
    %c0_i32_1 = arith.constant 0 : i32
    return %c0_i32, %c0_i32_0 : i32, i32
  }
  func.func @transform_33(%arg0: i32, %arg1: memref<1x4xi32, #tpu.memory_space<smem>>) -> (i32, i32) {
    %c0_i32 = arith.constant 0 : i32
    %c0_i32_0 = arith.constant 0 : i32
    %c0_i32_1 = arith.constant 0 : i32
    return %c0_i32, %c0_i32_0 : i32, i32
  }
  func.func @transform_34(%arg0: i32, %arg1: memref<1x4xi32, #tpu.memory_space<smem>>) -> (i32, i32) {
    %c0_i32 = arith.constant 0 : i32
    %c0_i32_0 = arith.constant 0 : i32
    %c0_i32_1 = arith.constant 0 : i32
    return %c0_i32, %c0_i32_0 : i32, i32
  }
  func.func @transform_35(%arg0: i32, %arg1: memref<1x4xi32, #tpu.memory_space<smem>>) -> (i32, i32) {
    %c0_i32 = arith.constant 0 : i32
    %c0_i32_0 = arith.constant 0 : i32
    %c0_i32_1 = arith.constant 0 : i32
    return %c0_i32, %c0_i32_0 : i32, i32
  }
  func.func @transform_36(%arg0: i32, %arg1: memref<1x4xi32, #tpu.memory_space<smem>>) -> (i32, i32) {
    %c0_i32 = arith.constant 0 : i32
    %c0_i32_0 = arith.constant 0 : i32
    %c0_i32_1 = arith.constant 0 : i32
    return %c0_i32, %c0_i32_0 : i32, i32
  }
  func.func @transform_37(%arg0: i32, %arg1: memref<1x4xi32, #tpu.memory_space<smem>>) -> (i32, i32) {
    %c0_i32 = arith.constant 0 : i32
    %c0_i32_0 = arith.constant 0 : i32
    %c0_i32_1 = arith.constant 0 : i32
    return %c0_i32, %c0_i32_0 : i32, i32
  }
  func.func @transform_38(%arg0: i32, %arg1: memref<1x4xi32, #tpu.memory_space<smem>>) -> (i32, i32) {
    %c0_i32 = arith.constant 0 : i32
    %c0_i32_0 = arith.constant 0 : i32
    %c0_i32_1 = arith.constant 0 : i32
    return %c0_i32, %c0_i32_0 : i32, i32
  }
  func.func @transform_39(%arg0: i32, %arg1: memref<1x4xi32, #tpu.memory_space<smem>>) -> (i32, i32) {
    %c0_i32 = arith.constant 0 : i32
    %c0_i32_0 = arith.constant 0 : i32
    %c0_i32_1 = arith.constant 0 : i32
    return %c0_i32, %c0_i32_0 : i32, i32
  }
  func.func @transform_40(%arg0: i32, %arg1: memref<1x4xi32, #tpu.memory_space<smem>>) -> (i32, i32) {
    %c0_i32 = arith.constant 0 : i32
    %c0_i32_0 = arith.constant 0 : i32
    %c0_i32_1 = arith.constant 0 : i32
    return %c0_i32, %c0_i32_0 : i32, i32
  }
  func.func @transform_41(%arg0: i32, %arg1: memref<1x4xi32, #tpu.memory_space<smem>>) -> (i32, i32) {
    %c0_i32 = arith.constant 0 : i32
    %c0_i32_0 = arith.constant 0 : i32
    %c0_i32_1 = arith.constant 0 : i32
    return %c0_i32, %c0_i32_0 : i32, i32
  }
  func.func @transform_42(%arg0: i32, %arg1: memref<1x4xi32, #tpu.memory_space<smem>>) -> (i32, i32) {
    %c0_i32 = arith.constant 0 : i32
    %c0_i32_0 = arith.constant 0 : i32
    %c0_i32_1 = arith.constant 0 : i32
    return %c0_i32, %c0_i32_0 : i32, i32
  }
  func.func @transform_43(%arg0: i32, %arg1: memref<1x4xi32, #tpu.memory_space<smem>>) -> (i32, i32) {
    %c0_i32 = arith.constant 0 : i32
    %c0_i32_0 = arith.constant 0 : i32
    %c0_i32_1 = arith.constant 0 : i32
    return %c0_i32, %c0_i32_0 : i32, i32
  }
  func.func @transform_44(%arg0: i32, %arg1: memref<1x4xi32, #tpu.memory_space<smem>>) -> (i32, i32) {
    %c0_i32 = arith.constant 0 : i32
    %c0_i32_0 = arith.constant 0 : i32
    %c0_i32_1 = arith.constant 0 : i32
    return %c0_i32, %c0_i32_0 : i32, i32
  }
  func.func @transform_45(%arg0: i32, %arg1: memref<1x4xi32, #tpu.memory_space<smem>>) -> (i32, i32) {
    %c0_i32 = arith.constant 0 : i32
    %c0_i32_0 = arith.constant 0 : i32
    %c0_i32_1 = arith.constant 0 : i32
    return %c0_i32, %c0_i32_0 : i32, i32
  }
  func.func @transform_46(%arg0: i32, %arg1: memref<1x4xi32, #tpu.memory_space<smem>>) -> (i32, i32) {
    %c0_i32 = arith.constant 0 : i32
    %c0_i32_0 = arith.constant 0 : i32
    %c0_i32_1 = arith.constant 0 : i32
    return %c0_i32, %c0_i32_0 : i32, i32
  }
  func.func @transform_47(%arg0: i32, %arg1: memref<1x4xi32, #tpu.memory_space<smem>>) -> (i32, i32) {
    %c0_i32 = arith.constant 0 : i32
    %c0_i32_0 = arith.constant 0 : i32
    %c0_i32_1 = arith.constant 0 : i32
    return %c0_i32, %c0_i32_0 : i32, i32
  }
  func.func @transform_48(%arg0: i32, %arg1: memref<1x4xi32, #tpu.memory_space<smem>>) -> (i32, i32, i32) {
    %c0_i32 = arith.constant 0 : i32
    %c0_i32_0 = arith.constant 0 : i32
    %c0_i32_1 = arith.constant 0 : i32
    return %arg0, %c0_i32, %c0_i32_0 : i32, i32, i32
  }
}

</mosaic_0001>

<llo_original>
// kernel: set_transformer_forward.1
$region0: #{set_transformer_forward.1}
  #allocation0 [shape = 'u32[]', space=smem, size = 0x4, offset = 0x4, fixed_abs, tag = 'smem constant byte address 0x4 - core index']
  #allocation1 [shape = 'u32[144,128]{1,0:T(1,128)}', space=vmem, size = 0x12000, scoped, tag = 'internal scratch']
  #allocation2 [shape = 's32[1]{0}', space=sflag, size = 0x4, scoped, tag = 'scoped memory for set_transformer_forward.1']
  #allocation3 [shape = 'u8[512]{0}', space=smem, size = 0x200, scoped, tag = 'prefetched SMEM operand 0']
  %s0 = inlined_call_operand.smem [shape: u32[50], index: -1, kind: input, shape index: {}]
  %s1 = sld [smem:[%s0]]
  %s2 = scalar_lea.smem %s0, 1
  %s3 = sld [smem:[%s2]]
  %s4 = scalar_lea.smem %s0, 2
  %s5 = sld [smem:[%s4]]
  %s6 = scalar_lea.smem %s0, 3
  %s7 = sld [smem:[%s6]]
  %s8 = scalar_lea.smem %s0, 4
  %s9 = sld [smem:[%s8]]
  %s10 = scalar_lea.smem %s0, 5
  %s11 = sld [smem:[%s10]]
  %s12 = scalar_lea.smem %s0, 6
  %s13 = sld [smem:[%s12]]
  %s14 = scalar_lea.smem %s0, 7
  %s15 = sld [smem:[%s14]]
  %s16 = scalar_lea.smem %s0, 8
  %s17 = sld [smem:[%s16]]
  %s18 = scalar_lea.smem %s0, 9
  %s19 = sld [smem:[%s18]]
  %s20 = scalar_lea.smem %s0, 10
  %s21 = sld [smem:[%s20]]
  %s22 = scalar_lea.smem %s0, 11
  %s23 = sld [smem:[%s22]]
  %s24 = scalar_lea.smem %s0, 12
  %s25 = sld [smem:[%s24]]
  %s26 = scalar_lea.smem %s0, 13
  %s27 = sld [smem:[%s26]]
  %s28 = scalar_lea.smem %s0, 14
  %s29 = sld [smem:[%s28]]
  %s30 = scalar_lea.smem %s0, 15
  %s31 = sld [smem:[%s30]]
  %s32 = scalar_lea.smem %s0, 16
  %s33 = sld [smem:[%s32]]
  %s34 = scalar_lea.smem %s0, 17
  %s35 = sld [smem:[%s34]]
  %s36 = scalar_lea.smem %s0, 18
  %s37 = sld [smem:[%s36]]
  %s38 = scalar_lea.smem %s0, 19
  %s39 = sld [smem:[%s38]]
  %s40 = scalar_lea.smem %s0, 20
  %s41 = sld [smem:[%s40]]
  %s42 = scalar_lea.smem %s0, 21
  %s43 = sld [smem:[%s42]]
  %s44 = scalar_lea.smem %s0, 22
  %s45 = sld [smem:[%s44]]
  %s46 = scalar_lea.smem %s0, 23
  %s47 = sld [smem:[%s46]]
  %s48 = scalar_lea.smem %s0, 24
  %s49 = sld [smem:[%s48]]
  %s50 = scalar_lea.smem %s0, 25
  %s51 = sld [smem:[%s50]]
  %s52 = scalar_lea.smem %s0, 26
  %s53 = sld [smem:[%s52]]
  %s54 = scalar_lea.smem %s0, 27
  %s55 = sld [smem:[%s54]]
  %s56 = scalar_lea.smem %s0, 28
  %s57 = sld [smem:[%s56]]
  %s58 = scalar_lea.smem %s0, 29
  %s59 = sld [smem:[%s58]]
  %s60 = scalar_lea.smem %s0, 30
  %s61 = sld [smem:[%s60]]
  %s62 = scalar_lea.smem %s0, 31
  %s63 = sld [smem:[%s62]]
  %s64 = scalar_lea.smem %s0, 32
  %s65 = sld [smem:[%s64]]
  %s66 = scalar_lea.smem %s0, 33
  %s67 = sld [smem:[%s66]]
  %s68 = scalar_lea.smem %s0, 34
  %s69 = sld [smem:[%s68]]
  %s70 = scalar_lea.smem %s0, 35
  %s71 = sld [smem:[%s70]]
  %s72 = scalar_lea.smem %s0, 36
  %s73 = sld [smem:[%s72]]
  %s74 = scalar_lea.smem %s0, 37
  %s75 = sld [smem:[%s74]]
  %s76 = scalar_lea.smem %s0, 38
  %s77 = sld [smem:[%s76]]
  %s78 = scalar_lea.smem %s0, 39
  %s79 = sld [smem:[%s78]]
  %s80 = scalar_lea.smem %s0, 40
  %s81 = sld [smem:[%s80]]
  %s82 = scalar_lea.smem %s0, 41
  %s83 = sld [smem:[%s82]]
  %s84 = scalar_lea.smem %s0, 42
  %s85 = sld [smem:[%s84]]
  %s86 = scalar_lea.smem %s0, 43
  %s87 = sld [smem:[%s86]]
  %s88 = scalar_lea.smem %s0, 44
  %s89 = sld [smem:[%s88]]
  %s90 = scalar_lea.smem %s0, 45
  %s91 = sld [smem:[%s90]]
  %s92 = scalar_lea.smem %s0, 46
  %s93 = sld [smem:[%s92]]
  %s94 = scalar_lea.smem %s0, 47
  %s95 = sld [smem:[%s94]]
  %s96 = scalar_lea.smem %s0, 48
  %s97 = sld [smem:[%s96]]
  %s98 = scalar_lea.smem %s0, 49
  %s99 = sld [smem:[%s98]]
  %s100 = sld [smem:[#allocation0]]
  $region234: #{set_transformer_forward.1} parent=0
    _
  %s102 = ssub.s32 1, %s100
  %s103 = scalar_select 0, %s102, %s100
  %s104 = sshll.u32 %s1, 4
  %s105 = int_to_ptr.vmem [resolvable:$true] %s104
  %107 = dma.vmem_to_smem %s105, 16, [#allocation3], [#allocation2]
  %108 = dma.done [#allocation2], 16
  %109 = sfence
  $region1: #{set_transformer_forward.1} parent=0
    #allocation4 [shape = 'u8[512]{0}', space=vmem, size = 0x400, scoped, tag = 'input window, operand 36, single buffered']
    #allocation5 [shape = 's32[1]{0}', space=sflag, size = 0x4, scoped, tag = 'scoped memory for set_transformer_forward.1']
    #allocation6 [shape = 's32[1]{0}', space=sflag, size = 0x4, scoped, tag = 'scoped memory for set_transformer_forward.1']
    #allocation7 [shape = 'u8[512]{0}', space=vmem, size = 0x400, scoped, tag = 'input window, operand 38, single buffered']
    #allocation8 [shape = 's32[1]{0}', space=sflag, size = 0x4, scoped, tag = 'scoped memory for set_transformer_forward.1']
    #allocation9 [shape = 'u8[512]{0}', space=vmem, size = 0x400, scoped, tag = 'input window, operand 39, single buffered']
    #allocation10 [shape = 'u8[512]{0}', space=vmem, size = 0x400, scoped, tag = 'input window, operand 40, single buffered']
    #allocation11 [shape = 's32[1]{0}', space=sflag, size = 0x4, scoped, tag = 'scoped memory for set_transformer_forward.1']
    #allocation12 [shape = 'u8[512]{0}', space=vmem, size = 0x400, scoped, tag = 'input window, operand 41, single buffered']
    #allocation13 [shape = 'u8[512]{0}', space=vmem, size = 0x400, scoped, tag = 'input window, operand 42, single buffered']
    #allocation14 [shape = 's32[1]{0}', space=sflag, size = 0x4, scoped, tag = 'scoped memory for set_transformer_forward.1']
    #allocation15 [shape = 'u8[512]{0}', space=vmem, size = 0x400, scoped, tag = 'input window, operand 44, single buffered']
    #allocation16 [shape = 'u8[512]{0}', space=vmem, size = 0x400, scoped, tag = 'input window, operand 46, single buffered']
    #allocation17 [shape = 's32[1]{0}', space=sflag, size = 0x4, scoped, tag = 'scoped memory for set_transformer_forward.1']
    #allocation18 [shape = 'u8[2048]{0}', space=vmem, size = 0x800, scoped, tag = 'output window, operand 0, single buffered']
    %110 = vsyncpa [#allocation5], 0
    %111 = vsyncpa [#allocation8], 0
    %112 = vsyncpa [#allocation11], 0
    %113 = vsyncpa [#allocation14], 0
    %114 = vsyncpa [#allocation17], 0
    %115 = vsyncpa [#allocation6], 0
    // Predicated region
    $region2: #{set_transformer_forward.1} parent=1 // pred_check
      _
    $region3: #{set_transformer_forward.1} parent=1 // pred_check_branch
      %117 = sbr.rel (0) target = $region5
    $region4: #{set_transformer_forward.1} parent=1 // pred_region
      _
    $region5: #{set_transformer_forward.1} parent=1 // pred_fallthru
      _
    // Predicated region
    $region6: #{set_transformer_forward.1} parent=1 // pred_check
      _
    $region7: #{set_transformer_forward.1} parent=1 // pred_check_branch
      %119 = sbr.rel (0) target = $region9
    $region8: #{set_transformer_forward.1} parent=1 // pred_region
      _
    $region9: #{set_transformer_forward.1} parent=1 // pred_fallthru
      _
    // Predicated region
    $region10: #{set_transformer_forward.1} parent=1 // pred_check
      _
    $region11: #{set_transformer_forward.1} parent=1 // pred_check_branch
      %121 = sbr.rel (0) target = $region13
    $region12: #{set_transformer_forward.1} parent=1 // pred_region
      _
    $region13: #{set_transformer_forward.1} parent=1 // pred_fallthru
      _
    // Predicated region
    $region14: #{set_transformer_forward.1} parent=1 // pred_check
      _
    $region15: #{set_transformer_forward.1} parent=1 // pred_check_branch
      %123 = sbr.rel (0) target = $region17
    $region16: #{set_transformer_forward.1} parent=1 // pred_region
      _
    $region17: #{set_transformer_forward.1} parent=1 // pred_fallthru
      _
    // Predicated region
    $region18: #{set_transformer_forward.1} parent=1 // pred_check
      _
    $region19: #{set_transformer_forward.1} parent=1 // pred_check_branch
      %125 = sbr.rel (0) target = $region21
    $region20: #{set_transformer_forward.1} parent=1 // pred_region
      _
    $region21: #{set_transformer_forward.1} parent=1 // pred_fallthru
      _
    // Predicated region
    $region22: #{set_transformer_forward.1} parent=1 // pred_check
      _
    $region23: #{set_transformer_forward.1} parent=1 // pred_check_branch
      %127 = sbr.rel (0) target = $region25
    $region24: #{set_transformer_forward.1} parent=1 // pred_region
      _
    $region25: #{set_transformer_forward.1} parent=1 // pred_fallthru
      _
    // Predicated region
    $region26: #{set_transformer_forward.1} parent=1 // pred_check
      _
    $region27: #{set_transformer_forward.1} parent=1 // pred_check_branch
      %129 = sbr.rel (0) target = $region29
    $region28: #{set_transformer_forward.1} parent=1 // pred_region
      _
    $region29: #{set_transformer_forward.1} parent=1 // pred_fallthru
      _
    // Predicated region
    $region30: #{set_transformer_forward.1} parent=1 // pred_check
      _
    $region31: #{set_transformer_forward.1} parent=1 // pred_check_branch
      %131 = sbr.rel (0) target = $region33
    $region32: #{set_transformer_forward.1} parent=1 // pred_region
      _
    $region33: #{set_transformer_forward.1} parent=1 // pred_fallthru
      _
    // Predicated region
    $region34: #{set_transformer_forward.1} parent=1 // pred_check
      _
    $region35: #{set_transformer_forward.1} parent=1 // pred_check_branch
      %133 = sbr.rel (0) target = $region37
    $region36: #{set_transformer_forward.1} parent=1 // pred_region
      _
    $region37: #{set_transformer_forward.1} parent=1 // pred_fallthru
      _
    // Predicated region
    $region38: #{set_transformer_forward.1} parent=1 // pred_check
      _
    $region39: #{set_transformer_forward.1} parent=1 // pred_check_branch
      %135 = sbr.rel (0) target = $region41
    $region40: #{set_transformer_forward.1} parent=1 // pred_region
      _
    $region41: #{set_transformer_forward.1} parent=1 // pred_fallthru
      _
    // Predicated region
    $region42: #{set_transformer_forward.1} parent=1 // pred_check
      _
    $region43: #{set_transformer_forward.1} parent=1 // pred_check_branch
      %137 = sbr.rel (0) target = $region45
    $region44: #{set_transformer_forward.1} parent=1 // pred_region
      _
    $region45: #{set_transformer_forward.1} parent=1 // pred_fallthru
      _
    // Predicated region
    $region46: #{set_transformer_forward.1} parent=1 // pred_check
      _
    $region47: #{set_transformer_forward.1} parent=1 // pred_check_branch
      %139 = sbr.rel (0) target = $region49
    $region48: #{set_transformer_forward.1} parent=1 // pred_region
      _
    $region49: #{set_transformer_forward.1} parent=1 // pred_fallthru
      _
    // Predicated region
    $region50: #{set_transformer_forward.1} parent=1 // pred_check
      _
    $region51: #{set_transformer_forward.1} parent=1 // pred_check_branch
      %141 = sbr.rel (0) target = $region53
    $region52: #{set_transformer_forward.1} parent=1 // pred_region
      _
    $region53: #{set_transformer_forward.1} parent=1 // pred_fallthru
      _
    // Predicated region
    $region54: #{set_transformer_forward.1} parent=1 // pred_check
      _
    $region55: #{set_transformer_forward.1} parent=1 // pred_check_branch
      %143 = sbr.rel (0) target = $region57
    $region56: #{set_transformer_forward.1} parent=1 // pred_region
      _
    $region57: #{set_transformer_forward.1} parent=1 // pred_fallthru
      _
    // Predicated region
    $region58: #{set_transformer_forward.1} parent=1 // pred_check
      _
    $region59: #{set_transformer_forward.1} parent=1 // pred_check_branch
      %145 = sbr.rel (0) target = $region61
    $region60: #{set_transformer_forward.1} parent=1 // pred_region
      _
    $region61: #{set_transformer_forward.1} parent=1 // pred_fallthru
      _
    // Predicated region
    $region62: #{set_transformer_forward.1} parent=1 // pred_check
      _
    $region63: #{set_transformer_forward.1} parent=1 // pred_check_branch
      %147 = sbr.rel (0) target = $region65
    $region64: #{set_transformer_forward.1} parent=1 // pred_region
      _
    $region65: #{set_transformer_forward.1} parent=1 // pred_fallthru
      _
    // Predicated region
    $region66: #{set_transformer_forward.1} parent=1 // pred_check
      _
    $region67: #{set_transformer_forward.1} parent=1 // pred_check_branch
      %149 = sbr.rel (0) target = $region69
    $region68: #{set_transformer_forward.1} parent=1 // pred_region
      _
    $region69: #{set_transformer_forward.1} parent=1 // pred_fallthru
      _
    // Predicated region
    $region70: #{set_transformer_forward.1} parent=1 // pred_check
      _
    $region71: #{set_transformer_forward.1} parent=1 // pred_check_branch
      %151 = sbr.rel (0) target = $region73
    $region72: #{set_transformer_forward.1} parent=1 // pred_region
      _
    $region73: #{set_transformer_forward.1} parent=1 // pred_fallthru
      _
    // Predicated region
    $region74: #{set_transformer_forward.1} parent=1 // pred_check
      _
    $region75: #{set_transformer_forward.1} parent=1 // pred_check_branch
      %153 = sbr.rel (0) target = $region77
    $region76: #{set_transformer_forward.1} parent=1 // pred_region
      _
    $region77: #{set_transformer_forward.1} parent=1 // pred_fallthru
      _
    // Predicated region
    $region78: #{set_transformer_forward.1} parent=1 // pred_check
      _
    $region79: #{set_transformer_forward.1} parent=1 // pred_check_branch
      %155 = sbr.rel (0) target = $region81
    $region80: #{set_transformer_forward.1} parent=1 // pred_region
      _
    $region81: #{set_transformer_forward.1} parent=1 // pred_fallthru
      _
    // Predicated region
    $region82: #{set_transformer_forward.1} parent=1 // pred_check
      _
    $region83: #{set_transformer_forward.1} parent=1 // pred_check_branch
      %157 = sbr.rel (0) target = $region85
    $region84: #{set_transformer_forward.1} parent=1 // pred_region
      _
    $region85: #{set_transformer_forward.1} parent=1 // pred_fallthru
      _
    // Predicated region
    $region86: #{set_transformer_forward.1} parent=1 // pred_check
      _
    $region87: #{set_transformer_forward.1} parent=1 // pred_check_branch
      %159 = sbr.rel (0) target = $region89
    $region88: #{set_transformer_forward.1} parent=1 // pred_region
      _
    $region89: #{set_transformer_forward.1} parent=1 // pred_fallthru
      _
    // Predicated region
    $region90: #{set_transformer_forward.1} parent=1 // pred_check
      _
    $region91: #{set_transformer_forward.1} parent=1 // pred_check_branch
      %161 = sbr.rel (0) target = $region93
    $region92: #{set_transformer_forward.1} parent=1 // pred_region
      _
    $region93: #{set_transformer_forward.1} parent=1 // pred_fallthru
      _
    // Predicated region
    $region94: #{set_transformer_forward.1} parent=1 // pred_check
      _
    $region95: #{set_transformer_forward.1} parent=1 // pred_check_branch
      %163 = sbr.rel (0) target = $region97
    $region96: #{set_transformer_forward.1} parent=1 // pred_region
      _
    $region97: #{set_transformer_forward.1} parent=1 // pred_fallthru
      _
    // Predicated region
    $region98: #{set_transformer_forward.1} parent=1 // pred_check
      _
    $region99: #{set_transformer_forward.1} parent=1 // pred_check_branch
      %165 = sbr.rel (0) target = $region101
    $region100: #{set_transformer_forward.1} parent=1 // pred_region
      _
    $region101: #{set_transformer_forward.1} parent=1 // pred_fallthru
      _
    // Predicated region
    $region102: #{set_transformer_forward.1} parent=1 // pred_check
      _
    $region103: #{set_transformer_forward.1} parent=1 // pred_check_branch
      %167 = sbr.rel (0) target = $region105
    $region104: #{set_transformer_forward.1} parent=1 // pred_region
      _
    $region105: #{set_transformer_forward.1} parent=1 // pred_fallthru
      _
    // Predicated region
    $region106: #{set_transformer_forward.1} parent=1 // pred_check
      _
    $region107: #{set_transformer_forward.1} parent=1 // pred_check_branch
      %169 = sbr.rel (0) target = $region109
    $region108: #{set_transformer_forward.1} parent=1 // pred_region
      _
    $region109: #{set_transformer_forward.1} parent=1 // pred_fallthru
      _
    // Predicated region
    $region110: #{set_transformer_forward.1} parent=1 // pred_check
      _
    $region111: #{set_transformer_forward.1} parent=1 // pred_check_branch
      %171 = sbr.rel (0) target = $region113
    $region112: #{set_transformer_forward.1} parent=1 // pred_region
      _
    $region113: #{set_transformer_forward.1} parent=1 // pred_fallthru
      _
    // Predicated region
    $region114: #{set_transformer_forward.1} parent=1 // pred_check
      _
    $region115: #{set_transformer_forward.1} parent=1 // pred_check_branch
      %173 = sbr.rel (0) target = $region117
    $region116: #{set_transformer_forward.1} parent=1 // pred_region
      _
    $region117: #{set_transformer_forward.1} parent=1 // pred_fallthru
      _
    // Predicated region
    $region118: #{set_transformer_forward.1} parent=1 // pred_check
      _
    $region119: #{set_transformer_forward.1} parent=1 // pred_check_branch
      %175 = sbr.rel (0) target = $region121
    $region120: #{set_transformer_forward.1} parent=1 // pred_region
      _
    $region121: #{set_transformer_forward.1} parent=1 // pred_fallthru
      _
    // Predicated region
    $region122: #{set_transformer_forward.1} parent=1 // pred_check
      _
    $region123: #{set_transformer_forward.1} parent=1 // pred_check_branch
      %177 = sbr.rel (0) target = $region125
    $region124: #{set_transformer_forward.1} parent=1 // pred_region
      _
    $region125: #{set_transformer_forward.1} parent=1 // pred_fallthru
      _
    // Predicated region
    $region126: #{set_transformer_forward.1} parent=1 // pred_check
      _
    $region127: #{set_transformer_forward.1} parent=1 // pred_check_branch
      %179 = sbr.rel (0) target = $region129
    $region128: #{set_transformer_forward.1} parent=1 // pred_region
      _
    $region129: #{set_transformer_forward.1} parent=1 // pred_fallthru
      _
    // Predicated region
    $region130: #{set_transformer_forward.1} parent=1 // pred_check
      _
    $region131: #{set_transformer_forward.1} parent=1 // pred_check_branch
      %181 = sbr.rel (0) target = $region133
    $region132: #{set_transformer_forward.1} parent=1 // pred_region
      _
    $region133: #{set_transformer_forward.1} parent=1 // pred_fallthru
      _
    // Predicated region
    $region134: #{set_transformer_forward.1} parent=1 // pred_check
      _
    $region135: #{set_transformer_forward.1} parent=1 // pred_check_branch
      %183 = sbr.rel (0) target = $region137
    $region136: #{set_transformer_forward.1} parent=1 // pred_region
      _
    $region137: #{set_transformer_forward.1} parent=1 // pred_fallthru
      _
    // Predicated region
    $region138: #{set_transformer_forward.1} parent=1 // pred_check
      _
    $region139: #{set_transformer_forward.1} parent=1 // pred_check_branch
      %185 = sbr.rel (0) target = $region141
    $region140: #{set_transformer_forward.1} parent=1 // pred_region
      _
    $region141: #{set_transformer_forward.1} parent=1 // pred_fallthru
      _
    // Predicated region
    $region142: #{set_transformer_forward.1} parent=1 // pred_check
      _
    $region143: #{set_transformer_forward.1} parent=1 // pred_check_branch
      %187 = sbr.rel (0) target = $region145
    $region144: #{set_transformer_forward.1} parent=1 // pred_region
      %s189 = ssub.s32 16, 16
      %190 = vsyncadd [#allocation5], %s189
      %s192 = sshll.u32 [#allocation4], 4
      %s193 = int_to_ptr.vmem [resolvable:$true] %s192
      %195 = dma.hbm_to_vmem [thread:$0]  %s73, 16, %s193, [#allocation5]
    $region145: #{set_transformer_forward.1} parent=1 // pred_fallthru
      _
    // Predicated region
    $region146: #{set_transformer_forward.1} parent=1 // pred_check
      _
    $region147: #{set_transformer_forward.1} parent=1 // pred_check_branch
      %197 = sbr.rel (0) target = $region149
    $region148: #{set_transformer_forward.1} parent=1 // pred_region
      _
    $region149: #{set_transformer_forward.1} parent=1 // pred_fallthru
      _
    // Predicated region
    $region150: #{set_transformer_forward.1} parent=1 // pred_check
      _
    $region151: #{set_transformer_forward.1} parent=1 // pred_check_branch
      %199 = sbr.rel (0) target = $region153
    $region152: #{set_transformer_forward.1} parent=1 // pred_region
      %s201 = ssub.s32 16, 16
      %202 = vsyncadd [#allocation8], %s201
      %s204 = sshll.u32 [#allocation7], 4
      %s205 = int_to_ptr.vmem [resolvable:$true] %s204
      %207 = dma.hbm_to_vmem [thread:$0]  %s77, 16, %s205, [#allocation8]
    $region153: #{set_transformer_forward.1} parent=1 // pred_fallthru
      _
    // Predicated region
    $region154: #{set_transformer_forward.1} parent=1 // pred_check
      _
    $region155: #{set_transformer_forward.1} parent=1 // pred_check_branch
      %209 = sbr.rel (0) target = $region157
    $region156: #{set_transformer_forward.1} parent=1 // pred_region
      %s211 = ssub.s32 16, 16
      %212 = vsyncadd [#allocation8], %s211
      %s214 = sshll.u32 [#allocation9], 4
      %s215 = int_to_ptr.vmem [resolvable:$true] %s214
      %217 = dma.hbm_to_vmem [thread:$0]  %s79, 16, %s215, [#allocation8]
    $region157: #{set_transformer_forward.1} parent=1 // pred_fallthru
      _
    // Predicated region
    $region158: #{set_transformer_forward.1} parent=1 // pred_check
      _
    $region159: #{set_transformer_forward.1} parent=1 // pred_check_branch
      %219 = sbr.rel (0) target = $region161
    $region160: #{set_transformer_forward.1} parent=1 // pred_region
      %s221 = ssub.s32 16, 16
      %222 = vsyncadd [#allocation11], %s221
      %s224 = sshll.u32 [#allocation10], 4
      %s225 = int_to_ptr.vmem [resolvable:$true] %s224
      %227 = dma.hbm_to_vmem [thread:$0]  %s81, 16, %s225, [#allocation11]
    $region161: #{set_transformer_forward.1} parent=1 // pred_fallthru
      _
    // Predicated region
    $region162: #{set_transformer_forward.1} parent=1 // pred_check
      _
    $region163: #{set_transformer_forward.1} parent=1 // pred_check_branch
      %229 = sbr.rel (0) target = $region165
    $region164: #{set_transformer_forward.1} parent=1 // pred_region
      %s231 = ssub.s32 16, 16
      %232 = vsyncadd [#allocation11], %s231
      %s234 = sshll.u32 [#allocation12], 4
      %s235 = int_to_ptr.vmem [resolvable:$true] %s234
      %237 = dma.hbm_to_vmem [thread:$0]  %s83, 16, %s235, [#allocation11]
    $region165: #{set_transformer_forward.1} parent=1 // pred_fallthru
      _
    // Predicated region
    $region166: #{set_transformer_forward.1} parent=1 // pred_check
      _
    $region167: #{set_transformer_forward.1} parent=1 // pred_check_branch
      %239 = sbr.rel (0) target = $region169
    $region168: #{set_transformer_forward.1} parent=1 // pred_region
      %s241 = ssub.s32 16, 16
      %242 = vsyncadd [#allocation14], %s241
      %s244 = sshll.u32 [#allocation13], 4
      %s245 = int_to_ptr.vmem [resolvable:$true] %s244
      %247 = dma.hbm_to_vmem [thread:$0]  %s85, 16, %s245, [#allocation14]
    $region169: #{set_transformer_forward.1} parent=1 // pred_fallthru
      _
    // Predicated region
    $region170: #{set_transformer_forward.1} parent=1 // pred_check
      _
    $region171: #{set_transformer_forward.1} parent=1 // pred_check_branch
      %249 = sbr.rel (0) target = $region173
    $region172: #{set_transformer_forward.1} parent=1 // pred_region
      _
    $region173: #{set_transformer_forward.1} parent=1 // pred_fallthru
      _
    // Predicated region
    $region174: #{set_transformer_forward.1} parent=1 // pred_check
      _
    $region175: #{set_transformer_forward.1} parent=1 // pred_check_branch
      %251 = sbr.rel (0) target = $region177
    $region176: #{set_transformer_forward.1} parent=1 // pred_region
      %s253 = ssub.s32 16, 16
      %254 = vsyncadd [#allocation14], %s253
      %s256 = sshll.u32 [#allocation15], 4
      %s257 = int_to_ptr.vmem [resolvable:$true] %s256
      %259 = dma.hbm_to_vmem [thread:$0]  %s89, 16, %s257, [#allocation14]
    $region177: #{set_transformer_forward.1} parent=1 // pred_fallthru
      _
    // Predicated region
    $region178: #{set_transformer_forward.1} parent=1 // pred_check
      _
    $region179: #{set_transformer_forward.1} parent=1 // pred_check_branch
      %261 = sbr.rel (0) target = $region181
    $region180: #{set_transformer_forward.1} parent=1 // pred_region
      _
    $region181: #{set_transformer_forward.1} parent=1 // pred_fallthru
      _
    // Predicated region
    $region182: #{set_transformer_forward.1} parent=1 // pred_check
      _
    $region183: #{set_transformer_forward.1} parent=1 // pred_check_branch
      %263 = sbr.rel (0) target = $region185
    $region184: #{set_transformer_forward.1} parent=1 // pred_region
      %s265 = ssub.s32 16, 16
      %266 = vsyncadd [#allocation17], %s265
      %s268 = sshll.u32 [#allocation16], 4
      %s269 = int_to_ptr.vmem [resolvable:$true] %s268
      %271 = dma.hbm_to_vmem [thread:$0]  %s93, 16, %s269, [#allocation17]
    $region185: #{set_transformer_forward.1} parent=1 // pred_fallthru
      _
    // Predicated region
    $region186: #{set_transformer_forward.1} parent=1 // pred_check
      _
    $region187: #{set_transformer_forward.1} parent=1 // pred_check_branch
      %273 = sbr.rel (0) target = $region189
    $region188: #{set_transformer_forward.1} parent=1 // pred_region
      _
    $region189: #{set_transformer_forward.1} parent=1 // pred_fallthru
      _
    // Predicated region
    $region190: #{set_transformer_forward.1} parent=1 // pred_check
      _
    $region191: #{set_transformer_forward.1} parent=1 // pred_check_branch
      %275 = sbr.rel (0) target = $region193
    $region192: #{set_transformer_forward.1} parent=1 // pred_region
      _
    $region193: #{set_transformer_forward.1} parent=1 // pred_fallthru
      _
    // Predicated region
    $region194: #{set_transformer_forward.1} parent=1 // pred_check
      _
    $region195: #{set_transformer_forward.1} parent=1 // pred_check_branch
      %277 = sbr.rel (0) target = $region197
    $region196: #{set_transformer_forward.1} parent=1 // pred_region
      %278 = dma.done [#allocation5], 16
    $region197: #{set_transformer_forward.1} parent=1 // pred_fallthru
      _
    // Predicated region
    $region198: #{set_transformer_forward.1} parent=1 // pred_check
      _
    $region199: #{set_transformer_forward.1} parent=1 // pred_check_branch
      %280 = sbr.rel (0) target = $region201
    $region200: #{set_transformer_forward.1} parent=1 // pred_region
      %281 = dma.done [#allocation8], 16
    $region201: #{set_transformer_forward.1} parent=1 // pred_fallthru
      _
    // Predicated region
    $region202: #{set_transformer_forward.1} parent=1 // pred_check
      _
    $region203: #{set_transformer_forward.1} parent=1 // pred_check_branch
      %283 = sbr.rel (0) target = $region205
    $region204: #{set_transformer_forward.1} parent=1 // pred_region
      %284 = dma.done [#allocation8], 16
    $region205: #{set_transformer_forward.1} parent=1 // pred_fallthru
      _
    // Predicated region
    $region206: #{set_transformer_forward.1} parent=1 // pred_check
      _
    $region207: #{set_transformer_forward.1} parent=1 // pred_check_branch
      %286 = sbr.rel (0) target = $region209
    $region208: #{set_transformer_forward.1} parent=1 // pred_region
      %287 = dma.done [#allocation11], 16
    $region209: #{set_transformer_forward.1} parent=1 // pred_fallthru
      _
    // Predicated region
    $region210: #{set_transformer_forward.1} parent=1 // pred_check
      _
    $region211: #{set_transformer_forward.1} parent=1 // pred_check_branch
      %289 = sbr.rel (0) target = $region213
    $region212: #{set_transformer_forward.1} parent=1 // pred_region
      %290 = dma.done [#allocation11], 16
    $region213: #{set_transformer_forward.1} parent=1 // pred_fallthru
      _
    // Predicated region
    $region214: #{set_transformer_forward.1} parent=1 // pred_check
      _
    $region215: #{set_transformer_forward.1} parent=1 // pred_check_branch
      %292 = sbr.rel (0) target = $region217
    $region216: #{set_transformer_forward.1} parent=1 // pred_region
      %293 = dma.done [#allocation14], 16
    $region217: #{set_transformer_forward.1} parent=1 // pred_fallthru
      _
    // Predicated region
    $region218: #{set_transformer_forward.1} parent=1 // pred_check
      _
    $region219: #{set_transformer_forward.1} parent=1 // pred_check_branch
      %295 = sbr.rel (0) target = $region221
    $region220: #{set_transformer_forward.1} parent=1 // pred_region
      %296 = dma.done [#allocation14], 16
    $region221: #{set_transformer_forward.1} parent=1 // pred_fallthru
      _
    // Predicated region
    $region222: #{set_transformer_forward.1} parent=1 // pred_check
      _
    $region223: #{set_transformer_forward.1} parent=1 // pred_check_branch
      %298 = sbr.rel (0) target = $region225
    $region224: #{set_transformer_forward.1} parent=1 // pred_region
      %299 = dma.done [#allocation17], 16
    $region225: #{set_transformer_forward.1} parent=1 // pred_fallthru
      _
    %v300 = vld [vmem:[%s3] sm:$0xff]
    %v301 = vld [vmem:[%s3 + $0x8] sm:$0xff]
    %v302 = vld [vmem:[%s3 + $0x10] sm:$0xff]
    %v303 = vld [vmem:[%s3 + $0x18] sm:$0xff]
    %v304 = vld [vmem:[%s5] sm:$0xff]
    %v305 = vld [vmem:[%s5 + $0x8] sm:$0xff]
    %v306 = vlaneseq
    %v307 = vand.u32 %v306, 127
    %v308 = vlaneseq
    %v309 = vshrl.u32 %v308, 7
    %v310 = vadd.s32 %v309, 8
    %v311 = vadd.s32 %v309, 16
    %v312 = vadd.s32 %v309, 24
    %vm313 = vcmp.lt.s32.totalorder %v307, 0
    %vm314 = vcmp.ge.s32.totalorder %v307, 0
    %vm315 = vcmp.lt.s32.totalorder %v307, 8
    %vm316 = vmand %vm314, %vm315
    %s317 = smul.u32 0, 128
    %s318 = sld [smem:[#allocation3 + %s317]]
    %v319 = vstv %s318
    %vm320 = vcmp.lt.s32.totalorder %v307, %v319
    %vm321 = vmand %vm316, %vm320
    %vm322 = vmor %vm313, %vm321
    %vm323 = vcmp.ge.s32.totalorder %v307, 8
    %vm324 = vcmp.lt.s32.totalorder %v307, 16
    %vm325 = vmand %vm323, %vm324
    %v326 = vsel %vm325, 1, 0
    %vm327 = vcmp.ge.s32.totalorder %v309, 8
    %vm328 = vcmp.ge.s32.totalorder %v310, 8
    %vm329 = vcmp.ge.s32.totalorder %v311, 8
    %vm330 = vcmp.ge.s32.totalorder %v312, 8
    %vm331 = vcmp.lt.s32.totalorder %v309, 16
    %vm332 = vcmp.lt.s32.totalorder %v310, 16
    %vm333 = vcmp.lt.s32.totalorder %v311, 16
    %vm334 = vcmp.lt.s32.totalorder %v312, 16
    %vm335 = vmand %vm327, %vm331
    %vm336 = vmand %vm328, %vm332
    %vm337 = vmand %vm329, %vm333
    %vm338 = vmand %vm330, %vm334
    %v339 = vsel %vm335, 1, 0
    %v340 = vsel %vm336, 1, 0
    %v341 = vsel %vm337, 1, 0
    %v342 = vsel %vm338, 1, 0
    %s343 = sadd.s32 %s317, 1
    %s344 = sld [smem:[#allocation3 + %s343]]
    %s345 = sadd.s32 %s344, 8
    %v346 = vstv %s345
    %vm347 = vcmp.lt.s32.totalorder %v307, %v346
    %vm348 = vmand %vm325, %vm347
    %vm349 = vmor %vm322, %vm348
    %vm350 = vcmp.ge.s32.totalorder %v307, 16
    %vm351 = vcmp.lt.s32.totalorder %v307, 24
    %vm352 = vmand %vm350, %vm351
    %v353 = vsel %vm352, 2, %v326
    %vm354 = vcmp.ge.s32.totalorder %v309, 16
    %vm355 = vcmp.ge.s32.totalorder %v310, 16
    %vm356 = vcmp.ge.s32.totalorder %v311, 16
    %vm357 = vcmp.ge.s32.totalorder %v312, 16
    %vm358 = vcmp.lt.s32.totalorder %v309, 24
    %vm359 = vcmp.lt.s32.totalorder %v310, 24
    %vm360 = vcmp.lt.s32.totalorder %v311, 24
    %vm361 = vcmp.lt.s32.totalorder %v312, 24
    %vm362 = vmand %vm354, %vm358
    %vm363 = vmand %vm355, %vm359
    %vm364 = vmand %vm356, %vm360
    %vm365 = vmand %vm357, %vm361
    %v366 = vsel %vm362, 2, %v339
    %v367 = vsel %vm363, 2, %v340
    %v368 = vsel %vm364, 2, %v341
    %v369 = vsel %vm365, 2, %v342
    %s370 = sadd.s32 %s317, 2
    %s371 = sld [smem:[#allocation3 + %s370]]
    %s372 = sadd.s32 %s371, 16
    %v373 = vstv %s372
    %vm374 = vcmp.lt.s32.totalorder %v307, %v373
    %vm375 = vmand %vm352, %vm374
    %vm376 = vmor %vm349, %vm375
    %vm377 = vcmp.ge.s32.totalorder %v307, 24
    %vm378 = vcmp.lt.s32.totalorder %v307, 32
    %vm379 = vmand %vm377, %vm378
    %v380 = vsel %vm379, 3, %v353
    %vm381 = vcmp.ge.s32.totalorder %v309, 24
    %vm382 = vcmp.ge.s32.totalorder %v310, 24
    %vm383 = vcmp.ge.s32.totalorder %v311, 24
    %vm384 = vcmp.ge.s32.totalorder %v312, 24
    %vm385 = vcmp.lt.s32.totalorder %v309, 32
    %vm386 = vcmp.lt.s32.totalorder %v310, 32
    %vm387 = vcmp.lt.s32.totalorder %v311, 32
    %vm388 = vcmp.lt.s32.totalorder %v312, 32
    %vm389 = vmand %vm381, %vm385
    %vm390 = vmand %vm382, %vm386
    %vm391 = vmand %vm383, %vm387
    %vm392 = vmand %vm384, %vm388
    %v393 = vsel %vm389, 3, %v366
    %v394 = vsel %vm390, 3, %v367
    %v395 = vsel %vm391, 3, %v368
    %v396 = vsel %vm392, 3, %v369
    %s397 = sadd.s32 %s317, 3
    %s398 = sld [smem:[#allocation3 + %s397]]
    %s399 = sadd.s32 %s398, 24
    %v400 = vstv %s399
    %vm401 = vcmp.lt.s32.totalorder %v307, %v400
    %vm402 = vmand %vm379, %vm401
    %vm403 = vmor %vm376, %vm402
    %vm404 = vcmp.ge.s32.totalorder %v309, 4
    %vm405 = vcmp.ge.s32.totalorder %v310, 4
    %v406 = vsel %vm404, 4, 0
    %v407 = vsel %vm405, 4, 0
    %v408 = vsub.s32 %v309, %v406
    %v409 = vsub.s32 %v310, %v407
    %vm410 = vcmp.ge.s32.totalorder %v307, 4
    %v411 = vsel %vm410, 4, 0
    %v412 = vsub.s32 %v307, %v411
    %v413 = vsel %vm327, 4, 0
    %v414 = vsel %vm328, 4, 0
    %v415 = vsub.s32 %v408, %v413
    %v416 = vsub.s32 %v409, %v414
    %v417 = vsel %vm323, 4, 0
    %v418 = vsub.s32 %v412, %v417
    %vm419 = vcmp.ge.s32.totalorder %v309, 12
    %vm420 = vcmp.ge.s32.totalorder %v310, 12
    %v421 = vsel %vm419, 4, 0
    %v422 = vsel %vm420, 4, 0
    %v423 = vsub.s32 %v415, %v421
    %v424 = vsub.s32 %v416, %v422
    %vm425 = vcmp.ge.s32.totalorder %v307, 12
    %v426 = vsel %vm425, 4, 0
    %v427 = vsub.s32 %v418, %v426
    %vm428 = vcmp.eq.s32.totalorder %v393, %v380
    %vm429 = vcmp.eq.s32.totalorder %v394, %v380
    %vm430 = vcmp.eq.s32.totalorder %v395, %v380
    %vm431 = vcmp.eq.s32.totalorder %v396, %v380
    %v432 = vsel %vm403, 1, 0
    %vm433 = vcmp.eq.s32.totalorder %v432, 1
    %vm434 = vmand %vm428, %vm433
    %vm435 = vmand %vm429, %vm433
    %vm436 = vmand %vm430, %vm433
    %vm437 = vmand %vm431, %vm433
    %vm438 = vcmp.eq.s32.totalorder %v423, %v380
    %vm439 = vcmp.eq.s32.totalorder %v424, %v380
    %vm440 = vmand %vm438, %vm433
    %vm441 = vmand %vm439, %vm433
    %vm442 = vcmp.eq.s32.totalorder %v423, %v427
    %vm443 = vcmp.eq.s32.totalorder %v424, %v427
    %v444 = vld [vmem:[%s7] sm:$0xff]
    %v445 = vld [vmem:[%s7 + $0x8] sm:$0xff]
    %v446 = vld [vmem:[%s7 + $0x10] sm:$0xff]
    %v447 = vld [vmem:[%s7 + $0x18] sm:$0xff]
    %vm448 = vcmask 261120
    %v450 = vsel %vm448, %v300, 0
    %v453 = vsel %vm448, %v301, 0
    %v456 = vsel %vm448, %v302, 0
    %v459 = vsel %vm448, %v303, 0
    %461 = vmatprep.subr.mxu0 0.0
    %462 = vmatpush1.msra.mxu0 %v444
    %463 = vmatprep.subr.mxu0 0.0
    %464 = vmatpush1.msra.mxu0 %v445
    %465 = vmatprep.subr.mxu0 0.0
    %466 = vmatpush1.msra.mxu0 %v446
    %467 = vmatprep.subr.mxu0 0.0
    %468 = vmatpush1.msra.mxu0 %v447
    %469 = vmatprep.subr.mxu0 0.0
    %470 = vmatpush1.msra.mxu0 0.0
    %471 = vmatprep.subr.mxu0 0.0
    %472 = vmatpush1.msra.mxu0 0.0
    %473 = vmatprep.subr.mxu0 0.0
    %474 = vmatpush1.msra.mxu0 0.0
    %475 = vmatprep.subr.mxu0 0.0
    %476 = vmatpush1.msra.mxu0 0.0
    %477 = vmatprep.subr.mxu0 0.0
    %478 = vmatpush1.msra.mxu0 0.0
    %479 = vmatprep.subr.mxu0 0.0
    %480 = vmatpush1.msra.mxu0 0.0
    %481 = vmatprep.subr.mxu0 0.0
    %482 = vmatpush1.msra.mxu0 0.0
    %483 = vmatprep.subr.mxu0 0.0
    %484 = vmatpush1.msra.mxu0 0.0
    %485 = vmatprep.subr.mxu0 0.0
    %486 = vmatpush1.msra.mxu0 0.0
    %487 = vmatprep.subr.mxu0 0.0
    %488 = vmatpush1.msra.mxu0 0.0
    %489 = vmatprep.subr.mxu0 0.0
    %490 = vmatpush1.msra.mxu0 0.0
    %491 = vmatprep.subr.mxu0 0.0
    %492 = vmatpush1.msra.mxu0 0.0
    %493 = vmatprep.subr.mxu0 0.0
    %494 = vmatpush1.msra.mxu0 0.0
    %495 = vmatprep.subr.mxu0 0.0
    %496 = vmatpush1.msra.mxu0 0.0
    %497 = vmatprep.subr.mxu0 0.0
    %498 = vmatpush1.msra.mxu0 0.0
    %499 = vmatprep.subr.mxu0 0.0
    %500 = vmatpush1.msra.mxu0 0.0
    %501 = vmatprep.subr.mxu0 0.0
    %502 = vmatpush1.msra.mxu0 0.0
    %503 = vmatprep.subr.mxu0 0.0
    %504 = vmatpush1.msra.mxu0 0.0
    %505 = vmatprep.subr.mxu0 0.0
    %506 = vmatpush1.msra.mxu0 0.0
    %507 = vmatprep.subr.mxu0 0.0
    %508 = vmatpush1.msra.mxu0 0.0
    %509 = vmatprep.subr.mxu0 0.0
    %510 = vmatpush1.msra.mxu0 0.0
    %511 = vmatprep.subr.mxu0 0.0
    %512 = vmatpush1.msra.mxu0 0.0
    %513 = vmatprep.subr.mxu0 0.0
    %514 = vmatpush1.msra.mxu0 0.0
    %515 = vmatprep.subr.mxu0 0.0
    %516 = vmatpush1.msra.mxu0 0.0
    %517 = vmatprep.subr.mxu0 0.0
    %518 = vmatpush1.msra.mxu0 0.0
    %519 = vmatprep.subr.mxu0 0.0
    %520 = vmatpush1.msra.mxu0 0.0
    %521 = vmatprep.subr.mxu0 0.0
    %522 = vmatpush1.msra.mxu0 0.0
    %523 = vmatprep.subr.mxu0 0.0
    %524 = vmatpush1.msra.mxu0 0.0
    %525 = vmatprep.mubr.f32.mxu0 0.0
    %526 = vmatmul.mubr.f32.gmra.mrb[0].mxu0 %v450
    %v527 = vpop.f32.mrb[0].mxu0
    %v528 = vadd.f32 0.0, %v527
    %v529 = vpop.f32.mrb[0].mxu0
    %530 = vmatprep.mubr.f32.mxu0 0.0
    %531 = vmatmul.mubr.f32.gmra.mrb[0].mxu0 %v453
    %v532 = vpop.f32.mrb[0].mxu0
    %v533 = vadd.f32 0.0, %v532
    %v534 = vpop.f32.mrb[0].mxu0
    %535 = vmatprep.mubr.f32.mxu0 0.0
    %536 = vmatmul.mubr.f32.gmra.mrb[0].mxu0 %v456
    %v537 = vpop.f32.mrb[0].mxu0
    %v538 = vadd.f32 0.0, %v537
    %v539 = vpop.f32.mrb[0].mxu0
    %540 = vmatprep.mubr.f32.mxu0 0.0
    %541 = vmatmul.mubr.f32.gmra.mrb[0].mxu0 %v459
    %v542 = vpop.f32.mrb[0].mxu0
    %v543 = vadd.f32 0.0, %v542
    %v544 = vpop.f32.mrb[0].mxu0
    %545 = vdwg.mxu0
    %v546 = vld [vmem:[%s9] sm:$0xff]
    %v547 = vld [vmem:[%s9 + $0x8] sm:$0xff]
    %v548 = vld [vmem:[%s9 + $0x10] sm:$0xff]
    %v549 = vld [vmem:[%s9 + $0x18] sm:$0xff]
    %550 = vmatprep.subr.mxu0 0.0
    %551 = vmatpush1.msra.mxu0 %v546
    %552 = vmatprep.subr.mxu0 0.0
    %553 = vmatpush1.msra.mxu0 %v547
    %554 = vmatprep.subr.mxu0 0.0
    %555 = vmatpush1.msra.mxu0 %v548
    %556 = vmatprep.subr.mxu0 0.0
    %557 = vmatpush1.msra.mxu0 %v549
    %558 = vmatprep.subr.mxu0 0.0
    %559 = vmatpush1.msra.mxu0 0.0
    %560 = vmatprep.subr.mxu0 0.0
    %561 = vmatpush1.msra.mxu0 0.0
    %562 = vmatprep.subr.mxu0 0.0
    %563 = vmatpush1.msra.mxu0 0.0
    %564 = vmatprep.subr.mxu0 0.0
    %565 = vmatpush1.msra.mxu0 0.0
    %566 = vmatprep.subr.mxu0 0.0
    %567 = vmatpush1.msra.mxu0 0.0
    %568 = vmatprep.subr.mxu0 0.0
    %569 = vmatpush1.msra.mxu0 0.0
    %570 = vmatprep.subr.mxu0 0.0
    %571 = vmatpush1.msra.mxu0 0.0
    %572 = vmatprep.subr.mxu0 0.0
    %573 = vmatpush1.msra.mxu0 0.0
    %574 = vmatprep.subr.mxu0 0.0
    %575 = vmatpush1.msra.mxu0 0.0
    %576 = vmatprep.subr.mxu0 0.0
    %577 = vmatpush1.msra.mxu0 0.0
    %578 = vmatprep.subr.mxu0 0.0
    %579 = vmatpush1.msra.mxu0 0.0
    %580 = vmatprep.subr.mxu0 0.0
    %581 = vmatpush1.msra.mxu0 0.0
    %582 = vmatprep.subr.mxu0 0.0
    %583 = vmatpush1.msra.mxu0 0.0
    %584 = vmatprep.subr.mxu0 0.0
    %585 = vmatpush1.msra.mxu0 0.0
    %586 = vmatprep.subr.mxu0 0.0
    %587 = vmatpush1.msra.mxu0 0.0
    %588 = vmatprep.subr.mxu0 0.0
    %589 = vmatpush1.msra.mxu0 0.0
    %590 = vmatprep.subr.mxu0 0.0
    %591 = vmatpush1.msra.mxu0 0.0
    %592 = vmatprep.subr.mxu0 0.0
    %593 = vmatpush1.msra.mxu0 0.0
    %594 = vmatprep.subr.mxu0 0.0
    %595 = vmatpush1.msra.mxu0 0.0
    %596 = vmatprep.subr.mxu0 0.0
    %597 = vmatpush1.msra.mxu0 0.0
    %598 = vmatprep.subr.mxu0 0.0
    %599 = vmatpush1.msra.mxu0 0.0
    %600 = vmatprep.subr.mxu0 0.0
    %601 = vmatpush1.msra.mxu0 0.0
    %602 = vmatprep.subr.mxu0 0.0
    %603 = vmatpush1.msra.mxu0 0.0
    %604 = vmatprep.subr.mxu0 0.0
    %605 = vmatpush1.msra.mxu0 0.0
    %606 = vmatprep.subr.mxu0 0.0
    %607 = vmatpush1.msra.mxu0 0.0
    %608 = vmatprep.subr.mxu0 0.0
    %609 = vmatpush1.msra.mxu0 0.0
    %610 = vmatprep.subr.mxu0 0.0
    %611 = vmatpush1.msra.mxu0 0.0
    %612 = vmatprep.subr.mxu0 0.0
    %613 = vmatpush1.msra.mxu0 0.0
    %614 = vmatprep.mubr.f32.mxu0 0.0
    %615 = vmatmul.mubr.f32.gmra.mrb[0].mxu0 %v450
    %v616 = vpop.f32.mrb[0].mxu0
    %v617 = vadd.f32 0.0, %v616
    %v618 = vpop.f32.mrb[0].mxu0
    %619 = vmatprep.mubr.f32.mxu0 0.0
    %620 = vmatmul.mubr.f32.gmra.mrb[0].mxu0 %v453
    %v621 = vpop.f32.mrb[0].mxu0
    %v622 = vadd.f32 0.0, %v621
    %v623 = vpop.f32.mrb[0].mxu0
    %624 = vmatprep.mubr.f32.mxu0 0.0
    %625 = vmatmul.mubr.f32.gmra.mrb[0].mxu0 %v456
    %v626 = vpop.f32.mrb[0].mxu0
    %v627 = vadd.f32 0.0, %v626
    %v628 = vpop.f32.mrb[0].mxu0
    %629 = vmatprep.mubr.f32.mxu0 0.0
    %630 = vmatmul.mubr.f32.gmra.mrb[0].mxu0 %v459
    %v631 = vpop.f32.mrb[0].mxu0
    %v632 = vadd.f32 0.0, %v631
    %v633 = vpop.f32.mrb[0].mxu0
    %634 = vdwg.mxu0
    %v635 = vld [vmem:[%s11] sm:$0xff]
    %v636 = vld [vmem:[%s11 + $0x8] sm:$0xff]
    %v637 = vld [vmem:[%s11 + $0x10] sm:$0xff]
    %v638 = vld [vmem:[%s11 + $0x18] sm:$0xff]
    %639 = vmatprep.subr.mxu0 0.0
    %640 = vmatpush1.msra.mxu0 %v635
    %641 = vmatprep.subr.mxu0 0.0
    %642 = vmatpush1.msra.mxu0 %v636
    %643 = vmatprep.subr.mxu0 0.0
    %644 = vmatpush1.msra.mxu0 %v637
    %645 = vmatprep.subr.mxu0 0.0
    %646 = vmatpush1.msra.mxu0 %v638
    %647 = vmatprep.subr.mxu0 0.0
    %648 = vmatpush1.msra.mxu0 0.0
    %649 = vmatprep.subr.mxu0 0.0
    %650 = vmatpush1.msra.mxu0 0.0
    %651 = vmatprep.subr.mxu0 0.0
    %652 = vmatpush1.msra.mxu0 0.0
    %653 = vmatprep.subr.mxu0 0.0
    %654 = vmatpush1.msra.mxu0 0.0
    %655 = vmatprep.subr.mxu0 0.0
    %656 = vmatpush1.msra.mxu0 0.0
    %657 = vmatprep.subr.mxu0 0.0
    %658 = vmatpush1.msra.mxu0 0.0
    %659 = vmatprep.subr.mxu0 0.0
    %660 = vmatpush1.msra.mxu0 0.0
    %661 = vmatprep.subr.mxu0 0.0
    %662 = vmatpush1.msra.mxu0 0.0
    %663 = vmatprep.subr.mxu0 0.0
    %664 = vmatpush1.msra.mxu0 0.0
    %665 = vmatprep.subr.mxu0 0.0
    %666 = vmatpush1.msra.mxu0 0.0
    %667 = vmatprep.subr.mxu0 0.0
    %668 = vmatpush1.msra.mxu0 0.0
    %669 = vmatprep.subr.mxu0 0.0
    %670 = vmatpush1.msra.mxu0 0.0
    %671 = vmatprep.subr.mxu0 0.0
    %672 = vmatpush1.msra.mxu0 0.0
    %673 = vmatprep.subr.mxu0 0.0
    %674 = vmatpush1.msra.mxu0 0.0
    %675 = vmatprep.subr.mxu0 0.0
    %676 = vmatpush1.msra.mxu0 0.0
    %677 = vmatprep.subr.mxu0 0.0
    %678 = vmatpush1.msra.mxu0 0.0
    %679 = vmatprep.subr.mxu0 0.0
    %680 = vmatpush1.msra.mxu0 0.0
    %681 = vmatprep.subr.mxu0 0.0
    %682 = vmatpush1.msra.mxu0 0.0
    %683 = vmatprep.subr.mxu0 0.0
    %684 = vmatpush1.msra.mxu0 0.0
    %685 = vmatprep.subr.mxu0 0.0
    %686 = vmatpush1.msra.mxu0 0.0
    %687 = vmatprep.subr.mxu0 0.0
    %688 = vmatpush1.msra.mxu0 0.0
    %689 = vmatprep.subr.mxu0 0.0
    %690 = vmatpush1.msra.mxu0 0.0
    %691 = vmatprep.subr.mxu0 0.0
    %692 = vmatpush1.msra.mxu0 0.0
    %693 = vmatprep.subr.mxu0 0.0
    %694 = vmatpush1.msra.mxu0 0.0
    %695 = vmatprep.subr.mxu0 0.0
    %696 = vmatpush1.msra.mxu0 0.0
    %697 = vmatprep.subr.mxu0 0.0
    %698 = vmatpush1.msra.mxu0 0.0
    %699 = vmatprep.subr.mxu0 0.0
    %700 = vmatpush1.msra.mxu0 0.0
    %701 = vmatprep.subr.mxu0 0.0
    %702 = vmatpush1.msra.mxu0 0.0
    %703 = vmatprep.mubr.f32.mxu0 0.0
    %704 = vmatmul.mubr.f32.gmra.mrb[0].mxu0 %v450
    %v705 = vpop.f32.mrb[0].mxu0
    %v706 = vadd.f32 0.0, %v705
    %v707 = vpop.f32.mrb[0].mxu0
    %708 = vmatprep.mubr.f32.mxu0 0.0
    %709 = vmatmul.mubr.f32.gmra.mrb[0].mxu0 %v453
    %v710 = vpop.f32.mrb[0].mxu0
    %v711 = vadd.f32 0.0, %v710
    %v712 = vpop.f32.mrb[0].mxu0
    %713 = vmatprep.mubr.f32.mxu0 0.0
    %714 = vmatmul.mubr.f32.gmra.mrb[0].mxu0 %v456
    %v715 = vpop.f32.mrb[0].mxu0
    %v716 = vadd.f32 0.0, %v715
    %v717 = vpop.f32.mrb[0].mxu0
    %718 = vmatprep.mubr.f32.mxu0 0.0
    %719 = vmatmul.mubr.f32.gmra.mrb[0].mxu0 %v459
    %v720 = vpop.f32.mrb[0].mxu0
    %v721 = vadd.f32 0.0, %v720
    %v722 = vpop.f32.mrb[0].mxu0
    %723 = vdwg.mxu0
    %v725 = vsel %vm448, %v528, 0
    %v728 = vsel %vm448, %v533, 0
    %v731 = vsel %vm448, %v538, 0
    %v734 = vsel %vm448, %v543, 0
    %v737 = vsel %vm448, %v617, 0
    %v740 = vsel %vm448, %v622, 0
    %v743 = vsel %vm448, %v627, 0
    %v746 = vsel %vm448, %v632, 0
    %748 = vmatprep.subr.mxu0 0.0
    %749 = vmatpush1.xpose.msra.mxu0 %v737
    %750 = vmatprep.subr.mxu0 0.0
    %751 = vmatpush1.xpose.msra.mxu0 %v740
    %752 = vmatprep.subr.mxu0 0.0
    %753 = vmatpush1.xpose.msra.mxu0 %v743
    %754 = vmatprep.subr.mxu0 0.0
    %755 = vmatpush1.xpose.msra.mxu0 %v746
    %756 = vmatprep.subr.mxu0 0.0
    %757 = vmatpush1.xpose.msra.mxu0 0.0
    %758 = vmatprep.subr.mxu0 0.0
    %759 = vmatpush1.xpose.msra.mxu0 0.0
    %760 = vmatprep.subr.mxu0 0.0
    %761 = vmatpush1.xpose.msra.mxu0 0.0
    %762 = vmatprep.subr.mxu0 0.0
    %763 = vmatpush1.xpose.msra.mxu0 0.0
    %764 = vmatprep.subr.mxu0 0.0
    %765 = vmatpush1.xpose.msra.mxu0 0.0
    %766 = vmatprep.subr.mxu0 0.0
    %767 = vmatpush1.xpose.msra.mxu0 0.0
    %768 = vmatprep.subr.mxu0 0.0
    %769 = vmatpush1.xpose.msra.mxu0 0.0
    %770 = vmatprep.subr.mxu0 0.0
    %771 = vmatpush1.xpose.msra.mxu0 0.0
    %772 = vmatprep.subr.mxu0 0.0
    %773 = vmatpush1.xpose.msra.mxu0 0.0
    %774 = vmatprep.subr.mxu0 0.0
    %775 = vmatpush1.xpose.msra.mxu0 0.0
    %776 = vmatprep.subr.mxu0 0.0
    %777 = vmatpush1.xpose.msra.mxu0 0.0
    %778 = vmatprep.subr.mxu0 0.0
    %779 = vmatpush1.xpose.msra.mxu0 0.0
    %780 = vmatprep.subr.mxu0 0.0
    %781 = vmatpush1.xpose.msra.mxu0 0.0
    %782 = vmatprep.subr.mxu0 0.0
    %783 = vmatpush1.xpose.msra.mxu0 0.0
    %784 = vmatprep.subr.mxu0 0.0
    %785 = vmatpush1.xpose.msra.mxu0 0.0
    %786 = vmatprep.subr.mxu0 0.0
    %787 = vmatpush1.xpose.msra.mxu0 0.0
    %788 = vmatprep.subr.mxu0 0.0
    %789 = vmatpush1.xpose.msra.mxu0 0.0
    %790 = vmatprep.subr.mxu0 0.0
    %791 = vmatpush1.xpose.msra.mxu0 0.0
    %792 = vmatprep.subr.mxu0 0.0
    %793 = vmatpush1.xpose.msra.mxu0 0.0
    %794 = vmatprep.subr.mxu0 0.0
    %795 = vmatpush1.xpose.msra.mxu0 0.0
    %796 = vmatprep.subr.mxu0 0.0
    %797 = vmatpush1.xpose.msra.mxu0 0.0
    %798 = vmatprep.subr.mxu0 0.0
    %799 = vmatpush1.xpose.msra.mxu0 0.0
    %800 = vmatprep.subr.mxu0 0.0
    %801 = vmatpush1.xpose.msra.mxu0 0.0
    %802 = vmatprep.subr.mxu0 0.0
    %803 = vmatpush1.xpose.msra.mxu0 0.0
    %804 = vmatprep.subr.mxu0 0.0
    %805 = vmatpush1.xpose.msra.mxu0 0.0
    %806 = vmatprep.subr.mxu0 0.0
    %807 = vmatpush1.xpose.msra.mxu0 0.0
    %808 = vmatprep.subr.mxu0 0.0
    %809 = vmatpush1.xpose.msra.mxu0 0.0
    %810 = vmatprep.subr.mxu0 0.0
    %811 = vmatpush1.xpose.msra.mxu0 0.0
    %812 = vmatprep.mubr.f32.mxu0 0.0
    %813 = vmatmul.mubr.f32.gmra.mrb[0].mxu0 %v725
    %v814 = vpop.f32.mrb[0].mxu0
    %v815 = vadd.f32 0.0, %v814
    %v816 = vpop.f32.mrb[0].mxu0
    %817 = vmatprep.mubr.f32.mxu0 0.0
    %818 = vmatmul.mubr.f32.gmra.mrb[0].mxu0 %v728
    %v819 = vpop.f32.mrb[0].mxu0
    %v820 = vadd.f32 0.0, %v819
    %v821 = vpop.f32.mrb[0].mxu0
    %822 = vmatprep.mubr.f32.mxu0 0.0
    %823 = vmatmul.mubr.f32.gmra.mrb[0].mxu0 %v731
    %v824 = vpop.f32.mrb[0].mxu0
    %v825 = vadd.f32 0.0, %v824
    %v826 = vpop.f32.mrb[0].mxu0
    %827 = vmatprep.mubr.f32.mxu0 0.0
    %828 = vmatmul.mubr.f32.gmra.mrb[0].mxu0 %v734
    %v829 = vpop.f32.mrb[0].mxu0
    %v830 = vadd.f32 0.0, %v829
    %v831 = vpop.f32.mrb[0].mxu0
    %832 = vdwg.mxu0
    %v833 = vmul.f32 %v815, 0.17677669
    %v834 = vmul.f32 %v820, 0.17677669
    %v835 = vmul.f32 %v825, 0.17677669
    %v836 = vmul.f32 %v830, 0.17677669
    %v837 = vsel %vm434, %v833, -1e+30
    %v838 = vsel %vm435, %v834, -1e+30
    %v839 = vsel %vm436, %v835, -1e+30
    %v840 = vsel %vm437, %v836, -1e+30
    %v841 = vsel %vm448, %v837, -inf
    %842 = vmax.xlane.f32.xlu0 %v841
    %v843 = vpop.xlane.xlu0 %842
    %v844 = vsel %vm448, %v838, -inf
    %845 = vmax.xlane.f32.xlu0 %v844
    %v846 = vpop.xlane.xlu0 %845
    %v847 = vsel %vm448, %v839, -inf
    %848 = vmax.xlane.f32.xlu0 %v847
    %v849 = vpop.xlane.xlu0 %848
    %v850 = vsel %vm448, %v840, -inf
    %851 = vmax.xlane.f32.xlu0 %v850
    %v852 = vpop.xlane.xlu0 %851
    %v853 = vsub.f32 %v837, %v843
    %v854 = vsub.f32 %v838, %v846
    %v855 = vsub.f32 %v839, %v849
    %v856 = vsub.f32 %v840, %v852
    %v857 = vmul.f32 %v853, 1.442695
    %v858 = vpow.pop %v857
    %v859 = vmul.f32 %v854, 1.442695
    %v860 = vpow.pop %v859
    %v861 = vmul.f32 %v855, 1.442695
    %v862 = vpow.pop %v861
    %v863 = vmul.f32 %v856, 1.442695
    %v864 = vpow.pop %v863
    %v865 = vsel %vm448, %v858, 0.0
    %866 = vadd.xlane.f32.xlu0 %v865
    %v867 = vpop.xlane.xlu0 %866
    %v868 = vsel %vm448, %v860, 0.0
    %869 = vadd.xlane.f32.xlu0 %v868
    %v870 = vpop.xlane.xlu0 %869
    %v871 = vsel %vm448, %v862, 0.0
    %872 = vadd.xlane.f32.xlu0 %v871
    %v873 = vpop.xlane.xlu0 %872
    %v874 = vsel %vm448, %v864, 0.0
    %875 = vadd.xlane.f32.xlu0 %v874
    %v876 = vpop.xlane.xlu0 %875
    %v877 = vrcp.pop %v867
    %v878 = vrcp.pop %v870
    %v879 = vrcp.pop %v873
    %v880 = vrcp.pop %v876
    %v881 = vmul.f32 %v858, %v877
    %v882 = vmul.f32 %v860, %v878
    %v883 = vmul.f32 %v862, %v879
    %v884 = vmul.f32 %v864, %v880
    %v886 = vsel %vm448, %v881, 0
    %v889 = vsel %vm448, %v882, 0
    %v892 = vsel %vm448, %v883, 0
    %v895 = vsel %vm448, %v884, 0
    %897 = vmatprep.subr.mxu0 0.0
    %898 = vmatpush1.msra.mxu0 %v706
    %899 = vmatprep.subr.mxu0 0.0
    %900 = vmatpush1.msra.mxu0 %v711
    %901 = vmatprep.subr.mxu0 0.0
    %902 = vmatpush1.msra.mxu0 %v716
    %903 = vmatprep.subr.mxu0 0.0
    %904 = vmatpush1.msra.mxu0 %v721
    %905 = vmatprep.subr.mxu0 0.0
    %906 = vmatpush1.msra.mxu0 0.0
    %907 = vmatprep.subr.mxu0 0.0
    %908 = vmatpush1.msra.mxu0 0.0
    %909 = vmatprep.subr.mxu0 0.0
    %910 = vmatpush1.msra.mxu0 0.0
    %911 = vmatprep.subr.mxu0 0.0
    %912 = vmatpush1.msra.mxu0 0.0
    %913 = vmatprep.subr.mxu0 0.0
    %914 = vmatpush1.msra.mxu0 0.0
    %915 = vmatprep.subr.mxu0 0.0
    %916 = vmatpush1.msra.mxu0 0.0
    %917 = vmatprep.subr.mxu0 0.0
    %918 = vmatpush1.msra.mxu0 0.0
    %919 = vmatprep.subr.mxu0 0.0
    %920 = vmatpush1.msra.mxu0 0.0
    %921 = vmatprep.subr.mxu0 0.0
    %922 = vmatpush1.msra.mxu0 0.0
    %923 = vmatprep.subr.mxu0 0.0
    %924 = vmatpush1.msra.mxu0 0.0
    %925 = vmatprep.subr.mxu0 0.0
    %926 = vmatpush1.msra.mxu0 0.0
    %927 = vmatprep.subr.mxu0 0.0
    %928 = vmatpush1.msra.mxu0 0.0
    %929 = vmatprep.subr.mxu0 0.0
    %930 = vmatpush1.msra.mxu0 0.0
    %931 = vmatprep.subr.mxu0 0.0
    %932 = vmatpush1.msra.mxu0 0.0
    %933 = vmatprep.subr.mxu0 0.0
    %934 = vmatpush1.msra.mxu0 0.0
    %935 = vmatprep.subr.mxu0 0.0
    %936 = vmatpush1.msra.mxu0 0.0
    %937 = vmatprep.subr.mxu0 0.0
    %938 = vmatpush1.msra.mxu0 0.0
    %939 = vmatprep.subr.mxu0 0.0
    %940 = vmatpush1.msra.mxu0 0.0
    %941 = vmatprep.subr.mxu0 0.0
    %942 = vmatpush1.msra.mxu0 0.0
    %943 = vmatprep.subr.mxu0 0.0
    %944 = vmatpush1.msra.mxu0 0.0
    %945 = vmatprep.subr.mxu0 0.0
    %946 = vmatpush1.msra.mxu0 0.0
    %947 = vmatprep.subr.mxu0 0.0
    %948 = vmatpush1.msra.mxu0 0.0
    %949 = vmatprep.subr.mxu0 0.0
    %950 = vmatpush1.msra.mxu0 0.0
    %951 = vmatprep.subr.mxu0 0.0
    %952 = vmatpush1.msra.mxu0 0.0
    %953 = vmatprep.subr.mxu0 0.0
    %954 = vmatpush1.msra.mxu0 0.0
    %955 = vmatprep.subr.mxu0 0.0
    %956 = vmatpush1.msra.mxu0 0.0
    %957 = vmatprep.subr.mxu0 0.0
    %958 = vmatpush1.msra.mxu0 0.0
    %959 = vmatprep.subr.mxu0 0.0
    %960 = vmatpush1.msra.mxu0 0.0
    %961 = vmatprep.mubr.f32.mxu0 0.0
    %962 = vmatmul.mubr.f32.gmra.mrb[0].mxu0 %v886
    %v963 = vpop.f32.mrb[0].mxu0
    %v964 = vadd.f32 0.0, %v963
    %v965 = vpop.f32.mrb[0].mxu0
    %966 = vmatprep.mubr.f32.mxu0 0.0
    %967 = vmatmul.mubr.f32.gmra.mrb[0].mxu0 %v889
    %v968 = vpop.f32.mrb[0].mxu0
    %v969 = vadd.f32 0.0, %v968
    %v970 = vpop.f32.mrb[0].mxu0
    %971 = vmatprep.mubr.f32.mxu0 0.0
    %972 = vmatmul.mubr.f32.gmra.mrb[0].mxu0 %v892
    %v973 = vpop.f32.mrb[0].mxu0
    %v974 = vadd.f32 0.0, %v973
    %v975 = vpop.f32.mrb[0].mxu0
    %976 = vmatprep.mubr.f32.mxu0 0.0
    %977 = vmatmul.mubr.f32.gmra.mrb[0].mxu0 %v895
    %v978 = vpop.f32.mrb[0].mxu0
    %v979 = vadd.f32 0.0, %v978
    %v980 = vpop.f32.mrb[0].mxu0
    %981 = vdwg.mxu0
    %982 = vrot.lane.b32.xlu0 %v528, 96
    %v983 = vpop.permute.xlu0 %982
    %984 = vrot.lane.b32.xlu0 %v533, 96
    %v985 = vpop.permute.xlu0 %984
    %986 = vrot.lane.b32.xlu0 %v538, 96
    %v987 = vpop.permute.xlu0 %986
    %988 = vrot.lane.b32.xlu0 %v543, 96
    %v989 = vpop.permute.xlu0 %988
    %990 = vrot.lane.b32.xlu0 %v617, 96
    %v991 = vpop.permute.xlu0 %990
    %992 = vrot.lane.b32.xlu0 %v622, 96
    %v993 = vpop.permute.xlu0 %992
    %994 = vrot.lane.b32.xlu0 %v627, 96
    %v995 = vpop.permute.xlu0 %994
    %996 = vrot.lane.b32.xlu0 %v632, 96
    %v997 = vpop.permute.xlu0 %996
    %v998 = vsel %vm448, %v983, 0
    %v1000 = vsel %vm448, %v985, 0
    %v1002 = vsel %vm448, %v987, 0
    %v1004 = vsel %vm448, %v989, 0
    %v1006 = vsel %vm448, %v991, 0
    %v1008 = vsel %vm448, %v993, 0
    %v1010 = vsel %vm448, %v995, 0
    %v1012 = vsel %vm448, %v997, 0
    %1014 = vmatprep.subr.mxu0 0.0
    %1015 = vmatpush1.xpose.msra.mxu0 %v1006
    %1016 = vmatprep.subr.mxu0 0.0
    %1017 = vmatpush1.xpose.msra.mxu0 %v1008
    %1018 = vmatprep.subr.mxu0 0.0
    %1019 = vmatpush1.xpose.msra.mxu0 %v1010
    %1020 = vmatprep.subr.mxu0 0.0
    %1021 = vmatpush1.xpose.msra.mxu0 %v1012
    %1022 = vmatprep.subr.mxu0 0.0
    %1023 = vmatpush1.xpose.msra.mxu0 0.0
    %1024 = vmatprep.subr.mxu0 0.0
    %1025 = vmatpush1.xpose.msra.mxu0 0.0
    %1026 = vmatprep.subr.mxu0 0.0
    %1027 = vmatpush1.xpose.msra.mxu0 0.0
    %1028 = vmatprep.subr.mxu0 0.0
    %1029 = vmatpush1.xpose.msra.mxu0 0.0
    %1030 = vmatprep.subr.mxu0 0.0
    %1031 = vmatpush1.xpose.msra.mxu0 0.0
    %1032 = vmatprep.subr.mxu0 0.0
    %1033 = vmatpush1.xpose.msra.mxu0 0.0
    %1034 = vmatprep.subr.mxu0 0.0
    %1035 = vmatpush1.xpose.msra.mxu0 0.0
    %1036 = vmatprep.subr.mxu0 0.0
    %1037 = vmatpush1.xpose.msra.mxu0 0.0
    %1038 = vmatprep.subr.mxu0 0.0
    %1039 = vmatpush1.xpose.msra.mxu0 0.0
    %1040 = vmatprep.subr.mxu0 0.0
    %1041 = vmatpush1.xpose.msra.mxu0 0.0
    %1042 = vmatprep.subr.mxu0 0.0
    %1043 = vmatpush1.xpose.msra.mxu0 0.0
    %1044 = vmatprep.subr.mxu0 0.0
    %1045 = vmatpush1.xpose.msra.mxu0 0.0
    %1046 = vmatprep.subr.mxu0 0.0
    %1047 = vmatpush1.xpose.msra.mxu0 0.0
    %1048 = vmatprep.subr.mxu0 0.0
    %1049 = vmatpush1.xpose.msra.mxu0 0.0
    %1050 = vmatprep.subr.mxu0 0.0
    %1051 = vmatpush1.xpose.msra.mxu0 0.0
    %1052 = vmatprep.subr.mxu0 0.0
    %1053 = vmatpush1.xpose.msra.mxu0 0.0
    %1054 = vmatprep.subr.mxu0 0.0
    %1055 = vmatpush1.xpose.msra.mxu0 0.0
    %1056 = vmatprep.subr.mxu0 0.0
    %1057 = vmatpush1.xpose.msra.mxu0 0.0
    %1058 = vmatprep.subr.mxu0 0.0
    %1059 = vmatpush1.xpose.msra.mxu0 0.0
    %1060 = vmatprep.subr.mxu0 0.0
    %1061 = vmatpush1.xpose.msra.mxu0 0.0
    %1062 = vmatprep.subr.mxu0 0.0
    %1063 = vmatpush1.xpose.msra.mxu0 0.0
    %1064 = vmatprep.subr.mxu0 0.0
    %1065 = vmatpush1.xpose.msra.mxu0 0.0
    %1066 = vmatprep.subr.mxu0 0.0
    %1067 = vmatpush1.xpose.msra.mxu0 0.0
    %1068 = vmatprep.subr.mxu0 0.0
    %1069 = vmatpush1.xpose.msra.mxu0 0.0
    %1070 = vmatprep.subr.mxu0 0.0
    %1071 = vmatpush1.xpose.msra.mxu0 0.0
    %1072 = vmatprep.subr.mxu0 0.0
    %1073 = vmatpush1.xpose.msra.mxu0 0.0
    %1074 = vmatprep.subr.mxu0 0.0
    %1075 = vmatpush1.xpose.msra.mxu0 0.0
    %1076 = vmatprep.subr.mxu0 0.0
    %1077 = vmatpush1.xpose.msra.mxu0 0.0
    %1078 = vmatprep.mubr.f32.mxu0 0.0
    %1079 = vmatmul.mubr.f32.gmra.mrb[0].mxu0 %v998
    %v1080 = vpop.f32.mrb[0].mxu0
    %v1081 = vadd.f32 0.0, %v1080
    %v1082 = vpop.f32.mrb[0].mxu0
    %1083 = vmatprep.mubr.f32.mxu0 0.0
    %1084 = vmatmul.mubr.f32.gmra.mrb[0].mxu0 %v1000
    %v1085 = vpop.f32.mrb[0].mxu0
    %v1086 = vadd.f32 0.0, %v1085
    %v1087 = vpop.f32.mrb[0].mxu0
    %1088 = vmatprep.mubr.f32.mxu0 0.0
    %1089 = vmatmul.mubr.f32.gmra.mrb[0].mxu0 %v1002
    %v1090 = vpop.f32.mrb[0].mxu0
    %v1091 = vadd.f32 0.0, %v1090
    %v1092 = vpop.f32.mrb[0].mxu0
    %1093 = vmatprep.mubr.f32.mxu0 0.0
    %1094 = vmatmul.mubr.f32.gmra.mrb[0].mxu0 %v1004
    %v1095 = vpop.f32.mrb[0].mxu0
    %v1096 = vadd.f32 0.0, %v1095
    %v1097 = vpop.f32.mrb[0].mxu0
    %1098 = vdwg.mxu0
    %v1099 = vmul.f32 %v1081, 0.17677669
    %v1100 = vmul.f32 %v1086, 0.17677669
    %v1101 = vmul.f32 %v1091, 0.17677669
    %v1102 = vmul.f32 %v1096, 0.17677669
    %v1103 = vsel %vm434, %v1099, -1e+30
    %v1104 = vsel %vm435, %v1100, -1e+30
    %v1105 = vsel %vm436, %v1101, -1e+30
    %v1106 = vsel %vm437, %v1102, -1e+30
    %v1107 = vsel %vm448, %v1103, -inf
    %1108 = vmax.xlane.f32.xlu0 %v1107
    %v1109 = vpop.xlane.xlu0 %1108
    %v1110 = vsel %vm448, %v1104, -inf
    %1111 = vmax.xlane.f32.xlu0 %v1110
    %v1112 = vpop.xlane.xlu0 %1111
    %v1113 = vsel %vm448, %v1105, -inf
    %1114 = vmax.xlane.f32.xlu0 %v1113
    %v1115 = vpop.xlane.xlu0 %1114
    %v1116 = vsel %vm448, %v1106, -inf
    %1117 = vmax.xlane.f32.xlu0 %v1116
    %v1118 = vpop.xlane.xlu0 %1117
    %v1119 = vsub.f32 %v1103, %v1109
    %v1120 = vsub.f32 %v1104, %v1112
    %v1121 = vsub.f32 %v1105, %v1115
    %v1122 = vsub.f32 %v1106, %v1118
    %v1123 = vmul.f32 %v1119, 1.442695
    %v1124 = vpow.pop %v1123
    %v1125 = vmul.f32 %v1120, 1.442695
    %v1126 = vpow.pop %v1125
    %v1127 = vmul.f32 %v1121, 1.442695
    %v1128 = vpow.pop %v1127
    %v1129 = vmul.f32 %v1122, 1.442695
    %v1130 = vpow.pop %v1129
    %v1131 = vsel %vm448, %v1124, 0.0
    %1132 = vadd.xlane.f32.xlu0 %v1131
    %v1133 = vpop.xlane.xlu0 %1132
    %v1134 = vsel %vm448, %v1126, 0.0
    %1135 = vadd.xlane.f32.xlu0 %v1134
    %v1136 = vpop.xlane.xlu0 %1135
    %v1137 = vsel %vm448, %v1128, 0.0
    %1138 = vadd.xlane.f32.xlu0 %v1137
    %v1139 = vpop.xlane.xlu0 %1138
    %v1140 = vsel %vm448, %v1130, 0.0
    %1141 = vadd.xlane.f32.xlu0 %v1140
    %v1142 = vpop.xlane.xlu0 %1141
    %v1143 = vrcp.pop %v1133
    %v1144 = vrcp.pop %v1136
    %v1145 = vrcp.pop %v1139
    %v1146 = vrcp.pop %v1142
    %v1147 = vmul.f32 %v1124, %v1143
    %v1148 = vmul.f32 %v1126, %v1144
    %v1149 = vmul.f32 %v1128, %v1145
    %v1150 = vmul.f32 %v1130, %v1146
    %1155 = vrot.lane.b32.xlu0 %v706, 96
    %v1156 = vpop.permute.xlu0 %1155
    %1157 = vrot.lane.b32.xlu0 %v711, 96
    %v1158 = vpop.permute.xlu0 %1157
    %1159 = vrot.lane.b32.xlu0 %v716, 96
    %v1160 = vpop.permute.xlu0 %1159
    %1161 = vrot.lane.b32.xlu0 %v721, 96
    %v1162 = vpop.permute.xlu0 %1161
    %v1168 = vsel %vm448, %v1147, 0
    %v1171 = vsel %vm448, %v1148, 0
    %v1174 = vsel %vm448, %v1149, 0
    %v1177 = vsel %vm448, %v1150, 0
    %1179 = vmatprep.subr.mxu0 0.0
    %1180 = vmatpush1.msra.mxu0 %v1156
    %1181 = vmatprep.subr.mxu0 0.0
    %1182 = vmatpush1.msra.mxu0 %v1158
    %1183 = vmatprep.subr.mxu0 0.0
    %1184 = vmatpush1.msra.mxu0 %v1160
    %1185 = vmatprep.subr.mxu0 0.0
    %1186 = vmatpush1.msra.mxu0 %v1162
    %1187 = vmatprep.subr.mxu0 0.0
    %1188 = vmatpush1.msra.mxu0 0.0
    %1189 = vmatprep.subr.mxu0 0.0
    %1190 = vmatpush1.msra.mxu0 0.0
    %1191 = vmatprep.subr.mxu0 0.0
    %1192 = vmatpush1.msra.mxu0 0.0
    %1193 = vmatprep.subr.mxu0 0.0
    %1194 = vmatpush1.msra.mxu0 0.0
    %1195 = vmatprep.subr.mxu0 0.0
    %1196 = vmatpush1.msra.mxu0 0.0
    %1197 = vmatprep.subr.mxu0 0.0
    %1198 = vmatpush1.msra.mxu0 0.0
    %1199 = vmatprep.subr.mxu0 0.0
    %1200 = vmatpush1.msra.mxu0 0.0
    %1201 = vmatprep.subr.mxu0 0.0
    %1202 = vmatpush1.msra.mxu0 0.0
    %1203 = vmatprep.subr.mxu0 0.0
    %1204 = vmatpush1.msra.mxu0 0.0
    %1205 = vmatprep.subr.mxu0 0.0
    %1206 = vmatpush1.msra.mxu0 0.0
    %1207 = vmatprep.subr.mxu0 0.0
    %1208 = vmatpush1.msra.mxu0 0.0
    %1209 = vmatprep.subr.mxu0 0.0
    %1210 = vmatpush1.msra.mxu0 0.0
    %1211 = vmatprep.subr.mxu0 0.0
    %1212 = vmatpush1.msra.mxu0 0.0
    %1213 = vmatprep.subr.mxu0 0.0
    %1214 = vmatpush1.msra.mxu0 0.0
    %1215 = vmatprep.subr.mxu0 0.0
    %1216 = vmatpush1.msra.mxu0 0.0
    %1217 = vmatprep.subr.mxu0 0.0
    %1218 = vmatpush1.msra.mxu0 0.0
    %1219 = vmatprep.subr.mxu0 0.0
    %1220 = vmatpush1.msra.mxu0 0.0
    %1221 = vmatprep.subr.mxu0 0.0
    %1222 = vmatpush1.msra.mxu0 0.0
    %1223 = vmatprep.subr.mxu0 0.0
    %1224 = vmatpush1.msra.mxu0 0.0
    %1225 = vmatprep.subr.mxu0 0.0
    %1226 = vmatpush1.msra.mxu0 0.0
    %1227 = vmatprep.subr.mxu0 0.0
    %1228 = vmatpush1.msra.mxu0 0.0
    %1229 = vmatprep.subr.mxu0 0.0
    %1230 = vmatpush1.msra.mxu0 0.0
    %1231 = vmatprep.subr.mxu0 0.0
    %1232 = vmatpush1.msra.mxu0 0.0
    %1233 = vmatprep.subr.mxu0 0.0
    %1234 = vmatpush1.msra.mxu0 0.0
    %1235 = vmatprep.subr.mxu0 0.0
    %1236 = vmatpush1.msra.mxu0 0.0
    %1237 = vmatprep.subr.mxu0 0.0
    %1238 = vmatpush1.msra.mxu0 0.0
    %1239 = vmatprep.subr.mxu0 0.0
    %1240 = vmatpush1.msra.mxu0 0.0
    %1241 = vmatprep.subr.mxu0 0.0
    %1242 = vmatpush1.msra.mxu0 0.0
    %1243 = vmatprep.mubr.f32.mxu0 0.0
    %1244 = vmatmul.mubr.f32.gmra.mrb[0].mxu0 %v1168
    %v1245 = vpop.f32.mrb[0].mxu0
    %v1246 = vadd.f32 0.0, %v1245
    %v1247 = vpop.f32.mrb[0].mxu0
    %1248 = vmatprep.mubr.f32.mxu0 0.0
    %1249 = vmatmul.mubr.f32.gmra.mrb[0].mxu0 %v1171
    %v1250 = vpop.f32.mrb[0].mxu0
    %v1251 = vadd.f32 0.0, %v1250
    %v1252 = vpop.f32.mrb[0].mxu0
    %1253 = vmatprep.mubr.f32.mxu0 0.0
    %1254 = vmatmul.mubr.f32.gmra.mrb[0].mxu0 %v1174
    %v1255 = vpop.f32.mrb[0].mxu0
    %v1256 = vadd.f32 0.0, %v1255
    %v1257 = vpop.f32.mrb[0].mxu0
    %1258 = vmatprep.mubr.f32.mxu0 0.0
    %1259 = vmatmul.mubr.f32.gmra.mrb[0].mxu0 %v1177
    %v1260 = vpop.f32.mrb[0].mxu0
    %v1261 = vadd.f32 0.0, %v1260
    %v1262 = vpop.f32.mrb[0].mxu0
    %1263 = vdwg.mxu0
    %1264 = vrot.lane.b32.xlu0 %v528, 64
    %v1265 = vpop.permute.xlu0 %1264
    %1266 = vrot.lane.b32.xlu0 %v533, 64
    %v1267 = vpop.permute.xlu0 %1266
    %1268 = vrot.lane.b32.xlu0 %v538, 64
    %v1269 = vpop.permute.xlu0 %1268
    %1270 = vrot.lane.b32.xlu0 %v543, 64
    %v1271 = vpop.permute.xlu0 %1270
    %1272 = vrot.lane.b32.xlu0 %v617, 64
    %v1273 = vpop.permute.xlu0 %1272
    %1274 = vrot.lane.b32.xlu0 %v622, 64
    %v1275 = vpop.permute.xlu0 %1274
    %1276 = vrot.lane.b32.xlu0 %v627, 64
    %v1277 = vpop.permute.xlu0 %1276
    %1278 = vrot.lane.b32.xlu0 %v632, 64
    %v1279 = vpop.permute.xlu0 %1278
    %v1280 = vsel %vm448, %v1265, 0
    %v1282 = vsel %vm448, %v1267, 0
    %v1284 = vsel %vm448, %v1269, 0
    %v1286 = vsel %vm448, %v1271, 0
    %v1288 = vsel %vm448, %v1273, 0
    %v1290 = vsel %vm448, %v1275, 0
    %v1292 = vsel %vm448, %v1277, 0
    %v1294 = vsel %vm448, %v1279, 0
    %1296 = vmatprep.subr.mxu0 0.0
    %1297 = vmatpush1.xpose.msra.mxu0 %v1288
    %1298 = vmatprep.subr.mxu0 0.0
    %1299 = vmatpush1.xpose.msra.mxu0 %v1290
    %1300 = vmatprep.subr.mxu0 0.0
    %1301 = vmatpush1.xpose.msra.mxu0 %v1292
    %1302 = vmatprep.subr.mxu0 0.0
    %1303 = vmatpush1.xpose.msra.mxu0 %v1294
    %1304 = vmatprep.subr.mxu0 0.0
    %1305 = vmatpush1.xpose.msra.mxu0 0.0
    %1306 = vmatprep.subr.mxu0 0.0
    %1307 = vmatpush1.xpose.msra.mxu0 0.0
    %1308 = vmatprep.subr.mxu0 0.0
    %1309 = vmatpush1.xpose.msra.mxu0 0.0
    %1310 = vmatprep.subr.mxu0 0.0
    %1311 = vmatpush1.xpose.msra.mxu0 0.0
    %1312 = vmatprep.subr.mxu0 0.0
    %1313 = vmatpush1.xpose.msra.mxu0 0.0
    %1314 = vmatprep.subr.mxu0 0.0
    %1315 = vmatpush1.xpose.msra.mxu0 0.0
    %1316 = vmatprep.subr.mxu0 0.0
    %1317 = vmatpush1.xpose.msra.mxu0 0.0
    %1318 = vmatprep.subr.mxu0 0.0
    %1319 = vmatpush1.xpose.msra.mxu0 0.0
    %1320 = vmatprep.subr.mxu0 0.0
    %1321 = vmatpush1.xpose.msra.mxu0 0.0
    %1322 = vmatprep.subr.mxu0 0.0
    %1323 = vmatpush1.xpose.msra.mxu0 0.0
    %1324 = vmatprep.subr.mxu0 0.0
    %1325 = vmatpush1.xpose.msra.mxu0 0.0
    %1326 = vmatprep.subr.mxu0 0.0
    %1327 = vmatpush1.xpose.msra.mxu0 0.0
    %1328 = vmatprep.subr.mxu0 0.0
    %1329 = vmatpush1.xpose.msra.mxu0 0.0
    %1330 = vmatprep.subr.mxu0 0.0
    %1331 = vmatpush1.xpose.msra.mxu0 0.0
    %1332 = vmatprep.subr.mxu0 0.0
    %1333 = vmatpush1.xpose.msra.mxu0 0.0
    %1334 = vmatprep.subr.mxu0 0.0
    %1335 = vmatpush1.xpose.msra.mxu0 0.0
    %1336 = vmatprep.subr.mxu0 0.0
    %1337 = vmatpush1.xpose.msra.mxu0 0.0
    %1338 = vmatprep.subr.mxu0 0.0
    %1339 = vmatpush1.xpose.msra.mxu0 0.0
    %1340 = vmatprep.subr.mxu0 0.0
    %1341 = vmatpush1.xpose.msra.mxu0 0.0
    %1342 = vmatprep.subr.mxu0 0.0
    %1343 = vmatpush1.xpose.msra.mxu0 0.0
    %1344 = vmatprep.subr.mxu0 0.0
    %1345 = vmatpush1.xpose.msra.mxu0 0.0
    %1346 = vmatprep.subr.mxu0 0.0
    %1347 = vmatpush1.xpose.msra.mxu0 0.0
    %1348 = vmatprep.subr.mxu0 0.0
    %1349 = vmatpush1.xpose.msra.mxu0 0.0
    %1350 = vmatprep.subr.mxu0 0.0
    %1351 = vmatpush1.xpose.msra.mxu0 0.0
    %1352 = vmatprep.subr.mxu0 0.0
    %1353 = vmatpush1.xpose.msra.mxu0 0.0
    %1354 = vmatprep.subr.mxu0 0.0
    %1355 = vmatpush1.xpose.msra.mxu0 0.0
    %1356 = vmatprep.subr.mxu0 0.0
    %1357 = vmatpush1.xpose.msra.mxu0 0.0
    %1358 = vmatprep.subr.mxu0 0.0
    %1359 = vmatpush1.xpose.msra.mxu0 0.0
    %1360 = vmatprep.mubr.f32.mxu0 0.0
    %1361 = vmatmul.mubr.f32.gmra.mrb[0].mxu0 %v1280
    %v1362 = vpop.f32.mrb[0].mxu0
    %v1363 = vadd.f32 0.0, %v1362
    %v1364 = vpop.f32.mrb[0].mxu0
    %1365 = vmatprep.mubr.f32.mxu0 0.0
    %1366 = vmatmul.mubr.f32.gmra.mrb[0].mxu0 %v1282
    %v1367 = vpop.f32.mrb[0].mxu0
    %v1368 = vadd.f32 0.0, %v1367
    %v1369 = vpop.f32.mrb[0].mxu0
    %1370 = vmatprep.mubr.f32.mxu0 0.0
    %1371 = vmatmul.mubr.f32.gmra.mrb[0].mxu0 %v1284
    %v1372 = vpop.f32.mrb[0].mxu0
    %v1373 = vadd.f32 0.0, %v1372
    %v1374 = vpop.f32.mrb[0].mxu0
    %1375 = vmatprep.mubr.f32.mxu0 0.0
    %1376 = vmatmul.mubr.f32.gmra.mrb[0].mxu0 %v1286
    %v1377 = vpop.f32.mrb[0].mxu0
    %v1378 = vadd.f32 0.0, %v1377
    %v1379 = vpop.f32.mrb[0].mxu0
    %1380 = vdwg.mxu0
    %v1381 = vmul.f32 %v1363, 0.17677669
    %v1382 = vmul.f32 %v1368, 0.17677669
    %v1383 = vmul.f32 %v1373, 0.17677669
    %v1384 = vmul.f32 %v1378, 0.17677669
    %v1385 = vsel %vm434, %v1381, -1e+30
    %v1386 = vsel %vm435, %v1382, -1e+30
    %v1387 = vsel %vm436, %v1383, -1e+30
    %v1388 = vsel %vm437, %v1384, -1e+30
    %v1389 = vsel %vm448, %v1385, -inf
    %1390 = vmax.xlane.f32.xlu0 %v1389
    %v1391 = vpop.xlane.xlu0 %1390
    %v1392 = vsel %vm448, %v1386, -inf
    %1393 = vmax.xlane.f32.xlu0 %v1392
    %v1394 = vpop.xlane.xlu0 %1393
    %v1395 = vsel %vm448, %v1387, -inf
    %1396 = vmax.xlane.f32.xlu0 %v1395
    %v1397 = vpop.xlane.xlu0 %1396
    %v1398 = vsel %vm448, %v1388, -inf
    %1399 = vmax.xlane.f32.xlu0 %v1398
    %v1400 = vpop.xlane.xlu0 %1399
    %v1401 = vsub.f32 %v1385, %v1391
    %v1402 = vsub.f32 %v1386, %v1394
    %v1403 = vsub.f32 %v1387, %v1397
    %v1404 = vsub.f32 %v1388, %v1400
    %v1405 = vmul.f32 %v1401, 1.442695
    %v1406 = vpow.pop %v1405
    %v1407 = vmul.f32 %v1402, 1.442695
    %v1408 = vpow.pop %v1407
    %v1409 = vmul.f32 %v1403, 1.442695
    %v1410 = vpow.pop %v1409
    %v1411 = vmul.f32 %v1404, 1.442695
    %v1412 = vpow.pop %v1411
    %v1413 = vsel %vm448, %v1406, 0.0
    %1414 = vadd.xlane.f32.xlu0 %v1413
    %v1415 = vpop.xlane.xlu0 %1414
    %v1416 = vsel %vm448, %v1408, 0.0
    %1417 = vadd.xlane.f32.xlu0 %v1416
    %v1418 = vpop.xlane.xlu0 %1417
    %v1419 = vsel %vm448, %v1410, 0.0
    %1420 = vadd.xlane.f32.xlu0 %v1419
    %v1421 = vpop.xlane.xlu0 %1420
    %v1422 = vsel %vm448, %v1412, 0.0
    %1423 = vadd.xlane.f32.xlu0 %v1422
    %v1424 = vpop.xlane.xlu0 %1423
    %v1425 = vrcp.pop %v1415
    %v1426 = vrcp.pop %v1418
    %v1427 = vrcp.pop %v1421
    %v1428 = vrcp.pop %v1424
    %v1429 = vmul.f32 %v1406, %v1425
    %v1430 = vmul.f32 %v1408, %v1426
    %v1431 = vmul.f32 %v1410, %v1427
    %v1432 = vmul.f32 %v1412, %v1428
    %1433 = vrot.lane.b32.xlu0 %v706, 64
    %v1434 = vpop.permute.xlu0 %1433
    %1435 = vrot.lane.b32.xlu0 %v711, 64
    %v1436 = vpop.permute.xlu0 %1435
    %1437 = vrot.lane.b32.xlu0 %v716, 64
    %v1438 = vpop.permute.xlu0 %1437
    %1439 = vrot.lane.b32.xlu0 %v721, 64
    %v1440 = vpop.permute.xlu0 %1439
    %v1446 = vsel %vm448, %v1429, 0
    %v1449 = vsel %vm448, %v1430, 0
    %v1452 = vsel %vm448, %v1431, 0
    %v1455 = vsel %vm448, %v1432, 0
    %1457 = vmatprep.subr.mxu0 0.0
    %1458 = vmatpush1.msra.mxu0 %v1434
    %1459 = vmatprep.subr.mxu0 0.0
    %1460 = vmatpush1.msra.mxu0 %v1436
    %1461 = vmatprep.subr.mxu0 0.0
    %1462 = vmatpush1.msra.mxu0 %v1438
    %1463 = vmatprep.subr.mxu0 0.0
    %1464 = vmatpush1.msra.mxu0 %v1440
    %1465 = vmatprep.subr.mxu0 0.0
    %1466 = vmatpush1.msra.mxu0 0.0
    %1467 = vmatprep.subr.mxu0 0.0
    %1468 = vmatpush1.msra.mxu0 0.0
    %1469 = vmatprep.subr.mxu0 0.0
    %1470 = vmatpush1.msra.mxu0 0.0
    %1471 = vmatprep.subr.mxu0 0.0
    %1472 = vmatpush1.msra.mxu0 0.0
    %1473 = vmatprep.subr.mxu0 0.0
    %1474 = vmatpush1.msra.mxu0 0.0
    %1475 = vmatprep.subr.mxu0 0.0
    %1476 = vmatpush1.msra.mxu0 0.0
    %1477 = vmatprep.subr.mxu0 0.0
    %1478 = vmatpush1.msra.mxu0 0.0
    %1479 = vmatprep.subr.mxu0 0.0
    %1480 = vmatpush1.msra.mxu0 0.0
    %1481 = vmatprep.subr.mxu0 0.0
    %1482 = vmatpush1.msra.mxu0 0.0
    %1483 = vmatprep.subr.mxu0 0.0
    %1484 = vmatpush1.msra.mxu0 0.0
    %1485 = vmatprep.subr.mxu0 0.0
    %1486 = vmatpush1.msra.mxu0 0.0
    %1487 = vmatprep.subr.mxu0 0.0
    %1488 = vmatpush1.msra.mxu0 0.0
    %1489 = vmatprep.subr.mxu0 0.0
    %1490 = vmatpush1.msra.mxu0 0.0
    %1491 = vmatprep.subr.mxu0 0.0
    %1492 = vmatpush1.msra.mxu0 0.0
    %1493 = vmatprep.subr.mxu0 0.0
    %1494 = vmatpush1.msra.mxu0 0.0
    %1495 = vmatprep.subr.mxu0 0.0
    %1496 = vmatpush1.msra.mxu0 0.0
    %1497 = vmatprep.subr.mxu0 0.0
    %1498 = vmatpush1.msra.mxu0 0.0
    %1499 = vmatprep.subr.mxu0 0.0
    %1500 = vmatpush1.msra.mxu0 0.0
    %1501 = vmatprep.subr.mxu0 0.0
    %1502 = vmatpush1.msra.mxu0 0.0
    %1503 = vmatprep.subr.mxu0 0.0
    %1504 = vmatpush1.msra.mxu0 0.0
    %1505 = vmatprep.subr.mxu0 0.0
    %1506 = vmatpush1.msra.mxu0 0.0
    %1507 = vmatprep.subr.mxu0 0.0
    %1508 = vmatpush1.msra.mxu0 0.0
    %1509 = vmatprep.subr.mxu0 0.0
    %1510 = vmatpush1.msra.mxu0 0.0
    %1511 = vmatprep.subr.mxu0 0.0
    %1512 = vmatpush1.msra.mxu0 0.0
    %1513 = vmatprep.subr.mxu0 0.0
    %1514 = vmatpush1.msra.mxu0 0.0
    %1515 = vmatprep.subr.mxu0 0.0
    %1516 = vmatpush1.msra.mxu0 0.0
    %1517 = vmatprep.subr.mxu0 0.0
    %1518 = vmatpush1.msra.mxu0 0.0
    %1519 = vmatprep.subr.mxu0 0.0
    %1520 = vmatpush1.msra.mxu0 0.0
    %1521 = vmatprep.mubr.f32.mxu0 0.0
    %1522 = vmatmul.mubr.f32.gmra.mrb[0].mxu0 %v1446
    %v1523 = vpop.f32.mrb[0].mxu0
    %v1524 = vadd.f32 0.0, %v1523
    %v1525 = vpop.f32.mrb[0].mxu0
    %1526 = vmatprep.mubr.f32.mxu0 0.0
    %1527 = vmatmul.mubr.f32.gmra.mrb[0].mxu0 %v1449
    %v1528 = vpop.f32.mrb[0].mxu0
    %v1529 = vadd.f32 0.0, %v1528
    %v1530 = vpop.f32.mrb[0].mxu0
    %1531 = vmatprep.mubr.f32.mxu0 0.0
    %1532 = vmatmul.mubr.f32.gmra.mrb[0].mxu0 %v1452
    %v1533 = vpop.f32.mrb[0].mxu0
    %v1534 = vadd.f32 0.0, %v1533
    %v1535 = vpop.f32.mrb[0].mxu0
    %1536 = vmatprep.mubr.f32.mxu0 0.0
    %1537 = vmatmul.mubr.f32.gmra.mrb[0].mxu0 %v1455
    %v1538 = vpop.f32.mrb[0].mxu0
    %v1539 = vadd.f32 0.0, %v1538
    %v1540 = vpop.f32.mrb[0].mxu0
    %1541 = vdwg.mxu0
    %1542 = vrot.lane.b32.xlu0 %v528, 32
    %v1543 = vpop.permute.xlu0 %1542
    %1544 = vrot.lane.b32.xlu0 %v533, 32
    %v1545 = vpop.permute.xlu0 %1544
    %1546 = vrot.lane.b32.xlu0 %v538, 32
    %v1547 = vpop.permute.xlu0 %1546
    %1548 = vrot.lane.b32.xlu0 %v543, 32
    %v1549 = vpop.permute.xlu0 %1548
    %1550 = vrot.lane.b32.xlu0 %v617, 32
    %v1551 = vpop.permute.xlu0 %1550
    %1552 = vrot.lane.b32.xlu0 %v622, 32
    %v1553 = vpop.permute.xlu0 %1552
    %1554 = vrot.lane.b32.xlu0 %v627, 32
    %v1555 = vpop.permute.xlu0 %1554
    %1556 = vrot.lane.b32.xlu0 %v632, 32
    %v1557 = vpop.permute.xlu0 %1556
    %v1558 = vsel %vm448, %v1543, 0
    %v1560 = vsel %vm448, %v1545, 0
    %v1562 = vsel %vm448, %v1547, 0
    %v1564 = vsel %vm448, %v1549, 0
    %v1566 = vsel %vm448, %v1551, 0
    %v1568 = vsel %vm448, %v1553, 0
    %v1570 = vsel %vm448, %v1555, 0
    %v1572 = vsel %vm448, %v1557, 0
    %1574 = vmatprep.subr.mxu0 0.0
    %1575 = vmatpush1.xpose.msra.mxu0 %v1566
    %1576 = vmatprep.subr.mxu0 0.0
    %1577 = vmatpush1.xpose.msra.mxu0 %v1568
    %1578 = vmatprep.subr.mxu0 0.0
    %1579 = vmatpush1.xpose.msra.mxu0 %v1570
    %1580 = vmatprep.subr.mxu0 0.0
    %1581 = vmatpush1.xpose.msra.mxu0 %v1572
    %1582 = vmatprep.subr.mxu0 0.0
    %1583 = vmatpush1.xpose.msra.mxu0 0.0
    %1584 = vmatprep.subr.mxu0 0.0
    %1585 = vmatpush1.xpose.msra.mxu0 0.0
    %1586 = vmatprep.subr.mxu0 0.0
    %1587 = vmatpush1.xpose.msra.mxu0 0.0
    %1588 = vmatprep.subr.mxu0 0.0
    %1589 = vmatpush1.xpose.msra.mxu0 0.0
    %1590 = vmatprep.subr.mxu0 0.0
    %1591 = vmatpush1.xpose.msra.mxu0 0.0
    %1592 = vmatprep.subr.mxu0 0.0
    %1593 = vmatpush1.xpose.msra.mxu0 0.0
    %1594 = vmatprep.subr.mxu0 0.0
    %1595 = vmatpush1.xpose.msra.mxu0 0.0
    %1596 = vmatprep.subr.mxu0 0.0
    %1597 = vmatpush1.xpose.msra.mxu0 0.0
    %1598 = vmatprep.subr.mxu0 0.0
    %1599 = vmatpush1.xpose.msra.mxu0 0.0
    %1600 = vmatprep.subr.mxu0 0.0
    %1601 = vmatpush1.xpose.msra.mxu0 0.0
    %1602 = vmatprep.subr.mxu0 0.0
    %1603 = vmatpush1.xpose.msra.mxu0 0.0
    %1604 = vmatprep.subr.mxu0 0.0
    %1605 = vmatpush1.xpose.msra.mxu0 0.0
    %1606 = vmatprep.subr.mxu0 0.0
    %1607 = vmatpush1.xpose.msra.mxu0 0.0
    %1608 = vmatprep.subr.mxu0 0.0
    %1609 = vmatpush1.xpose.msra.mxu0 0.0
    %1610 = vmatprep.subr.mxu0 0.0
    %1611 = vmatpush1.xpose.msra.mxu0 0.0
    %1612 = vmatprep.subr.mxu0 0.0
    %1613 = vmatpush1.xpose.msra.mxu0 0.0
    %1614 = vmatprep.subr.mxu0 0.0
    %1615 = vmatpush1.xpose.msra.mxu0 0.0
    %1616 = vmatprep.subr.mxu0 0.0
    %1617 = vmatpush1.xpose.msra.mxu0 0.0
    %1618 = vmatprep.subr.mxu0 0.0
    %1619 = vmatpush1.xpose.msra.mxu0 0.0
    %1620 = vmatprep.subr.mxu0 0.0
    %1621 = vmatpush1.xpose.msra.mxu0 0.0
    %1622 = vmatprep.subr.mxu0 0.0
    %1623 = vmatpush1.xpose.msra.mxu0 0.0
    %1624 = vmatprep.subr.mxu0 0.0
    %1625 = vmatpush1.xpose.msra.mxu0 0.0
    %1626 = vmatprep.subr.mxu0 0.0
    %1627 = vmatpush1.xpose.msra.mxu0 0.0
    %1628 = vmatprep.subr.mxu0 0.0
    %1629 = vmatpush1.xpose.msra.mxu0 0.0
    %1630 = vmatprep.subr.mxu0 0.0
    %1631 = vmatpush1.xpose.msra.mxu0 0.0
    %1632 = vmatprep.subr.mxu0 0.0
    %1633 = vmatpush1.xpose.msra.mxu0 0.0
    %1634 = vmatprep.subr.mxu0 0.0
    %1635 = vmatpush1.xpose.msra.mxu0 0.0
    %1636 = vmatprep.subr.mxu0 0.0
    %1637 = vmatpush1.xpose.msra.mxu0 0.0
    %1638 = vmatprep.mubr.f32.mxu0 0.0
    %1639 = vmatmul.mubr.f32.gmra.mrb[0].mxu0 %v1558
    %v1640 = vpop.f32.mrb[0].mxu0
    %v1641 = vadd.f32 0.0, %v1640
    %v1642 = vpop.f32.mrb[0].mxu0
    %1643 = vmatprep.mubr.f32.mxu0 0.0
    %1644 = vmatmul.mubr.f32.gmra.mrb[0].mxu0 %v1560
    %v1645 = vpop.f32.mrb[0].mxu0
    %v1646 = vadd.f32 0.0, %v1645
    %v1647 = vpop.f32.mrb[0].mxu0
    %1648 = vmatprep.mubr.f32.mxu0 0.0
    %1649 = vmatmul.mubr.f32.gmra.mrb[0].mxu0 %v1562
    %v1650 = vpop.f32.mrb[0].mxu0
    %v1651 = vadd.f32 0.0, %v1650
    %v1652 = vpop.f32.mrb[0].mxu0
    %1653 = vmatprep.mubr.f32.mxu0 0.0
    %1654 = vmatmul.mubr.f32.gmra.mrb[0].mxu0 %v1564
    %v1655 = vpop.f32.mrb[0].mxu0
    %v1656 = vadd.f32 0.0, %v1655
    %v1657 = vpop.f32.mrb[0].mxu0
    %1658 = vdwg.mxu0
    %v1659 = vmul.f32 %v1641, 0.17677669
    %v1660 = vmul.f32 %v1646, 0.17677669
    %v1661 = vmul.f32 %v1651, 0.17677669
    %v1662 = vmul.f32 %v1656, 0.17677669
    %v1663 = vsel %vm434, %v1659, -1e+30
    %v1664 = vsel %vm435, %v1660, -1e+30
    %v1665 = vsel %vm436, %v1661, -1e+30
    %v1666 = vsel %vm437, %v1662, -1e+30
    %v1667 = vsel %vm448, %v1663, -inf
    %1668 = vmax.xlane.f32.xlu0 %v1667
    %v1669 = vpop.xlane.xlu0 %1668
    %v1670 = vsel %vm448, %v1664, -inf
    %1671 = vmax.xlane.f32.xlu0 %v1670
    %v1672 = vpop.xlane.xlu0 %1671
    %v1673 = vsel %vm448, %v1665, -inf
    %1674 = vmax.xlane.f32.xlu0 %v1673
    %v1675 = vpop.xlane.xlu0 %1674
    %v1676 = vsel %vm448, %v1666, -inf
    %1677 = vmax.xlane.f32.xlu0 %v1676
    %v1678 = vpop.xlane.xlu0 %1677
    %v1679 = vsub.f32 %v1663, %v1669
    %v1680 = vsub.f32 %v1664, %v1672
    %v1681 = vsub.f32 %v1665, %v1675
    %v1682 = vsub.f32 %v1666, %v1678
    %v1683 = vmul.f32 %v1679, 1.442695
    %v1684 = vpow.pop %v1683
    %v1685 = vmul.f32 %v1680, 1.442695
    %v1686 = vpow.pop %v1685
    %v1687 = vmul.f32 %v1681, 1.442695
    %v1688 = vpow.pop %v1687
    %v1689 = vmul.f32 %v1682, 1.442695
    %v1690 = vpow.pop %v1689
    %v1691 = vsel %vm448, %v1684, 0.0
    %1692 = vadd.xlane.f32.xlu0 %v1691
    %v1693 = vpop.xlane.xlu0 %1692
    %v1694 = vsel %vm448, %v1686, 0.0
    %1695 = vadd.xlane.f32.xlu0 %v1694
    %v1696 = vpop.xlane.xlu0 %1695
    %v1697 = vsel %vm448, %v1688, 0.0
    %1698 = vadd.xlane.f32.xlu0 %v1697
    %v1699 = vpop.xlane.xlu0 %1698
    %v1700 = vsel %vm448, %v1690, 0.0
    %1701 = vadd.xlane.f32.xlu0 %v1700
    %v1702 = vpop.xlane.xlu0 %1701
    %v1703 = vrcp.pop %v1693
    %v1704 = vrcp.pop %v1696
    %v1705 = vrcp.pop %v1699
    %v1706 = vrcp.pop %v1702
    %v1707 = vmul.f32 %v1684, %v1703
    %v1708 = vmul.f32 %v1686, %v1704
    %v1709 = vmul.f32 %v1688, %v1705
    %v1710 = vmul.f32 %v1690, %v1706
    %1711 = vrot.lane.b32.xlu0 %v706, 32
    %v1712 = vpop.permute.xlu0 %1711
    %1713 = vrot.lane.b32.xlu0 %v711, 32
    %v1714 = vpop.permute.xlu0 %1713
    %1715 = vrot.lane.b32.xlu0 %v716, 32
    %v1716 = vpop.permute.xlu0 %1715
    %1717 = vrot.lane.b32.xlu0 %v721, 32
    %v1718 = vpop.permute.xlu0 %1717
    %v1724 = vsel %vm448, %v1707, 0
    %v1727 = vsel %vm448, %v1708, 0
    %v1730 = vsel %vm448, %v1709, 0
    %v1733 = vsel %vm448, %v1710, 0
    %1735 = vmatprep.subr.mxu0 0.0
    %1736 = vmatpush1.msra.mxu0 %v1712
    %1737 = vmatprep.subr.mxu0 0.0
    %1738 = vmatpush1.msra.mxu0 %v1714
    %1739 = vmatprep.subr.mxu0 0.0
    %1740 = vmatpush1.msra.mxu0 %v1716
    %1741 = vmatprep.subr.mxu0 0.0
    %1742 = vmatpush1.msra.mxu0 %v1718
    %1743 = vmatprep.subr.mxu0 0.0
    %1744 = vmatpush1.msra.mxu0 0.0
    %1745 = vmatprep.subr.mxu0 0.0
    %1746 = vmatpush1.msra.mxu0 0.0
    %1747 = vmatprep.subr.mxu0 0.0
    %1748 = vmatpush1.msra.mxu0 0.0
    %1749 = vmatprep.subr.mxu0 0.0
    %1750 = vmatpush1.msra.mxu0 0.0
    %1751 = vmatprep.subr.mxu0 0.0
    %1752 = vmatpush1.msra.mxu0 0.0
    %1753 = vmatprep.subr.mxu0 0.0
    %1754 = vmatpush1.msra.mxu0 0.0
    %1755 = vmatprep.subr.mxu0 0.0
    %1756 = vmatpush1.msra.mxu0 0.0
    %1757 = vmatprep.subr.mxu0 0.0
    %1758 = vmatpush1.msra.mxu0 0.0
    %1759 = vmatprep.subr.mxu0 0.0
    %1760 = vmatpush1.msra.mxu0 0.0
    %1761 = vmatprep.subr.mxu0 0.0
    %1762 = vmatpush1.msra.mxu0 0.0
    %1763 = vmatprep.subr.mxu0 0.0
    %1764 = vmatpush1.msra.mxu0 0.0
    %1765 = vmatprep.subr.mxu0 0.0
    %1766 = vmatpush1.msra.mxu0 0.0
    %1767 = vmatprep.subr.mxu0 0.0
    %1768 = vmatpush1.msra.mxu0 0.0
    %1769 = vmatprep.subr.mxu0 0.0
    %1770 = vmatpush1.msra.mxu0 0.0
    %1771 = vmatprep.subr.mxu0 0.0
    %1772 = vmatpush1.msra.mxu0 0.0
    %1773 = vmatprep.subr.mxu0 0.0
    %1774 = vmatpush1.msra.mxu0 0.0
    %1775 = vmatprep.subr.mxu0 0.0
    %1776 = vmatpush1.msra.mxu0 0.0
    %1777 = vmatprep.subr.mxu0 0.0
    %1778 = vmatpush1.msra.mxu0 0.0
    %1779 = vmatprep.subr.mxu0 0.0
    %1780 = vmatpush1.msra.mxu0 0.0
    %1781 = vmatprep.subr.mxu0 0.0
    %1782 = vmatpush1.msra.mxu0 0.0
    %1783 = vmatprep.subr.mxu0 0.0
    %1784 = vmatpush1.msra.mxu0 0.0
    %1785 = vmatprep.subr.mxu0 0.0
    %1786 = vmatpush1.msra.mxu0 0.0
    %1787 = vmatprep.subr.mxu0 0.0
    %1788 = vmatpush1.msra.mxu0 0.0
    %1789 = vmatprep.subr.mxu0 0.0
    %1790 = vmatpush1.msra.mxu0 0.0
    %1791 = vmatprep.subr.mxu0 0.0
    %1792 = vmatpush1.msra.mxu0 0.0
    %1793 = vmatprep.subr.mxu0 0.0
    %1794 = vmatpush1.msra.mxu0 0.0
    %1795 = vmatprep.subr.mxu0 0.0
    %1796 = vmatpush1.msra.mxu0 0.0
    %1797 = vmatprep.subr.mxu0 0.0
    %1798 = vmatpush1.msra.mxu0 0.0
    %1799 = vmatprep.mubr.f32.mxu0 0.0
    %1800 = vmatmul.mubr.f32.gmra.mrb[0].mxu0 %v1724
    %v1801 = vpop.f32.mrb[0].mxu0
    %v1802 = vadd.f32 0.0, %v1801
    %v1803 = vpop.f32.mrb[0].mxu0
    %1804 = vmatprep.mubr.f32.mxu0 0.0
    %1805 = vmatmul.mubr.f32.gmra.mrb[0].mxu0 %v1727
    %v1806 = vpop.f32.mrb[0].mxu0
    %v1807 = vadd.f32 0.0, %v1806
    %v1808 = vpop.f32.mrb[0].mxu0
    %1809 = vmatprep.mubr.f32.mxu0 0.0
    %1810 = vmatmul.mubr.f32.gmra.mrb[0].mxu0 %v1730
    %v1811 = vpop.f32.mrb[0].mxu0
    %v1812 = vadd.f32 0.0, %v1811
    %v1813 = vpop.f32.mrb[0].mxu0
    %1814 = vmatprep.mubr.f32.mxu0 0.0
    %1815 = vmatmul.mubr.f32.gmra.mrb[0].mxu0 %v1733
    %v1816 = vpop.f32.mrb[0].mxu0
    %v1817 = vadd.f32 0.0, %v1816
    %v1818 = vpop.f32.mrb[0].mxu0
    %1819 = vdwg.mxu0
    %1824 = vrot.lane.b32.xlu0 %v1246, 32
    %v1825 = vpop.permute.xlu0 %1824
    %1826 = vrot.lane.b32.xlu0 %v1251, 32
    %v1827 = vpop.permute.xlu0 %1826
    %1828 = vrot.lane.b32.xlu0 %v1256, 32
    %v1829 = vpop.permute.xlu0 %1828
    %1830 = vrot.lane.b32.xlu0 %v1261, 32
    %v1831 = vpop.permute.xlu0 %1830
    %1840 = vrot.lane.b32.xlu0 %v1524, 64
    %v1841 = vpop.permute.xlu0 %1840
    %1842 = vrot.lane.b32.xlu0 %v1529, 64
    %v1843 = vpop.permute.xlu0 %1842
    %1844 = vrot.lane.b32.xlu0 %v1534, 64
    %v1845 = vpop.permute.xlu0 %1844
    %1846 = vrot.lane.b32.xlu0 %v1539, 64
    %v1847 = vpop.permute.xlu0 %1846
    %1856 = vrot.lane.b32.xlu0 %v1802, 96
    %v1857 = vpop.permute.xlu0 %1856
    %1858 = vrot.lane.b32.xlu0 %v1807, 96
    %v1859 = vpop.permute.xlu0 %1858
    %1860 = vrot.lane.b32.xlu0 %v1812, 96
    %v1861 = vpop.permute.xlu0 %1860
    %1862 = vrot.lane.b32.xlu0 %v1817, 96
    %v1863 = vpop.permute.xlu0 %1862
    %v1868 = vsel %vm448, %v964, %v1825
    %v1869 = vsel %vm448, %v969, %v1827
    %v1870 = vsel %vm448, %v974, %v1829
    %v1871 = vsel %vm448, %v979, %v1831
    %vm1872 = vcmask 523264
    %v1873 = vsel %vm1872, %v1868, %v1841
    %v1874 = vsel %vm1872, %v1869, %v1843
    %v1875 = vsel %vm1872, %v1870, %v1845
    %v1876 = vsel %vm1872, %v1871, %v1847
    %vm1877 = vcmask 785408
    %v1878 = vsel %vm1877, %v1873, %v1857
    %v1879 = vsel %vm1877, %v1874, %v1859
    %v1880 = vsel %vm1877, %v1875, %v1861
    %v1881 = vsel %vm1877, %v1876, %v1863
    %v1882 = vld [vmem:[%s13] sm:$0xff]
    %v1883 = vld [vmem:[%s13 + $0x8] sm:$0xff]
    %v1884 = vld [vmem:[%s13 + $0x10] sm:$0xff]
    %v1885 = vld [vmem:[%s13 + $0x18] sm:$0xff]
    %v1886 = vld [vmem:[%s13 + $0x20] sm:$0xff]
    %v1887 = vld [vmem:[%s13 + $0x28] sm:$0xff]
    %v1888 = vld [vmem:[%s13 + $0x30] sm:$0xff]
    %v1889 = vld [vmem:[%s13 + $0x38] sm:$0xff]
    %v1890 = vld [vmem:[%s13 + $0x40] sm:$0xff]
    %v1891 = vld [vmem:[%s13 + $0x48] sm:$0xff]
    %v1892 = vld [vmem:[%s13 + $0x50] sm:$0xff]
    %v1893 = vld [vmem:[%s13 + $0x58] sm:$0xff]
    %v1894 = vld [vmem:[%s13 + $0x60] sm:$0xff]
    %v1895 = vld [vmem:[%s13 + $0x68] sm:$0xff]
    %v1896 = vld [vmem:[%s13 + $0x70] sm:$0xff]
    %v1897 = vld [vmem:[%s13 + $0x78] sm:$0xff]
    %1898 = vmatprep.subr.mxu0 0.0
    %1899 = vmatpush1.msra.mxu0 %v1882
    %1900 = vmatprep.subr.mxu0 0.0
    %1901 = vmatpush1.msra.mxu0 %v1883
    %1902 = vmatprep.subr.mxu0 0.0
    %1903 = vmatpush1.msra.mxu0 %v1884
    %1904 = vmatprep.subr.mxu0 0.0
    %1905 = vmatpush1.msra.mxu0 %v1885
    %1906 = vmatprep.subr.mxu0 0.0
    %1907 = vmatpush1.msra.mxu0 %v1886
    %1908 = vmatprep.subr.mxu0 0.0
    %1909 = vmatpush1.msra.mxu0 %v1887
    %1910 = vmatprep.subr.mxu0 0.0
    %1911 = vmatpush1.msra.mxu0 %v1888
    %1912 = vmatprep.subr.mxu0 0.0
    %1913 = vmatpush1.msra.mxu0 %v1889
    %1914 = vmatprep.subr.mxu0 0.0
    %1915 = vmatpush1.msra.mxu0 %v1890
    %1916 = vmatprep.subr.mxu0 0.0
    %1917 = vmatpush1.msra.mxu0 %v1891
    %1918 = vmatprep.subr.mxu0 0.0
    %1919 = vmatpush1.msra.mxu0 %v1892
    %1920 = vmatprep.subr.mxu0 0.0
    %1921 = vmatpush1.msra.mxu0 %v1893
    %1922 = vmatprep.subr.mxu0 0.0
    %1923 = vmatpush1.msra.mxu0 %v1894
    %1924 = vmatprep.subr.mxu0 0.0
    %1925 = vmatpush1.msra.mxu0 %v1895
    %1926 = vmatprep.subr.mxu0 0.0
    %1927 = vmatpush1.msra.mxu0 %v1896
    %1928 = vmatprep.subr.mxu0 0.0
    %1929 = vmatpush1.msra.mxu0 %v1897
    %1930 = vmatprep.subr.mxu0 0.0
    %1931 = vmatpush1.msra.mxu0 0.0
    %1932 = vmatprep.subr.mxu0 0.0
    %1933 = vmatpush1.msra.mxu0 0.0
    %1934 = vmatprep.subr.mxu0 0.0
    %1935 = vmatpush1.msra.mxu0 0.0
    %1936 = vmatprep.subr.mxu0 0.0
    %1937 = vmatpush1.msra.mxu0 0.0
    %1938 = vmatprep.subr.mxu0 0.0
    %1939 = vmatpush1.msra.mxu0 0.0
    %1940 = vmatprep.subr.mxu0 0.0
    %1941 = vmatpush1.msra.mxu0 0.0
    %1942 = vmatprep.subr.mxu0 0.0
    %1943 = vmatpush1.msra.mxu0 0.0
    %1944 = vmatprep.subr.mxu0 0.0
    %1945 = vmatpush1.msra.mxu0 0.0
    %1946 = vmatprep.subr.mxu0 0.0
    %1947 = vmatpush1.msra.mxu0 0.0
    %1948 = vmatprep.subr.mxu0 0.0
    %1949 = vmatpush1.msra.mxu0 0.0
    %1950 = vmatprep.subr.mxu0 0.0
    %1951 = vmatpush1.msra.mxu0 0.0
    %1952 = vmatprep.subr.mxu0 0.0
    %1953 = vmatpush1.msra.mxu0 0.0
    %1954 = vmatprep.subr.mxu0 0.0
    %1955 = vmatpush1.msra.mxu0 0.0
    %1956 = vmatprep.subr.mxu0 0.0
    %1957 = vmatpush1.msra.mxu0 0.0
    %1958 = vmatprep.subr.mxu0 0.0
    %1959 = vmatpush1.msra.mxu0 0.0
    %1960 = vmatprep.subr.mxu0 0.0
    %1961 = vmatpush1.msra.mxu0 0.0
    %1962 = vmatprep.mubr.f32.mxu0 0.0
    %1963 = vmatmul.mubr.f32.gmra.mrb[0].mxu0 %v1878
    %v1964 = vpop.f32.mrb[0].mxu0
    %v1965 = vadd.f32 0.0, %v1964
    %v1966 = vpop.f32.mrb[0].mxu0
    %1967 = vmatprep.mubr.f32.mxu0 0.0
    %1968 = vmatmul.mubr.f32.gmra.mrb[0].mxu0 %v1879
    %v1969 = vpop.f32.mrb[0].mxu0
    %v1970 = vadd.f32 0.0, %v1969
    %v1971 = vpop.f32.mrb[0].mxu0
    %1972 = vmatprep.mubr.f32.mxu0 0.0
    %1973 = vmatmul.mubr.f32.gmra.mrb[0].mxu0 %v1880
    %v1974 = vpop.f32.mrb[0].mxu0
    %v1975 = vadd.f32 0.0, %v1974
    %v1976 = vpop.f32.mrb[0].mxu0
    %1977 = vmatprep.mubr.f32.mxu0 0.0
    %1978 = vmatmul.mubr.f32.gmra.mrb[0].mxu0 %v1881
    %v1979 = vpop.f32.mrb[0].mxu0
    %v1980 = vadd.f32 0.0, %v1979
    %v1981 = vpop.f32.mrb[0].mxu0
    %1982 = vdwg.mxu0
    %v1983 = vadd.f32 %v300, %v1965
    %v1984 = vadd.f32 %v301, %v1970
    %v1985 = vadd.f32 %v302, %v1975
    %v1986 = vadd.f32 %v303, %v1980
    %v1987 = vld [vmem:[%s23] sm:$0x1]
    %v1988 = vld [vmem:[%s25] sm:$0x1]
    %v1989 = vsel %vm448, %v1983, 0.0
    %1990 = vadd.xlane.f32.xlu0 %v1989
    %v1991 = vpop.xlane.xlu0 %1990
    %v1992 = vsel %vm448, %v1984, 0.0
    %1993 = vadd.xlane.f32.xlu0 %v1992
    %v1994 = vpop.xlane.xlu0 %1993
    %v1995 = vsel %vm448, %v1985, 0.0
    %1996 = vadd.xlane.f32.xlu0 %v1995
    %v1997 = vpop.xlane.xlu0 %1996
    %v1998 = vsel %vm448, %v1986, 0.0
    %1999 = vadd.xlane.f32.xlu0 %v1998
    %v2000 = vpop.xlane.xlu0 %1999
    %v2001 = vrcp.pop 32.0
    %v2002 = vmul.f32 %v1991, %v2001
    %v2003 = vmul.f32 %v1994, %v2001
    %v2004 = vmul.f32 %v1997, %v2001
    %v2005 = vmul.f32 %v2000, %v2001
    %v2006 = vsub.f32 %v1983, %v2002
    %v2007 = vsub.f32 %v1984, %v2003
    %v2008 = vsub.f32 %v1985, %v2004
    %v2009 = vsub.f32 %v1986, %v2005
    %v2010 = vmul.f32 %v2006, %v2006
    %v2011 = vmul.f32 %v2007, %v2007
    %v2012 = vmul.f32 %v2008, %v2008
    %v2013 = vmul.f32 %v2009, %v2009
    %v2014 = vsel %vm448, %v2010, 0.0
    %2015 = vadd.xlane.f32.xlu0 %v2014
    %v2016 = vpop.xlane.xlu0 %2015
    %v2017 = vsel %vm448, %v2011, 0.0
    %2018 = vadd.xlane.f32.xlu0 %v2017
    %v2019 = vpop.xlane.xlu0 %2018
    %v2020 = vsel %vm448, %v2012, 0.0
    %2021 = vadd.xlane.f32.xlu0 %v2020
    %v2022 = vpop.xlane.xlu0 %2021
    %v2023 = vsel %vm448, %v2013, 0.0
    %2024 = vadd.xlane.f32.xlu0 %v2023
    %v2025 = vpop.xlane.xlu0 %2024
    %v2026 = vmul.f32 %v2016, %v2001
    %v2027 = vmul.f32 %v2019, %v2001
    %v2028 = vmul.f32 %v2022, %v2001
    %v2029 = vmul.f32 %v2025, %v2001
    %v2030 = vadd.f32 %v2026, 1e-05
    %v2031 = vadd.f32 %v2027, 1e-05
    %v2032 = vadd.f32 %v2028, 1e-05
    %v2033 = vadd.f32 %v2029, 1e-05
    %v2034 = vrsqrt.pop %v2030
    %v2035 = vrsqrt.pop %v2031
    %v2036 = vrsqrt.pop %v2032
    %v2037 = vrsqrt.pop %v2033
    %v2038 = vmul.f32 %v2006, %v2034
    %v2039 = vmul.f32 %v2007, %v2035
    %v2040 = vmul.f32 %v2008, %v2036
    %v2041 = vmul.f32 %v2009, %v2037
    %v2043 = vlaneseq
    %v2044 = vshrl.u32 %v2043, 7
    %v2045 = vsub.s32 0, %v2044
    %v2046 = vrot.slane %v1987, %v2045
    %v2048 = vmul.f32 %v2038, %v2046
    %v2049 = vmul.f32 %v2039, %v2046
    %v2050 = vmul.f32 %v2040, %v2046
    %v2051 = vmul.f32 %v2041, %v2046
    %v2053 = vlaneseq
    %v2054 = vshrl.u32 %v2053, 7
    %v2055 = vsub.s32 0, %v2054
    %v2056 = vrot.slane %v1988, %v2055
    %v2058 = vadd.f32 %v2048, %v2056
    %v2059 = vadd.f32 %v2049, %v2056
    %v2060 = vadd.f32 %v2050, %v2056
    %v2061 = vadd.f32 %v2051, %v2056
    %v2062 = vld [vmem:[%s15] sm:$0xff]
    %v2063 = vld [vmem:[%s15 + $0x8] sm:$0xff]
    %v2064 = vld [vmem:[%s15 + $0x10] sm:$0xff]
    %v2065 = vld [vmem:[%s15 + $0x18] sm:$0xff]
    %v2066 = vld [vmem:[%s17] sm:$0x1]
    %v2068 = vlaneseq
    %v2069 = vshrl.u32 %v2068, 7
    %v2070 = vsub.s32 0, %v2069
    %v2071 = vrot.slane %v2066, %v2070
    %v2074 = vsel %vm448, %v2058, 0
    %v2077 = vsel %vm448, %v2059, 0
    %v2080 = vsel %vm448, %v2060, 0
    %v2083 = vsel %vm448, %v2061, 0
    %2085 = vmatprep.subr.mxu0 0.0
    %2086 = vmatpush1.msra.mxu0 %v2062
    %2087 = vmatprep.subr.mxu0 0.0
    %2088 = vmatpush1.msra.mxu0 %v2063
    %2089 = vmatprep.subr.mxu0 0.0
    %2090 = vmatpush1.msra.mxu0 %v2064
    %2091 = vmatprep.subr.mxu0 0.0
    %2092 = vmatpush1.msra.mxu0 %v2065
    %2093 = vmatprep.subr.mxu0 0.0
    %2094 = vmatpush1.msra.mxu0 0.0
    %2095 = vmatprep.subr.mxu0 0.0
    %2096 = vmatpush1.msra.mxu0 0.0
    %2097 = vmatprep.subr.mxu0 0.0
    %2098 = vmatpush1.msra.mxu0 0.0
    %2099 = vmatprep.subr.mxu0 0.0
    %2100 = vmatpush1.msra.mxu0 0.0
    %2101 = vmatprep.subr.mxu0 0.0
    %2102 = vmatpush1.msra.mxu0 0.0
    %2103 = vmatprep.subr.mxu0 0.0
    %2104 = vmatpush1.msra.mxu0 0.0
    %2105 = vmatprep.subr.mxu0 0.0
    %2106 = vmatpush1.msra.mxu0 0.0
    %2107 = vmatprep.subr.mxu0 0.0
    %2108 = vmatpush1.msra.mxu0 0.0
    %2109 = vmatprep.subr.mxu0 0.0
    %2110 = vmatpush1.msra.mxu0 0.0
    %2111 = vmatprep.subr.mxu0 0.0
    %2112 = vmatpush1.msra.mxu0 0.0
    %2113 = vmatprep.subr.mxu0 0.0
    %2114 = vmatpush1.msra.mxu0 0.0
    %2115 = vmatprep.subr.mxu0 0.0
    %2116 = vmatpush1.msra.mxu0 0.0
    %2117 = vmatprep.subr.mxu0 0.0
    %2118 = vmatpush1.msra.mxu0 0.0
    %2119 = vmatprep.subr.mxu0 0.0
    %2120 = vmatpush1.msra.mxu0 0.0
    %2121 = vmatprep.subr.mxu0 0.0
    %2122 = vmatpush1.msra.mxu0 0.0
    %2123 = vmatprep.subr.mxu0 0.0
    %2124 = vmatpush1.msra.mxu0 0.0
    %2125 = vmatprep.subr.mxu0 0.0
    %2126 = vmatpush1.msra.mxu0 0.0
    %2127 = vmatprep.subr.mxu0 0.0
    %2128 = vmatpush1.msra.mxu0 0.0
    %2129 = vmatprep.subr.mxu0 0.0
    %2130 = vmatpush1.msra.mxu0 0.0
    %2131 = vmatprep.subr.mxu0 0.0
    %2132 = vmatpush1.msra.mxu0 0.0
    %2133 = vmatprep.subr.mxu0 0.0
    %2134 = vmatpush1.msra.mxu0 0.0
    %2135 = vmatprep.subr.mxu0 0.0
    %2136 = vmatpush1.msra.mxu0 0.0
    %2137 = vmatprep.subr.mxu0 0.0
    %2138 = vmatpush1.msra.mxu0 0.0
    %2139 = vmatprep.subr.mxu0 0.0
    %2140 = vmatpush1.msra.mxu0 0.0
    %2141 = vmatprep.subr.mxu0 0.0
    %2142 = vmatpush1.msra.mxu0 0.0
    %2143 = vmatprep.subr.mxu0 0.0
    %2144 = vmatpush1.msra.mxu0 0.0
    %2145 = vmatprep.subr.mxu0 0.0
    %2146 = vmatpush1.msra.mxu0 0.0
    %2147 = vmatprep.subr.mxu0 0.0
    %2148 = vmatpush1.msra.mxu0 0.0
    %2149 = vmatprep.mubr.f32.mxu0 0.0
    %2150 = vmatmul.mubr.f32.gmra.mrb[0].mxu0 %v2074
    %v2151 = vpop.f32.mrb[0].mxu0
    %v2152 = vadd.f32 %v2071, %v2151
    %v2153 = vpop.f32.mrb[0].mxu0
    %2154 = vmatprep.mubr.f32.mxu0 0.0
    %2155 = vmatmul.mubr.f32.gmra.mrb[0].mxu0 %v2077
    %v2156 = vpop.f32.mrb[0].mxu0
    %v2157 = vadd.f32 %v2071, %v2156
    %v2158 = vpop.f32.mrb[0].mxu0
    %2159 = vmatprep.mubr.f32.mxu0 0.0
    %2160 = vmatmul.mubr.f32.gmra.mrb[0].mxu0 %v2080
    %v2161 = vpop.f32.mrb[0].mxu0
    %v2162 = vadd.f32 %v2071, %v2161
    %v2163 = vpop.f32.mrb[0].mxu0
    %2164 = vmatprep.mubr.f32.mxu0 0.0
    %2165 = vmatmul.mubr.f32.gmra.mrb[0].mxu0 %v2083
    %v2166 = vpop.f32.mrb[0].mxu0
    %v2167 = vadd.f32 %v2071, %v2166
    %v2168 = vpop.f32.mrb[0].mxu0
    %2169 = vdwg.mxu0
    %v2170 = vmax.f32 %v2152, 0.0
    %v2171 = vmax.f32 %v2157, 0.0
    %v2172 = vmax.f32 %v2162, 0.0
    %v2173 = vmax.f32 %v2167, 0.0
    %v2174 = vld [vmem:[%s19] sm:$0xff]
    %v2175 = vld [vmem:[%s19 + $0x8] sm:$0xff]
    %v2176 = vld [vmem:[%s19 + $0x10] sm:$0xff]
    %v2177 = vld [vmem:[%s19 + $0x18] sm:$0xff]
    %v2178 = vld [vmem:[%s21] sm:$0x1]
    %v2180 = vlaneseq
    %v2181 = vshrl.u32 %v2180, 7
    %v2182 = vsub.s32 0, %v2181
    %v2183 = vrot.slane %v2178, %v2182
    %v2186 = vsel %vm448, %v2170, 0
    %v2189 = vsel %vm448, %v2171, 0
    %v2192 = vsel %vm448, %v2172, 0
    %v2195 = vsel %vm448, %v2173, 0
    %2197 = vmatprep.subr.mxu0 0.0
    %2198 = vmatpush1.msra.mxu0 %v2174
    %2199 = vmatprep.subr.mxu0 0.0
    %2200 = vmatpush1.msra.mxu0 %v2175
    %2201 = vmatprep.subr.mxu0 0.0
    %2202 = vmatpush1.msra.mxu0 %v2176
    %2203 = vmatprep.subr.mxu0 0.0
    %2204 = vmatpush1.msra.mxu0 %v2177
    %2205 = vmatprep.subr.mxu0 0.0
    %2206 = vmatpush1.msra.mxu0 0.0
    %2207 = vmatprep.subr.mxu0 0.0
    %2208 = vmatpush1.msra.mxu0 0.0
    %2209 = vmatprep.subr.mxu0 0.0
    %2210 = vmatpush1.msra.mxu0 0.0
    %2211 = vmatprep.subr.mxu0 0.0
    %2212 = vmatpush1.msra.mxu0 0.0
    %2213 = vmatprep.subr.mxu0 0.0
    %2214 = vmatpush1.msra.mxu0 0.0
    %2215 = vmatprep.subr.mxu0 0.0
    %2216 = vmatpush1.msra.mxu0 0.0
    %2217 = vmatprep.subr.mxu0 0.0
    %2218 = vmatpush1.msra.mxu0 0.0
    %2219 = vmatprep.subr.mxu0 0.0
    %2220 = vmatpush1.msra.mxu0 0.0
    %2221 = vmatprep.subr.mxu0 0.0
    %2222 = vmatpush1.msra.mxu0 0.0
    %2223 = vmatprep.subr.mxu0 0.0
    %2224 = vmatpush1.msra.mxu0 0.0
    %2225 = vmatprep.subr.mxu0 0.0
    %2226 = vmatpush1.msra.mxu0 0.0
    %2227 = vmatprep.subr.mxu0 0.0
    %2228 = vmatpush1.msra.mxu0 0.0
    %2229 = vmatprep.subr.mxu0 0.0
    %2230 = vmatpush1.msra.mxu0 0.0
    %2231 = vmatprep.subr.mxu0 0.0
    %2232 = vmatpush1.msra.mxu0 0.0
    %2233 = vmatprep.subr.mxu0 0.0
    %2234 = vmatpush1.msra.mxu0 0.0
    %2235 = vmatprep.subr.mxu0 0.0
    %2236 = vmatpush1.msra.mxu0 0.0
    %2237 = vmatprep.subr.mxu0 0.0
    %2238 = vmatpush1.msra.mxu0 0.0
    %2239 = vmatprep.subr.mxu0 0.0
    %2240 = vmatpush1.msra.mxu0 0.0
    %2241 = vmatprep.subr.mxu0 0.0
    %2242 = vmatpush1.msra.mxu0 0.0
    %2243 = vmatprep.subr.mxu0 0.0
    %2244 = vmatpush1.msra.mxu0 0.0
    %2245 = vmatprep.subr.mxu0 0.0
    %2246 = vmatpush1.msra.mxu0 0.0
    %2247 = vmatprep.subr.mxu0 0.0
    %2248 = vmatpush1.msra.mxu0 0.0
    %2249 = vmatprep.subr.mxu0 0.0
    %2250 = vmatpush1.msra.mxu0 0.0
    %2251 = vmatprep.subr.mxu0 0.0
    %2252 = vmatpush1.msra.mxu0 0.0
    %2253 = vmatprep.subr.mxu0 0.0
    %2254 = vmatpush1.msra.mxu0 0.0
    %2255 = vmatprep.subr.mxu0 0.0
    %2256 = vmatpush1.msra.mxu0 0.0
    %2257 = vmatprep.subr.mxu0 0.0
    %2258 = vmatpush1.msra.mxu0 0.0
    %2259 = vmatprep.subr.mxu0 0.0
    %2260 = vmatpush1.msra.mxu0 0.0
    %2261 = vmatprep.mubr.f32.mxu0 0.0
    %2262 = vmatmul.mubr.f32.gmra.mrb[0].mxu0 %v2186
    %v2263 = vpop.f32.mrb[0].mxu0
    %v2264 = vadd.f32 %v2183, %v2263
    %v2265 = vpop.f32.mrb[0].mxu0
    %2266 = vmatprep.mubr.f32.mxu0 0.0
    %2267 = vmatmul.mubr.f32.gmra.mrb[0].mxu0 %v2189
    %v2268 = vpop.f32.mrb[0].mxu0
    %v2269 = vadd.f32 %v2183, %v2268
    %v2270 = vpop.f32.mrb[0].mxu0
    %2271 = vmatprep.mubr.f32.mxu0 0.0
    %2272 = vmatmul.mubr.f32.gmra.mrb[0].mxu0 %v2192
    %v2273 = vpop.f32.mrb[0].mxu0
    %v2274 = vadd.f32 %v2183, %v2273
    %v2275 = vpop.f32.mrb[0].mxu0
    %2276 = vmatprep.mubr.f32.mxu0 0.0
    %2277 = vmatmul.mubr.f32.gmra.mrb[0].mxu0 %v2195
    %v2278 = vpop.f32.mrb[0].mxu0
    %v2279 = vadd.f32 %v2183, %v2278
    %v2280 = vpop.f32.mrb[0].mxu0
    %2281 = vdwg.mxu0
    %v2282 = vadd.f32 %v2058, %v2264
    %v2283 = vadd.f32 %v2059, %v2269
    %v2284 = vadd.f32 %v2060, %v2274
    %v2285 = vadd.f32 %v2061, %v2279
    %v2286 = vld [vmem:[%s27] sm:$0x1]
    %v2287 = vld [vmem:[%s29] sm:$0x1]
    %v2288 = vsel %vm448, %v2282, 0.0
    %2289 = vadd.xlane.f32.xlu0 %v2288
    %v2290 = vpop.xlane.xlu0 %2289
    %v2291 = vsel %vm448, %v2283, 0.0
    %2292 = vadd.xlane.f32.xlu0 %v2291
    %v2293 = vpop.xlane.xlu0 %2292
    %v2294 = vsel %vm448, %v2284, 0.0
    %2295 = vadd.xlane.f32.xlu0 %v2294
    %v2296 = vpop.xlane.xlu0 %2295
    %v2297 = vsel %vm448, %v2285, 0.0
    %2298 = vadd.xlane.f32.xlu0 %v2297
    %v2299 = vpop.xlane.xlu0 %2298
    %v2300 = vmul.f32 %v2290, %v2001
    %v2301 = vmul.f32 %v2293, %v2001
    %v2302 = vmul.f32 %v2296, %v2001
    %v2303 = vmul.f32 %v2299, %v2001
    %v2304 = vsub.f32 %v2282, %v2300
    %v2305 = vsub.f32 %v2283, %v2301
    %v2306 = vsub.f32 %v2284, %v2302
    %v2307 = vsub.f32 %v2285, %v2303
    %v2308 = vmul.f32 %v2304, %v2304
    %v2309 = vmul.f32 %v2305, %v2305
    %v2310 = vmul.f32 %v2306, %v2306
    %v2311 = vmul.f32 %v2307, %v2307
    %v2312 = vsel %vm448, %v2308, 0.0
    %2313 = vadd.xlane.f32.xlu0 %v2312
    %v2314 = vpop.xlane.xlu0 %2313
    %v2315 = vsel %vm448, %v2309, 0.0
    %2316 = vadd.xlane.f32.xlu0 %v2315
    %v2317 = vpop.xlane.xlu0 %2316
    %v2318 = vsel %vm448, %v2310, 0.0
    %2319 = vadd.xlane.f32.xlu0 %v2318
    %v2320 = vpop.xlane.xlu0 %2319
    %v2321 = vsel %vm448, %v2311, 0.0
    %2322 = vadd.xlane.f32.xlu0 %v2321
    %v2323 = vpop.xlane.xlu0 %2322
    %v2324 = vmul.f32 %v2314, %v2001
    %v2325 = vmul.f32 %v2317, %v2001
    %v2326 = vmul.f32 %v2320, %v2001
    %v2327 = vmul.f32 %v2323, %v2001
    %v2328 = vadd.f32 %v2324, 1e-05
    %v2329 = vadd.f32 %v2325, 1e-05
    %v2330 = vadd.f32 %v2326, 1e-05
    %v2331 = vadd.f32 %v2327, 1e-05
    %v2332 = vrsqrt.pop %v2328
    %v2333 = vrsqrt.pop %v2329
    %v2334 = vrsqrt.pop %v2330
    %v2335 = vrsqrt.pop %v2331
    %v2336 = vmul.f32 %v2304, %v2332
    %v2337 = vmul.f32 %v2305, %v2333
    %v2338 = vmul.f32 %v2306, %v2334
    %v2339 = vmul.f32 %v2307, %v2335
    %v2341 = vlaneseq
    %v2342 = vshrl.u32 %v2341, 7
    %v2343 = vsub.s32 0, %v2342
    %v2344 = vrot.slane %v2286, %v2343
    %v2346 = vmul.f32 %v2336, %v2344
    %v2347 = vmul.f32 %v2337, %v2344
    %v2348 = vmul.f32 %v2338, %v2344
    %v2349 = vmul.f32 %v2339, %v2344
    %v2351 = vlaneseq
    %v2352 = vshrl.u32 %v2351, 7
    %v2353 = vsub.s32 0, %v2352
    %v2354 = vrot.slane %v2287, %v2353
    %v2356 = vadd.f32 %v2346, %v2354
    %v2357 = vadd.f32 %v2347, %v2354
    %v2358 = vadd.f32 %v2348, %v2354
    %v2359 = vadd.f32 %v2349, %v2354
    %v2360 = vld [vmem:[%s31] sm:$0xff]
    %v2361 = vld [vmem:[%s31 + $0x8] sm:$0xff]
    %v2362 = vld [vmem:[%s31 + $0x10] sm:$0xff]
    %v2363 = vld [vmem:[%s31 + $0x18] sm:$0xff]
    %v2364 = vld [vmem:[%s33] sm:$0x1]
    %v2366 = vlaneseq
    %v2367 = vshrl.u32 %v2366, 7
    %v2368 = vsub.s32 0, %v2367
    %v2369 = vrot.slane %v2364, %v2368
    %v2372 = vsel %vm448, %v2356, 0
    %v2375 = vsel %vm448, %v2357, 0
    %v2378 = vsel %vm448, %v2358, 0
    %v2381 = vsel %vm448, %v2359, 0
    %2383 = vmatprep.subr.mxu0 0.0
    %2384 = vmatpush1.msra.mxu0 %v2360
    %2385 = vmatprep.subr.mxu0 0.0
    %2386 = vmatpush1.msra.mxu0 %v2361
    %2387 = vmatprep.subr.mxu0 0.0
    %2388 = vmatpush1.msra.mxu0 %v2362
    %2389 = vmatprep.subr.mxu0 0.0
    %2390 = vmatpush1.msra.mxu0 %v2363
    %2391 = vmatprep.subr.mxu0 0.0
    %2392 = vmatpush1.msra.mxu0 0.0
    %2393 = vmatprep.subr.mxu0 0.0
    %2394 = vmatpush1.msra.mxu0 0.0
    %2395 = vmatprep.subr.mxu0 0.0
    %2396 = vmatpush1.msra.mxu0 0.0
    %2397 = vmatprep.subr.mxu0 0.0
    %2398 = vmatpush1.msra.mxu0 0.0
    %2399 = vmatprep.subr.mxu0 0.0
    %2400 = vmatpush1.msra.mxu0 0.0
    %2401 = vmatprep.subr.mxu0 0.0
    %2402 = vmatpush1.msra.mxu0 0.0
    %2403 = vmatprep.subr.mxu0 0.0
    %2404 = vmatpush1.msra.mxu0 0.0
    %2405 = vmatprep.subr.mxu0 0.0
    %2406 = vmatpush1.msra.mxu0 0.0
    %2407 = vmatprep.subr.mxu0 0.0
    %2408 = vmatpush1.msra.mxu0 0.0
    %2409 = vmatprep.subr.mxu0 0.0
    %2410 = vmatpush1.msra.mxu0 0.0
    %2411 = vmatprep.subr.mxu0 0.0
    %2412 = vmatpush1.msra.mxu0 0.0
    %2413 = vmatprep.subr.mxu0 0.0
    %2414 = vmatpush1.msra.mxu0 0.0
    %2415 = vmatprep.subr.mxu0 0.0
    %2416 = vmatpush1.msra.mxu0 0.0
    %2417 = vmatprep.subr.mxu0 0.0
    %2418 = vmatpush1.msra.mxu0 0.0
    %2419 = vmatprep.subr.mxu0 0.0
    %2420 = vmatpush1.msra.mxu0 0.0
    %2421 = vmatprep.subr.mxu0 0.0
    %2422 = vmatpush1.msra.mxu0 0.0
    %2423 = vmatprep.subr.mxu0 0.0
    %2424 = vmatpush1.msra.mxu0 0.0
    %2425 = vmatprep.subr.mxu0 0.0
    %2426 = vmatpush1.msra.mxu0 0.0
    %2427 = vmatprep.subr.mxu0 0.0
    %2428 = vmatpush1.msra.mxu0 0.0
    %2429 = vmatprep.subr.mxu0 0.0
    %2430 = vmatpush1.msra.mxu0 0.0
    %2431 = vmatprep.subr.mxu0 0.0
    %2432 = vmatpush1.msra.mxu0 0.0
    %2433 = vmatprep.subr.mxu0 0.0
    %2434 = vmatpush1.msra.mxu0 0.0
    %2435 = vmatprep.subr.mxu0 0.0
    %2436 = vmatpush1.msra.mxu0 0.0
    %2437 = vmatprep.subr.mxu0 0.0
    %2438 = vmatpush1.msra.mxu0 0.0
    %2439 = vmatprep.subr.mxu0 0.0
    %2440 = vmatpush1.msra.mxu0 0.0
    %2441 = vmatprep.subr.mxu0 0.0
    %2442 = vmatpush1.msra.mxu0 0.0
    %2443 = vmatprep.subr.mxu0 0.0
    %2444 = vmatpush1.msra.mxu0 0.0
    %2445 = vmatprep.subr.mxu0 0.0
    %2446 = vmatpush1.msra.mxu0 0.0
    %2447 = vmatprep.mubr.f32.mxu0 0.0
    %2448 = vmatmul.mubr.f32.gmra.mrb[0].mxu0 %v2372
    %v2449 = vpop.f32.mrb[0].mxu0
    %v2450 = vadd.f32 %v2369, %v2449
    %v2451 = vpop.f32.mrb[0].mxu0
    %2452 = vmatprep.mubr.f32.mxu0 0.0
    %2453 = vmatmul.mubr.f32.gmra.mrb[0].mxu0 %v2375
    %v2454 = vpop.f32.mrb[0].mxu0
    %v2455 = vadd.f32 %v2369, %v2454
    %v2456 = vpop.f32.mrb[0].mxu0
    %2457 = vmatprep.mubr.f32.mxu0 0.0
    %2458 = vmatmul.mubr.f32.gmra.mrb[0].mxu0 %v2378
    %v2459 = vpop.f32.mrb[0].mxu0
    %v2460 = vadd.f32 %v2369, %v2459
    %v2461 = vpop.f32.mrb[0].mxu0
    %2462 = vmatprep.mubr.f32.mxu0 0.0
    %2463 = vmatmul.mubr.f32.gmra.mrb[0].mxu0 %v2381
    %v2464 = vpop.f32.mrb[0].mxu0
    %v2465 = vadd.f32 %v2369, %v2464
    %v2466 = vpop.f32.mrb[0].mxu0
    %2467 = vdwg.mxu0
    %v2468 = vmax.f32 %v2450, 0.0
    %v2469 = vmax.f32 %v2455, 0.0
    %v2470 = vmax.f32 %v2460, 0.0
    %v2471 = vmax.f32 %v2465, 0.0
    %v2472 = vld [vmem:[%s35] sm:$0xff]
    %v2473 = vld [vmem:[%s35 + $0x8] sm:$0xff]
    %v2474 = vld [vmem:[%s35 + $0x10] sm:$0xff]
    %v2475 = vld [vmem:[%s35 + $0x18] sm:$0xff]
    %v2476 = vld [vmem:[%s37] sm:$0x1]
    %v2478 = vlaneseq
    %v2479 = vshrl.u32 %v2478, 7
    %v2480 = vsub.s32 0, %v2479
    %v2481 = vrot.slane %v2476, %v2480
    %v2484 = vsel %vm448, %v2468, 0
    %v2487 = vsel %vm448, %v2469, 0
    %v2490 = vsel %vm448, %v2470, 0
    %v2493 = vsel %vm448, %v2471, 0
    %2495 = vmatprep.subr.mxu0 0.0
    %2496 = vmatpush1.msra.mxu0 %v2472
    %2497 = vmatprep.subr.mxu0 0.0
    %2498 = vmatpush1.msra.mxu0 %v2473
    %2499 = vmatprep.subr.mxu0 0.0
    %2500 = vmatpush1.msra.mxu0 %v2474
    %2501 = vmatprep.subr.mxu0 0.0
    %2502 = vmatpush1.msra.mxu0 %v2475
    %2503 = vmatprep.subr.mxu0 0.0
    %2504 = vmatpush1.msra.mxu0 0.0
    %2505 = vmatprep.subr.mxu0 0.0
    %2506 = vmatpush1.msra.mxu0 0.0
    %2507 = vmatprep.subr.mxu0 0.0
    %2508 = vmatpush1.msra.mxu0 0.0
    %2509 = vmatprep.subr.mxu0 0.0
    %2510 = vmatpush1.msra.mxu0 0.0
    %2511 = vmatprep.subr.mxu0 0.0
    %2512 = vmatpush1.msra.mxu0 0.0
    %2513 = vmatprep.subr.mxu0 0.0
    %2514 = vmatpush1.msra.mxu0 0.0
    %2515 = vmatprep.subr.mxu0 0.0
    %2516 = vmatpush1.msra.mxu0 0.0
    %2517 = vmatprep.subr.mxu0 0.0
    %2518 = vmatpush1.msra.mxu0 0.0
    %2519 = vmatprep.subr.mxu0 0.0
    %2520 = vmatpush1.msra.mxu0 0.0
    %2521 = vmatprep.subr.mxu0 0.0
    %2522 = vmatpush1.msra.mxu0 0.0
    %2523 = vmatprep.subr.mxu0 0.0
    %2524 = vmatpush1.msra.mxu0 0.0
    %2525 = vmatprep.subr.mxu0 0.0
    %2526 = vmatpush1.msra.mxu0 0.0
    %2527 = vmatprep.subr.mxu0 0.0
    %2528 = vmatpush1.msra.mxu0 0.0
    %2529 = vmatprep.subr.mxu0 0.0
    %2530 = vmatpush1.msra.mxu0 0.0
    %2531 = vmatprep.subr.mxu0 0.0
    %2532 = vmatpush1.msra.mxu0 0.0
    %2533 = vmatprep.subr.mxu0 0.0
    %2534 = vmatpush1.msra.mxu0 0.0
    %2535 = vmatprep.subr.mxu0 0.0
    %2536 = vmatpush1.msra.mxu0 0.0
    %2537 = vmatprep.subr.mxu0 0.0
    %2538 = vmatpush1.msra.mxu0 0.0
    %2539 = vmatprep.subr.mxu0 0.0
    %2540 = vmatpush1.msra.mxu0 0.0
    %2541 = vmatprep.subr.mxu0 0.0
    %2542 = vmatpush1.msra.mxu0 0.0
    %2543 = vmatprep.subr.mxu0 0.0
    %2544 = vmatpush1.msra.mxu0 0.0
    %2545 = vmatprep.subr.mxu0 0.0
    %2546 = vmatpush1.msra.mxu0 0.0
    %2547 = vmatprep.subr.mxu0 0.0
    %2548 = vmatpush1.msra.mxu0 0.0
    %2549 = vmatprep.subr.mxu0 0.0
    %2550 = vmatpush1.msra.mxu0 0.0
    %2551 = vmatprep.subr.mxu0 0.0
    %2552 = vmatpush1.msra.mxu0 0.0
    %2553 = vmatprep.subr.mxu0 0.0
    %2554 = vmatpush1.msra.mxu0 0.0
    %2555 = vmatprep.subr.mxu0 0.0
    %2556 = vmatpush1.msra.mxu0 0.0
    %2557 = vmatprep.subr.mxu0 0.0
    %2558 = vmatpush1.msra.mxu0 0.0
    %2559 = vmatprep.mubr.f32.mxu0 0.0
    %2560 = vmatmul.mubr.f32.gmra.mrb[0].mxu0 %v2484
    %v2561 = vpop.f32.mrb[0].mxu0
    %v2562 = vadd.f32 %v2481, %v2561
    %v2563 = vpop.f32.mrb[0].mxu0
    %2564 = vmatprep.mubr.f32.mxu0 0.0
    %2565 = vmatmul.mubr.f32.gmra.mrb[0].mxu0 %v2487
    %v2566 = vpop.f32.mrb[0].mxu0
    %v2567 = vadd.f32 %v2481, %v2566
    %v2568 = vpop.f32.mrb[0].mxu0
    %2569 = vmatprep.mubr.f32.mxu0 0.0
    %2570 = vmatmul.mubr.f32.gmra.mrb[0].mxu0 %v2490
    %v2571 = vpop.f32.mrb[0].mxu0
    %v2572 = vadd.f32 %v2481, %v2571
    %v2573 = vpop.f32.mrb[0].mxu0
    %2574 = vmatprep.mubr.f32.mxu0 0.0
    %2575 = vmatmul.mubr.f32.gmra.mrb[0].mxu0 %v2493
    %v2576 = vpop.f32.mrb[0].mxu0
    %v2577 = vadd.f32 %v2481, %v2576
    %v2578 = vpop.f32.mrb[0].mxu0
    %2579 = vdwg.mxu0
    %v2580 = vld [vmem:[%s39] sm:$0xff]
    %v2581 = vld [vmem:[%s39 + $0x8] sm:$0xff]
    %v2582 = vld [vmem:[%s39 + $0x10] sm:$0xff]
    %v2583 = vld [vmem:[%s39 + $0x18] sm:$0xff]
    %v2585 = vsel %vm448, %v304, 0
    %v2588 = vsel %vm448, %v305, 0
    %2590 = vmatprep.subr.mxu0 0.0
    %2591 = vmatpush1.msra.mxu0 %v2580
    %2592 = vmatprep.subr.mxu0 0.0
    %2593 = vmatpush1.msra.mxu0 %v2581
    %2594 = vmatprep.subr.mxu0 0.0
    %2595 = vmatpush1.msra.mxu0 %v2582
    %2596 = vmatprep.subr.mxu0 0.0
    %2597 = vmatpush1.msra.mxu0 %v2583
    %2598 = vmatprep.subr.mxu0 0.0
    %2599 = vmatpush1.msra.mxu0 0.0
    %2600 = vmatprep.subr.mxu0 0.0
    %2601 = vmatpush1.msra.mxu0 0.0
    %2602 = vmatprep.subr.mxu0 0.0
    %2603 = vmatpush1.msra.mxu0 0.0
    %2604 = vmatprep.subr.mxu0 0.0
    %2605 = vmatpush1.msra.mxu0 0.0
    %2606 = vmatprep.subr.mxu0 0.0
    %2607 = vmatpush1.msra.mxu0 0.0
    %2608 = vmatprep.subr.mxu0 0.0
    %2609 = vmatpush1.msra.mxu0 0.0
    %2610 = vmatprep.subr.mxu0 0.0
    %2611 = vmatpush1.msra.mxu0 0.0
    %2612 = vmatprep.subr.mxu0 0.0
    %2613 = vmatpush1.msra.mxu0 0.0
    %2614 = vmatprep.subr.mxu0 0.0
    %2615 = vmatpush1.msra.mxu0 0.0
    %2616 = vmatprep.subr.mxu0 0.0
    %2617 = vmatpush1.msra.mxu0 0.0
    %2618 = vmatprep.subr.mxu0 0.0
    %2619 = vmatpush1.msra.mxu0 0.0
    %2620 = vmatprep.subr.mxu0 0.0
    %2621 = vmatpush1.msra.mxu0 0.0
    %2622 = vmatprep.subr.mxu0 0.0
    %2623 = vmatpush1.msra.mxu0 0.0
    %2624 = vmatprep.subr.mxu0 0.0
    %2625 = vmatpush1.msra.mxu0 0.0
    %2626 = vmatprep.subr.mxu0 0.0
    %2627 = vmatpush1.msra.mxu0 0.0
    %2628 = vmatprep.subr.mxu0 0.0
    %2629 = vmatpush1.msra.mxu0 0.0
    %2630 = vmatprep.subr.mxu0 0.0
    %2631 = vmatpush1.msra.mxu0 0.0
    %2632 = vmatprep.subr.mxu0 0.0
    %2633 = vmatpush1.msra.mxu0 0.0
    %2634 = vmatprep.subr.mxu0 0.0
    %2635 = vmatpush1.msra.mxu0 0.0
    %2636 = vmatprep.subr.mxu0 0.0
    %2637 = vmatpush1.msra.mxu0 0.0
    %2638 = vmatprep.subr.mxu0 0.0
    %2639 = vmatpush1.msra.mxu0 0.0
    %2640 = vmatprep.subr.mxu0 0.0
    %2641 = vmatpush1.msra.mxu0 0.0
    %2642 = vmatprep.subr.mxu0 0.0
    %2643 = vmatpush1.msra.mxu0 0.0
    %2644 = vmatprep.subr.mxu0 0.0
    %2645 = vmatpush1.msra.mxu0 0.0
    %2646 = vmatprep.subr.mxu0 0.0
    %2647 = vmatpush1.msra.mxu0 0.0
    %2648 = vmatprep.subr.mxu0 0.0
    %2649 = vmatpush1.msra.mxu0 0.0
    %2650 = vmatprep.subr.mxu0 0.0
    %2651 = vmatpush1.msra.mxu0 0.0
    %2652 = vmatprep.subr.mxu0 0.0
    %2653 = vmatpush1.msra.mxu0 0.0
    %2654 = vmatprep.mubr.f32.mxu0 0.0
    %2655 = vmatmul.mubr.f32.gmra.mrb[0].mxu0 %v2585
    %v2656 = vpop.f32.mrb[0].mxu0
    %v2657 = vadd.f32 0.0, %v2656
    %v2658 = vpop.f32.mrb[0].mxu0
    %2659 = vmatprep.mubr.f32.mxu0 0.0
    %2660 = vmatmul.mubr.f32.gmra.mrb[0].mxu0 %v2588
    %v2661 = vpop.f32.mrb[0].mxu0
    %v2662 = vadd.f32 0.0, %v2661
    %v2663 = vpop.f32.mrb[0].mxu0
    %2664 = vdwg.mxu0
    %v2665 = vld [vmem:[%s41] sm:$0xff]
    %v2666 = vld [vmem:[%s41 + $0x8] sm:$0xff]
    %v2667 = vld [vmem:[%s41 + $0x10] sm:$0xff]
    %v2668 = vld [vmem:[%s41 + $0x18] sm:$0xff]
    %v2670 = vsel %vm448, %v2562, 0
    %v2673 = vsel %vm448, %v2567, 0
    %v2676 = vsel %vm448, %v2572, 0
    %v2679 = vsel %vm448, %v2577, 0
    %2681 = vmatprep.subr.mxu0 0.0
    %2682 = vmatpush1.msra.mxu0 %v2665
    %2683 = vmatprep.subr.mxu0 0.0
    %2684 = vmatpush1.msra.mxu0 %v2666
    %2685 = vmatprep.subr.mxu0 0.0
    %2686 = vmatpush1.msra.mxu0 %v2667
    %2687 = vmatprep.subr.mxu0 0.0
    %2688 = vmatpush1.msra.mxu0 %v2668
    %2689 = vmatprep.subr.mxu0 0.0
    %2690 = vmatpush1.msra.mxu0 0.0
    %2691 = vmatprep.subr.mxu0 0.0
    %2692 = vmatpush1.msra.mxu0 0.0
    %2693 = vmatprep.subr.mxu0 0.0
    %2694 = vmatpush1.msra.mxu0 0.0
    %2695 = vmatprep.subr.mxu0 0.0
    %2696 = vmatpush1.msra.mxu0 0.0
    %2697 = vmatprep.subr.mxu0 0.0
    %2698 = vmatpush1.msra.mxu0 0.0
    %2699 = vmatprep.subr.mxu0 0.0
    %2700 = vmatpush1.msra.mxu0 0.0
    %2701 = vmatprep.subr.mxu0 0.0
    %2702 = vmatpush1.msra.mxu0 0.0
    %2703 = vmatprep.subr.mxu0 0.0
    %2704 = vmatpush1.msra.mxu0 0.0
    %2705 = vmatprep.subr.mxu0 0.0
    %2706 = vmatpush1.msra.mxu0 0.0
    %2707 = vmatprep.subr.mxu0 0.0
    %2708 = vmatpush1.msra.mxu0 0.0
    %2709 = vmatprep.subr.mxu0 0.0
    %2710 = vmatpush1.msra.mxu0 0.0
    %2711 = vmatprep.subr.mxu0 0.0
    %2712 = vmatpush1.msra.mxu0 0.0
    %2713 = vmatprep.subr.mxu0 0.0
    %2714 = vmatpush1.msra.mxu0 0.0
    %2715 = vmatprep.subr.mxu0 0.0
    %2716 = vmatpush1.msra.mxu0 0.0
    %2717 = vmatprep.subr.mxu0 0.0
    %2718 = vmatpush1.msra.mxu0 0.0
    %2719 = vmatprep.subr.mxu0 0.0
    %2720 = vmatpush1.msra.mxu0 0.0
    %2721 = vmatprep.subr.mxu0 0.0
    %2722 = vmatpush1.msra.mxu0 0.0
    %2723 = vmatprep.subr.mxu0 0.0
    %2724 = vmatpush1.msra.mxu0 0.0
    %2725 = vmatprep.subr.mxu0 0.0
    %2726 = vmatpush1.msra.mxu0 0.0
    %2727 = vmatprep.subr.mxu0 0.0
    %2728 = vmatpush1.msra.mxu0 0.0
    %2729 = vmatprep.subr.mxu0 0.0
    %2730 = vmatpush1.msra.mxu0 0.0
    %2731 = vmatprep.subr.mxu0 0.0
    %2732 = vmatpush1.msra.mxu0 0.0
    %2733 = vmatprep.subr.mxu0 0.0
    %2734 = vmatpush1.msra.mxu0 0.0
    %2735 = vmatprep.subr.mxu0 0.0
    %2736 = vmatpush1.msra.mxu0 0.0
    %2737 = vmatprep.subr.mxu0 0.0
    %2738 = vmatpush1.msra.mxu0 0.0
    %2739 = vmatprep.subr.mxu0 0.0
    %2740 = vmatpush1.msra.mxu0 0.0
    %2741 = vmatprep.subr.mxu0 0.0
    %2742 = vmatpush1.msra.mxu0 0.0
    %2743 = vmatprep.subr.mxu0 0.0
    %2744 = vmatpush1.msra.mxu0 0.0
    %2745 = vmatprep.mubr.f32.mxu0 0.0
    %2746 = vmatmul.mubr.f32.gmra.mrb[0].mxu0 %v2670
    %v2747 = vpop.f32.mrb[0].mxu0
    %v2748 = vadd.f32 0.0, %v2747
    %v2749 = vpop.f32.mrb[0].mxu0
    %2750 = vmatprep.mubr.f32.mxu0 0.0
    %2751 = vmatmul.mubr.f32.gmra.mrb[0].mxu0 %v2673
    %v2752 = vpop.f32.mrb[0].mxu0
    %v2753 = vadd.f32 0.0, %v2752
    %v2754 = vpop.f32.mrb[0].mxu0
    %2755 = vmatprep.mubr.f32.mxu0 0.0
    %2756 = vmatmul.mubr.f32.gmra.mrb[0].mxu0 %v2676
    %v2757 = vpop.f32.mrb[0].mxu0
    %v2758 = vadd.f32 0.0, %v2757
    %v2759 = vpop.f32.mrb[0].mxu0
    %2760 = vmatprep.mubr.f32.mxu0 0.0
    %2761 = vmatmul.mubr.f32.gmra.mrb[0].mxu0 %v2679
    %v2762 = vpop.f32.mrb[0].mxu0
    %v2763 = vadd.f32 0.0, %v2762
    %v2764 = vpop.f32.mrb[0].mxu0
    %2765 = vdwg.mxu0
    %v2766 = vld [vmem:[%s43] sm:$0xff]
    %v2767 = vld [vmem:[%s43 + $0x8] sm:$0xff]
    %v2768 = vld [vmem:[%s43 + $0x10] sm:$0xff]
    %v2769 = vld [vmem:[%s43 + $0x18] sm:$0xff]
    %2770 = vmatprep.subr.mxu0 0.0
    %2771 = vmatpush1.msra.mxu0 %v2766
    %2772 = vmatprep.subr.mxu0 0.0
    %2773 = vmatpush1.msra.mxu0 %v2767
    %2774 = vmatprep.subr.mxu0 0.0
    %2775 = vmatpush1.msra.mxu0 %v2768
    %2776 = vmatprep.subr.mxu0 0.0
    %2777 = vmatpush1.msra.mxu0 %v2769
    %2778 = vmatprep.subr.mxu0 0.0
    %2779 = vmatpush1.msra.mxu0 0.0
    %2780 = vmatprep.subr.mxu0 0.0
    %2781 = vmatpush1.msra.mxu0 0.0
    %2782 = vmatprep.subr.mxu0 0.0
    %2783 = vmatpush1.msra.mxu0 0.0
    %2784 = vmatprep.subr.mxu0 0.0
    %2785 = vmatpush1.msra.mxu0 0.0
    %2786 = vmatprep.subr.mxu0 0.0
    %2787 = vmatpush1.msra.mxu0 0.0
    %2788 = vmatprep.subr.mxu0 0.0
    %2789 = vmatpush1.msra.mxu0 0.0
    %2790 = vmatprep.subr.mxu0 0.0
    %2791 = vmatpush1.msra.mxu0 0.0
    %2792 = vmatprep.subr.mxu0 0.0
    %2793 = vmatpush1.msra.mxu0 0.0
    %2794 = vmatprep.subr.mxu0 0.0
    %2795 = vmatpush1.msra.mxu0 0.0
    %2796 = vmatprep.subr.mxu0 0.0
    %2797 = vmatpush1.msra.mxu0 0.0
    %2798 = vmatprep.subr.mxu0 0.0
    %2799 = vmatpush1.msra.mxu0 0.0
    %2800 = vmatprep.subr.mxu0 0.0
    %2801 = vmatpush1.msra.mxu0 0.0
    %2802 = vmatprep.subr.mxu0 0.0
    %2803 = vmatpush1.msra.mxu0 0.0
    %2804 = vmatprep.subr.mxu0 0.0
    %2805 = vmatpush1.msra.mxu0 0.0
    %2806 = vmatprep.subr.mxu0 0.0
    %2807 = vmatpush1.msra.mxu0 0.0
    %2808 = vmatprep.subr.mxu0 0.0
    %2809 = vmatpush1.msra.mxu0 0.0
    %2810 = vmatprep.subr.mxu0 0.0
    %2811 = vmatpush1.msra.mxu0 0.0
    %2812 = vmatprep.subr.mxu0 0.0
    %2813 = vmatpush1.msra.mxu0 0.0
    %2814 = vmatprep.subr.mxu0 0.0
    %2815 = vmatpush1.msra.mxu0 0.0
    %2816 = vmatprep.subr.mxu0 0.0
    %2817 = vmatpush1.msra.mxu0 0.0
    %2818 = vmatprep.subr.mxu0 0.0
    %2819 = vmatpush1.msra.mxu0 0.0
    %2820 = vmatprep.subr.mxu0 0.0
    %2821 = vmatpush1.msra.mxu0 0.0
    %2822 = vmatprep.subr.mxu0 0.0
    %2823 = vmatpush1.msra.mxu0 0.0
    %2824 = vmatprep.subr.mxu0 0.0
    %2825 = vmatpush1.msra.mxu0 0.0
    %2826 = vmatprep.subr.mxu0 0.0
    %2827 = vmatpush1.msra.mxu0 0.0
    %2828 = vmatprep.subr.mxu0 0.0
    %2829 = vmatpush1.msra.mxu0 0.0
    %2830 = vmatprep.subr.mxu0 0.0
    %2831 = vmatpush1.msra.mxu0 0.0
    %2832 = vmatprep.subr.mxu0 0.0
    %2833 = vmatpush1.msra.mxu0 0.0
    %2834 = vmatprep.mubr.f32.mxu0 0.0
    %2835 = vmatmul.mubr.f32.gmra.mrb[0].mxu0 %v2670
    %v2836 = vpop.f32.mrb[0].mxu0
    %v2837 = vadd.f32 0.0, %v2836
    %v2838 = vpop.f32.mrb[0].mxu0
    %2839 = vmatprep.mubr.f32.mxu0 0.0
    %2840 = vmatmul.mubr.f32.gmra.mrb[0].mxu0 %v2673
    %v2841 = vpop.f32.mrb[0].mxu0
    %v2842 = vadd.f32 0.0, %v2841
    %v2843 = vpop.f32.mrb[0].mxu0
    %2844 = vmatprep.mubr.f32.mxu0 0.0
    %2845 = vmatmul.mubr.f32.gmra.mrb[0].mxu0 %v2676
    %v2846 = vpop.f32.mrb[0].mxu0
    %v2847 = vadd.f32 0.0, %v2846
    %v2848 = vpop.f32.mrb[0].mxu0
    %2849 = vmatprep.mubr.f32.mxu0 0.0
    %2850 = vmatmul.mubr.f32.gmra.mrb[0].mxu0 %v2679
    %v2851 = vpop.f32.mrb[0].mxu0
    %v2852 = vadd.f32 0.0, %v2851
    %v2853 = vpop.f32.mrb[0].mxu0
    %2854 = vdwg.mxu0
    %v2856 = vsel %vm448, %v2657, 0
    %v2859 = vsel %vm448, %v2662, 0
    %v2862 = vsel %vm448, %v2748, 0
    %v2865 = vsel %vm448, %v2753, 0
    %v2868 = vsel %vm448, %v2758, 0
    %v2871 = vsel %vm448, %v2763, 0
    %2873 = vmatprep.subr.mxu0 0.0
    %2874 = vmatpush1.xpose.msra.mxu0 %v2862
    %2875 = vmatprep.subr.mxu0 0.0
    %2876 = vmatpush1.xpose.msra.mxu0 %v2865
    %2877 = vmatprep.subr.mxu0 0.0
    %2878 = vmatpush1.xpose.msra.mxu0 %v2868
    %2879 = vmatprep.subr.mxu0 0.0
    %2880 = vmatpush1.xpose.msra.mxu0 %v2871
    %2881 = vmatprep.subr.mxu0 0.0
    %2882 = vmatpush1.xpose.msra.mxu0 0.0
    %2883 = vmatprep.subr.mxu0 0.0
    %2884 = vmatpush1.xpose.msra.mxu0 0.0
    %2885 = vmatprep.subr.mxu0 0.0
    %2886 = vmatpush1.xpose.msra.mxu0 0.0
    %2887 = vmatprep.subr.mxu0 0.0
    %2888 = vmatpush1.xpose.msra.mxu0 0.0
    %2889 = vmatprep.subr.mxu0 0.0
    %2890 = vmatpush1.xpose.msra.mxu0 0.0
    %2891 = vmatprep.subr.mxu0 0.0
    %2892 = vmatpush1.xpose.msra.mxu0 0.0
    %2893 = vmatprep.subr.mxu0 0.0
    %2894 = vmatpush1.xpose.msra.mxu0 0.0
    %2895 = vmatprep.subr.mxu0 0.0
    %2896 = vmatpush1.xpose.msra.mxu0 0.0
    %2897 = vmatprep.subr.mxu0 0.0
    %2898 = vmatpush1.xpose.msra.mxu0 0.0
    %2899 = vmatprep.subr.mxu0 0.0
    %2900 = vmatpush1.xpose.msra.mxu0 0.0
    %2901 = vmatprep.subr.mxu0 0.0
    %2902 = vmatpush1.xpose.msra.mxu0 0.0
    %2903 = vmatprep.subr.mxu0 0.0
    %2904 = vmatpush1.xpose.msra.mxu0 0.0
    %2905 = vmatprep.subr.mxu0 0.0
    %2906 = vmatpush1.xpose.msra.mxu0 0.0
    %2907 = vmatprep.subr.mxu0 0.0
    %2908 = vmatpush1.xpose.msra.mxu0 0.0
    %2909 = vmatprep.subr.mxu0 0.0
    %2910 = vmatpush1.xpose.msra.mxu0 0.0
    %2911 = vmatprep.subr.mxu0 0.0
    %2912 = vmatpush1.xpose.msra.mxu0 0.0
    %2913 = vmatprep.subr.mxu0 0.0
    %2914 = vmatpush1.xpose.msra.mxu0 0.0
    %2915 = vmatprep.subr.mxu0 0.0
    %2916 = vmatpush1.xpose.msra.mxu0 0.0
    %2917 = vmatprep.subr.mxu0 0.0
    %2918 = vmatpush1.xpose.msra.mxu0 0.0
    %2919 = vmatprep.subr.mxu0 0.0
    %2920 = vmatpush1.xpose.msra.mxu0 0.0
    %2921 = vmatprep.subr.mxu0 0.0
    %2922 = vmatpush1.xpose.msra.mxu0 0.0
    %2923 = vmatprep.subr.mxu0 0.0
    %2924 = vmatpush1.xpose.msra.mxu0 0.0
    %2925 = vmatprep.subr.mxu0 0.0
    %2926 = vmatpush1.xpose.msra.mxu0 0.0
    %2927 = vmatprep.subr.mxu0 0.0
    %2928 = vmatpush1.xpose.msra.mxu0 0.0
    %2929 = vmatprep.subr.mxu0 0.0
    %2930 = vmatpush1.xpose.msra.mxu0 0.0
    %2931 = vmatprep.subr.mxu0 0.0
    %2932 = vmatpush1.xpose.msra.mxu0 0.0
    %2933 = vmatprep.subr.mxu0 0.0
    %2934 = vmatpush1.xpose.msra.mxu0 0.0
    %2935 = vmatprep.subr.mxu0 0.0
    %2936 = vmatpush1.xpose.msra.mxu0 0.0
    %2937 = vmatprep.mubr.f32.mxu0 0.0
    %2938 = vmatmul.mubr.f32.gmra.mrb[0].mxu0 %v2856
    %v2939 = vpop.f32.mrb[0].mxu0
    %v2940 = vadd.f32 0.0, %v2939
    %v2941 = vpop.f32.mrb[0].mxu0
    %2942 = vmatprep.mubr.f32.mxu0 0.0
    %2943 = vmatmul.mubr.f32.gmra.mrb[0].mxu0 %v2859
    %v2944 = vpop.f32.mrb[0].mxu0
    %v2945 = vadd.f32 0.0, %v2944
    %v2946 = vpop.f32.mrb[0].mxu0
    %2947 = vdwg.mxu0
    %v2948 = vmul.f32 %v2940, 0.17677669
    %v2949 = vmul.f32 %v2945, 0.17677669
    %v2950 = vsel %vm440, %v2948, -1e+30
    %v2951 = vsel %vm441, %v2949, -1e+30
    %v2952 = vsel %vm448, %v2950, -inf
    %2953 = vmax.xlane.f32.xlu0 %v2952
    %v2954 = vpop.xlane.xlu0 %2953
    %v2955 = vsel %vm448, %v2951, -inf
    %2956 = vmax.xlane.f32.xlu0 %v2955
    %v2957 = vpop.xlane.xlu0 %2956
    %v2958 = vsub.f32 %v2950, %v2954
    %v2959 = vsub.f32 %v2951, %v2957
    %v2960 = vmul.f32 %v2958, 1.442695
    %v2961 = vpow.pop %v2960
    %v2962 = vmul.f32 %v2959, 1.442695
    %v2963 = vpow.pop %v2962
    %v2964 = vsel %vm448, %v2961, 0.0
    %2965 = vadd.xlane.f32.xlu0 %v2964
    %v2966 = vpop.xlane.xlu0 %2965
    %v2967 = vsel %vm448, %v2963, 0.0
    %2968 = vadd.xlane.f32.xlu0 %v2967
    %v2969 = vpop.xlane.xlu0 %2968
    %v2970 = vrcp.pop %v2966
    %v2971 = vrcp.pop %v2969
    %v2972 = vmul.f32 %v2961, %v2970
    %v2973 = vmul.f32 %v2963, %v2971
    %v2975 = vsel %vm448, %v2972, 0
    %v2978 = vsel %vm448, %v2973, 0
    %2980 = vmatprep.subr.mxu0 0.0
    %2981 = vmatpush1.msra.mxu0 %v2837
    %2982 = vmatprep.subr.mxu0 0.0
    %2983 = vmatpush1.msra.mxu0 %v2842
    %2984 = vmatprep.subr.mxu0 0.0
    %2985 = vmatpush1.msra.mxu0 %v2847
    %2986 = vmatprep.subr.mxu0 0.0
    %2987 = vmatpush1.msra.mxu0 %v2852
    %2988 = vmatprep.subr.mxu0 0.0
    %2989 = vmatpush1.msra.mxu0 0.0
    %2990 = vmatprep.subr.mxu0 0.0
    %2991 = vmatpush1.msra.mxu0 0.0
    %2992 = vmatprep.subr.mxu0 0.0
    %2993 = vmatpush1.msra.mxu0 0.0
    %2994 = vmatprep.subr.mxu0 0.0
    %2995 = vmatpush1.msra.mxu0 0.0
    %2996 = vmatprep.subr.mxu0 0.0
    %2997 = vmatpush1.msra.mxu0 0.0
    %2998 = vmatprep.subr.mxu0 0.0
    %2999 = vmatpush1.msra.mxu0 0.0
    %3000 = vmatprep.subr.mxu0 0.0
    %3001 = vmatpush1.msra.mxu0 0.0
    %3002 = vmatprep.subr.mxu0 0.0
    %3003 = vmatpush1.msra.mxu0 0.0
    %3004 = vmatprep.subr.mxu0 0.0
    %3005 = vmatpush1.msra.mxu0 0.0
    %3006 = vmatprep.subr.mxu0 0.0
    %3007 = vmatpush1.msra.mxu0 0.0
    %3008 = vmatprep.subr.mxu0 0.0
    %3009 = vmatpush1.msra.mxu0 0.0
    %3010 = vmatprep.subr.mxu0 0.0
    %3011 = vmatpush1.msra.mxu0 0.0
    %3012 = vmatprep.subr.mxu0 0.0
    %3013 = vmatpush1.msra.mxu0 0.0
    %3014 = vmatprep.subr.mxu0 0.0
    %3015 = vmatpush1.msra.mxu0 0.0
    %3016 = vmatprep.subr.mxu0 0.0
    %3017 = vmatpush1.msra.mxu0 0.0
    %3018 = vmatprep.subr.mxu0 0.0
    %3019 = vmatpush1.msra.mxu0 0.0
    %3020 = vmatprep.subr.mxu0 0.0
    %3021 = vmatpush1.msra.mxu0 0.0
    %3022 = vmatprep.subr.mxu0 0.0
    %3023 = vmatpush1.msra.mxu0 0.0
    %3024 = vmatprep.subr.mxu0 0.0
    %3025 = vmatpush1.msra.mxu0 0.0
    %3026 = vmatprep.subr.mxu0 0.0
    %3027 = vmatpush1.msra.mxu0 0.0
    %3028 = vmatprep.subr.mxu0 0.0
    %3029 = vmatpush1.msra.mxu0 0.0
    %3030 = vmatprep.subr.mxu0 0.0
    %3031 = vmatpush1.msra.mxu0 0.0
    %3032 = vmatprep.subr.mxu0 0.0
    %3033 = vmatpush1.msra.mxu0 0.0
    %3034 = vmatprep.subr.mxu0 0.0
    %3035 = vmatpush1.msra.mxu0 0.0
    %3036 = vmatprep.subr.mxu0 0.0
    %3037 = vmatpush1.msra.mxu0 0.0
    %3038 = vmatprep.subr.mxu0 0.0
    %3039 = vmatpush1.msra.mxu0 0.0
    %3040 = vmatprep.subr.mxu0 0.0
    %3041 = vmatpush1.msra.mxu0 0.0
    %3042 = vmatprep.subr.mxu0 0.0
    %3043 = vmatpush1.msra.mxu0 0.0
    %3044 = vmatprep.mubr.f32.mxu0 0.0
    %3045 = vmatmul.mubr.f32.gmra.mrb[0].mxu0 %v2975
    %v3046 = vpop.f32.mrb[0].mxu0
    %v3047 = vadd.f32 0.0, %v3046
    %v3048 = vpop.f32.mrb[0].mxu0
    %3049 = vmatprep.mubr.f32.mxu0 0.0
    %3050 = vmatmul.mubr.f32.gmra.mrb[0].mxu0 %v2978
    %v3051 = vpop.f32.mrb[0].mxu0
    %v3052 = vadd.f32 0.0, %v3051
    %v3053 = vpop.f32.mrb[0].mxu0
    %3054 = vdwg.mxu0
    %3055 = vrot.lane.b32.xlu0 %v2657, 96
    %v3056 = vpop.permute.xlu0 %3055
    %3057 = vrot.lane.b32.xlu0 %v2662, 96
    %v3058 = vpop.permute.xlu0 %3057
    %3059 = vrot.lane.b32.xlu0 %v2748, 96
    %v3060 = vpop.permute.xlu0 %3059
    %3061 = vrot.lane.b32.xlu0 %v2753, 96
    %v3062 = vpop.permute.xlu0 %3061
    %3063 = vrot.lane.b32.xlu0 %v2758, 96
    %v3064 = vpop.permute.xlu0 %3063
    %3065 = vrot.lane.b32.xlu0 %v2763, 96
    %v3066 = vpop.permute.xlu0 %3065
    %v3067 = vsel %vm448, %v3056, 0
    %v3069 = vsel %vm448, %v3058, 0
    %v3071 = vsel %vm448, %v3060, 0
    %v3073 = vsel %vm448, %v3062, 0
    %v3075 = vsel %vm448, %v3064, 0
    %v3077 = vsel %vm448, %v3066, 0
    %3079 = vmatprep.subr.mxu0 0.0
    %3080 = vmatpush1.xpose.msra.mxu0 %v3071
    %3081 = vmatprep.subr.mxu0 0.0
    %3082 = vmatpush1.xpose.msra.mxu0 %v3073
    %3083 = vmatprep.subr.mxu0 0.0
    %3084 = vmatpush1.xpose.msra.mxu0 %v3075
    %3085 = vmatprep.subr.mxu0 0.0
    %3086 = vmatpush1.xpose.msra.mxu0 %v3077
    %3087 = vmatprep.subr.mxu0 0.0
    %3088 = vmatpush1.xpose.msra.mxu0 0.0
    %3089 = vmatprep.subr.mxu0 0.0
    %3090 = vmatpush1.xpose.msra.mxu0 0.0
    %3091 = vmatprep.subr.mxu0 0.0
    %3092 = vmatpush1.xpose.msra.mxu0 0.0
    %3093 = vmatprep.subr.mxu0 0.0
    %3094 = vmatpush1.xpose.msra.mxu0 0.0
    %3095 = vmatprep.subr.mxu0 0.0
    %3096 = vmatpush1.xpose.msra.mxu0 0.0
    %3097 = vmatprep.subr.mxu0 0.0
    %3098 = vmatpush1.xpose.msra.mxu0 0.0
    %3099 = vmatprep.subr.mxu0 0.0
    %3100 = vmatpush1.xpose.msra.mxu0 0.0
    %3101 = vmatprep.subr.mxu0 0.0
    %3102 = vmatpush1.xpose.msra.mxu0 0.0
    %3103 = vmatprep.subr.mxu0 0.0
    %3104 = vmatpush1.xpose.msra.mxu0 0.0
    %3105 = vmatprep.subr.mxu0 0.0
    %3106 = vmatpush1.xpose.msra.mxu0 0.0
    %3107 = vmatprep.subr.mxu0 0.0
    %3108 = vmatpush1.xpose.msra.mxu0 0.0
    %3109 = vmatprep.subr.mxu0 0.0
    %3110 = vmatpush1.xpose.msra.mxu0 0.0
    %3111 = vmatprep.subr.mxu0 0.0
    %3112 = vmatpush1.xpose.msra.mxu0 0.0
    %3113 = vmatprep.subr.mxu0 0.0
    %3114 = vmatpush1.xpose.msra.mxu0 0.0
    %3115 = vmatprep.subr.mxu0 0.0
    %3116 = vmatpush1.xpose.msra.mxu0 0.0
    %3117 = vmatprep.subr.mxu0 0.0
    %3118 = vmatpush1.xpose.msra.mxu0 0.0
    %3119 = vmatprep.subr.mxu0 0.0
    %3120 = vmatpush1.xpose.msra.mxu0 0.0
    %3121 = vmatprep.subr.mxu0 0.0
    %3122 = vmatpush1.xpose.msra.mxu0 0.0
    %3123 = vmatprep.subr.mxu0 0.0
    %3124 = vmatpush1.xpose.msra.mxu0 0.0
    %3125 = vmatprep.subr.mxu0 0.0
    %3126 = vmatpush1.xpose.msra.mxu0 0.0
    %3127 = vmatprep.subr.mxu0 0.0
    %3128 = vmatpush1.xpose.msra.mxu0 0.0
    %3129 = vmatprep.subr.mxu0 0.0
    %3130 = vmatpush1.xpose.msra.mxu0 0.0
    %3131 = vmatprep.subr.mxu0 0.0
    %3132 = vmatpush1.xpose.msra.mxu0 0.0
    %3133 = vmatprep.subr.mxu0 0.0
    %3134 = vmatpush1.xpose.msra.mxu0 0.0
    %3135 = vmatprep.subr.mxu0 0.0
    %3136 = vmatpush1.xpose.msra.mxu0 0.0
    %3137 = vmatprep.subr.mxu0 0.0
    %3138 = vmatpush1.xpose.msra.mxu0 0.0
    %3139 = vmatprep.subr.mxu0 0.0
    %3140 = vmatpush1.xpose.msra.mxu0 0.0
    %3141 = vmatprep.subr.mxu0 0.0
    %3142 = vmatpush1.xpose.msra.mxu0 0.0
    %3143 = vmatprep.mubr.f32.mxu0 0.0
    %3144 = vmatmul.mubr.f32.gmra.mrb[0].mxu0 %v3067
    %v3145 = vpop.f32.mrb[0].mxu0
    %v3146 = vadd.f32 0.0, %v3145
    %v3147 = vpop.f32.mrb[0].mxu0
    %3148 = vmatprep.mubr.f32.mxu0 0.0
    %3149 = vmatmul.mubr.f32.gmra.mrb[0].mxu0 %v3069
    %v3150 = vpop.f32.mrb[0].mxu0
    %v3151 = vadd.f32 0.0, %v3150
    %v3152 = vpop.f32.mrb[0].mxu0
    %3153 = vdwg.mxu0
    %v3154 = vmul.f32 %v3146, 0.17677669
    %v3155 = vmul.f32 %v3151, 0.17677669
    %v3156 = vsel %vm440, %v3154, -1e+30
    %v3157 = vsel %vm441, %v3155, -1e+30
    %v3158 = vsel %vm448, %v3156, -inf
    %3159 = vmax.xlane.f32.xlu0 %v3158
    %v3160 = vpop.xlane.xlu0 %3159
    %v3161 = vsel %vm448, %v3157, -inf
    %3162 = vmax.xlane.f32.xlu0 %v3161
    %v3163 = vpop.xlane.xlu0 %3162
    %v3164 = vsub.f32 %v3156, %v3160
    %v3165 = vsub.f32 %v3157, %v3163
    %v3166 = vmul.f32 %v3164, 1.442695
    %v3167 = vpow.pop %v3166
    %v3168 = vmul.f32 %v3165, 1.442695
    %v3169 = vpow.pop %v3168
    %v3170 = vsel %vm448, %v3167, 0.0
    %3171 = vadd.xlane.f32.xlu0 %v3170
    %v3172 = vpop.xlane.xlu0 %3171
    %v3173 = vsel %vm448, %v3169, 0.0
    %3174 = vadd.xlane.f32.xlu0 %v3173
    %v3175 = vpop.xlane.xlu0 %3174
    %v3176 = vrcp.pop %v3172
    %v3177 = vrcp.pop %v3175
    %v3178 = vmul.f32 %v3167, %v3176
    %v3179 = vmul.f32 %v3169, %v3177
    %3184 = vrot.lane.b32.xlu0 %v2837, 96
    %v3185 = vpop.permute.xlu0 %3184
    %3186 = vrot.lane.b32.xlu0 %v2842, 96
    %v3187 = vpop.permute.xlu0 %3186
    %3188 = vrot.lane.b32.xlu0 %v2847, 96
    %v3189 = vpop.permute.xlu0 %3188
    %3190 = vrot.lane.b32.xlu0 %v2852, 96
    %v3191 = vpop.permute.xlu0 %3190
    %v3197 = vsel %vm448, %v3178, 0
    %v3200 = vsel %vm448, %v3179, 0
    %3202 = vmatprep.subr.mxu0 0.0
    %3203 = vmatpush1.msra.mxu0 %v3185
    %3204 = vmatprep.subr.mxu0 0.0
    %3205 = vmatpush1.msra.mxu0 %v3187
    %3206 = vmatprep.subr.mxu0 0.0
    %3207 = vmatpush1.msra.mxu0 %v3189
    %3208 = vmatprep.subr.mxu0 0.0
    %3209 = vmatpush1.msra.mxu0 %v3191
    %3210 = vmatprep.subr.mxu0 0.0
    %3211 = vmatpush1.msra.mxu0 0.0
    %3212 = vmatprep.subr.mxu0 0.0
    %3213 = vmatpush1.msra.mxu0 0.0
    %3214 = vmatprep.subr.mxu0 0.0
    %3215 = vmatpush1.msra.mxu0 0.0
    %3216 = vmatprep.subr.mxu0 0.0
    %3217 = vmatpush1.msra.mxu0 0.0
    %3218 = vmatprep.subr.mxu0 0.0
    %3219 = vmatpush1.msra.mxu0 0.0
    %3220 = vmatprep.subr.mxu0 0.0
    %3221 = vmatpush1.msra.mxu0 0.0
    %3222 = vmatprep.subr.mxu0 0.0
    %3223 = vmatpush1.msra.mxu0 0.0
    %3224 = vmatprep.subr.mxu0 0.0
    %3225 = vmatpush1.msra.mxu0 0.0
    %3226 = vmatprep.subr.mxu0 0.0
    %3227 = vmatpush1.msra.mxu0 0.0
    %3228 = vmatprep.subr.mxu0 0.0
    %3229 = vmatpush1.msra.mxu0 0.0
    %3230 = vmatprep.subr.mxu0 0.0
    %3231 = vmatpush1.msra.mxu0 0.0
    %3232 = vmatprep.subr.mxu0 0.0
    %3233 = vmatpush1.msra.mxu0 0.0
    %3234 = vmatprep.subr.mxu0 0.0
    %3235 = vmatpush1.msra.mxu0 0.0
    %3236 = vmatprep.subr.mxu0 0.0
    %3237 = vmatpush1.msra.mxu0 0.0
    %3238 = vmatprep.subr.mxu0 0.0
    %3239 = vmatpush1.msra.mxu0 0.0
    %3240 = vmatprep.subr.mxu0 0.0
    %3241 = vmatpush1.msra.mxu0 0.0
    %3242 = vmatprep.subr.mxu0 0.0
    %3243 = vmatpush1.msra.mxu0 0.0
    %3244 = vmatprep.subr.mxu0 0.0
    %3245 = vmatpush1.msra.mxu0 0.0
    %3246 = vmatprep.subr.mxu0 0.0
    %3247 = vmatpush1.msra.mxu0 0.0
    %3248 = vmatprep.subr.mxu0 0.0
    %3249 = vmatpush1.msra.mxu0 0.0
    %3250 = vmatprep.subr.mxu0 0.0
    %3251 = vmatpush1.msra.mxu0 0.0
    %3252 = vmatprep.subr.mxu0 0.0
    %3253 = vmatpush1.msra.mxu0 0.0
    %3254 = vmatprep.subr.mxu0 0.0
    %3255 = vmatpush1.msra.mxu0 0.0
    %3256 = vmatprep.subr.mxu0 0.0
    %3257 = vmatpush1.msra.mxu0 0.0
    %3258 = vmatprep.subr.mxu0 0.0
    %3259 = vmatpush1.msra.mxu0 0.0
    %3260 = vmatprep.subr.mxu0 0.0
    %3261 = vmatpush1.msra.mxu0 0.0
    %3262 = vmatprep.subr.mxu0 0.0
    %3263 = vmatpush1.msra.mxu0 0.0
    %3264 = vmatprep.subr.mxu0 0.0
    %3265 = vmatpush1.msra.mxu0 0.0
    %3266 = vmatprep.mubr.f32.mxu0 0.0
    %3267 = vmatmul.mubr.f32.gmra.mrb[0].mxu0 %v3197
    %v3268 = vpop.f32.mrb[0].mxu0
    %v3269 = vadd.f32 0.0, %v3268
    %v3270 = vpop.f32.mrb[0].mxu0
    %3271 = vmatprep.mubr.f32.mxu0 0.0
    %3272 = vmatmul.mubr.f32.gmra.mrb[0].mxu0 %v3200
    %v3273 = vpop.f32.mrb[0].mxu0
    %v3274 = vadd.f32 0.0, %v3273
    %v3275 = vpop.f32.mrb[0].mxu0
    %3276 = vdwg.mxu0
    %3277 = vrot.lane.b32.xlu0 %v2657, 64
    %v3278 = vpop.permute.xlu0 %3277
    %3279 = vrot.lane.b32.xlu0 %v2662, 64
    %v3280 = vpop.permute.xlu0 %3279
    %3281 = vrot.lane.b32.xlu0 %v2748, 64
    %v3282 = vpop.permute.xlu0 %3281
    %3283 = vrot.lane.b32.xlu0 %v2753, 64
    %v3284 = vpop.permute.xlu0 %3283
    %3285 = vrot.lane.b32.xlu0 %v2758, 64
    %v3286 = vpop.permute.xlu0 %3285
    %3287 = vrot.lane.b32.xlu0 %v2763, 64
    %v3288 = vpop.permute.xlu0 %3287
    %v3289 = vsel %vm448, %v3278, 0
    %v3291 = vsel %vm448, %v3280, 0
    %v3293 = vsel %vm448, %v3282, 0
    %v3295 = vsel %vm448, %v3284, 0
    %v3297 = vsel %vm448, %v3286, 0
    %v3299 = vsel %vm448, %v3288, 0
    %3301 = vmatprep.subr.mxu0 0.0
    %3302 = vmatpush1.xpose.msra.mxu0 %v3293
    %3303 = vmatprep.subr.mxu0 0.0
    %3304 = vmatpush1.xpose.msra.mxu0 %v3295
    %3305 = vmatprep.subr.mxu0 0.0
    %3306 = vmatpush1.xpose.msra.mxu0 %v3297
    %3307 = vmatprep.subr.mxu0 0.0
    %3308 = vmatpush1.xpose.msra.mxu0 %v3299
    %3309 = vmatprep.subr.mxu0 0.0
    %3310 = vmatpush1.xpose.msra.mxu0 0.0
    %3311 = vmatprep.subr.mxu0 0.0
    %3312 = vmatpush1.xpose.msra.mxu0 0.0
    %3313 = vmatprep.subr.mxu0 0.0
    %3314 = vmatpush1.xpose.msra.mxu0 0.0
    %3315 = vmatprep.subr.mxu0 0.0
    %3316 = vmatpush1.xpose.msra.mxu0 0.0
    %3317 = vmatprep.subr.mxu0 0.0
    %3318 = vmatpush1.xpose.msra.mxu0 0.0
    %3319 = vmatprep.subr.mxu0 0.0
    %3320 = vmatpush1.xpose.msra.mxu0 0.0
    %3321 = vmatprep.subr.mxu0 0.0
    %3322 = vmatpush1.xpose.msra.mxu0 0.0
    %3323 = vmatprep.subr.mxu0 0.0
    %3324 = vmatpush1.xpose.msra.mxu0 0.0
    %3325 = vmatprep.subr.mxu0 0.0
    %3326 = vmatpush1.xpose.msra.mxu0 0.0
    %3327 = vmatprep.subr.mxu0 0.0
    %3328 = vmatpush1.xpose.msra.mxu0 0.0
    %3329 = vmatprep.subr.mxu0 0.0
    %3330 = vmatpush1.xpose.msra.mxu0 0.0
    %3331 = vmatprep.subr.mxu0 0.0
    %3332 = vmatpush1.xpose.msra.mxu0 0.0
    %3333 = vmatprep.subr.mxu0 0.0
    %3334 = vmatpush1.xpose.msra.mxu0 0.0
    %3335 = vmatprep.subr.mxu0 0.0
    %3336 = vmatpush1.xpose.msra.mxu0 0.0
    %3337 = vmatprep.subr.mxu0 0.0
    %3338 = vmatpush1.xpose.msra.mxu0 0.0
    %3339 = vmatprep.subr.mxu0 0.0
    %3340 = vmatpush1.xpose.msra.mxu0 0.0
    %3341 = vmatprep.subr.mxu0 0.0
    %3342 = vmatpush1.xpose.msra.mxu0 0.0
    %3343 = vmatprep.subr.mxu0 0.0
    %3344 = vmatpush1.xpose.msra.mxu0 0.0
    %3345 = vmatprep.subr.mxu0 0.0
    %3346 = vmatpush1.xpose.msra.mxu0 0.0
    %3347 = vmatprep.subr.mxu0 0.0
    %3348 = vmatpush1.xpose.msra.mxu0 0.0
    %3349 = vmatprep.subr.mxu0 0.0
    %3350 = vmatpush1.xpose.msra.mxu0 0.0
    %3351 = vmatprep.subr.mxu0 0.0
    %3352 = vmatpush1.xpose.msra.mxu0 0.0
    %3353 = vmatprep.subr.mxu0 0.0
    %3354 = vmatpush1.xpose.msra.mxu0 0.0
    %3355 = vmatprep.subr.mxu0 0.0
    %3356 = vmatpush1.xpose.msra.mxu0 0.0
    %3357 = vmatprep.subr.mxu0 0.0
    %3358 = vmatpush1.xpose.msra.mxu0 0.0
    %3359 = vmatprep.subr.mxu0 0.0
    %3360 = vmatpush1.xpose.msra.mxu0 0.0
    %3361 = vmatprep.subr.mxu0 0.0
    %3362 = vmatpush1.xpose.msra.mxu0 0.0
    %3363 = vmatprep.subr.mxu0 0.0
    %3364 = vmatpush1.xpose.msra.mxu0 0.0
    %3365 = vmatprep.mubr.f32.mxu0 0.0
    %3366 = vmatmul.mubr.f32.gmra.mrb[0].mxu0 %v3289
    %v3367 = vpop.f32.mrb[0].mxu0
    %v3368 = vadd.f32 0.0, %v3367
    %v3369 = vpop.f32.mrb[0].mxu0
    %3370 = vmatprep.mubr.f32.mxu0 0.0
    %3371 = vmatmul.mubr.f32.gmra.mrb[0].mxu0 %v3291
    %v3372 = vpop.f32.mrb[0].mxu0
    %v3373 = vadd.f32 0.0, %v3372
    %v3374 = vpop.f32.mrb[0].mxu0
    %3375 = vdwg.mxu0
    %v3376 = vmul.f32 %v3368, 0.17677669
    %v3377 = vmul.f32 %v3373, 0.17677669
    %v3378 = vsel %vm440, %v3376, -1e+30
    %v3379 = vsel %vm441, %v3377, -1e+30
    %v3380 = vsel %vm448, %v3378, -inf
    %3381 = vmax.xlane.f32.xlu0 %v3380
    %v3382 = vpop.xlane.xlu0 %3381
    %v3383 = vsel %vm448, %v3379, -inf
    %3384 = vmax.xlane.f32.xlu0 %v3383
    %v3385 = vpop.xlane.xlu0 %3384
    %v3386 = vsub.f32 %v3378, %v3382
    %v3387 = vsub.f32 %v3379, %v3385
    %v3388 = vmul.f32 %v3386, 1.442695
    %v3389 = vpow.pop %v3388
    %v3390 = vmul.f32 %v3387, 1.442695
    %v3391 = vpow.pop %v3390
    %v3392 = vsel %vm448, %v3389, 0.0
    %3393 = vadd.xlane.f32.xlu0 %v3392
    %v3394 = vpop.xlane.xlu0 %3393
    %v3395 = vsel %vm448, %v3391, 0.0
    %3396 = vadd.xlane.f32.xlu0 %v3395
    %v3397 = vpop.xlane.xlu0 %3396
    %v3398 = vrcp.pop %v3394
    %v3399 = vrcp.pop %v3397
    %v3400 = vmul.f32 %v3389, %v3398
    %v3401 = vmul.f32 %v3391, %v3399
    %3402 = vrot.lane.b32.xlu0 %v2837, 64
    %v3403 = vpop.permute.xlu0 %3402
    %3404 = vrot.lane.b32.xlu0 %v2842, 64
    %v3405 = vpop.permute.xlu0 %3404
    %3406 = vrot.lane.b32.xlu0 %v2847, 64
    %v3407 = vpop.permute.xlu0 %3406
    %3408 = vrot.lane.b32.xlu0 %v2852, 64
    %v3409 = vpop.permute.xlu0 %3408
    %v3415 = vsel %vm448, %v3400, 0
    %v3418 = vsel %vm448, %v3401, 0
    %3420 = vmatprep.subr.mxu0 0.0
    %3421 = vmatpush1.msra.mxu0 %v3403
    %3422 = vmatprep.subr.mxu0 0.0
    %3423 = vmatpush1.msra.mxu0 %v3405
    %3424 = vmatprep.subr.mxu0 0.0
    %3425 = vmatpush1.msra.mxu0 %v3407
    %3426 = vmatprep.subr.mxu0 0.0
    %3427 = vmatpush1.msra.mxu0 %v3409
    %3428 = vmatprep.subr.mxu0 0.0
    %3429 = vmatpush1.msra.mxu0 0.0
    %3430 = vmatprep.subr.mxu0 0.0
    %3431 = vmatpush1.msra.mxu0 0.0
    %3432 = vmatprep.subr.mxu0 0.0
    %3433 = vmatpush1.msra.mxu0 0.0
    %3434 = vmatprep.subr.mxu0 0.0
    %3435 = vmatpush1.msra.mxu0 0.0
    %3436 = vmatprep.subr.mxu0 0.0
    %3437 = vmatpush1.msra.mxu0 0.0
    %3438 = vmatprep.subr.mxu0 0.0
    %3439 = vmatpush1.msra.mxu0 0.0
    %3440 = vmatprep.subr.mxu0 0.0
    %3441 = vmatpush1.msra.mxu0 0.0
    %3442 = vmatprep.subr.mxu0 0.0
    %3443 = vmatpush1.msra.mxu0 0.0
    %3444 = vmatprep.subr.mxu0 0.0
    %3445 = vmatpush1.msra.mxu0 0.0
    %3446 = vmatprep.subr.mxu0 0.0
    %3447 = vmatpush1.msra.mxu0 0.0
    %3448 = vmatprep.subr.mxu0 0.0
    %3449 = vmatpush1.msra.mxu0 0.0
    %3450 = vmatprep.subr.mxu0 0.0
    %3451 = vmatpush1.msra.mxu0 0.0
    %3452 = vmatprep.subr.mxu0 0.0
    %3453 = vmatpush1.msra.mxu0 0.0
    %3454 = vmatprep.subr.mxu0 0.0
    %3455 = vmatpush1.msra.mxu0 0.0
    %3456 = vmatprep.subr.mxu0 0.0
    %3457 = vmatpush1.msra.mxu0 0.0
    %3458 = vmatprep.subr.mxu0 0.0
    %3459 = vmatpush1.msra.mxu0 0.0
    %3460 = vmatprep.subr.mxu0 0.0
    %3461 = vmatpush1.msra.mxu0 0.0
    %3462 = vmatprep.subr.mxu0 0.0
    %3463 = vmatpush1.msra.mxu0 0.0
    %3464 = vmatprep.subr.mxu0 0.0
    %3465 = vmatpush1.msra.mxu0 0.0
    %3466 = vmatprep.subr.mxu0 0.0
    %3467 = vmatpush1.msra.mxu0 0.0
    %3468 = vmatprep.subr.mxu0 0.0
    %3469 = vmatpush1.msra.mxu0 0.0
    %3470 = vmatprep.subr.mxu0 0.0
    %3471 = vmatpush1.msra.mxu0 0.0
    %3472 = vmatprep.subr.mxu0 0.0
    %3473 = vmatpush1.msra.mxu0 0.0
    %3474 = vmatprep.subr.mxu0 0.0
    %3475 = vmatpush1.msra.mxu0 0.0
    %3476 = vmatprep.subr.mxu0 0.0
    %3477 = vmatpush1.msra.mxu0 0.0
    %3478 = vmatprep.subr.mxu0 0.0
    %3479 = vmatpush1.msra.mxu0 0.0
    %3480 = vmatprep.subr.mxu0 0.0
    %3481 = vmatpush1.msra.mxu0 0.0
    %3482 = vmatprep.subr.mxu0 0.0
    %3483 = vmatpush1.msra.mxu0 0.0
    %3484 = vmatprep.mubr.f32.mxu0 0.0
    %3485 = vmatmul.mubr.f32.gmra.mrb[0].mxu0 %v3415
    %v3486 = vpop.f32.mrb[0].mxu0
    %v3487 = vadd.f32 0.0, %v3486
    %v3488 = vpop.f32.mrb[0].mxu0
    %3489 = vmatprep.mubr.f32.mxu0 0.0
    %3490 = vmatmul.mubr.f32.gmra.mrb[0].mxu0 %v3418
    %v3491 = vpop.f32.mrb[0].mxu0
    %v3492 = vadd.f32 0.0, %v3491
    %v3493 = vpop.f32.mrb[0].mxu0
    %3494 = vdwg.mxu0
    %3495 = vrot.lane.b32.xlu0 %v2657, 32
    %v3496 = vpop.permute.xlu0 %3495
    %3497 = vrot.lane.b32.xlu0 %v2662, 32
    %v3498 = vpop.permute.xlu0 %3497
    %3499 = vrot.lane.b32.xlu0 %v2748, 32
    %v3500 = vpop.permute.xlu0 %3499
    %3501 = vrot.lane.b32.xlu0 %v2753, 32
    %v3502 = vpop.permute.xlu0 %3501
    %3503 = vrot.lane.b32.xlu0 %v2758, 32
    %v3504 = vpop.permute.xlu0 %3503
    %3505 = vrot.lane.b32.xlu0 %v2763, 32
    %v3506 = vpop.permute.xlu0 %3505
    %v3507 = vsel %vm448, %v3496, 0
    %v3509 = vsel %vm448, %v3498, 0
    %v3511 = vsel %vm448, %v3500, 0
    %v3513 = vsel %vm448, %v3502, 0
    %v3515 = vsel %vm448, %v3504, 0
    %v3517 = vsel %vm448, %v3506, 0
    %3519 = vmatprep.subr.mxu0 0.0
    %3520 = vmatpush1.xpose.msra.mxu0 %v3511
    %3521 = vmatprep.subr.mxu0 0.0
    %3522 = vmatpush1.xpose.msra.mxu0 %v3513
    %3523 = vmatprep.subr.mxu0 0.0
    %3524 = vmatpush1.xpose.msra.mxu0 %v3515
    %3525 = vmatprep.subr.mxu0 0.0
    %3526 = vmatpush1.xpose.msra.mxu0 %v3517
    %3527 = vmatprep.subr.mxu0 0.0
    %3528 = vmatpush1.xpose.msra.mxu0 0.0
    %3529 = vmatprep.subr.mxu0 0.0
    %3530 = vmatpush1.xpose.msra.mxu0 0.0
    %3531 = vmatprep.subr.mxu0 0.0
    %3532 = vmatpush1.xpose.msra.mxu0 0.0
    %3533 = vmatprep.subr.mxu0 0.0
    %3534 = vmatpush1.xpose.msra.mxu0 0.0
    %3535 = vmatprep.subr.mxu0 0.0
    %3536 = vmatpush1.xpose.msra.mxu0 0.0
    %3537 = vmatprep.subr.mxu0 0.0
    %3538 = vmatpush1.xpose.msra.mxu0 0.0
    %3539 = vmatprep.subr.mxu0 0.0
    %3540 = vmatpush1.xpose.msra.mxu0 0.0
    %3541 = vmatprep.subr.mxu0 0.0
    %3542 = vmatpush1.xpose.msra.mxu0 0.0
    %3543 = vmatprep.subr.mxu0 0.0
    %3544 = vmatpush1.xpose.msra.mxu0 0.0
    %3545 = vmatprep.subr.mxu0 0.0
    %3546 = vmatpush1.xpose.msra.mxu0 0.0
    %3547 = vmatprep.subr.mxu0 0.0
    %3548 = vmatpush1.xpose.msra.mxu0 0.0
    %3549 = vmatprep.subr.mxu0 0.0
    %3550 = vmatpush1.xpose.msra.mxu0 0.0
    %3551 = vmatprep.subr.mxu0 0.0
    %3552 = vmatpush1.xpose.msra.mxu0 0.0
    %3553 = vmatprep.subr.mxu0 0.0
    %3554 = vmatpush1.xpose.msra.mxu0 0.0
    %3555 = vmatprep.subr.mxu0 0.0
    %3556 = vmatpush1.xpose.msra.mxu0 0.0
    %3557 = vmatprep.subr.mxu0 0.0
    %3558 = vmatpush1.xpose.msra.mxu0 0.0
    %3559 = vmatprep.subr.mxu0 0.0
    %3560 = vmatpush1.xpose.msra.mxu0 0.0
    %3561 = vmatprep.subr.mxu0 0.0
    %3562 = vmatpush1.xpose.msra.mxu0 0.0
    %3563 = vmatprep.subr.mxu0 0.0
    %3564 = vmatpush1.xpose.msra.mxu0 0.0
    %3565 = vmatprep.subr.mxu0 0.0
    %3566 = vmatpush1.xpose.msra.mxu0 0.0
    %3567 = vmatprep.subr.mxu0 0.0
    %3568 = vmatpush1.xpose.msra.mxu0 0.0
    %3569 = vmatprep.subr.mxu0 0.0
    %3570 = vmatpush1.xpose.msra.mxu0 0.0
    %3571 = vmatprep.subr.mxu0 0.0
    %3572 = vmatpush1.xpose.msra.mxu0 0.0
    %3573 = vmatprep.subr.mxu0 0.0
    %3574 = vmatpush1.xpose.msra.mxu0 0.0
    %3575 = vmatprep.subr.mxu0 0.0
    %3576 = vmatpush1.xpose.msra.mxu0 0.0
    %3577 = vmatprep.subr.mxu0 0.0
    %3578 = vmatpush1.xpose.msra.mxu0 0.0
    %3579 = vmatprep.subr.mxu0 0.0
    %3580 = vmatpush1.xpose.msra.mxu0 0.0
    %3581 = vmatprep.subr.mxu0 0.0
    %3582 = vmatpush1.xpose.msra.mxu0 0.0
    %3583 = vmatprep.mubr.f32.mxu0 0.0
    %3584 = vmatmul.mubr.f32.gmra.mrb[0].mxu0 %v3507
    %v3585 = vpop.f32.mrb[0].mxu0
    %v3586 = vadd.f32 0.0, %v3585
    %v3587 = vpop.f32.mrb[0].mxu0
    %3588 = vmatprep.mubr.f32.mxu0 0.0
    %3589 = vmatmul.mubr.f32.gmra.mrb[0].mxu0 %v3509
    %v3590 = vpop.f32.mrb[0].mxu0
    %v3591 = vadd.f32 0.0, %v3590
    %v3592 = vpop.f32.mrb[0].mxu0
    %3593 = vdwg.mxu0
    %v3594 = vmul.f32 %v3586, 0.17677669
    %v3595 = vmul.f32 %v3591, 0.17677669
    %v3596 = vsel %vm440, %v3594, -1e+30
    %v3597 = vsel %vm441, %v3595, -1e+30
    %v3598 = vsel %vm448, %v3596, -inf
    %3599 = vmax.xlane.f32.xlu0 %v3598
    %v3600 = vpop.xlane.xlu0 %3599
    %v3601 = vsel %vm448, %v3597, -inf
    %3602 = vmax.xlane.f32.xlu0 %v3601
    %v3603 = vpop.xlane.xlu0 %3602
    %v3604 = vsub.f32 %v3596, %v3600
    %v3605 = vsub.f32 %v3597, %v3603
    %v3606 = vmul.f32 %v3604, 1.442695
    %v3607 = vpow.pop %v3606
    %v3608 = vmul.f32 %v3605, 1.442695
    %v3609 = vpow.pop %v3608
    %v3610 = vsel %vm448, %v3607, 0.0
    %3611 = vadd.xlane.f32.xlu0 %v3610
    %v3612 = vpop.xlane.xlu0 %3611
    %v3613 = vsel %vm448, %v3609, 0.0
    %3614 = vadd.xlane.f32.xlu0 %v3613
    %v3615 = vpop.xlane.xlu0 %3614
    %v3616 = vrcp.pop %v3612
    %v3617 = vrcp.pop %v3615
    %v3618 = vmul.f32 %v3607, %v3616
    %v3619 = vmul.f32 %v3609, %v3617
    %3620 = vrot.lane.b32.xlu0 %v2837, 32
    %v3621 = vpop.permute.xlu0 %3620
    %3622 = vrot.lane.b32.xlu0 %v2842, 32
    %v3623 = vpop.permute.xlu0 %3622
    %3624 = vrot.lane.b32.xlu0 %v2847, 32
    %v3625 = vpop.permute.xlu0 %3624
    %3626 = vrot.lane.b32.xlu0 %v2852, 32
    %v3627 = vpop.permute.xlu0 %3626
    %v3633 = vsel %vm448, %v3618, 0
    %v3636 = vsel %vm448, %v3619, 0
    %3638 = vmatprep.subr.mxu0 0.0
    %3639 = vmatpush1.msra.mxu0 %v3621
    %3640 = vmatprep.subr.mxu0 0.0
    %3641 = vmatpush1.msra.mxu0 %v3623
    %3642 = vmatprep.subr.mxu0 0.0
    %3643 = vmatpush1.msra.mxu0 %v3625
    %3644 = vmatprep.subr.mxu0 0.0
    %3645 = vmatpush1.msra.mxu0 %v3627
    %3646 = vmatprep.subr.mxu0 0.0
    %3647 = vmatpush1.msra.mxu0 0.0
    %3648 = vmatprep.subr.mxu0 0.0
    %3649 = vmatpush1.msra.mxu0 0.0
    %3650 = vmatprep.subr.mxu0 0.0
    %3651 = vmatpush1.msra.mxu0 0.0
    %3652 = vmatprep.subr.mxu0 0.0
    %3653 = vmatpush1.msra.mxu0 0.0
    %3654 = vmatprep.subr.mxu0 0.0
    %3655 = vmatpush1.msra.mxu0 0.0
    %3656 = vmatprep.subr.mxu0 0.0
    %3657 = vmatpush1.msra.mxu0 0.0
    %3658 = vmatprep.subr.mxu0 0.0
    %3659 = vmatpush1.msra.mxu0 0.0
    %3660 = vmatprep.subr.mxu0 0.0
    %3661 = vmatpush1.msra.mxu0 0.0
    %3662 = vmatprep.subr.mxu0 0.0
    %3663 = vmatpush1.msra.mxu0 0.0
    %3664 = vmatprep.subr.mxu0 0.0
    %3665 = vmatpush1.msra.mxu0 0.0
    %3666 = vmatprep.subr.mxu0 0.0
    %3667 = vmatpush1.msra.mxu0 0.0
    %3668 = vmatprep.subr.mxu0 0.0
    %3669 = vmatpush1.msra.mxu0 0.0
    %3670 = vmatprep.subr.mxu0 0.0
    %3671 = vmatpush1.msra.mxu0 0.0
    %3672 = vmatprep.subr.mxu0 0.0
    %3673 = vmatpush1.msra.mxu0 0.0
    %3674 = vmatprep.subr.mxu0 0.0
    %3675 = vmatpush1.msra.mxu0 0.0
    %3676 = vmatprep.subr.mxu0 0.0
    %3677 = vmatpush1.msra.mxu0 0.0
    %3678 = vmatprep.subr.mxu0 0.0
    %3679 = vmatpush1.msra.mxu0 0.0
    %3680 = vmatprep.subr.mxu0 0.0
    %3681 = vmatpush1.msra.mxu0 0.0
    %3682 = vmatprep.subr.mxu0 0.0
    %3683 = vmatpush1.msra.mxu0 0.0
    %3684 = vmatprep.subr.mxu0 0.0
    %3685 = vmatpush1.msra.mxu0 0.0
    %3686 = vmatprep.subr.mxu0 0.0
    %3687 = vmatpush1.msra.mxu0 0.0
    %3688 = vmatprep.subr.mxu0 0.0
    %3689 = vmatpush1.msra.mxu0 0.0
    %3690 = vmatprep.subr.mxu0 0.0
    %3691 = vmatpush1.msra.mxu0 0.0
    %3692 = vmatprep.subr.mxu0 0.0
    %3693 = vmatpush1.msra.mxu0 0.0
    %3694 = vmatprep.subr.mxu0 0.0
    %3695 = vmatpush1.msra.mxu0 0.0
    %3696 = vmatprep.subr.mxu0 0.0
    %3697 = vmatpush1.msra.mxu0 0.0
    %3698 = vmatprep.subr.mxu0 0.0
    %3699 = vmatpush1.msra.mxu0 0.0
    %3700 = vmatprep.subr.mxu0 0.0
    %3701 = vmatpush1.msra.mxu0 0.0
    %3702 = vmatprep.mubr.f32.mxu0 0.0
    %3703 = vmatmul.mubr.f32.gmra.mrb[0].mxu0 %v3633
    %v3704 = vpop.f32.mrb[0].mxu0
    %v3705 = vadd.f32 0.0, %v3704
    %v3706 = vpop.f32.mrb[0].mxu0
    %3707 = vmatprep.mubr.f32.mxu0 0.0
    %3708 = vmatmul.mubr.f32.gmra.mrb[0].mxu0 %v3636
    %v3709 = vpop.f32.mrb[0].mxu0
    %v3710 = vadd.f32 0.0, %v3709
    %v3711 = vpop.f32.mrb[0].mxu0
    %3712 = vdwg.mxu0
    %3715 = vrot.lane.b32.xlu0 %v3269, 32
    %v3716 = vpop.permute.xlu0 %3715
    %3717 = vrot.lane.b32.xlu0 %v3274, 32
    %v3718 = vpop.permute.xlu0 %3717
    %3723 = vrot.lane.b32.xlu0 %v3487, 64
    %v3724 = vpop.permute.xlu0 %3723
    %3725 = vrot.lane.b32.xlu0 %v3492, 64
    %v3726 = vpop.permute.xlu0 %3725
    %3731 = vrot.lane.b32.xlu0 %v3705, 96
    %v3732 = vpop.permute.xlu0 %3731
    %3733 = vrot.lane.b32.xlu0 %v3710, 96
    %v3734 = vpop.permute.xlu0 %3733
    %v3737 = vsel %vm448, %v3047, %v3716
    %v3738 = vsel %vm448, %v3052, %v3718
    %v3739 = vsel %vm1872, %v3737, %v3724
    %v3740 = vsel %vm1872, %v3738, %v3726
    %v3741 = vsel %vm1877, %v3739, %v3732
    %v3742 = vsel %vm1877, %v3740, %v3734
    %v3743 = vld [vmem:[%s45] sm:$0xff]
    %v3744 = vld [vmem:[%s45 + $0x8] sm:$0xff]
    %v3745 = vld [vmem:[%s45 + $0x10] sm:$0xff]
    %v3746 = vld [vmem:[%s45 + $0x18] sm:$0xff]
    %v3747 = vld [vmem:[%s45 + $0x20] sm:$0xff]
    %v3748 = vld [vmem:[%s45 + $0x28] sm:$0xff]
    %v3749 = vld [vmem:[%s45 + $0x30] sm:$0xff]
    %v3750 = vld [vmem:[%s45 + $0x38] sm:$0xff]
    %v3751 = vld [vmem:[%s45 + $0x40] sm:$0xff]
    %v3752 = vld [vmem:[%s45 + $0x48] sm:$0xff]
    %v3753 = vld [vmem:[%s45 + $0x50] sm:$0xff]
    %v3754 = vld [vmem:[%s45 + $0x58] sm:$0xff]
    %v3755 = vld [vmem:[%s45 + $0x60] sm:$0xff]
    %v3756 = vld [vmem:[%s45 + $0x68] sm:$0xff]
    %v3757 = vld [vmem:[%s45 + $0x70] sm:$0xff]
    %v3758 = vld [vmem:[%s45 + $0x78] sm:$0xff]
    %3759 = vmatprep.subr.mxu0 0.0
    %3760 = vmatpush1.msra.mxu0 %v3743
    %3761 = vmatprep.subr.mxu0 0.0
    %3762 = vmatpush1.msra.mxu0 %v3744
    %3763 = vmatprep.subr.mxu0 0.0
    %3764 = vmatpush1.msra.mxu0 %v3745
    %3765 = vmatprep.subr.mxu0 0.0
    %3766 = vmatpush1.msra.mxu0 %v3746
    %3767 = vmatprep.subr.mxu0 0.0
    %3768 = vmatpush1.msra.mxu0 %v3747
    %3769 = vmatprep.subr.mxu0 0.0
    %3770 = vmatpush1.msra.mxu0 %v3748
    %3771 = vmatprep.subr.mxu0 0.0
    %3772 = vmatpush1.msra.mxu0 %v3749
    %3773 = vmatprep.subr.mxu0 0.0
    %3774 = vmatpush1.msra.mxu0 %v3750
    %3775 = vmatprep.subr.mxu0 0.0
    %3776 = vmatpush1.msra.mxu0 %v3751
    %3777 = vmatprep.subr.mxu0 0.0
    %3778 = vmatpush1.msra.mxu0 %v3752
    %3779 = vmatprep.subr.mxu0 0.0
    %3780 = vmatpush1.msra.mxu0 %v3753
    %3781 = vmatprep.subr.mxu0 0.0
    %3782 = vmatpush1.msra.mxu0 %v3754
    %3783 = vmatprep.subr.mxu0 0.0
    %3784 = vmatpush1.msra.mxu0 %v3755
    %3785 = vmatprep.subr.mxu0 0.0
    %3786 = vmatpush1.msra.mxu0 %v3756
    %3787 = vmatprep.subr.mxu0 0.0
    %3788 = vmatpush1.msra.mxu0 %v3757
    %3789 = vmatprep.subr.mxu0 0.0
    %3790 = vmatpush1.msra.mxu0 %v3758
    %3791 = vmatprep.subr.mxu0 0.0
    %3792 = vmatpush1.msra.mxu0 0.0
    %3793 = vmatprep.subr.mxu0 0.0
    %3794 = vmatpush1.msra.mxu0 0.0
    %3795 = vmatprep.subr.mxu0 0.0
    %3796 = vmatpush1.msra.mxu0 0.0
    %3797 = vmatprep.subr.mxu0 0.0
    %3798 = vmatpush1.msra.mxu0 0.0
    %3799 = vmatprep.subr.mxu0 0.0
    %3800 = vmatpush1.msra.mxu0 0.0
    %3801 = vmatprep.subr.mxu0 0.0
    %3802 = vmatpush1.msra.mxu0 0.0
    %3803 = vmatprep.subr.mxu0 0.0
    %3804 = vmatpush1.msra.mxu0 0.0
    %3805 = vmatprep.subr.mxu0 0.0
    %3806 = vmatpush1.msra.mxu0 0.0
    %3807 = vmatprep.subr.mxu0 0.0
    %3808 = vmatpush1.msra.mxu0 0.0
    %3809 = vmatprep.subr.mxu0 0.0
    %3810 = vmatpush1.msra.mxu0 0.0
    %3811 = vmatprep.subr.mxu0 0.0
    %3812 = vmatpush1.msra.mxu0 0.0
    %3813 = vmatprep.subr.mxu0 0.0
    %3814 = vmatpush1.msra.mxu0 0.0
    %3815 = vmatprep.subr.mxu0 0.0
    %3816 = vmatpush1.msra.mxu0 0.0
    %3817 = vmatprep.subr.mxu0 0.0
    %3818 = vmatpush1.msra.mxu0 0.0
    %3819 = vmatprep.subr.mxu0 0.0
    %3820 = vmatpush1.msra.mxu0 0.0
    %3821 = vmatprep.subr.mxu0 0.0
    %3822 = vmatpush1.msra.mxu0 0.0
    %3823 = vmatprep.mubr.f32.mxu0 0.0
    %3824 = vmatmul.mubr.f32.gmra.mrb[0].mxu0 %v3741
    %v3825 = vpop.f32.mrb[0].mxu0
    %v3826 = vadd.f32 0.0, %v3825
    %v3827 = vpop.f32.mrb[0].mxu0
    %3828 = vmatprep.mubr.f32.mxu0 0.0
    %3829 = vmatmul.mubr.f32.gmra.mrb[0].mxu0 %v3742
    %v3830 = vpop.f32.mrb[0].mxu0
    %v3831 = vadd.f32 0.0, %v3830
    %v3832 = vpop.f32.mrb[0].mxu0
    %3833 = vdwg.mxu0
    %v3834 = vadd.f32 %v304, %v3826
    %v3835 = vadd.f32 %v305, %v3831
    %v3836 = vld [vmem:[%s55] sm:$0x1]
    %v3837 = vld [vmem:[%s57] sm:$0x1]
    %v3838 = vsel %vm448, %v3834, 0.0
    %3839 = vadd.xlane.f32.xlu0 %v3838
    %v3840 = vpop.xlane.xlu0 %3839
    %v3841 = vsel %vm448, %v3835, 0.0
    %3842 = vadd.xlane.f32.xlu0 %v3841
    %v3843 = vpop.xlane.xlu0 %3842
    %v3844 = vmul.f32 %v3840, %v2001
    %v3845 = vmul.f32 %v3843, %v2001
    %v3846 = vsub.f32 %v3834, %v3844
    %v3847 = vsub.f32 %v3835, %v3845
    %v3848 = vmul.f32 %v3846, %v3846
    %v3849 = vmul.f32 %v3847, %v3847
    %v3850 = vsel %vm448, %v3848, 0.0
    %3851 = vadd.xlane.f32.xlu0 %v3850
    %v3852 = vpop.xlane.xlu0 %3851
    %v3853 = vsel %vm448, %v3849, 0.0
    %3854 = vadd.xlane.f32.xlu0 %v3853
    %v3855 = vpop.xlane.xlu0 %3854
    %v3856 = vmul.f32 %v3852, %v2001
    %v3857 = vmul.f32 %v3855, %v2001
    %v3858 = vadd.f32 %v3856, 1e-05
    %v3859 = vadd.f32 %v3857, 1e-05
    %v3860 = vrsqrt.pop %v3858
    %v3861 = vrsqrt.pop %v3859
    %v3862 = vmul.f32 %v3846, %v3860
    %v3863 = vmul.f32 %v3847, %v3861
    %v3865 = vlaneseq
    %v3866 = vshrl.u32 %v3865, 7
    %v3867 = vsub.s32 0, %v3866
    %v3868 = vrot.slane %v3836, %v3867
    %v3870 = vmul.f32 %v3862, %v3868
    %v3871 = vmul.f32 %v3863, %v3868
    %v3873 = vlaneseq
    %v3874 = vshrl.u32 %v3873, 7
    %v3875 = vsub.s32 0, %v3874
    %v3876 = vrot.slane %v3837, %v3875
    %v3878 = vadd.f32 %v3870, %v3876
    %v3879 = vadd.f32 %v3871, %v3876
    %v3880 = vld [vmem:[%s47] sm:$0xff]
    %v3881 = vld [vmem:[%s47 + $0x8] sm:$0xff]
    %v3882 = vld [vmem:[%s47 + $0x10] sm:$0xff]
    %v3883 = vld [vmem:[%s47 + $0x18] sm:$0xff]
    %v3884 = vld [vmem:[%s49] sm:$0x1]
    %v3886 = vlaneseq
    %v3887 = vshrl.u32 %v3886, 7
    %v3888 = vsub.s32 0, %v3887
    %v3889 = vrot.slane %v3884, %v3888
    %v3892 = vsel %vm448, %v3878, 0
    %v3895 = vsel %vm448, %v3879, 0
    %3897 = vmatprep.subr.mxu0 0.0
    %3898 = vmatpush1.msra.mxu0 %v3880
    %3899 = vmatprep.subr.mxu0 0.0
    %3900 = vmatpush1.msra.mxu0 %v3881
    %3901 = vmatprep.subr.mxu0 0.0
    %3902 = vmatpush1.msra.mxu0 %v3882
    %3903 = vmatprep.subr.mxu0 0.0
    %3904 = vmatpush1.msra.mxu0 %v3883
    %3905 = vmatprep.subr.mxu0 0.0
    %3906 = vmatpush1.msra.mxu0 0.0
    %3907 = vmatprep.subr.mxu0 0.0
    %3908 = vmatpush1.msra.mxu0 0.0
    %3909 = vmatprep.subr.mxu0 0.0
    %3910 = vmatpush1.msra.mxu0 0.0
    %3911 = vmatprep.subr.mxu0 0.0
    %3912 = vmatpush1.msra.mxu0 0.0
    %3913 = vmatprep.subr.mxu0 0.0
    %3914 = vmatpush1.msra.mxu0 0.0
    %3915 = vmatprep.subr.mxu0 0.0
    %3916 = vmatpush1.msra.mxu0 0.0
    %3917 = vmatprep.subr.mxu0 0.0
    %3918 = vmatpush1.msra.mxu0 0.0
    %3919 = vmatprep.subr.mxu0 0.0
    %3920 = vmatpush1.msra.mxu0 0.0
    %3921 = vmatprep.subr.mxu0 0.0
    %3922 = vmatpush1.msra.mxu0 0.0
    %3923 = vmatprep.subr.mxu0 0.0
    %3924 = vmatpush1.msra.mxu0 0.0
    %3925 = vmatprep.subr.mxu0 0.0
    %3926 = vmatpush1.msra.mxu0 0.0
    %3927 = vmatprep.subr.mxu0 0.0
    %3928 = vmatpush1.msra.mxu0 0.0
    %3929 = vmatprep.subr.mxu0 0.0
    %3930 = vmatpush1.msra.mxu0 0.0
    %3931 = vmatprep.subr.mxu0 0.0
    %3932 = vmatpush1.msra.mxu0 0.0
    %3933 = vmatprep.subr.mxu0 0.0
    %3934 = vmatpush1.msra.mxu0 0.0
    %3935 = vmatprep.subr.mxu0 0.0
    %3936 = vmatpush1.msra.mxu0 0.0
    %3937 = vmatprep.subr.mxu0 0.0
    %3938 = vmatpush1.msra.mxu0 0.0
    %3939 = vmatprep.subr.mxu0 0.0
    %3940 = vmatpush1.msra.mxu0 0.0
    %3941 = vmatprep.subr.mxu0 0.0
    %3942 = vmatpush1.msra.mxu0 0.0
    %3943 = vmatprep.subr.mxu0 0.0
    %3944 = vmatpush1.msra.mxu0 0.0
    %3945 = vmatprep.subr.mxu0 0.0
    %3946 = vmatpush1.msra.mxu0 0.0
    %3947 = vmatprep.subr.mxu0 0.0
    %3948 = vmatpush1.msra.mxu0 0.0
    %3949 = vmatprep.subr.mxu0 0.0
    %3950 = vmatpush1.msra.mxu0 0.0
    %3951 = vmatprep.subr.mxu0 0.0
    %3952 = vmatpush1.msra.mxu0 0.0
    %3953 = vmatprep.subr.mxu0 0.0
    %3954 = vmatpush1.msra.mxu0 0.0
    %3955 = vmatprep.subr.mxu0 0.0
    %3956 = vmatpush1.msra.mxu0 0.0
    %3957 = vmatprep.subr.mxu0 0.0
    %3958 = vmatpush1.msra.mxu0 0.0
    %3959 = vmatprep.subr.mxu0 0.0
    %3960 = vmatpush1.msra.mxu0 0.0
    %3961 = vmatprep.mubr.f32.mxu0 0.0
    %3962 = vmatmul.mubr.f32.gmra.mrb[0].mxu0 %v3892
    %v3963 = vpop.f32.mrb[0].mxu0
    %v3964 = vadd.f32 %v3889, %v3963
    %v3965 = vpop.f32.mrb[0].mxu0
    %3966 = vmatprep.mubr.f32.mxu0 0.0
    %3967 = vmatmul.mubr.f32.gmra.mrb[0].mxu0 %v3895
    %v3968 = vpop.f32.mrb[0].mxu0
    %v3969 = vadd.f32 %v3889, %v3968
    %v3970 = vpop.f32.mrb[0].mxu0
    %3971 = vdwg.mxu0
    %v3972 = vmax.f32 %v3964, 0.0
    %v3973 = vmax.f32 %v3969, 0.0
    %v3974 = vld [vmem:[%s51] sm:$0xff]
    %v3975 = vld [vmem:[%s51 + $0x8] sm:$0xff]
    %v3976 = vld [vmem:[%s51 + $0x10] sm:$0xff]
    %v3977 = vld [vmem:[%s51 + $0x18] sm:$0xff]
    %v3978 = vld [vmem:[%s53] sm:$0x1]
    %v3980 = vlaneseq
    %v3981 = vshrl.u32 %v3980, 7
    %v3982 = vsub.s32 0, %v3981
    %v3983 = vrot.slane %v3978, %v3982
    %v3986 = vsel %vm448, %v3972, 0
    %v3989 = vsel %vm448, %v3973, 0
    %3991 = vmatprep.subr.mxu0 0.0
    %3992 = vmatpush1.msra.mxu0 %v3974
    %3993 = vmatprep.subr.mxu0 0.0
    %3994 = vmatpush1.msra.mxu0 %v3975
    %3995 = vmatprep.subr.mxu0 0.0
    %3996 = vmatpush1.msra.mxu0 %v3976
    %3997 = vmatprep.subr.mxu0 0.0
    %3998 = vmatpush1.msra.mxu0 %v3977
    %3999 = vmatprep.subr.mxu0 0.0
    %4000 = vmatpush1.msra.mxu0 0.0
    %4001 = vmatprep.subr.mxu0 0.0
    %4002 = vmatpush1.msra.mxu0 0.0
    %4003 = vmatprep.subr.mxu0 0.0
    %4004 = vmatpush1.msra.mxu0 0.0
    %4005 = vmatprep.subr.mxu0 0.0
    %4006 = vmatpush1.msra.mxu0 0.0
    %4007 = vmatprep.subr.mxu0 0.0
    %4008 = vmatpush1.msra.mxu0 0.0
    %4009 = vmatprep.subr.mxu0 0.0
    %4010 = vmatpush1.msra.mxu0 0.0
    %4011 = vmatprep.subr.mxu0 0.0
    %4012 = vmatpush1.msra.mxu0 0.0
    %4013 = vmatprep.subr.mxu0 0.0
    %4014 = vmatpush1.msra.mxu0 0.0
    %4015 = vmatprep.subr.mxu0 0.0
    %4016 = vmatpush1.msra.mxu0 0.0
    %4017 = vmatprep.subr.mxu0 0.0
    %4018 = vmatpush1.msra.mxu0 0.0
    %4019 = vmatprep.subr.mxu0 0.0
    %4020 = vmatpush1.msra.mxu0 0.0
    %4021 = vmatprep.subr.mxu0 0.0
    %4022 = vmatpush1.msra.mxu0 0.0
    %4023 = vmatprep.subr.mxu0 0.0
    %4024 = vmatpush1.msra.mxu0 0.0
    %4025 = vmatprep.subr.mxu0 0.0
    %4026 = vmatpush1.msra.mxu0 0.0
    %4027 = vmatprep.subr.mxu0 0.0
    %4028 = vmatpush1.msra.mxu0 0.0
    %4029 = vmatprep.subr.mxu0 0.0
    %4030 = vmatpush1.msra.mxu0 0.0
    %4031 = vmatprep.subr.mxu0 0.0
    %4032 = vmatpush1.msra.mxu0 0.0
    %4033 = vmatprep.subr.mxu0 0.0
    %4034 = vmatpush1.msra.mxu0 0.0
    %4035 = vmatprep.subr.mxu0 0.0
    %4036 = vmatpush1.msra.mxu0 0.0
    %4037 = vmatprep.subr.mxu0 0.0
    %4038 = vmatpush1.msra.mxu0 0.0
    %4039 = vmatprep.subr.mxu0 0.0
    %4040 = vmatpush1.msra.mxu0 0.0
    %4041 = vmatprep.subr.mxu0 0.0
    %4042 = vmatpush1.msra.mxu0 0.0
    %4043 = vmatprep.subr.mxu0 0.0
    %4044 = vmatpush1.msra.mxu0 0.0
    %4045 = vmatprep.subr.mxu0 0.0
    %4046 = vmatpush1.msra.mxu0 0.0
    %4047 = vmatprep.subr.mxu0 0.0
    %4048 = vmatpush1.msra.mxu0 0.0
    %4049 = vmatprep.subr.mxu0 0.0
    %4050 = vmatpush1.msra.mxu0 0.0
    %4051 = vmatprep.subr.mxu0 0.0
    %4052 = vmatpush1.msra.mxu0 0.0
    %4053 = vmatprep.subr.mxu0 0.0
    %4054 = vmatpush1.msra.mxu0 0.0
    %4055 = vmatprep.mubr.f32.mxu0 0.0
    %4056 = vmatmul.mubr.f32.gmra.mrb[0].mxu0 %v3986
    %v4057 = vpop.f32.mrb[0].mxu0
    %v4058 = vadd.f32 %v3983, %v4057
    %v4059 = vpop.f32.mrb[0].mxu0
    %4060 = vmatprep.mubr.f32.mxu0 0.0
    %4061 = vmatmul.mubr.f32.gmra.mrb[0].mxu0 %v3989
    %v4062 = vpop.f32.mrb[0].mxu0
    %v4063 = vadd.f32 %v3983, %v4062
    %v4064 = vpop.f32.mrb[0].mxu0
    %4065 = vdwg.mxu0
    %v4066 = vadd.f32 %v3878, %v4058
    %v4067 = vadd.f32 %v3879, %v4063
    %v4068 = vld [vmem:[%s59] sm:$0x1]
    %v4069 = vld [vmem:[%s61] sm:$0x1]
    %v4070 = vsel %vm448, %v4066, 0.0
    %4071 = vadd.xlane.f32.xlu0 %v4070
    %v4072 = vpop.xlane.xlu0 %4071
    %v4073 = vsel %vm448, %v4067, 0.0
    %4074 = vadd.xlane.f32.xlu0 %v4073
    %v4075 = vpop.xlane.xlu0 %4074
    %v4076 = vmul.f32 %v4072, %v2001
    %v4077 = vmul.f32 %v4075, %v2001
    %v4078 = vsub.f32 %v4066, %v4076
    %v4079 = vsub.f32 %v4067, %v4077
    %v4080 = vmul.f32 %v4078, %v4078
    %v4081 = vmul.f32 %v4079, %v4079
    %v4082 = vsel %vm448, %v4080, 0.0
    %4083 = vadd.xlane.f32.xlu0 %v4082
    %v4084 = vpop.xlane.xlu0 %4083
    %v4085 = vsel %vm448, %v4081, 0.0
    %4086 = vadd.xlane.f32.xlu0 %v4085
    %v4087 = vpop.xlane.xlu0 %4086
    %v4088 = vmul.f32 %v4084, %v2001
    %v4089 = vmul.f32 %v4087, %v2001
    %v4090 = vadd.f32 %v4088, 1e-05
    %v4091 = vadd.f32 %v4089, 1e-05
    %v4092 = vrsqrt.pop %v4090
    %v4093 = vrsqrt.pop %v4091
    %v4094 = vmul.f32 %v4078, %v4092
    %v4095 = vmul.f32 %v4079, %v4093
    %v4097 = vlaneseq
    %v4098 = vshrl.u32 %v4097, 7
    %v4099 = vsub.s32 0, %v4098
    %v4100 = vrot.slane %v4068, %v4099
    %v4102 = vmul.f32 %v4094, %v4100
    %v4103 = vmul.f32 %v4095, %v4100
    %v4105 = vlaneseq
    %v4106 = vshrl.u32 %v4105, 7
    %v4107 = vsub.s32 0, %v4106
    %v4108 = vrot.slane %v4069, %v4107
    %v4110 = vadd.f32 %v4102, %v4108
    %v4111 = vadd.f32 %v4103, %v4108
    %v4112 = vld [vmem:[%s63] sm:$0xff]
    %v4113 = vld [vmem:[%s63 + $0x8] sm:$0xff]
    %v4114 = vld [vmem:[%s63 + $0x10] sm:$0xff]
    %v4115 = vld [vmem:[%s63 + $0x18] sm:$0xff]
    %v4117 = vsel %vm448, %v4110, 0
    %v4120 = vsel %vm448, %v4111, 0
    %4122 = vmatprep.subr.mxu0 0.0
    %4123 = vmatpush1.msra.mxu0 %v4112
    %4124 = vmatprep.subr.mxu0 0.0
    %4125 = vmatpush1.msra.mxu0 %v4113
    %4126 = vmatprep.subr.mxu0 0.0
    %4127 = vmatpush1.msra.mxu0 %v4114
    %4128 = vmatprep.subr.mxu0 0.0
    %4129 = vmatpush1.msra.mxu0 %v4115
    %4130 = vmatprep.subr.mxu0 0.0
    %4131 = vmatpush1.msra.mxu0 0.0
    %4132 = vmatprep.subr.mxu0 0.0
    %4133 = vmatpush1.msra.mxu0 0.0
    %4134 = vmatprep.subr.mxu0 0.0
    %4135 = vmatpush1.msra.mxu0 0.0
    %4136 = vmatprep.subr.mxu0 0.0
    %4137 = vmatpush1.msra.mxu0 0.0
    %4138 = vmatprep.subr.mxu0 0.0
    %4139 = vmatpush1.msra.mxu0 0.0
    %4140 = vmatprep.subr.mxu0 0.0
    %4141 = vmatpush1.msra.mxu0 0.0
    %4142 = vmatprep.subr.mxu0 0.0
    %4143 = vmatpush1.msra.mxu0 0.0
    %4144 = vmatprep.subr.mxu0 0.0
    %4145 = vmatpush1.msra.mxu0 0.0
    %4146 = vmatprep.subr.mxu0 0.0
    %4147 = vmatpush1.msra.mxu0 0.0
    %4148 = vmatprep.subr.mxu0 0.0
    %4149 = vmatpush1.msra.mxu0 0.0
    %4150 = vmatprep.subr.mxu0 0.0
    %4151 = vmatpush1.msra.mxu0 0.0
    %4152 = vmatprep.subr.mxu0 0.0
    %4153 = vmatpush1.msra.mxu0 0.0
    %4154 = vmatprep.subr.mxu0 0.0
    %4155 = vmatpush1.msra.mxu0 0.0
    %4156 = vmatprep.subr.mxu0 0.0
    %4157 = vmatpush1.msra.mxu0 0.0
    %4158 = vmatprep.subr.mxu0 0.0
    %4159 = vmatpush1.msra.mxu0 0.0
    %4160 = vmatprep.subr.mxu0 0.0
    %4161 = vmatpush1.msra.mxu0 0.0
    %4162 = vmatprep.subr.mxu0 0.0
    %4163 = vmatpush1.msra.mxu0 0.0
    %4164 = vmatprep.subr.mxu0 0.0
    %4165 = vmatpush1.msra.mxu0 0.0
    %4166 = vmatprep.subr.mxu0 0.0
    %4167 = vmatpush1.msra.mxu0 0.0
    %4168 = vmatprep.subr.mxu0 0.0
    %4169 = vmatpush1.msra.mxu0 0.0
    %4170 = vmatprep.subr.mxu0 0.0
    %4171 = vmatpush1.msra.mxu0 0.0
    %4172 = vmatprep.subr.mxu0 0.0
    %4173 = vmatpush1.msra.mxu0 0.0
    %4174 = vmatprep.subr.mxu0 0.0
    %4175 = vmatpush1.msra.mxu0 0.0
    %4176 = vmatprep.subr.mxu0 0.0
    %4177 = vmatpush1.msra.mxu0 0.0
    %4178 = vmatprep.subr.mxu0 0.0
    %4179 = vmatpush1.msra.mxu0 0.0
    %4180 = vmatprep.subr.mxu0 0.0
    %4181 = vmatpush1.msra.mxu0 0.0
    %4182 = vmatprep.subr.mxu0 0.0
    %4183 = vmatpush1.msra.mxu0 0.0
    %4184 = vmatprep.subr.mxu0 0.0
    %4185 = vmatpush1.msra.mxu0 0.0
    %4186 = vmatprep.mubr.f32.mxu0 0.0
    %4187 = vmatmul.mubr.f32.gmra.mrb[0].mxu0 %v4117
    %v4188 = vpop.f32.mrb[0].mxu0
    %v4189 = vadd.f32 0.0, %v4188
    %v4190 = vpop.f32.mrb[0].mxu0
    %4191 = vmatprep.mubr.f32.mxu0 0.0
    %4192 = vmatmul.mubr.f32.gmra.mrb[0].mxu0 %v4120
    %v4193 = vpop.f32.mrb[0].mxu0
    %v4194 = vadd.f32 0.0, %v4193
    %v4195 = vpop.f32.mrb[0].mxu0
    %4196 = vdwg.mxu0
    %v4197 = vld [vmem:[%s65] sm:$0xff]
    %v4198 = vld [vmem:[%s65 + $0x8] sm:$0xff]
    %v4199 = vld [vmem:[%s65 + $0x10] sm:$0xff]
    %v4200 = vld [vmem:[%s65 + $0x18] sm:$0xff]
    %4201 = vmatprep.subr.mxu0 0.0
    %4202 = vmatpush1.msra.mxu0 %v4197
    %4203 = vmatprep.subr.mxu0 0.0
    %4204 = vmatpush1.msra.mxu0 %v4198
    %4205 = vmatprep.subr.mxu0 0.0
    %4206 = vmatpush1.msra.mxu0 %v4199
    %4207 = vmatprep.subr.mxu0 0.0
    %4208 = vmatpush1.msra.mxu0 %v4200
    %4209 = vmatprep.subr.mxu0 0.0
    %4210 = vmatpush1.msra.mxu0 0.0
    %4211 = vmatprep.subr.mxu0 0.0
    %4212 = vmatpush1.msra.mxu0 0.0
    %4213 = vmatprep.subr.mxu0 0.0
    %4214 = vmatpush1.msra.mxu0 0.0
    %4215 = vmatprep.subr.mxu0 0.0
    %4216 = vmatpush1.msra.mxu0 0.0
    %4217 = vmatprep.subr.mxu0 0.0
    %4218 = vmatpush1.msra.mxu0 0.0
    %4219 = vmatprep.subr.mxu0 0.0
    %4220 = vmatpush1.msra.mxu0 0.0
    %4221 = vmatprep.subr.mxu0 0.0
    %4222 = vmatpush1.msra.mxu0 0.0
    %4223 = vmatprep.subr.mxu0 0.0
    %4224 = vmatpush1.msra.mxu0 0.0
    %4225 = vmatprep.subr.mxu0 0.0
    %4226 = vmatpush1.msra.mxu0 0.0
    %4227 = vmatprep.subr.mxu0 0.0
    %4228 = vmatpush1.msra.mxu0 0.0
    %4229 = vmatprep.subr.mxu0 0.0
    %4230 = vmatpush1.msra.mxu0 0.0
    %4231 = vmatprep.subr.mxu0 0.0
    %4232 = vmatpush1.msra.mxu0 0.0
    %4233 = vmatprep.subr.mxu0 0.0
    %4234 = vmatpush1.msra.mxu0 0.0
    %4235 = vmatprep.subr.mxu0 0.0
    %4236 = vmatpush1.msra.mxu0 0.0
    %4237 = vmatprep.subr.mxu0 0.0
    %4238 = vmatpush1.msra.mxu0 0.0
    %4239 = vmatprep.subr.mxu0 0.0
    %4240 = vmatpush1.msra.mxu0 0.0
    %4241 = vmatprep.subr.mxu0 0.0
    %4242 = vmatpush1.msra.mxu0 0.0
    %4243 = vmatprep.subr.mxu0 0.0
    %4244 = vmatpush1.msra.mxu0 0.0
    %4245 = vmatprep.subr.mxu0 0.0
    %4246 = vmatpush1.msra.mxu0 0.0
    %4247 = vmatprep.subr.mxu0 0.0
    %4248 = vmatpush1.msra.mxu0 0.0
    %4249 = vmatprep.subr.mxu0 0.0
    %4250 = vmatpush1.msra.mxu0 0.0
    %4251 = vmatprep.subr.mxu0 0.0
    %4252 = vmatpush1.msra.mxu0 0.0
    %4253 = vmatprep.subr.mxu0 0.0
    %4254 = vmatpush1.msra.mxu0 0.0
    %4255 = vmatprep.subr.mxu0 0.0
    %4256 = vmatpush1.msra.mxu0 0.0
    %4257 = vmatprep.subr.mxu0 0.0
    %4258 = vmatpush1.msra.mxu0 0.0
    %4259 = vmatprep.subr.mxu0 0.0
    %4260 = vmatpush1.msra.mxu0 0.0
    %4261 = vmatprep.subr.mxu0 0.0
    %4262 = vmatpush1.msra.mxu0 0.0
    %4263 = vmatprep.subr.mxu0 0.0
    %4264 = vmatpush1.msra.mxu0 0.0
    %4265 = vmatprep.mubr.f32.mxu0 0.0
    %4266 = vmatmul.mubr.f32.gmra.mrb[0].mxu0 %v4117
    %v4267 = vpop.f32.mrb[0].mxu0
    %v4268 = vadd.f32 0.0, %v4267
    %v4269 = vpop.f32.mrb[0].mxu0
    %4270 = vmatprep.mubr.f32.mxu0 0.0
    %4271 = vmatmul.mubr.f32.gmra.mrb[0].mxu0 %v4120
    %v4272 = vpop.f32.mrb[0].mxu0
    %v4273 = vadd.f32 0.0, %v4272
    %v4274 = vpop.f32.mrb[0].mxu0
    %4275 = vdwg.mxu0
    %v4276 = vld [vmem:[%s67] sm:$0xff]
    %v4277 = vld [vmem:[%s67 + $0x8] sm:$0xff]
    %v4278 = vld [vmem:[%s67 + $0x10] sm:$0xff]
    %v4279 = vld [vmem:[%s67 + $0x18] sm:$0xff]
    %4280 = vmatprep.subr.mxu0 0.0
    %4281 = vmatpush1.msra.mxu0 %v4276
    %4282 = vmatprep.subr.mxu0 0.0
    %4283 = vmatpush1.msra.mxu0 %v4277
    %4284 = vmatprep.subr.mxu0 0.0
    %4285 = vmatpush1.msra.mxu0 %v4278
    %4286 = vmatprep.subr.mxu0 0.0
    %4287 = vmatpush1.msra.mxu0 %v4279
    %4288 = vmatprep.subr.mxu0 0.0
    %4289 = vmatpush1.msra.mxu0 0.0
    %4290 = vmatprep.subr.mxu0 0.0
    %4291 = vmatpush1.msra.mxu0 0.0
    %4292 = vmatprep.subr.mxu0 0.0
    %4293 = vmatpush1.msra.mxu0 0.0
    %4294 = vmatprep.subr.mxu0 0.0
    %4295 = vmatpush1.msra.mxu0 0.0
    %4296 = vmatprep.subr.mxu0 0.0
    %4297 = vmatpush1.msra.mxu0 0.0
    %4298 = vmatprep.subr.mxu0 0.0
    %4299 = vmatpush1.msra.mxu0 0.0
    %4300 = vmatprep.subr.mxu0 0.0
    %4301 = vmatpush1.msra.mxu0 0.0
    %4302 = vmatprep.subr.mxu0 0.0
    %4303 = vmatpush1.msra.mxu0 0.0
    %4304 = vmatprep.subr.mxu0 0.0
    %4305 = vmatpush1.msra.mxu0 0.0
    %4306 = vmatprep.subr.mxu0 0.0
    %4307 = vmatpush1.msra.mxu0 0.0
    %4308 = vmatprep.subr.mxu0 0.0
    %4309 = vmatpush1.msra.mxu0 0.0
    %4310 = vmatprep.subr.mxu0 0.0
    %4311 = vmatpush1.msra.mxu0 0.0
    %4312 = vmatprep.subr.mxu0 0.0
    %4313 = vmatpush1.msra.mxu0 0.0
    %4314 = vmatprep.subr.mxu0 0.0
    %4315 = vmatpush1.msra.mxu0 0.0
    %4316 = vmatprep.subr.mxu0 0.0
    %4317 = vmatpush1.msra.mxu0 0.0
    %4318 = vmatprep.subr.mxu0 0.0
    %4319 = vmatpush1.msra.mxu0 0.0
    %4320 = vmatprep.subr.mxu0 0.0
    %4321 = vmatpush1.msra.mxu0 0.0
    %4322 = vmatprep.subr.mxu0 0.0
    %4323 = vmatpush1.msra.mxu0 0.0
    %4324 = vmatprep.subr.mxu0 0.0
    %4325 = vmatpush1.msra.mxu0 0.0
    %4326 = vmatprep.subr.mxu0 0.0
    %4327 = vmatpush1.msra.mxu0 0.0
    %4328 = vmatprep.subr.mxu0 0.0
    %4329 = vmatpush1.msra.mxu0 0.0
    %4330 = vmatprep.subr.mxu0 0.0
    %4331 = vmatpush1.msra.mxu0 0.0
    %4332 = vmatprep.subr.mxu0 0.0
    %4333 = vmatpush1.msra.mxu0 0.0
    %4334 = vmatprep.subr.mxu0 0.0
    %4335 = vmatpush1.msra.mxu0 0.0
    %4336 = vmatprep.subr.mxu0 0.0
    %4337 = vmatpush1.msra.mxu0 0.0
    %4338 = vmatprep.subr.mxu0 0.0
    %4339 = vmatpush1.msra.mxu0 0.0
    %4340 = vmatprep.subr.mxu0 0.0
    %4341 = vmatpush1.msra.mxu0 0.0
    %4342 = vmatprep.subr.mxu0 0.0
    %4343 = vmatpush1.msra.mxu0 0.0
    %4344 = vmatprep.mubr.f32.mxu0 0.0
    %4345 = vmatmul.mubr.f32.gmra.mrb[0].mxu0 %v4117
    %v4346 = vpop.f32.mrb[0].mxu0
    %v4347 = vadd.f32 0.0, %v4346
    %v4348 = vpop.f32.mrb[0].mxu0
    %4349 = vmatprep.mubr.f32.mxu0 0.0
    %4350 = vmatmul.mubr.f32.gmra.mrb[0].mxu0 %v4120
    %v4351 = vpop.f32.mrb[0].mxu0
    %v4352 = vadd.f32 0.0, %v4351
    %v4353 = vpop.f32.mrb[0].mxu0
    %4354 = vdwg.mxu0
    %v4356 = vsel %vm448, %v4189, 0
    %v4359 = vsel %vm448, %v4194, 0
    %v4362 = vsel %vm448, %v4268, 0
    %v4365 = vsel %vm448, %v4273, 0
    %4367 = vmatprep.subr.mxu0 0.0
    %4368 = vmatpush1.xpose.msra.mxu0 %v4362
    %4369 = vmatprep.subr.mxu0 0.0
    %4370 = vmatpush1.xpose.msra.mxu0 %v4365
    %4371 = vmatprep.subr.mxu0 0.0
    %4372 = vmatpush1.xpose.msra.mxu0 0.0
    %4373 = vmatprep.subr.mxu0 0.0
    %4374 = vmatpush1.xpose.msra.mxu0 0.0
    %4375 = vmatprep.subr.mxu0 0.0
    %4376 = vmatpush1.xpose.msra.mxu0 0.0
    %4377 = vmatprep.subr.mxu0 0.0
    %4378 = vmatpush1.xpose.msra.mxu0 0.0
    %4379 = vmatprep.subr.mxu0 0.0
    %4380 = vmatpush1.xpose.msra.mxu0 0.0
    %4381 = vmatprep.subr.mxu0 0.0
    %4382 = vmatpush1.xpose.msra.mxu0 0.0
    %4383 = vmatprep.subr.mxu0 0.0
    %4384 = vmatpush1.xpose.msra.mxu0 0.0
    %4385 = vmatprep.subr.mxu0 0.0
    %4386 = vmatpush1.xpose.msra.mxu0 0.0
    %4387 = vmatprep.subr.mxu0 0.0
    %4388 = vmatpush1.xpose.msra.mxu0 0.0
    %4389 = vmatprep.subr.mxu0 0.0
    %4390 = vmatpush1.xpose.msra.mxu0 0.0
    %4391 = vmatprep.subr.mxu0 0.0
    %4392 = vmatpush1.xpose.msra.mxu0 0.0
    %4393 = vmatprep.subr.mxu0 0.0
    %4394 = vmatpush1.xpose.msra.mxu0 0.0
    %4395 = vmatprep.subr.mxu0 0.0
    %4396 = vmatpush1.xpose.msra.mxu0 0.0
    %4397 = vmatprep.subr.mxu0 0.0
    %4398 = vmatpush1.xpose.msra.mxu0 0.0
    %4399 = vmatprep.subr.mxu0 0.0
    %4400 = vmatpush1.xpose.msra.mxu0 0.0
    %4401 = vmatprep.subr.mxu0 0.0
    %4402 = vmatpush1.xpose.msra.mxu0 0.0
    %4403 = vmatprep.subr.mxu0 0.0
    %4404 = vmatpush1.xpose.msra.mxu0 0.0
    %4405 = vmatprep.subr.mxu0 0.0
    %4406 = vmatpush1.xpose.msra.mxu0 0.0
    %4407 = vmatprep.subr.mxu0 0.0
    %4408 = vmatpush1.xpose.msra.mxu0 0.0
    %4409 = vmatprep.subr.mxu0 0.0
    %4410 = vmatpush1.xpose.msra.mxu0 0.0
    %4411 = vmatprep.subr.mxu0 0.0
    %4412 = vmatpush1.xpose.msra.mxu0 0.0
    %4413 = vmatprep.subr.mxu0 0.0
    %4414 = vmatpush1.xpose.msra.mxu0 0.0
    %4415 = vmatprep.subr.mxu0 0.0
    %4416 = vmatpush1.xpose.msra.mxu0 0.0
    %4417 = vmatprep.subr.mxu0 0.0
    %4418 = vmatpush1.xpose.msra.mxu0 0.0
    %4419 = vmatprep.subr.mxu0 0.0
    %4420 = vmatpush1.xpose.msra.mxu0 0.0
    %4421 = vmatprep.subr.mxu0 0.0
    %4422 = vmatpush1.xpose.msra.mxu0 0.0
    %4423 = vmatprep.subr.mxu0 0.0
    %4424 = vmatpush1.xpose.msra.mxu0 0.0
    %4425 = vmatprep.subr.mxu0 0.0
    %4426 = vmatpush1.xpose.msra.mxu0 0.0
    %4427 = vmatprep.subr.mxu0 0.0
    %4428 = vmatpush1.xpose.msra.mxu0 0.0
    %4429 = vmatprep.subr.mxu0 0.0
    %4430 = vmatpush1.xpose.msra.mxu0 0.0
    %4431 = vmatprep.mubr.f32.mxu0 0.0
    %4432 = vmatmul.mubr.f32.gmra.mrb[0].mxu0 %v4356
    %v4433 = vpop.f32.mrb[0].mxu0
    %v4434 = vadd.f32 0.0, %v4433
    %v4435 = vpop.f32.mrb[0].mxu0
    %4436 = vmatprep.mubr.f32.mxu0 0.0
    %4437 = vmatmul.mubr.f32.gmra.mrb[0].mxu0 %v4359
    %v4438 = vpop.f32.mrb[0].mxu0
    %v4439 = vadd.f32 0.0, %v4438
    %v4440 = vpop.f32.mrb[0].mxu0
    %4441 = vdwg.mxu0
    %v4442 = vmul.f32 %v4434, 0.17677669
    %v4443 = vmul.f32 %v4439, 0.17677669
    %v4444 = vsel %vm442, %v4442, -1e+30
    %v4445 = vsel %vm443, %v4443, -1e+30
    %vm4446 = vcmask 130048
    %v4447 = vsel %vm4446, %v4444, -inf
    %4448 = vmax.xlane.f32.xlu0 %v4447
    %v4449 = vpop.xlane.xlu0 %4448
    %v4450 = vsel %vm4446, %v4445, -inf
    %4451 = vmax.xlane.f32.xlu0 %v4450
    %v4452 = vpop.xlane.xlu0 %4451
    %v4453 = vsub.f32 %v4444, %v4449
    %v4454 = vsub.f32 %v4445, %v4452
    %v4455 = vmul.f32 %v4453, 1.442695
    %v4456 = vpow.pop %v4455
    %v4457 = vmul.f32 %v4454, 1.442695
    %v4458 = vpow.pop %v4457
    %v4459 = vsel %vm4446, %v4456, 0.0
    %4460 = vadd.xlane.f32.xlu0 %v4459
    %v4461 = vpop.xlane.xlu0 %4460
    %v4462 = vsel %vm4446, %v4458, 0.0
    %4463 = vadd.xlane.f32.xlu0 %v4462
    %v4464 = vpop.xlane.xlu0 %4463
    %v4465 = vrcp.pop %v4461
    %v4466 = vrcp.pop %v4464
    %v4467 = vmul.f32 %v4456, %v4465
    %v4468 = vmul.f32 %v4458, %v4466
    %v4470 = vsel %vm4446, %v4467, 0
    %v4473 = vsel %vm4446, %v4468, 0
    %4475 = vmatprep.subr.mxu0 0.0
    %4476 = vmatpush1.msra.mxu0 %v4347
    %4477 = vmatprep.subr.mxu0 0.0
    %4478 = vmatpush1.msra.mxu0 %v4352
    %4479 = vmatprep.subr.mxu0 0.0
    %4480 = vmatpush1.msra.mxu0 0.0
    %4481 = vmatprep.subr.mxu0 0.0
    %4482 = vmatpush1.msra.mxu0 0.0
    %4483 = vmatprep.subr.mxu0 0.0
    %4484 = vmatpush1.msra.mxu0 0.0
    %4485 = vmatprep.subr.mxu0 0.0
    %4486 = vmatpush1.msra.mxu0 0.0
    %4487 = vmatprep.subr.mxu0 0.0
    %4488 = vmatpush1.msra.mxu0 0.0
    %4489 = vmatprep.subr.mxu0 0.0
    %4490 = vmatpush1.msra.mxu0 0.0
    %4491 = vmatprep.subr.mxu0 0.0
    %4492 = vmatpush1.msra.mxu0 0.0
    %4493 = vmatprep.subr.mxu0 0.0
    %4494 = vmatpush1.msra.mxu0 0.0
    %4495 = vmatprep.subr.mxu0 0.0
    %4496 = vmatpush1.msra.mxu0 0.0
    %4497 = vmatprep.subr.mxu0 0.0
    %4498 = vmatpush1.msra.mxu0 0.0
    %4499 = vmatprep.subr.mxu0 0.0
    %4500 = vmatpush1.msra.mxu0 0.0
    %4501 = vmatprep.subr.mxu0 0.0
    %4502 = vmatpush1.msra.mxu0 0.0
    %4503 = vmatprep.subr.mxu0 0.0
    %4504 = vmatpush1.msra.mxu0 0.0
    %4505 = vmatprep.subr.mxu0 0.0
    %4506 = vmatpush1.msra.mxu0 0.0
    %4507 = vmatprep.subr.mxu0 0.0
    %4508 = vmatpush1.msra.mxu0 0.0
    %4509 = vmatprep.subr.mxu0 0.0
    %4510 = vmatpush1.msra.mxu0 0.0
    %4511 = vmatprep.subr.mxu0 0.0
    %4512 = vmatpush1.msra.mxu0 0.0
    %4513 = vmatprep.subr.mxu0 0.0
    %4514 = vmatpush1.msra.mxu0 0.0
    %4515 = vmatprep.subr.mxu0 0.0
    %4516 = vmatpush1.msra.mxu0 0.0
    %4517 = vmatprep.subr.mxu0 0.0
    %4518 = vmatpush1.msra.mxu0 0.0
    %4519 = vmatprep.subr.mxu0 0.0
    %4520 = vmatpush1.msra.mxu0 0.0
    %4521 = vmatprep.subr.mxu0 0.0
    %4522 = vmatpush1.msra.mxu0 0.0
    %4523 = vmatprep.subr.mxu0 0.0
    %4524 = vmatpush1.msra.mxu0 0.0
    %4525 = vmatprep.subr.mxu0 0.0
    %4526 = vmatpush1.msra.mxu0 0.0
    %4527 = vmatprep.subr.mxu0 0.0
    %4528 = vmatpush1.msra.mxu0 0.0
    %4529 = vmatprep.subr.mxu0 0.0
    %4530 = vmatpush1.msra.mxu0 0.0
    %4531 = vmatprep.subr.mxu0 0.0
    %4532 = vmatpush1.msra.mxu0 0.0
    %4533 = vmatprep.subr.mxu0 0.0
    %4534 = vmatpush1.msra.mxu0 0.0
    %4535 = vmatprep.subr.mxu0 0.0
    %4536 = vmatpush1.msra.mxu0 0.0
    %4537 = vmatprep.subr.mxu0 0.0
    %4538 = vmatpush1.msra.mxu0 0.0
    %4539 = vmatprep.mubr.f32.mxu0 0.0
    %4540 = vmatmul.mubr.f32.gmra.mrb[0].mxu0 %v4470
    %v4541 = vpop.f32.mrb[0].mxu0
    %v4542 = vadd.f32 0.0, %v4541
    %v4543 = vpop.f32.mrb[0].mxu0
    %4544 = vmatprep.mubr.f32.mxu0 0.0
    %4545 = vmatmul.mubr.f32.gmra.mrb[0].mxu0 %v4473
    %v4546 = vpop.f32.mrb[0].mxu0
    %v4547 = vadd.f32 0.0, %v4546
    %v4548 = vpop.f32.mrb[0].mxu0
    %4549 = vdwg.mxu0
    %4550 = vrot.lane.b32.xlu0 %v4189, 96
    %v4551 = vpop.permute.xlu0 %4550
    %4552 = vrot.lane.b32.xlu0 %v4194, 96
    %v4553 = vpop.permute.xlu0 %4552
    %4554 = vrot.lane.b32.xlu0 %v4268, 96
    %v4555 = vpop.permute.xlu0 %4554
    %4556 = vrot.lane.b32.xlu0 %v4273, 96
    %v4557 = vpop.permute.xlu0 %4556
    %v4558 = vsel %vm448, %v4551, 0
    %v4560 = vsel %vm448, %v4553, 0
    %v4562 = vsel %vm448, %v4555, 0
    %v4564 = vsel %vm448, %v4557, 0
    %4566 = vmatprep.subr.mxu0 0.0
    %4567 = vmatpush1.xpose.msra.mxu0 %v4562
    %4568 = vmatprep.subr.mxu0 0.0
    %4569 = vmatpush1.xpose.msra.mxu0 %v4564
    %4570 = vmatprep.subr.mxu0 0.0
    %4571 = vmatpush1.xpose.msra.mxu0 0.0
    %4572 = vmatprep.subr.mxu0 0.0
    %4573 = vmatpush1.xpose.msra.mxu0 0.0
    %4574 = vmatprep.subr.mxu0 0.0
    %4575 = vmatpush1.xpose.msra.mxu0 0.0
    %4576 = vmatprep.subr.mxu0 0.0
    %4577 = vmatpush1.xpose.msra.mxu0 0.0
    %4578 = vmatprep.subr.mxu0 0.0
    %4579 = vmatpush1.xpose.msra.mxu0 0.0
    %4580 = vmatprep.subr.mxu0 0.0
    %4581 = vmatpush1.xpose.msra.mxu0 0.0
    %4582 = vmatprep.subr.mxu0 0.0
    %4583 = vmatpush1.xpose.msra.mxu0 0.0
    %4584 = vmatprep.subr.mxu0 0.0
    %4585 = vmatpush1.xpose.msra.mxu0 0.0
    %4586 = vmatprep.subr.mxu0 0.0
    %4587 = vmatpush1.xpose.msra.mxu0 0.0
    %4588 = vmatprep.subr.mxu0 0.0
    %4589 = vmatpush1.xpose.msra.mxu0 0.0
    %4590 = vmatprep.subr.mxu0 0.0
    %4591 = vmatpush1.xpose.msra.mxu0 0.0
    %4592 = vmatprep.subr.mxu0 0.0
    %4593 = vmatpush1.xpose.msra.mxu0 0.0
    %4594 = vmatprep.subr.mxu0 0.0
    %4595 = vmatpush1.xpose.msra.mxu0 0.0
    %4596 = vmatprep.subr.mxu0 0.0
    %4597 = vmatpush1.xpose.msra.mxu0 0.0
    %4598 = vmatprep.subr.mxu0 0.0
    %4599 = vmatpush1.xpose.msra.mxu0 0.0
    %4600 = vmatprep.subr.mxu0 0.0
    %4601 = vmatpush1.xpose.msra.mxu0 0.0
    %4602 = vmatprep.subr.mxu0 0.0
    %4603 = vmatpush1.xpose.msra.mxu0 0.0
    %4604 = vmatprep.subr.mxu0 0.0
    %4605 = vmatpush1.xpose.msra.mxu0 0.0
    %4606 = vmatprep.subr.mxu0 0.0
    %4607 = vmatpush1.xpose.msra.mxu0 0.0
    %4608 = vmatprep.subr.mxu0 0.0
    %4609 = vmatpush1.xpose.msra.mxu0 0.0
    %4610 = vmatprep.subr.mxu0 0.0
    %4611 = vmatpush1.xpose.msra.mxu0 0.0
    %4612 = vmatprep.subr.mxu0 0.0
    %4613 = vmatpush1.xpose.msra.mxu0 0.0
    %4614 = vmatprep.subr.mxu0 0.0
    %4615 = vmatpush1.xpose.msra.mxu0 0.0
    %4616 = vmatprep.subr.mxu0 0.0
    %4617 = vmatpush1.xpose.msra.mxu0 0.0
    %4618 = vmatprep.subr.mxu0 0.0
    %4619 = vmatpush1.xpose.msra.mxu0 0.0
    %4620 = vmatprep.subr.mxu0 0.0
    %4621 = vmatpush1.xpose.msra.mxu0 0.0
    %4622 = vmatprep.subr.mxu0 0.0
    %4623 = vmatpush1.xpose.msra.mxu0 0.0
    %4624 = vmatprep.subr.mxu0 0.0
    %4625 = vmatpush1.xpose.msra.mxu0 0.0
    %4626 = vmatprep.subr.mxu0 0.0
    %4627 = vmatpush1.xpose.msra.mxu0 0.0
    %4628 = vmatprep.subr.mxu0 0.0
    %4629 = vmatpush1.xpose.msra.mxu0 0.0
    %4630 = vmatprep.mubr.f32.mxu0 0.0
    %4631 = vmatmul.mubr.f32.gmra.mrb[0].mxu0 %v4558
    %v4632 = vpop.f32.mrb[0].mxu0
    %v4633 = vadd.f32 0.0, %v4632
    %v4634 = vpop.f32.mrb[0].mxu0
    %4635 = vmatprep.mubr.f32.mxu0 0.0
    %4636 = vmatmul.mubr.f32.gmra.mrb[0].mxu0 %v4560
    %v4637 = vpop.f32.mrb[0].mxu0
    %v4638 = vadd.f32 0.0, %v4637
    %v4639 = vpop.f32.mrb[0].mxu0
    %4640 = vdwg.mxu0
    %v4641 = vmul.f32 %v4633, 0.17677669
    %v4642 = vmul.f32 %v4638, 0.17677669
    %v4643 = vsel %vm442, %v4641, -1e+30
    %v4644 = vsel %vm443, %v4642, -1e+30
    %v4645 = vsel %vm4446, %v4643, -inf
    %4646 = vmax.xlane.f32.xlu0 %v4645
    %v4647 = vpop.xlane.xlu0 %4646
    %v4648 = vsel %vm4446, %v4644, -inf
    %4649 = vmax.xlane.f32.xlu0 %v4648
    %v4650 = vpop.xlane.xlu0 %4649
    %v4651 = vsub.f32 %v4643, %v4647
    %v4652 = vsub.f32 %v4644, %v4650
    %v4653 = vmul.f32 %v4651, 1.442695
    %v4654 = vpow.pop %v4653
    %v4655 = vmul.f32 %v4652, 1.442695
    %v4656 = vpow.pop %v4655
    %v4657 = vsel %vm4446, %v4654, 0.0
    %4658 = vadd.xlane.f32.xlu0 %v4657
    %v4659 = vpop.xlane.xlu0 %4658
    %v4660 = vsel %vm4446, %v4656, 0.0
    %4661 = vadd.xlane.f32.xlu0 %v4660
    %v4662 = vpop.xlane.xlu0 %4661
    %v4663 = vrcp.pop %v4659
    %v4664 = vrcp.pop %v4662
    %v4665 = vmul.f32 %v4654, %v4663
    %v4666 = vmul.f32 %v4656, %v4664
    %4669 = vrot.lane.b32.xlu0 %v4347, 96
    %v4670 = vpop.permute.xlu0 %4669
    %4671 = vrot.lane.b32.xlu0 %v4352, 96
    %v4672 = vpop.permute.xlu0 %4671
    %v4676 = vsel %vm4446, %v4665, 0
    %v4679 = vsel %vm4446, %v4666, 0
    %4681 = vmatprep.subr.mxu0 0.0
    %4682 = vmatpush1.msra.mxu0 %v4670
    %4683 = vmatprep.subr.mxu0 0.0
    %4684 = vmatpush1.msra.mxu0 %v4672
    %4685 = vmatprep.subr.mxu0 0.0
    %4686 = vmatpush1.msra.mxu0 0.0
    %4687 = vmatprep.subr.mxu0 0.0
    %4688 = vmatpush1.msra.mxu0 0.0
    %4689 = vmatprep.subr.mxu0 0.0
    %4690 = vmatpush1.msra.mxu0 0.0
    %4691 = vmatprep.subr.mxu0 0.0
    %4692 = vmatpush1.msra.mxu0 0.0
    %4693 = vmatprep.subr.mxu0 0.0
    %4694 = vmatpush1.msra.mxu0 0.0
    %4695 = vmatprep.subr.mxu0 0.0
    %4696 = vmatpush1.msra.mxu0 0.0
    %4697 = vmatprep.subr.mxu0 0.0
    %4698 = vmatpush1.msra.mxu0 0.0
    %4699 = vmatprep.subr.mxu0 0.0
    %4700 = vmatpush1.msra.mxu0 0.0
    %4701 = vmatprep.subr.mxu0 0.0
    %4702 = vmatpush1.msra.mxu0 0.0
    %4703 = vmatprep.subr.mxu0 0.0
    %4704 = vmatpush1.msra.mxu0 0.0
    %4705 = vmatprep.subr.mxu0 0.0
    %4706 = vmatpush1.msra.mxu0 0.0
    %4707 = vmatprep.subr.mxu0 0.0
    %4708 = vmatpush1.msra.mxu0 0.0
    %4709 = vmatprep.subr.mxu0 0.0
    %4710 = vmatpush1.msra.mxu0 0.0
    %4711 = vmatprep.subr.mxu0 0.0
    %4712 = vmatpush1.msra.mxu0 0.0
    %4713 = vmatprep.subr.mxu0 0.0
    %4714 = vmatpush1.msra.mxu0 0.0
    %4715 = vmatprep.subr.mxu0 0.0
    %4716 = vmatpush1.msra.mxu0 0.0
    %4717 = vmatprep.subr.mxu0 0.0
    %4718 = vmatpush1.msra.mxu0 0.0
    %4719 = vmatprep.subr.mxu0 0.0
    %4720 = vmatpush1.msra.mxu0 0.0
    %4721 = vmatprep.subr.mxu0 0.0
    %4722 = vmatpush1.msra.mxu0 0.0
    %4723 = vmatprep.subr.mxu0 0.0
    %4724 = vmatpush1.msra.mxu0 0.0
    %4725 = vmatprep.subr.mxu0 0.0
    %4726 = vmatpush1.msra.mxu0 0.0
    %4727 = vmatprep.subr.mxu0 0.0
    %4728 = vmatpush1.msra.mxu0 0.0
    %4729 = vmatprep.subr.mxu0 0.0
    %4730 = vmatpush1.msra.mxu0 0.0
    %4731 = vmatprep.subr.mxu0 0.0
    %4732 = vmatpush1.msra.mxu0 0.0
    %4733 = vmatprep.subr.mxu0 0.0
    %4734 = vmatpush1.msra.mxu0 0.0
    %4735 = vmatprep.subr.mxu0 0.0
    %4736 = vmatpush1.msra.mxu0 0.0
    %4737 = vmatprep.subr.mxu0 0.0
    %4738 = vmatpush1.msra.mxu0 0.0
    %4739 = vmatprep.subr.mxu0 0.0
    %4740 = vmatpush1.msra.mxu0 0.0
    %4741 = vmatprep.subr.mxu0 0.0
    %4742 = vmatpush1.msra.mxu0 0.0
    %4743 = vmatprep.subr.mxu0 0.0
    %4744 = vmatpush1.msra.mxu0 0.0
    %4745 = vmatprep.mubr.f32.mxu0 0.0
    %4746 = vmatmul.mubr.f32.gmra.mrb[0].mxu0 %v4676
    %v4747 = vpop.f32.mrb[0].mxu0
    %v4748 = vadd.f32 0.0, %v4747
    %v4749 = vpop.f32.mrb[0].mxu0
    %4750 = vmatprep.mubr.f32.mxu0 0.0
    %4751 = vmatmul.mubr.f32.gmra.mrb[0].mxu0 %v4679
    %v4752 = vpop.f32.mrb[0].mxu0
    %v4753 = vadd.f32 0.0, %v4752
    %v4754 = vpop.f32.mrb[0].mxu0
    %4755 = vdwg.mxu0
    %4756 = vrot.lane.b32.xlu0 %v4189, 64
    %v4757 = vpop.permute.xlu0 %4756
    %4758 = vrot.lane.b32.xlu0 %v4194, 64
    %v4759 = vpop.permute.xlu0 %4758
    %4760 = vrot.lane.b32.xlu0 %v4268, 64
    %v4761 = vpop.permute.xlu0 %4760
    %4762 = vrot.lane.b32.xlu0 %v4273, 64
    %v4763 = vpop.permute.xlu0 %4762
    %v4764 = vsel %vm448, %v4757, 0
    %v4766 = vsel %vm448, %v4759, 0
    %v4768 = vsel %vm448, %v4761, 0
    %v4770 = vsel %vm448, %v4763, 0
    %4772 = vmatprep.subr.mxu0 0.0
    %4773 = vmatpush1.xpose.msra.mxu0 %v4768
    %4774 = vmatprep.subr.mxu0 0.0
    %4775 = vmatpush1.xpose.msra.mxu0 %v4770
    %4776 = vmatprep.subr.mxu0 0.0
    %4777 = vmatpush1.xpose.msra.mxu0 0.0
    %4778 = vmatprep.subr.mxu0 0.0
    %4779 = vmatpush1.xpose.msra.mxu0 0.0
    %4780 = vmatprep.subr.mxu0 0.0
    %4781 = vmatpush1.xpose.msra.mxu0 0.0
    %4782 = vmatprep.subr.mxu0 0.0
    %4783 = vmatpush1.xpose.msra.mxu0 0.0
    %4784 = vmatprep.subr.mxu0 0.0
    %4785 = vmatpush1.xpose.msra.mxu0 0.0
    %4786 = vmatprep.subr.mxu0 0.0
    %4787 = vmatpush1.xpose.msra.mxu0 0.0
    %4788 = vmatprep.subr.mxu0 0.0
    %4789 = vmatpush1.xpose.msra.mxu0 0.0
    %4790 = vmatprep.subr.mxu0 0.0
    %4791 = vmatpush1.xpose.msra.mxu0 0.0
    %4792 = vmatprep.subr.mxu0 0.0
    %4793 = vmatpush1.xpose.msra.mxu0 0.0
    %4794 = vmatprep.subr.mxu0 0.0
    %4795 = vmatpush1.xpose.msra.mxu0 0.0
    %4796 = vmatprep.subr.mxu0 0.0
    %4797 = vmatpush1.xpose.msra.mxu0 0.0
    %4798 = vmatprep.subr.mxu0 0.0
    %4799 = vmatpush1.xpose.msra.mxu0 0.0
    %4800 = vmatprep.subr.mxu0 0.0
    %4801 = vmatpush1.xpose.msra.mxu0 0.0
    %4802 = vmatprep.subr.mxu0 0.0
    %4803 = vmatpush1.xpose.msra.mxu0 0.0
    %4804 = vmatprep.subr.mxu0 0.0
    %4805 = vmatpush1.xpose.msra.mxu0 0.0
    %4806 = vmatprep.subr.mxu0 0.0
    %4807 = vmatpush1.xpose.msra.mxu0 0.0
    %4808 = vmatprep.subr.mxu0 0.0
    %4809 = vmatpush1.xpose.msra.mxu0 0.0
    %4810 = vmatprep.subr.mxu0 0.0
    %4811 = vmatpush1.xpose.msra.mxu0 0.0
    %4812 = vmatprep.subr.mxu0 0.0
    %4813 = vmatpush1.xpose.msra.mxu0 0.0
    %4814 = vmatprep.subr.mxu0 0.0
    %4815 = vmatpush1.xpose.msra.mxu0 0.0
    %4816 = vmatprep.subr.mxu0 0.0
    %4817 = vmatpush1.xpose.msra.mxu0 0.0
    %4818 = vmatprep.subr.mxu0 0.0
    %4819 = vmatpush1.xpose.msra.mxu0 0.0
    %4820 = vmatprep.subr.mxu0 0.0
    %4821 = vmatpush1.xpose.msra.mxu0 0.0
    %4822 = vmatprep.subr.mxu0 0.0
    %4823 = vmatpush1.xpose.msra.mxu0 0.0
    %4824 = vmatprep.subr.mxu0 0.0
    %4825 = vmatpush1.xpose.msra.mxu0 0.0
    %4826 = vmatprep.subr.mxu0 0.0
    %4827 = vmatpush1.xpose.msra.mxu0 0.0
    %4828 = vmatprep.subr.mxu0 0.0
    %4829 = vmatpush1.xpose.msra.mxu0 0.0
    %4830 = vmatprep.subr.mxu0 0.0
    %4831 = vmatpush1.xpose.msra.mxu0 0.0
    %4832 = vmatprep.subr.mxu0 0.0
    %4833 = vmatpush1.xpose.msra.mxu0 0.0
    %4834 = vmatprep.subr.mxu0 0.0
    %4835 = vmatpush1.xpose.msra.mxu0 0.0
    %4836 = vmatprep.mubr.f32.mxu0 0.0
    %4837 = vmatmul.mubr.f32.gmra.mrb[0].mxu0 %v4764
    %v4838 = vpop.f32.mrb[0].mxu0
    %v4839 = vadd.f32 0.0, %v4838
    %v4840 = vpop.f32.mrb[0].mxu0
    %4841 = vmatprep.mubr.f32.mxu0 0.0
    %4842 = vmatmul.mubr.f32.gmra.mrb[0].mxu0 %v4766
    %v4843 = vpop.f32.mrb[0].mxu0
    %v4844 = vadd.f32 0.0, %v4843
    %v4845 = vpop.f32.mrb[0].mxu0
    %4846 = vdwg.mxu0
    %v4847 = vmul.f32 %v4839, 0.17677669
    %v4848 = vmul.f32 %v4844, 0.17677669
    %v4849 = vsel %vm442, %v4847, -1e+30
    %v4850 = vsel %vm443, %v4848, -1e+30
    %v4851 = vsel %vm4446, %v4849, -inf
    %4852 = vmax.xlane.f32.xlu0 %v4851
    %v4853 = vpop.xlane.xlu0 %4852
    %v4854 = vsel %vm4446, %v4850, -inf
    %4855 = vmax.xlane.f32.xlu0 %v4854
    %v4856 = vpop.xlane.xlu0 %4855
    %v4857 = vsub.f32 %v4849, %v4853
    %v4858 = vsub.f32 %v4850, %v4856
    %v4859 = vmul.f32 %v4857, 1.442695
    %v4860 = vpow.pop %v4859
    %v4861 = vmul.f32 %v4858, 1.442695
    %v4862 = vpow.pop %v4861
    %v4863 = vsel %vm4446, %v4860, 0.0
    %4864 = vadd.xlane.f32.xlu0 %v4863
    %v4865 = vpop.xlane.xlu0 %4864
    %v4866 = vsel %vm4446, %v4862, 0.0
    %4867 = vadd.xlane.f32.xlu0 %v4866
    %v4868 = vpop.xlane.xlu0 %4867
    %v4869 = vrcp.pop %v4865
    %v4870 = vrcp.pop %v4868
    %v4871 = vmul.f32 %v4860, %v4869
    %v4872 = vmul.f32 %v4862, %v4870
    %4873 = vrot.lane.b32.xlu0 %v4347, 64
    %v4874 = vpop.permute.xlu0 %4873
    %4875 = vrot.lane.b32.xlu0 %v4352, 64
    %v4876 = vpop.permute.xlu0 %4875
    %v4880 = vsel %vm4446, %v4871, 0
    %v4883 = vsel %vm4446, %v4872, 0
    %4885 = vmatprep.subr.mxu0 0.0
    %4886 = vmatpush1.msra.mxu0 %v4874
    %4887 = vmatprep.subr.mxu0 0.0
    %4888 = vmatpush1.msra.mxu0 %v4876
    %4889 = vmatprep.subr.mxu0 0.0
    %4890 = vmatpush1.msra.mxu0 0.0
    %4891 = vmatprep.subr.mxu0 0.0
    %4892 = vmatpush1.msra.mxu0 0.0
    %4893 = vmatprep.subr.mxu0 0.0
    %4894 = vmatpush1.msra.mxu0 0.0
    %4895 = vmatprep.subr.mxu0 0.0
    %4896 = vmatpush1.msra.mxu0 0.0
    %4897 = vmatprep.subr.mxu0 0.0
    %4898 = vmatpush1.msra.mxu0 0.0
    %4899 = vmatprep.subr.mxu0 0.0
    %4900 = vmatpush1.msra.mxu0 0.0
    %4901 = vmatprep.subr.mxu0 0.0
    %4902 = vmatpush1.msra.mxu0 0.0
    %4903 = vmatprep.subr.mxu0 0.0
    %4904 = vmatpush1.msra.mxu0 0.0
    %4905 = vmatprep.subr.mxu0 0.0
    %4906 = vmatpush1.msra.mxu0 0.0
    %4907 = vmatprep.subr.mxu0 0.0
    %4908 = vmatpush1.msra.mxu0 0.0
    %4909 = vmatprep.subr.mxu0 0.0
    %4910 = vmatpush1.msra.mxu0 0.0
    %4911 = vmatprep.subr.mxu0 0.0
    %4912 = vmatpush1.msra.mxu0 0.0
    %4913 = vmatprep.subr.mxu0 0.0
    %4914 = vmatpush1.msra.mxu0 0.0
    %4915 = vmatprep.subr.mxu0 0.0
    %4916 = vmatpush1.msra.mxu0 0.0
    %4917 = vmatprep.subr.mxu0 0.0
    %4918 = vmatpush1.msra.mxu0 0.0
    %4919 = vmatprep.subr.mxu0 0.0
    %4920 = vmatpush1.msra.mxu0 0.0
    %4921 = vmatprep.subr.mxu0 0.0
    %4922 = vmatpush1.msra.mxu0 0.0
    %4923 = vmatprep.subr.mxu0 0.0
    %4924 = vmatpush1.msra.mxu0 0.0
    %4925 = vmatprep.subr.mxu0 0.0
    %4926 = vmatpush1.msra.mxu0 0.0
    %4927 = vmatprep.subr.mxu0 0.0
    %4928 = vmatpush1.msra.mxu0 0.0
    %4929 = vmatprep.subr.mxu0 0.0
    %4930 = vmatpush1.msra.mxu0 0.0
    %4931 = vmatprep.subr.mxu0 0.0
    %4932 = vmatpush1.msra.mxu0 0.0
    %4933 = vmatprep.subr.mxu0 0.0
    %4934 = vmatpush1.msra.mxu0 0.0
    %4935 = vmatprep.subr.mxu0 0.0
    %4936 = vmatpush1.msra.mxu0 0.0
    %4937 = vmatprep.subr.mxu0 0.0
    %4938 = vmatpush1.msra.mxu0 0.0
    %4939 = vmatprep.subr.mxu0 0.0
    %4940 = vmatpush1.msra.mxu0 0.0
    %4941 = vmatprep.subr.mxu0 0.0
    %4942 = vmatpush1.msra.mxu0 0.0
    %4943 = vmatprep.subr.mxu0 0.0
    %4944 = vmatpush1.msra.mxu0 0.0
    %4945 = vmatprep.subr.mxu0 0.0
    %4946 = vmatpush1.msra.mxu0 0.0
    %4947 = vmatprep.subr.mxu0 0.0
    %4948 = vmatpush1.msra.mxu0 0.0
    %4949 = vmatprep.mubr.f32.mxu0 0.0
    %4950 = vmatmul.mubr.f32.gmra.mrb[0].mxu0 %v4880
    %v4951 = vpop.f32.mrb[0].mxu0
    %v4952 = vadd.f32 0.0, %v4951
    %v4953 = vpop.f32.mrb[0].mxu0
    %4954 = vmatprep.mubr.f32.mxu0 0.0
    %4955 = vmatmul.mubr.f32.gmra.mrb[0].mxu0 %v4883
    %v4956 = vpop.f32.mrb[0].mxu0
    %v4957 = vadd.f32 0.0, %v4956
    %v4958 = vpop.f32.mrb[0].mxu0
    %4959 = vdwg.mxu0
    %4960 = vrot.lane.b32.xlu0 %v4189, 32
    %v4961 = vpop.permute.xlu0 %4960
    %4962 = vrot.lane.b32.xlu0 %v4194, 32
    %v4963 = vpop.permute.xlu0 %4962
    %4964 = vrot.lane.b32.xlu0 %v4268, 32
    %v4965 = vpop.permute.xlu0 %4964
    %4966 = vrot.lane.b32.xlu0 %v4273, 32
    %v4967 = vpop.permute.xlu0 %4966
    %v4968 = vsel %vm448, %v4961, 0
    %v4970 = vsel %vm448, %v4963, 0
    %v4972 = vsel %vm448, %v4965, 0
    %v4974 = vsel %vm448, %v4967, 0
    %4976 = vmatprep.subr.mxu0 0.0
    %4977 = vmatpush1.xpose.msra.mxu0 %v4972
    %4978 = vmatprep.subr.mxu0 0.0
    %4979 = vmatpush1.xpose.msra.mxu0 %v4974
    %4980 = vmatprep.subr.mxu0 0.0
    %4981 = vmatpush1.xpose.msra.mxu0 0.0
    %4982 = vmatprep.subr.mxu0 0.0
    %4983 = vmatpush1.xpose.msra.mxu0 0.0
    %4984 = vmatprep.subr.mxu0 0.0
    %4985 = vmatpush1.xpose.msra.mxu0 0.0
    %4986 = vmatprep.subr.mxu0 0.0
    %4987 = vmatpush1.xpose.msra.mxu0 0.0
    %4988 = vmatprep.subr.mxu0 0.0
    %4989 = vmatpush1.xpose.msra.mxu0 0.0
    %4990 = vmatprep.subr.mxu0 0.0
    %4991 = vmatpush1.xpose.msra.mxu0 0.0
    %4992 = vmatprep.subr.mxu0 0.0
    %4993 = vmatpush1.xpose.msra.mxu0 0.0
    %4994 = vmatprep.subr.mxu0 0.0
    %4995 = vmatpush1.xpose.msra.mxu0 0.0
    %4996 = vmatprep.subr.mxu0 0.0
    %4997 = vmatpush1.xpose.msra.mxu0 0.0
    %4998 = vmatprep.subr.mxu0 0.0
    %4999 = vmatpush1.xpose.msra.mxu0 0.0
    %5000 = vmatprep.subr.mxu0 0.0
    %5001 = vmatpush1.xpose.msra.mxu0 0.0
    %5002 = vmatprep.subr.mxu0 0.0
    %5003 = vmatpush1.xpose.msra.mxu0 0.0
    %5004 = vmatprep.subr.mxu0 0.0
    %5005 = vmatpush1.xpose.msra.mxu0 0.0
    %5006 = vmatprep.subr.mxu0 0.0
    %5007 = vmatpush1.xpose.msra.mxu0 0.0
    %5008 = vmatprep.subr.mxu0 0.0
    %5009 = vmatpush1.xpose.msra.mxu0 0.0
    %5010 = vmatprep.subr.mxu0 0.0
    %5011 = vmatpush1.xpose.msra.mxu0 0.0
    %5012 = vmatprep.subr.mxu0 0.0
    %5013 = vmatpush1.xpose.msra.mxu0 0.0
    %5014 = vmatprep.subr.mxu0 0.0
    %5015 = vmatpush1.xpose.msra.mxu0 0.0
    %5016 = vmatprep.subr.mxu0 0.0
    %5017 = vmatpush1.xpose.msra.mxu0 0.0
    %5018 = vmatprep.subr.mxu0 0.0
    %5019 = vmatpush1.xpose.msra.mxu0 0.0
    %5020 = vmatprep.subr.mxu0 0.0
    %5021 = vmatpush1.xpose.msra.mxu0 0.0
    %5022 = vmatprep.subr.mxu0 0.0
    %5023 = vmatpush1.xpose.msra.mxu0 0.0
    %5024 = vmatprep.subr.mxu0 0.0
    %5025 = vmatpush1.xpose.msra.mxu0 0.0
    %5026 = vmatprep.subr.mxu0 0.0
    %5027 = vmatpush1.xpose.msra.mxu0 0.0
    %5028 = vmatprep.subr.mxu0 0.0
    %5029 = vmatpush1.xpose.msra.mxu0 0.0
    %5030 = vmatprep.subr.mxu0 0.0
    %5031 = vmatpush1.xpose.msra.mxu0 0.0
    %5032 = vmatprep.subr.mxu0 0.0
    %5033 = vmatpush1.xpose.msra.mxu0 0.0
    %5034 = vmatprep.subr.mxu0 0.0
    %5035 = vmatpush1.xpose.msra.mxu0 0.0
    %5036 = vmatprep.subr.mxu0 0.0
    %5037 = vmatpush1.xpose.msra.mxu0 0.0
    %5038 = vmatprep.subr.mxu0 0.0
    %5039 = vmatpush1.xpose.msra.mxu0 0.0
    %5040 = vmatprep.mubr.f32.mxu0 0.0
    %5041 = vmatmul.mubr.f32.gmra.mrb[0].mxu0 %v4968
    %v5042 = vpop.f32.mrb[0].mxu0
    %v5043 = vadd.f32 0.0, %v5042
    %v5044 = vpop.f32.mrb[0].mxu0
    %5045 = vmatprep.mubr.f32.mxu0 0.0
    %5046 = vmatmul.mubr.f32.gmra.mrb[0].mxu0 %v4970
    %v5047 = vpop.f32.mrb[0].mxu0
    %v5048 = vadd.f32 0.0, %v5047
    %v5049 = vpop.f32.mrb[0].mxu0
    %5050 = vdwg.mxu0
    %v5051 = vmul.f32 %v5043, 0.17677669
    %v5052 = vmul.f32 %v5048, 0.17677669
    %v5053 = vsel %vm442, %v5051, -1e+30
    %v5054 = vsel %vm443, %v5052, -1e+30
    %v5055 = vsel %vm4446, %v5053, -inf
    %5056 = vmax.xlane.f32.xlu0 %v5055
    %v5057 = vpop.xlane.xlu0 %5056
    %v5058 = vsel %vm4446, %v5054, -inf
    %5059 = vmax.xlane.f32.xlu0 %v5058
    %v5060 = vpop.xlane.xlu0 %5059
    %v5061 = vsub.f32 %v5053, %v5057
    %v5062 = vsub.f32 %v5054, %v5060
    %v5063 = vmul.f32 %v5061, 1.442695
    %v5064 = vpow.pop %v5063
    %v5065 = vmul.f32 %v5062, 1.442695
    %v5066 = vpow.pop %v5065
    %v5067 = vsel %vm4446, %v5064, 0.0
    %5068 = vadd.xlane.f32.xlu0 %v5067
    %v5069 = vpop.xlane.xlu0 %5068
    %v5070 = vsel %vm4446, %v5066, 0.0
    %5071 = vadd.xlane.f32.xlu0 %v5070
    %v5072 = vpop.xlane.xlu0 %5071
    %v5073 = vrcp.pop %v5069
    %v5074 = vrcp.pop %v5072
    %v5075 = vmul.f32 %v5064, %v5073
    %v5076 = vmul.f32 %v5066, %v5074
    %5077 = vrot.lane.b32.xlu0 %v4347, 32
    %v5078 = vpop.permute.xlu0 %5077
    %5079 = vrot.lane.b32.xlu0 %v4352, 32
    %v5080 = vpop.permute.xlu0 %5079
    %v5084 = vsel %vm4446, %v5075, 0
    %v5087 = vsel %vm4446, %v5076, 0
    %5089 = vmatprep.subr.mxu0 0.0
    %5090 = vmatpush1.msra.mxu0 %v5078
    %5091 = vmatprep.subr.mxu0 0.0
    %5092 = vmatpush1.msra.mxu0 %v5080
    %5093 = vmatprep.subr.mxu0 0.0
    %5094 = vmatpush1.msra.mxu0 0.0
    %5095 = vmatprep.subr.mxu0 0.0
    %5096 = vmatpush1.msra.mxu0 0.0
    %5097 = vmatprep.subr.mxu0 0.0
    %5098 = vmatpush1.msra.mxu0 0.0
    %5099 = vmatprep.subr.mxu0 0.0
    %5100 = vmatpush1.msra.mxu0 0.0
    %5101 = vmatprep.subr.mxu0 0.0
    %5102 = vmatpush1.msra.mxu0 0.0
    %5103 = vmatprep.subr.mxu0 0.0
    %5104 = vmatpush1.msra.mxu0 0.0
    %5105 = vmatprep.subr.mxu0 0.0
    %5106 = vmatpush1.msra.mxu0 0.0
    %5107 = vmatprep.subr.mxu0 0.0
    %5108 = vmatpush1.msra.mxu0 0.0
    %5109 = vmatprep.subr.mxu0 0.0
    %5110 = vmatpush1.msra.mxu0 0.0
    %5111 = vmatprep.subr.mxu0 0.0
    %5112 = vmatpush1.msra.mxu0 0.0
    %5113 = vmatprep.subr.mxu0 0.0
    %5114 = vmatpush1.msra.mxu0 0.0
    %5115 = vmatprep.subr.mxu0 0.0
    %5116 = vmatpush1.msra.mxu0 0.0
    %5117 = vmatprep.subr.mxu0 0.0
    %5118 = vmatpush1.msra.mxu0 0.0
    %5119 = vmatprep.subr.mxu0 0.0
    %5120 = vmatpush1.msra.mxu0 0.0
    %5121 = vmatprep.subr.mxu0 0.0
    %5122 = vmatpush1.msra.mxu0 0.0
    %5123 = vmatprep.subr.mxu0 0.0
    %5124 = vmatpush1.msra.mxu0 0.0
    %5125 = vmatprep.subr.mxu0 0.0
    %5126 = vmatpush1.msra.mxu0 0.0
    %5127 = vmatprep.subr.mxu0 0.0
    %5128 = vmatpush1.msra.mxu0 0.0
    %5129 = vmatprep.subr.mxu0 0.0
    %5130 = vmatpush1.msra.mxu0 0.0
    %5131 = vmatprep.subr.mxu0 0.0
    %5132 = vmatpush1.msra.mxu0 0.0
    %5133 = vmatprep.subr.mxu0 0.0
    %5134 = vmatpush1.msra.mxu0 0.0
    %5135 = vmatprep.subr.mxu0 0.0
    %5136 = vmatpush1.msra.mxu0 0.0
    %5137 = vmatprep.subr.mxu0 0.0
    %5138 = vmatpush1.msra.mxu0 0.0
    %5139 = vmatprep.subr.mxu0 0.0
    %5140 = vmatpush1.msra.mxu0 0.0
    %5141 = vmatprep.subr.mxu0 0.0
    %5142 = vmatpush1.msra.mxu0 0.0
    %5143 = vmatprep.subr.mxu0 0.0
    %5144 = vmatpush1.msra.mxu0 0.0
    %5145 = vmatprep.subr.mxu0 0.0
    %5146 = vmatpush1.msra.mxu0 0.0
    %5147 = vmatprep.subr.mxu0 0.0
    %5148 = vmatpush1.msra.mxu0 0.0
    %5149 = vmatprep.subr.mxu0 0.0
    %5150 = vmatpush1.msra.mxu0 0.0
    %5151 = vmatprep.subr.mxu0 0.0
    %5152 = vmatpush1.msra.mxu0 0.0
    %5153 = vmatprep.mubr.f32.mxu0 0.0
    %5154 = vmatmul.mubr.f32.gmra.mrb[0].mxu0 %v5084
    %v5155 = vpop.f32.mrb[0].mxu0
    %v5156 = vadd.f32 0.0, %v5155
    %v5157 = vpop.f32.mrb[0].mxu0
    %5158 = vmatprep.mubr.f32.mxu0 0.0
    %5159 = vmatmul.mubr.f32.gmra.mrb[0].mxu0 %v5087
    %v5160 = vpop.f32.mrb[0].mxu0
    %v5161 = vadd.f32 0.0, %v5160
    %v5162 = vpop.f32.mrb[0].mxu0
    %5163 = vdwg.mxu0
    %5166 = vrot.lane.b32.xlu0 %v4748, 32
    %v5167 = vpop.permute.xlu0 %5166
    %5168 = vrot.lane.b32.xlu0 %v4753, 32
    %v5169 = vpop.permute.xlu0 %5168
    %5174 = vrot.lane.b32.xlu0 %v4952, 64
    %v5175 = vpop.permute.xlu0 %5174
    %5176 = vrot.lane.b32.xlu0 %v4957, 64
    %v5177 = vpop.permute.xlu0 %5176
    %5182 = vrot.lane.b32.xlu0 %v5156, 96
    %v5183 = vpop.permute.xlu0 %5182
    %5184 = vrot.lane.b32.xlu0 %v5161, 96
    %v5185 = vpop.permute.xlu0 %5184
    %v5188 = vsel %vm448, %v4542, %v5167
    %v5189 = vsel %vm448, %v4547, %v5169
    %v5190 = vsel %vm1872, %v5188, %v5175
    %v5191 = vsel %vm1872, %v5189, %v5177
    %v5192 = vsel %vm1877, %v5190, %v5183
    %v5193 = vsel %vm1877, %v5191, %v5185
    %v5194 = vld [vmem:[%s69] sm:$0xff]
    %v5195 = vld [vmem:[%s69 + $0x8] sm:$0xff]
    %v5196 = vld [vmem:[%s69 + $0x10] sm:$0xff]
    %v5197 = vld [vmem:[%s69 + $0x18] sm:$0xff]
    %v5198 = vld [vmem:[%s69 + $0x20] sm:$0xff]
    %v5199 = vld [vmem:[%s69 + $0x28] sm:$0xff]
    %v5200 = vld [vmem:[%s69 + $0x30] sm:$0xff]
    %v5201 = vld [vmem:[%s69 + $0x38] sm:$0xff]
    %v5202 = vld [vmem:[%s69 + $0x40] sm:$0xff]
    %v5203 = vld [vmem:[%s69 + $0x48] sm:$0xff]
    %v5204 = vld [vmem:[%s69 + $0x50] sm:$0xff]
    %v5205 = vld [vmem:[%s69 + $0x58] sm:$0xff]
    %v5206 = vld [vmem:[%s69 + $0x60] sm:$0xff]
    %v5207 = vld [vmem:[%s69 + $0x68] sm:$0xff]
    %v5208 = vld [vmem:[%s69 + $0x70] sm:$0xff]
    %v5209 = vld [vmem:[%s69 + $0x78] sm:$0xff]
    %5210 = vmatprep.subr.mxu0 0.0
    %5211 = vmatpush1.msra.mxu0 %v5194
    %5212 = vmatprep.subr.mxu0 0.0
    %5213 = vmatpush1.msra.mxu0 %v5195
    %5214 = vmatprep.subr.mxu0 0.0
    %5215 = vmatpush1.msra.mxu0 %v5196
    %5216 = vmatprep.subr.mxu0 0.0
    %5217 = vmatpush1.msra.mxu0 %v5197
    %5218 = vmatprep.subr.mxu0 0.0
    %5219 = vmatpush1.msra.mxu0 %v5198
    %5220 = vmatprep.subr.mxu0 0.0
    %5221 = vmatpush1.msra.mxu0 %v5199
    %5222 = vmatprep.subr.mxu0 0.0
    %5223 = vmatpush1.msra.mxu0 %v5200
    %5224 = vmatprep.subr.mxu0 0.0
    %5225 = vmatpush1.msra.mxu0 %v5201
    %5226 = vmatprep.subr.mxu0 0.0
    %5227 = vmatpush1.msra.mxu0 %v5202
    %5228 = vmatprep.subr.mxu0 0.0
    %5229 = vmatpush1.msra.mxu0 %v5203
    %5230 = vmatprep.subr.mxu0 0.0
    %5231 = vmatpush1.msra.mxu0 %v5204
    %5232 = vmatprep.subr.mxu0 0.0
    %5233 = vmatpush1.msra.mxu0 %v5205
    %5234 = vmatprep.subr.mxu0 0.0
    %5235 = vmatpush1.msra.mxu0 %v5206
    %5236 = vmatprep.subr.mxu0 0.0
    %5237 = vmatpush1.msra.mxu0 %v5207
    %5238 = vmatprep.subr.mxu0 0.0
    %5239 = vmatpush1.msra.mxu0 %v5208
    %5240 = vmatprep.subr.mxu0 0.0
    %5241 = vmatpush1.msra.mxu0 %v5209
    %5242 = vmatprep.subr.mxu0 0.0
    %5243 = vmatpush1.msra.mxu0 0.0
    %5244 = vmatprep.subr.mxu0 0.0
    %5245 = vmatpush1.msra.mxu0 0.0
    %5246 = vmatprep.subr.mxu0 0.0
    %5247 = vmatpush1.msra.mxu0 0.0
    %5248 = vmatprep.subr.mxu0 0.0
    %5249 = vmatpush1.msra.mxu0 0.0
    %5250 = vmatprep.subr.mxu0 0.0
    %5251 = vmatpush1.msra.mxu0 0.0
    %5252 = vmatprep.subr.mxu0 0.0
    %5253 = vmatpush1.msra.mxu0 0.0
    %5254 = vmatprep.subr.mxu0 0.0
    %5255 = vmatpush1.msra.mxu0 0.0
    %5256 = vmatprep.subr.mxu0 0.0
    %5257 = vmatpush1.msra.mxu0 0.0
    %5258 = vmatprep.subr.mxu0 0.0
    %5259 = vmatpush1.msra.mxu0 0.0
    %5260 = vmatprep.subr.mxu0 0.0
    %5261 = vmatpush1.msra.mxu0 0.0
    %5262 = vmatprep.subr.mxu0 0.0
    %5263 = vmatpush1.msra.mxu0 0.0
    %5264 = vmatprep.subr.mxu0 0.0
    %5265 = vmatpush1.msra.mxu0 0.0
    %5266 = vmatprep.subr.mxu0 0.0
    %5267 = vmatpush1.msra.mxu0 0.0
    %5268 = vmatprep.subr.mxu0 0.0
    %5269 = vmatpush1.msra.mxu0 0.0
    %5270 = vmatprep.subr.mxu0 0.0
    %5271 = vmatpush1.msra.mxu0 0.0
    %5272 = vmatprep.subr.mxu0 0.0
    %5273 = vmatpush1.msra.mxu0 0.0
    %5274 = vmatprep.mubr.f32.mxu0 0.0
    %5275 = vmatmul.mubr.f32.gmra.mrb[0].mxu0 %v5192
    %v5276 = vpop.f32.mrb[0].mxu0
    %v5277 = vadd.f32 0.0, %v5276
    %v5278 = vpop.f32.mrb[0].mxu0
    %5279 = vmatprep.mubr.f32.mxu0 0.0
    %5280 = vmatmul.mubr.f32.gmra.mrb[0].mxu0 %v5193
    %v5281 = vpop.f32.mrb[0].mxu0
    %v5282 = vadd.f32 0.0, %v5281
    %v5283 = vpop.f32.mrb[0].mxu0
    %5284 = vdwg.mxu0
    %v5285 = vadd.f32 %v4110, %v5277
    %v5286 = vadd.f32 %v4111, %v5282
    %v5287 = vld [vmem:[#allocation9] sm:$0x1]
    %v5288 = vld [vmem:[#allocation10] sm:$0x1]
    %v5289 = vsel %vm448, %v5285, 0.0
    %5290 = vadd.xlane.f32.xlu0 %v5289
    %v5291 = vpop.xlane.xlu0 %5290
    %v5292 = vsel %vm448, %v5286, 0.0
    %5293 = vadd.xlane.f32.xlu0 %v5292
    %v5294 = vpop.xlane.xlu0 %5293
    %v5295 = vmul.f32 %v5291, %v2001
    %v5296 = vmul.f32 %v5294, %v2001
    %v5297 = vsub.f32 %v5285, %v5295
    %v5298 = vsub.f32 %v5286, %v5296
    %v5299 = vmul.f32 %v5297, %v5297
    %v5300 = vmul.f32 %v5298, %v5298
    %v5301 = vsel %vm448, %v5299, 0.0
    %5302 = vadd.xlane.f32.xlu0 %v5301
    %v5303 = vpop.xlane.xlu0 %5302
    %v5304 = vsel %vm448, %v5300, 0.0
    %5305 = vadd.xlane.f32.xlu0 %v5304
    %v5306 = vpop.xlane.xlu0 %5305
    %v5307 = vmul.f32 %v5303, %v2001
    %v5308 = vmul.f32 %v5306, %v2001
    %v5309 = vadd.f32 %v5307, 1e-05
    %v5310 = vadd.f32 %v5308, 1e-05
    %v5311 = vrsqrt.pop %v5309
    %v5312 = vrsqrt.pop %v5310
    %v5313 = vmul.f32 %v5297, %v5311
    %v5314 = vmul.f32 %v5298, %v5312
    %v5316 = vlaneseq
    %v5317 = vshrl.u32 %v5316, 7
    %v5318 = vsub.s32 0, %v5317
    %v5319 = vrot.slane %v5287, %v5318
    %v5321 = vmul.f32 %v5313, %v5319
    %v5322 = vmul.f32 %v5314, %v5319
    %v5324 = vlaneseq
    %v5325 = vshrl.u32 %v5324, 7
    %v5326 = vsub.s32 0, %v5325
    %v5327 = vrot.slane %v5288, %v5326
    %v5329 = vadd.f32 %v5321, %v5327
    %v5330 = vadd.f32 %v5322, %v5327
    %v5331 = vld [vmem:[%s71] sm:$0xff]
    %v5332 = vld [vmem:[%s71 + $0x8] sm:$0xff]
    %v5333 = vld [vmem:[%s71 + $0x10] sm:$0xff]
    %v5334 = vld [vmem:[%s71 + $0x18] sm:$0xff]
    %v5335 = vld [vmem:[#allocation4] sm:$0x1]
    %v5337 = vlaneseq
    %v5338 = vshrl.u32 %v5337, 7
    %v5339 = vsub.s32 0, %v5338
    %v5340 = vrot.slane %v5335, %v5339
    %v5343 = vsel %vm448, %v5329, 0
    %v5346 = vsel %vm448, %v5330, 0
    %5348 = vmatprep.subr.mxu0 0.0
    %5349 = vmatpush1.msra.mxu0 %v5331
    %5350 = vmatprep.subr.mxu0 0.0
    %5351 = vmatpush1.msra.mxu0 %v5332
    %5352 = vmatprep.subr.mxu0 0.0
    %5353 = vmatpush1.msra.mxu0 %v5333
    %5354 = vmatprep.subr.mxu0 0.0
    %5355 = vmatpush1.msra.mxu0 %v5334
    %5356 = vmatprep.subr.mxu0 0.0
    %5357 = vmatpush1.msra.mxu0 0.0
    %5358 = vmatprep.subr.mxu0 0.0
    %5359 = vmatpush1.msra.mxu0 0.0
    %5360 = vmatprep.subr.mxu0 0.0
    %5361 = vmatpush1.msra.mxu0 0.0
    %5362 = vmatprep.subr.mxu0 0.0
    %5363 = vmatpush1.msra.mxu0 0.0
    %5364 = vmatprep.subr.mxu0 0.0
    %5365 = vmatpush1.msra.mxu0 0.0
    %5366 = vmatprep.subr.mxu0 0.0
    %5367 = vmatpush1.msra.mxu0 0.0
    %5368 = vmatprep.subr.mxu0 0.0
    %5369 = vmatpush1.msra.mxu0 0.0
    %5370 = vmatprep.subr.mxu0 0.0
    %5371 = vmatpush1.msra.mxu0 0.0
    %5372 = vmatprep.subr.mxu0 0.0
    %5373 = vmatpush1.msra.mxu0 0.0
    %5374 = vmatprep.subr.mxu0 0.0
    %5375 = vmatpush1.msra.mxu0 0.0
    %5376 = vmatprep.subr.mxu0 0.0
    %5377 = vmatpush1.msra.mxu0 0.0
    %5378 = vmatprep.subr.mxu0 0.0
    %5379 = vmatpush1.msra.mxu0 0.0
    %5380 = vmatprep.subr.mxu0 0.0
    %5381 = vmatpush1.msra.mxu0 0.0
    %5382 = vmatprep.subr.mxu0 0.0
    %5383 = vmatpush1.msra.mxu0 0.0
    %5384 = vmatprep.subr.mxu0 0.0
    %5385 = vmatpush1.msra.mxu0 0.0
    %5386 = vmatprep.subr.mxu0 0.0
    %5387 = vmatpush1.msra.mxu0 0.0
    %5388 = vmatprep.subr.mxu0 0.0
    %5389 = vmatpush1.msra.mxu0 0.0
    %5390 = vmatprep.subr.mxu0 0.0
    %5391 = vmatpush1.msra.mxu0 0.0
    %5392 = vmatprep.subr.mxu0 0.0
    %5393 = vmatpush1.msra.mxu0 0.0
    %5394 = vmatprep.subr.mxu0 0.0
    %5395 = vmatpush1.msra.mxu0 0.0
    %5396 = vmatprep.subr.mxu0 0.0
    %5397 = vmatpush1.msra.mxu0 0.0
    %5398 = vmatprep.subr.mxu0 0.0
    %5399 = vmatpush1.msra.mxu0 0.0
    %5400 = vmatprep.subr.mxu0 0.0
    %5401 = vmatpush1.msra.mxu0 0.0
    %5402 = vmatprep.subr.mxu0 0.0
    %5403 = vmatpush1.msra.mxu0 0.0
    %5404 = vmatprep.subr.mxu0 0.0
    %5405 = vmatpush1.msra.mxu0 0.0
    %5406 = vmatprep.subr.mxu0 0.0
    %5407 = vmatpush1.msra.mxu0 0.0
    %5408 = vmatprep.subr.mxu0 0.0
    %5409 = vmatpush1.msra.mxu0 0.0
    %5410 = vmatprep.subr.mxu0 0.0
    %5411 = vmatpush1.msra.mxu0 0.0
    %5412 = vmatprep.mubr.f32.mxu0 0.0
    %5413 = vmatmul.mubr.f32.gmra.mrb[0].mxu0 %v5343
    %v5414 = vpop.f32.mrb[0].mxu0
    %v5415 = vadd.f32 %v5340, %v5414
    %v5416 = vpop.f32.mrb[0].mxu0
    %5417 = vmatprep.mubr.f32.mxu0 0.0
    %5418 = vmatmul.mubr.f32.gmra.mrb[0].mxu0 %v5346
    %v5419 = vpop.f32.mrb[0].mxu0
    %v5420 = vadd.f32 %v5340, %v5419
    %v5421 = vpop.f32.mrb[0].mxu0
    %5422 = vdwg.mxu0
    %v5423 = vmax.f32 %v5415, 0.0
    %v5424 = vmax.f32 %v5420, 0.0
    %v5425 = vld [vmem:[%s75] sm:$0xff]
    %v5426 = vld [vmem:[%s75 + $0x8] sm:$0xff]
    %v5427 = vld [vmem:[%s75 + $0x10] sm:$0xff]
    %v5428 = vld [vmem:[%s75 + $0x18] sm:$0xff]
    %v5429 = vld [vmem:[#allocation7] sm:$0x1]
    %v5431 = vlaneseq
    %v5432 = vshrl.u32 %v5431, 7
    %v5433 = vsub.s32 0, %v5432
    %v5434 = vrot.slane %v5429, %v5433
    %v5437 = vsel %vm448, %v5423, 0
    %v5440 = vsel %vm448, %v5424, 0
    %5442 = vmatprep.subr.mxu0 0.0
    %5443 = vmatpush1.msra.mxu0 %v5425
    %5444 = vmatprep.subr.mxu0 0.0
    %5445 = vmatpush1.msra.mxu0 %v5426
    %5446 = vmatprep.subr.mxu0 0.0
    %5447 = vmatpush1.msra.mxu0 %v5427
    %5448 = vmatprep.subr.mxu0 0.0
    %5449 = vmatpush1.msra.mxu0 %v5428
    %5450 = vmatprep.subr.mxu0 0.0
    %5451 = vmatpush1.msra.mxu0 0.0
    %5452 = vmatprep.subr.mxu0 0.0
    %5453 = vmatpush1.msra.mxu0 0.0
    %5454 = vmatprep.subr.mxu0 0.0
    %5455 = vmatpush1.msra.mxu0 0.0
    %5456 = vmatprep.subr.mxu0 0.0
    %5457 = vmatpush1.msra.mxu0 0.0
    %5458 = vmatprep.subr.mxu0 0.0
    %5459 = vmatpush1.msra.mxu0 0.0
    %5460 = vmatprep.subr.mxu0 0.0
    %5461 = vmatpush1.msra.mxu0 0.0
    %5462 = vmatprep.subr.mxu0 0.0
    %5463 = vmatpush1.msra.mxu0 0.0
    %5464 = vmatprep.subr.mxu0 0.0
    %5465 = vmatpush1.msra.mxu0 0.0
    %5466 = vmatprep.subr.mxu0 0.0
    %5467 = vmatpush1.msra.mxu0 0.0
    %5468 = vmatprep.subr.mxu0 0.0
    %5469 = vmatpush1.msra.mxu0 0.0
    %5470 = vmatprep.subr.mxu0 0.0
    %5471 = vmatpush1.msra.mxu0 0.0
    %5472 = vmatprep.subr.mxu0 0.0
    %5473 = vmatpush1.msra.mxu0 0.0
    %5474 = vmatprep.subr.mxu0 0.0
    %5475 = vmatpush1.msra.mxu0 0.0
    %5476 = vmatprep.subr.mxu0 0.0
    %5477 = vmatpush1.msra.mxu0 0.0
    %5478 = vmatprep.subr.mxu0 0.0
    %5479 = vmatpush1.msra.mxu0 0.0
    %5480 = vmatprep.subr.mxu0 0.0
    %5481 = vmatpush1.msra.mxu0 0.0
    %5482 = vmatprep.subr.mxu0 0.0
    %5483 = vmatpush1.msra.mxu0 0.0
    %5484 = vmatprep.subr.mxu0 0.0
    %5485 = vmatpush1.msra.mxu0 0.0
    %5486 = vmatprep.subr.mxu0 0.0
    %5487 = vmatpush1.msra.mxu0 0.0
    %5488 = vmatprep.subr.mxu0 0.0
    %5489 = vmatpush1.msra.mxu0 0.0
    %5490 = vmatprep.subr.mxu0 0.0
    %5491 = vmatpush1.msra.mxu0 0.0
    %5492 = vmatprep.subr.mxu0 0.0
    %5493 = vmatpush1.msra.mxu0 0.0
    %5494 = vmatprep.subr.mxu0 0.0
    %5495 = vmatpush1.msra.mxu0 0.0
    %5496 = vmatprep.subr.mxu0 0.0
    %5497 = vmatpush1.msra.mxu0 0.0
    %5498 = vmatprep.subr.mxu0 0.0
    %5499 = vmatpush1.msra.mxu0 0.0
    %5500 = vmatprep.subr.mxu0 0.0
    %5501 = vmatpush1.msra.mxu0 0.0
    %5502 = vmatprep.subr.mxu0 0.0
    %5503 = vmatpush1.msra.mxu0 0.0
    %5504 = vmatprep.subr.mxu0 0.0
    %5505 = vmatpush1.msra.mxu0 0.0
    %5506 = vmatprep.mubr.f32.mxu0 0.0
    %5507 = vmatmul.mubr.f32.gmra.mrb[0].mxu0 %v5437
    %v5508 = vpop.f32.mrb[0].mxu0
    %v5509 = vadd.f32 %v5434, %v5508
    %v5510 = vpop.f32.mrb[0].mxu0
    %5511 = vmatprep.mubr.f32.mxu0 0.0
    %5512 = vmatmul.mubr.f32.gmra.mrb[0].mxu0 %v5440
    %v5513 = vpop.f32.mrb[0].mxu0
    %v5514 = vadd.f32 %v5434, %v5513
    %v5515 = vpop.f32.mrb[0].mxu0
    %5516 = vdwg.mxu0
    %v5517 = vadd.f32 %v5329, %v5509
    %v5518 = vadd.f32 %v5330, %v5514
    %v5519 = vld [vmem:[#allocation12] sm:$0x1]
    %v5520 = vld [vmem:[#allocation13] sm:$0x1]
    %v5521 = vsel %vm448, %v5517, 0.0
    %5522 = vadd.xlane.f32.xlu0 %v5521
    %v5523 = vpop.xlane.xlu0 %5522
    %v5524 = vsel %vm448, %v5518, 0.0
    %5525 = vadd.xlane.f32.xlu0 %v5524
    %v5526 = vpop.xlane.xlu0 %5525
    %v5527 = vmul.f32 %v5523, %v2001
    %v5528 = vmul.f32 %v5526, %v2001
    %v5529 = vsub.f32 %v5517, %v5527
    %v5530 = vsub.f32 %v5518, %v5528
    %v5531 = vmul.f32 %v5529, %v5529
    %v5532 = vmul.f32 %v5530, %v5530
    %v5533 = vsel %vm448, %v5531, 0.0
    %5534 = vadd.xlane.f32.xlu0 %v5533
    %v5535 = vpop.xlane.xlu0 %5534
    %v5536 = vsel %vm448, %v5532, 0.0
    %5537 = vadd.xlane.f32.xlu0 %v5536
    %v5538 = vpop.xlane.xlu0 %5537
    %v5539 = vmul.f32 %v5535, %v2001
    %v5540 = vmul.f32 %v5538, %v2001
    %v5541 = vadd.f32 %v5539, 1e-05
    %v5542 = vadd.f32 %v5540, 1e-05
    %v5543 = vrsqrt.pop %v5541
    %v5544 = vrsqrt.pop %v5542
    %v5545 = vmul.f32 %v5529, %v5543
    %v5546 = vmul.f32 %v5530, %v5544
    %v5548 = vlaneseq
    %v5549 = vshrl.u32 %v5548, 7
    %v5550 = vsub.s32 0, %v5549
    %v5551 = vrot.slane %v5519, %v5550
    %v5553 = vmul.f32 %v5545, %v5551
    %v5554 = vmul.f32 %v5546, %v5551
    %v5556 = vlaneseq
    %v5557 = vshrl.u32 %v5556, 7
    %v5558 = vsub.s32 0, %v5557
    %v5559 = vrot.slane %v5520, %v5558
    %v5561 = vadd.f32 %v5553, %v5559
    %v5562 = vadd.f32 %v5554, %v5559
    %v5564 = vrot.slane %v5561, 4
    %5565 = vrot.lane.b32.xlu0 %v5564, 32
    %v5566 = vpop.permute.xlu0 %5565
    %5569 = vrot.lane.b32.xlu0 %v5562, 64
    %v5570 = vpop.permute.xlu0 %5569
    %v5572 = vrot.slane %v5562, 4
    %5573 = vrot.lane.b32.xlu0 %v5572, 96
    %v5574 = vpop.permute.xlu0 %5573
    %v5576 = vsel %vm448, %v5561, %v5566
    %v5577 = vsel %vm1872, %v5576, %v5570
    %v5578 = vsel %vm1877, %v5577, %v5574
    %v5579 = vld [vmem:[%s87] sm:$0xff]
    %v5580 = vld [vmem:[%s87 + $0x8] sm:$0xff]
    %v5581 = vld [vmem:[%s87 + $0x10] sm:$0xff]
    %v5582 = vld [vmem:[%s87 + $0x18] sm:$0xff]
    %v5583 = vld [vmem:[%s87 + $0x20] sm:$0xff]
    %v5584 = vld [vmem:[%s87 + $0x28] sm:$0xff]
    %v5585 = vld [vmem:[%s87 + $0x30] sm:$0xff]
    %v5586 = vld [vmem:[%s87 + $0x38] sm:$0xff]
    %v5587 = vld [vmem:[%s87 + $0x40] sm:$0xff]
    %v5588 = vld [vmem:[%s87 + $0x48] sm:$0xff]
    %v5589 = vld [vmem:[%s87 + $0x50] sm:$0xff]
    %v5590 = vld [vmem:[%s87 + $0x58] sm:$0xff]
    %v5591 = vld [vmem:[%s87 + $0x60] sm:$0xff]
    %v5592 = vld [vmem:[%s87 + $0x68] sm:$0xff]
    %v5593 = vld [vmem:[%s87 + $0x70] sm:$0xff]
    %v5594 = vld [vmem:[%s87 + $0x78] sm:$0xff]
    %v5595 = vld [vmem:[#allocation15] sm:$0x1]
    %v5597 = vlaneseq
    %v5598 = vshrl.u32 %v5597, 7
    %v5599 = vsub.s32 0, %v5598
    %v5600 = vrot.slane %v5595, %v5599
    %5602 = vmatprep.subr.mxu0 0.0
    %5603 = vmatpush1.msra.mxu0 %v5579
    %5604 = vmatprep.subr.mxu0 0.0
    %5605 = vmatpush1.msra.mxu0 %v5580
    %5606 = vmatprep.subr.mxu0 0.0
    %5607 = vmatpush1.msra.mxu0 %v5581
    %5608 = vmatprep.subr.mxu0 0.0
    %5609 = vmatpush1.msra.mxu0 %v5582
    %5610 = vmatprep.subr.mxu0 0.0
    %5611 = vmatpush1.msra.mxu0 %v5583
    %5612 = vmatprep.subr.mxu0 0.0
    %5613 = vmatpush1.msra.mxu0 %v5584
    %5614 = vmatprep.subr.mxu0 0.0
    %5615 = vmatpush1.msra.mxu0 %v5585
    %5616 = vmatprep.subr.mxu0 0.0
    %5617 = vmatpush1.msra.mxu0 %v5586
    %5618 = vmatprep.subr.mxu0 0.0
    %5619 = vmatpush1.msra.mxu0 %v5587
    %5620 = vmatprep.subr.mxu0 0.0
    %5621 = vmatpush1.msra.mxu0 %v5588
    %5622 = vmatprep.subr.mxu0 0.0
    %5623 = vmatpush1.msra.mxu0 %v5589
    %5624 = vmatprep.subr.mxu0 0.0
    %5625 = vmatpush1.msra.mxu0 %v5590
    %5626 = vmatprep.subr.mxu0 0.0
    %5627 = vmatpush1.msra.mxu0 %v5591
    %5628 = vmatprep.subr.mxu0 0.0
    %5629 = vmatpush1.msra.mxu0 %v5592
    %5630 = vmatprep.subr.mxu0 0.0
    %5631 = vmatpush1.msra.mxu0 %v5593
    %5632 = vmatprep.subr.mxu0 0.0
    %5633 = vmatpush1.msra.mxu0 %v5594
    %5634 = vmatprep.subr.mxu0 0.0
    %5635 = vmatpush1.msra.mxu0 0.0
    %5636 = vmatprep.subr.mxu0 0.0
    %5637 = vmatpush1.msra.mxu0 0.0
    %5638 = vmatprep.subr.mxu0 0.0
    %5639 = vmatpush1.msra.mxu0 0.0
    %5640 = vmatprep.subr.mxu0 0.0
    %5641 = vmatpush1.msra.mxu0 0.0
    %5642 = vmatprep.subr.mxu0 0.0
    %5643 = vmatpush1.msra.mxu0 0.0
    %5644 = vmatprep.subr.mxu0 0.0
    %5645 = vmatpush1.msra.mxu0 0.0
    %5646 = vmatprep.subr.mxu0 0.0
    %5647 = vmatpush1.msra.mxu0 0.0
    %5648 = vmatprep.subr.mxu0 0.0
    %5649 = vmatpush1.msra.mxu0 0.0
    %5650 = vmatprep.subr.mxu0 0.0
    %5651 = vmatpush1.msra.mxu0 0.0
    %5652 = vmatprep.subr.mxu0 0.0
    %5653 = vmatpush1.msra.mxu0 0.0
    %5654 = vmatprep.subr.mxu0 0.0
    %5655 = vmatpush1.msra.mxu0 0.0
    %5656 = vmatprep.subr.mxu0 0.0
    %5657 = vmatpush1.msra.mxu0 0.0
    %5658 = vmatprep.subr.mxu0 0.0
    %5659 = vmatpush1.msra.mxu0 0.0
    %5660 = vmatprep.subr.mxu0 0.0
    %5661 = vmatpush1.msra.mxu0 0.0
    %5662 = vmatprep.subr.mxu0 0.0
    %5663 = vmatpush1.msra.mxu0 0.0
    %5664 = vmatprep.subr.mxu0 0.0
    %5665 = vmatpush1.msra.mxu0 0.0
    %5666 = vmatprep.mubr.f32.mxu0 0.0
    %5667 = vmatmul.mubr.f32.gmra.mrb[0].mxu0 %v5578
    %v5668 = vpop.f32.mrb[0].mxu0
    %v5669 = vadd.f32 %v5600, %v5668
    %v5670 = vpop.f32.mrb[0].mxu0
    %5671 = vdwg.mxu0
    %v5672 = vld [vmem:[%s91] sm:$0xff]
    %v5673 = vld [vmem:[%s91 + $0x8] sm:$0xff]
    %v5674 = vld [vmem:[%s91 + $0x10] sm:$0xff]
    %v5675 = vld [vmem:[%s91 + $0x18] sm:$0xff]
    %v5676 = vld [vmem:[#allocation16] sm:$0x1]
    %v5678 = vlaneseq
    %v5679 = vshrl.u32 %v5678, 7
    %v5680 = vsub.s32 0, %v5679
    %v5681 = vrot.slane %v5676, %v5680
    %v5684 = vsel %vm448, %v5669, 0
    %5686 = vmatprep.subr.mxu0 0.0
    %5687 = vmatpush1.msra.mxu0 %v5672
    %5688 = vmatprep.subr.mxu0 0.0
    %5689 = vmatpush1.msra.mxu0 %v5673
    %5690 = vmatprep.subr.mxu0 0.0
    %5691 = vmatpush1.msra.mxu0 %v5674
    %5692 = vmatprep.subr.mxu0 0.0
    %5693 = vmatpush1.msra.mxu0 %v5675
    %5694 = vmatprep.subr.mxu0 0.0
    %5695 = vmatpush1.msra.mxu0 0.0
    %5696 = vmatprep.subr.mxu0 0.0
    %5697 = vmatpush1.msra.mxu0 0.0
    %5698 = vmatprep.subr.mxu0 0.0
    %5699 = vmatpush1.msra.mxu0 0.0
    %5700 = vmatprep.subr.mxu0 0.0
    %5701 = vmatpush1.msra.mxu0 0.0
    %5702 = vmatprep.subr.mxu0 0.0
    %5703 = vmatpush1.msra.mxu0 0.0
    %5704 = vmatprep.subr.mxu0 0.0
    %5705 = vmatpush1.msra.mxu0 0.0
    %5706 = vmatprep.subr.mxu0 0.0
    %5707 = vmatpush1.msra.mxu0 0.0
    %5708 = vmatprep.subr.mxu0 0.0
    %5709 = vmatpush1.msra.mxu0 0.0
    %5710 = vmatprep.subr.mxu0 0.0
    %5711 = vmatpush1.msra.mxu0 0.0
    %5712 = vmatprep.subr.mxu0 0.0
    %5713 = vmatpush1.msra.mxu0 0.0
    %5714 = vmatprep.subr.mxu0 0.0
    %5715 = vmatpush1.msra.mxu0 0.0
    %5716 = vmatprep.subr.mxu0 0.0
    %5717 = vmatpush1.msra.mxu0 0.0
    %5718 = vmatprep.subr.mxu0 0.0
    %5719 = vmatpush1.msra.mxu0 0.0
    %5720 = vmatprep.subr.mxu0 0.0
    %5721 = vmatpush1.msra.mxu0 0.0
    %5722 = vmatprep.subr.mxu0 0.0
    %5723 = vmatpush1.msra.mxu0 0.0
    %5724 = vmatprep.subr.mxu0 0.0
    %5725 = vmatpush1.msra.mxu0 0.0
    %5726 = vmatprep.subr.mxu0 0.0
    %5727 = vmatpush1.msra.mxu0 0.0
    %5728 = vmatprep.subr.mxu0 0.0
    %5729 = vmatpush1.msra.mxu0 0.0
    %5730 = vmatprep.subr.mxu0 0.0
    %5731 = vmatpush1.msra.mxu0 0.0
    %5732 = vmatprep.subr.mxu0 0.0
    %5733 = vmatpush1.msra.mxu0 0.0
    %5734 = vmatprep.subr.mxu0 0.0
    %5735 = vmatpush1.msra.mxu0 0.0
    %5736 = vmatprep.subr.mxu0 0.0
    %5737 = vmatpush1.msra.mxu0 0.0
    %5738 = vmatprep.subr.mxu0 0.0
    %5739 = vmatpush1.msra.mxu0 0.0
    %5740 = vmatprep.subr.mxu0 0.0
    %5741 = vmatpush1.msra.mxu0 0.0
    %5742 = vmatprep.subr.mxu0 0.0
    %5743 = vmatpush1.msra.mxu0 0.0
    %5744 = vmatprep.subr.mxu0 0.0
    %5745 = vmatpush1.msra.mxu0 0.0
    %5746 = vmatprep.subr.mxu0 0.0
    %5747 = vmatpush1.msra.mxu0 0.0
    %5748 = vmatprep.subr.mxu0 0.0
    %5749 = vmatpush1.msra.mxu0 0.0
    %5750 = vmatprep.mubr.f32.mxu0 0.0
    %5751 = vmatmul.mubr.f32.gmra.mrb[0].mxu0 %v5684
    %v5752 = vpop.f32.mrb[0].mxu0
    %v5753 = vadd.f32 %v5681, %v5752
    %v5754 = vpop.f32.mrb[0].mxu0
    %5755 = vdwg.mxu0
    %v5756 = vmax.f32 %v5753, 0.0
    %v5757 = vld [vmem:[%s95] sm:$0xff]
    %v5758 = vld [vmem:[%s95 + $0x8] sm:$0xff]
    %v5759 = vld [vmem:[%s95 + $0x10] sm:$0xff]
    %v5760 = vld [vmem:[%s95 + $0x18] sm:$0xff]
    %v5761 = vld [vmem:[%s97] sm:$0x1]
    %v5763 = vlaneseq
    %v5764 = vshrl.u32 %v5763, 7
    %v5765 = vsub.s32 0, %v5764
    %v5766 = vrot.slane %v5761, %v5765
    %v5769 = vsel %vm448, %v5756, 0
    %5771 = vmatprep.subr.mxu0 0.0
    %5772 = vmatpush1.msra.mxu0 %v5757
    %5773 = vmatprep.subr.mxu0 0.0
    %5774 = vmatpush1.msra.mxu0 %v5758
    %5775 = vmatprep.subr.mxu0 0.0
    %5776 = vmatpush1.msra.mxu0 %v5759
    %5777 = vmatprep.subr.mxu0 0.0
    %5778 = vmatpush1.msra.mxu0 %v5760
    %5779 = vmatprep.subr.mxu0 0.0
    %5780 = vmatpush1.msra.mxu0 0.0
    %5781 = vmatprep.subr.mxu0 0.0
    %5782 = vmatpush1.msra.mxu0 0.0
    %5783 = vmatprep.subr.mxu0 0.0
    %5784 = vmatpush1.msra.mxu0 0.0
    %5785 = vmatprep.subr.mxu0 0.0
    %5786 = vmatpush1.msra.mxu0 0.0
    %5787 = vmatprep.subr.mxu0 0.0
    %5788 = vmatpush1.msra.mxu0 0.0
    %5789 = vmatprep.subr.mxu0 0.0
    %5790 = vmatpush1.msra.mxu0 0.0
    %5791 = vmatprep.subr.mxu0 0.0
    %5792 = vmatpush1.msra.mxu0 0.0
    %5793 = vmatprep.subr.mxu0 0.0
    %5794 = vmatpush1.msra.mxu0 0.0
    %5795 = vmatprep.subr.mxu0 0.0
    %5796 = vmatpush1.msra.mxu0 0.0
    %5797 = vmatprep.subr.mxu0 0.0
    %5798 = vmatpush1.msra.mxu0 0.0
    %5799 = vmatprep.subr.mxu0 0.0
    %5800 = vmatpush1.msra.mxu0 0.0
    %5801 = vmatprep.subr.mxu0 0.0
    %5802 = vmatpush1.msra.mxu0 0.0
    %5803 = vmatprep.subr.mxu0 0.0
    %5804 = vmatpush1.msra.mxu0 0.0
    %5805 = vmatprep.subr.mxu0 0.0
    %5806 = vmatpush1.msra.mxu0 0.0
    %5807 = vmatprep.subr.mxu0 0.0
    %5808 = vmatpush1.msra.mxu0 0.0
    %5809 = vmatprep.subr.mxu0 0.0
    %5810 = vmatpush1.msra.mxu0 0.0
    %5811 = vmatprep.subr.mxu0 0.0
    %5812 = vmatpush1.msra.mxu0 0.0
    %5813 = vmatprep.subr.mxu0 0.0
    %5814 = vmatpush1.msra.mxu0 0.0
    %5815 = vmatprep.subr.mxu0 0.0
    %5816 = vmatpush1.msra.mxu0 0.0
    %5817 = vmatprep.subr.mxu0 0.0
    %5818 = vmatpush1.msra.mxu0 0.0
    %5819 = vmatprep.subr.mxu0 0.0
    %5820 = vmatpush1.msra.mxu0 0.0
    %5821 = vmatprep.subr.mxu0 0.0
    %5822 = vmatpush1.msra.mxu0 0.0
    %5823 = vmatprep.subr.mxu0 0.0
    %5824 = vmatpush1.msra.mxu0 0.0
    %5825 = vmatprep.subr.mxu0 0.0
    %5826 = vmatpush1.msra.mxu0 0.0
    %5827 = vmatprep.subr.mxu0 0.0
    %5828 = vmatpush1.msra.mxu0 0.0
    %5829 = vmatprep.subr.mxu0 0.0
    %5830 = vmatpush1.msra.mxu0 0.0
    %5831 = vmatprep.subr.mxu0 0.0
    %5832 = vmatpush1.msra.mxu0 0.0
    %5833 = vmatprep.subr.mxu0 0.0
    %5834 = vmatpush1.msra.mxu0 0.0
    %5835 = vmatprep.mubr.f32.mxu0 0.0
    %5836 = vmatmul.mubr.f32.gmra.mrb[0].mxu0 %v5769
    %v5837 = vpop.f32.mrb[0].mxu0
    %v5838 = vadd.f32 %v5766, %v5837
    %v5839 = vpop.f32.mrb[0].mxu0
    %5840 = vdwg.mxu0
    %5841 = vst [vmem:[#allocation18] sm:$0xf] %v5838
    // Predicated region
    $region226: #{set_transformer_forward.1} parent=1 // pred_check
      _
    $region227: #{set_transformer_forward.1} parent=1 // pred_check_branch
      %5843 = sbr.rel (0) target = $region229
    $region228: #{set_transformer_forward.1} parent=1 // pred_region
      %s5845 = ssub.s32 64, 64
      %5846 = vsyncadd [#allocation6], %s5845
      %s5848 = sshll.u32 [#allocation18], 4
      %s5849 = int_to_ptr.vmem [resolvable:$true] %s5848
      %5851 = dma.vmem_to_hbm [thread:$0]  %s5849, 64, %s99, [#allocation6]
    $region229: #{set_transformer_forward.1} parent=1 // pred_fallthru
      _
    // Predicated region
    $region230: #{set_transformer_forward.1} parent=1 // pred_check
      _
    $region231: #{set_transformer_forward.1} parent=1 // pred_check_branch
      %5853 = sbr.rel (0) target = $region233
    $region232: #{set_transformer_forward.1} parent=1 // pred_region
      %5854 = dma.done [#allocation6], 64
    $region233: #{set_transformer_forward.1} parent=1 // pred_fallthru
      _
    %5855 = vsyncpa [#allocation5], 1
    %5856 = vsyncpa [#allocation8], 1
    %5857 = vsyncpa [#allocation11], 1
    %5858 = vsyncpa [#allocation14], 1
    %5859 = vsyncpa [#allocation17], 1
    %5860 = vsyncpa [#allocation6], 1

</llo_original>
